<compile_context>
chip_gen: v5e
topology: v5e:2x2
jax: 0.10.0
libtpu: 0.0.40
codegen_flags: <defaults>
</compile_context>

<pallas_src>
import functools

import jax
import jax.numpy as jnp
from jax.experimental import pallas as pl
from jax.experimental.pallas import tpu as pltpu

EPS = 1e-5
CPAD = 128                      # output-channel lanes padded to 128 (lane-dense stores)
STAT_ROWS = 8                   # per-tile BN partial stats padded to 8 sublanes
VMEM_LIMIT = 32 * 1024 * 1024   # fits scoped budgets on v5e/v6e/v7x


def _round_up(x, m):
    return (x + m - 1) // m * m


def _pick_tm(M, cap=128):
    """Row-tile size: <= cap, multiple of 8, and >= 2 grid steps when possible so both
    v7x TensorCores get work on the 'parallel' axis."""
    tm = min(cap, _round_up(M, 8))
    if _round_up(M, tm) // tm < 2 and tm >= 16 and tm % 16 == 0:
        tm //= 2
    return tm


# ======================================================= conv matmul (single K step)
def _conv_mm_kernel(*refs, has_res, emit_stats):
    if has_res:
        a_ref, b_ref, r_ref = refs[:3]
        rest = refs[3:]
    else:
        a_ref, b_ref = refs[:2]
        r_ref = None
        rest = refs[2:]
    if emit_stats:
        o_ref, s_ref, q_ref = rest
    else:
        (o_ref,) = rest

    out = jnp.dot(a_ref[...], b_ref[...], preferred_element_type=jnp.float32)
    if has_res:
        out = out + r_ref[...].astype(jnp.float32)
    o_ref[...] = out.astype(o_ref.dtype)

    if emit_stats:
        # per-tile partial BN stats, written into row 0 of an 8-sublane block so the
        # stats output stays (8,128)-aligned and the grid axis stays "parallel".
        row = jax.lax.broadcasted_iota(jnp.int32, (STAT_ROWS, out.shape[1]), 0)
        s_ref[...] = jnp.where(row == 0, jnp.sum(out, axis=0, keepdims=True), 0.0)
        q_ref[...] = jnp.where(row == 0, jnp.sum(out * out, axis=0, keepdims=True), 0.0)


def pallas_conv_mm(a, b, residual=None, emit_stats=True):
    """a: (M, Kp) bf16 im2col patches; b: (Kp, CPAD) bf16 matmul-ready weights.
    Optional fused residual add (bf16) and per-tile BN partial stats from the epilogue.
    Every conv in this net has Kp <= 640, so one K step always fits VMEM and the f32
    accumulator scratch + pl.when init/flush of a K-tiled matmul is skipped."""
    M, K = a.shape
    Kb, N = b.shape
    assert Kb == K and N == CPAD and K % 128 == 0 and K <= 2048

    tm = _pick_tm(M)
    Mp = _round_up(M, tm)
    nt = Mp // tm
    if Mp != M:
        a = jnp.pad(a, ((0, Mp - M), (0, 0)))

    has_res = residual is not None
    inputs = [a, b]
    in_specs = [pl.BlockSpec((tm, K), lambda i: (i, 0)),
                pl.BlockSpec((K, CPAD), lambda i: (0, 0))]
    if has_res:
        r = residual
        if Mp != M:
            r = jnp.pad(r, ((0, Mp - M), (0, 0)))
        inputs.append(r)
        in_specs.append(pl.BlockSpec((tm, CPAD), lambda i: (i, 0)))

    out_shapes = [jax.ShapeDtypeStruct((Mp, CPAD), jnp.bfloat16)]
    out_specs = [pl.BlockSpec((tm, CPAD), lambda i: (i, 0))]
    if emit_stats:
        out_shapes += [jax.ShapeDtypeStruct((nt * STAT_ROWS, CPAD), jnp.float32)] * 2
        out_specs += [pl.BlockSpec((STAT_ROWS, CPAD), lambda i: (i, 0))] * 2

    res = pl.pallas_call(
        functools.partial(_conv_mm_kernel, has_res=has_res, emit_stats=emit_stats),
        out_shape=tuple(out_shapes) if emit_stats else out_shapes[0],
        grid_spec=pltpu.PrefetchScalarGridSpec(
            num_scalar_prefetch=0,
            grid=(nt,),
            in_specs=in_specs,
            out_specs=tuple(out_specs) if emit_stats else out_specs[0]),
        compiler_params=pltpu.CompilerParams(
            dimension_semantics=("parallel",),
            vmem_limit_bytes=VMEM_LIMIT),
        cost_estimate=pl.CostEstimate(
            flops=2 * Mp * CPAD * K, transcendentals=0,
            bytes_accessed=(Mp * K + K * CPAD + Mp * CPAD) * 2),
    )(*inputs)

    if emit_stats:
        out, s, q = res
    else:
        out = res
    if Mp != M:
        out = out[:M]
    return (out, s, q) if emit_stats else out


# =============================================== BN (batch stats) + ReLU, bf16 output
def _bn_relu_kernel(x_ref, s_ref, q_ref, g_ref, b_ref, o_ref, *, count):
    # reduce the (tiny) per-tile partial stats, fold rsqrt + scale/shift + ReLU
    s = jnp.sum(s_ref[...], axis=0, keepdims=True)
    q = jnp.sum(q_ref[...], axis=0, keepdims=True)
    inv = 1.0 / count
    mean = s * inv
    var = jnp.maximum(q * inv - mean * mean, 0.0)
    scale = g_ref[...] * jax.lax.rsqrt(var + EPS)
    shift = b_ref[...] - mean * scale
    y = jnp.maximum(x_ref[...].astype(jnp.float32) * scale + shift, 0.0)
    o_ref[...] = y.astype(o_ref.dtype)


def pallas_bn_relu(x2d, s, q, gamma, beta, count):
    """Training-mode BatchNorm using the (sum, sum_sq) partials emitted by the producing
    conv's epilogue, fused with ReLU; emits bf16 for the consuming conv."""
    M, C = x2d.shape
    tm = _pick_tm(M, cap=256)
    Mp = _round_up(M, tm)
    xp = x2d if Mp == M else jnp.pad(x2d, ((0, Mp - M), (0, 0)))
    out = pl.pallas_call(
        functools.partial(_bn_relu_kernel, count=float(count)),
        out_shape=jax.ShapeDtypeStruct((Mp, C), jnp.bfloat16),
        grid_spec=pltpu.PrefetchScalarGridSpec(
            num_scalar_prefetch=0,
            grid=(Mp // tm,),
            in_specs=[pl.BlockSpec((tm, C), lambda i: (i, 0)),
                      pl.BlockSpec(s.shape, lambda i: (0, 0)),
                      pl.BlockSpec(q.shape, lambda i: (0, 0)),
                      pl.BlockSpec((1, C), lambda i: (0, 0)),
                      pl.BlockSpec((1, C), lambda i: (0, 0))],
            out_specs=pl.BlockSpec((tm, C), lambda i: (i, 0))),
        compiler_params=pltpu.CompilerParams(
            dimension_semantics=("parallel",),
            vmem_limit_bytes=VMEM_LIMIT),
    )(xp, s, q, gamma, beta)
    return out[:M] if Mp != M else out


# ========================================== fused head: BN + ReLU + avgpool(1) + FC
def _head_kernel(x_ref, s_ref, q_ref, g_ref, b_ref, w_ref, fb_ref, o_ref, *, count):
    s = jnp.sum(s_ref[...], axis=0, keepdims=True)
    q = jnp.sum(q_ref[...], axis=0, keepdims=True)
    inv = 1.0 / count
    mean = s * inv
    var = jnp.maximum(q * inv - mean * mean, 0.0)
    scale = g_ref[...] * jax.lax.rsqrt(var + EPS)                 # (1, C)
    shift = b_ref[...] - mean * scale                             # (1, C)
    x = x_ref[...].astype(jnp.float32)                            # (N, HW, C)
    y = jnp.maximum(x * scale.reshape(1, 1, -1) + shift.reshape(1, 1, -1), 0.0)
    pooled = jnp.mean(y, axis=1)                                  # (N, C) adaptive avgpool(1)
    o_ref[...] = (jnp.dot(pooled, w_ref[...], preferred_element_type=jnp.float32)
                  + fb_ref[...])


def pallas_head(x2d, s, q, gamma, beta, fc_w, fc_b, shape, num_classes):
    N, H, W = shape
    M = N * H * W
    x3 = x2d.reshape(N, H * W, CPAD)
    out = pl.pallas_call(
        functools.partial(_head_kernel, count=float(M)),
        out_shape=jax.ShapeDtypeStruct((N, CPAD), jnp.float32),
        grid_spec=pltpu.PrefetchScalarGridSpec(
            num_scalar_prefetch=0,
            grid=(1,),
            in_specs=[pl.BlockSpec((N, H * W, CPAD), lambda i: (0, 0, 0)),
                      pl.BlockSpec(s.shape, lambda i: (0, 0)),
                      pl.BlockSpec(q.shape, lambda i: (0, 0)),
                      pl.BlockSpec((1, CPAD), lambda i: (0, 0)),
                      pl.BlockSpec((1, CPAD), lambda i: (0, 0)),
                      pl.BlockSpec((CPAD, CPAD), lambda i: (0, 0)),
                      pl.BlockSpec((1, CPAD), lambda i: (0, 0))],
            out_specs=pl.BlockSpec((N, CPAD), lambda i: (0, 0))),
        compiler_params=pltpu.CompilerParams(
            dimension_semantics=("arbitrary",),
            vmem_limit_bytes=VMEM_LIMIT),
    )(x3, s, q, gamma, beta, fc_w, fc_b)
    return out[:, :num_classes]


# ============================================================= conv glue (im2col etc.)
def conv3x3(pre4d, w_mat, cin, stride, residual=None, emit_stats=True):
    """3x3 conv: im2col over the TRUE cin channels (glue) + fused MXU matmul.
    pre4d: (N,H,W,Cstore) bf16 NHWC, only channels [:cin] meaningful.
    w_mat: (Kp, CPAD) bf16 matmul-ready weights, Kp = round_up(9*cin, 128)."""
    N, H, W, _ = pre4d.shape
    KH = KW = 3
    pad = 1
    Ho = (H + 2 * pad - KH) // stride + 1
    Wo = (W + 2 * pad - KW) // stride + 1
    x = pre4d[..., :cin]
    xp = jnp.pad(x, ((0, 0), (pad, pad), (pad, pad), (0, 0)))
    cols = [xp[:, i:i + stride * Ho:stride, j:j + stride * Wo:stride, :]
            for i in range(KH) for j in range(KW)]
    patches = jnp.concatenate(cols, axis=-1).reshape(N * Ho * Wo, KH * KW * cin)
    Kp = w_mat.shape[0]
    if Kp != KH * KW * cin:
        patches = jnp.pad(patches, ((0, 0), (0, Kp - KH * KW * cin)))
    return pallas_conv_mm(patches, w_mat, residual=residual,
                          emit_stats=emit_stats), (Ho, Wo)


def conv1x1(pre4d, w_mat, stride):
    """1x1 shortcut conv (strided) on the lane-padded pre-activation; K = CPAD,
    padded weight rows/lanes are zero so padded channels contribute nothing."""
    x = pre4d[:, ::stride, ::stride, :]
    N, Ho, Wo, C = x.shape
    return pallas_conv_mm(x.reshape(N * Ho * Wo, C), w_mat, emit_stats=False)


# ------------------------------------------------------------------- parameter init
def _kaiming_conv_mat(key, kh, kw, cin, cout):
    """PyTorch kaiming_normal_ (fan_in) conv weight, stored matmul-ready:
    (round_up(kh*kw*cin, 128), CPAD) bf16, rows ordered to match the im2col patches."""
    fan_in = cin * kh * kw
    std = (2.0 / fan_in) ** 0.5
    w = jax.random.normal(key, (kh, kw, cin, cout), jnp.float32) * std
    wm = w.reshape(kh * kw * cin, cout)
    Kp = _round_up(kh * kw * cin, 128)
    wm = jnp.pad(wm, ((0, Kp - kh * kw * cin), (0, CPAD - cout)))
    return wm.astype(jnp.bfloat16)


def _bn_params(c):
    gamma = jnp.zeros((1, CPAD), jnp.float32).at[0, :c].set(1.0)   # pads stay 0 -> padded
    beta = jnp.zeros((1, CPAD), jnp.float32)                       # channels stay exactly 0
    return gamma, beta


def make_block_params(key, cin, cout, stride):
    ks = jax.random.split(key, 3)
    g1, b1 = _bn_params(cin)
    g2, b2 = _bn_params(cout)
    p = {"bn1_g": g1, "bn1_b": b1,
         "conv1_w": _kaiming_conv_mat(ks[0], 3, 3, cin, cout),
         "bn2_g": g2, "bn2_b": b2,
         "conv2_w": _kaiming_conv_mat(ks[1], 3, 3, cout, cout)}
    if stride != 1 or cin != cout:
        p["down_w"] = _kaiming_conv_mat(ks[2], 1, 1, cin, cout)
    return p


# static architecture: (planes, first_stride) for layer1/2/3
ARCH = ((16, 1), (32, 2), (64, 2))


def make_params(key, n_size=1, num_classes=10):
    keys = jax.random.split(key, 6)
    params = {"conv1_w": _kaiming_conv_mat(keys[0], 3, 3, 3, 16)}
    inplane = 16
    for li, (planes, stride0) in enumerate(ARCH, start=1):
        strides = [stride0] + [1] * (n_size - 1)
        blocks = []
        for bi, s in enumerate(strides):
            bk = jax.random.fold_in(keys[li], bi)
            blocks.append(make_block_params(bk, inplane, planes, s))
            inplane = planes
        params[f"layer{li}"] = blocks
    params["bn1_g"], params["bn1_b"] = _bn_params(inplane)   # PreActResNet's recreated bn1
    bound = 1.0 / (inplane ** 0.5)
    fcw = jax.random.uniform(keys[4], (inplane, num_classes), jnp.float32,
                             minval=-bound, maxval=bound)
    fcb = jax.random.uniform(keys[5], (num_classes,), jnp.float32,
                             minval=-bound, maxval=bound)
    params["fc_w"] = jnp.pad(fcw, ((0, CPAD - inplane), (0, CPAD - num_classes)))
    params["fc_b"] = jnp.pad(fcb, (0, CPAD - num_classes)).reshape(1, CPAD)
    return params


# -------------------------------------------------------------------------- forward
def preact_block(x2d, s, q, shape, p, stride, cin, cout):
    """x2d: (M, CPAD) bf16 block input; (s, q): BN partial stats emitted by the conv
    that produced x2d. Returns the block output, its stats and the new spatial shape."""
    N, H, W = shape
    pre = pallas_bn_relu(x2d, s, q, p["bn1_g"], p["bn1_b"], count=N * H * W)
    pre4d = pre.reshape(N, H, W, CPAD)
    if "down_w" in p:
        shortcut = conv1x1(pre4d, p["down_w"], stride)          # bf16 (Mo, CPAD)
    else:
        shortcut = x2d                                          # identity (bf16)
    (out1, s1, q1), (Ho, Wo) = conv3x3(pre4d, p["conv1_w"], cin, stride, emit_stats=True)
    pre2 = pallas_bn_relu(out1, s1, q1, p["bn2_g"], p["bn2_b"], count=N * Ho * Wo)
    # conv2: residual add + next-BN stats fused into the matmul epilogue
    (out2, s2, q2), _ = conv3x3(pre2.reshape(N, Ho, Wo, CPAD), p["conv2_w"], cout, 1,
                                residual=shortcut, emit_stats=True)
    return out2, s2, q2, (N, Ho, Wo)


def preact_resnet_forward(params, x_nchw, *, n_size, num_classes):
    x = jnp.transpose(x_nchw, (0, 2, 3, 1)).astype(jnp.bfloat16)   # NCHW -> NHWC, cast once
    N, H, W, _ = x.shape
    (x2d, s, q), (H, W) = conv3x3(x, params["conv1_w"], 3, 1, emit_stats=True)
    shape = (N, H, W)
    inplane = 16
    for li, (planes, stride0) in enumerate(ARCH, start=1):
        strides = [stride0] + [1] * (n_size - 1)                    # static Python ints
        for bi, stride in enumerate(strides):
            x2d, s, q, shape = preact_block(x2d, s, q, shape,
                                            params[f"layer{li}"][bi],
                                            stride, inplane, planes)
            inplane = planes
    return pallas_head(x2d, s, q, params["bn1_g"], params["bn1_b"],
                       params["fc_w"], params["fc_b"], shape, num_classes)


# ------------------------------------------------------------------------------ main
if __name__ == "__main__":
    N_SIZE, NUM_CLASSES = 1, 10
    key = jax.random.PRNGKey(0)
    pkey, xkey = jax.random.split(key)
    params = make_params(pkey, n_size=N_SIZE, num_classes=NUM_CLASSES)
    x = jax.random.normal(xkey, (2, 3, 16, 16), jnp.float32)        # NCHW like PyTorch

    fwd = jax.jit(functools.partial(preact_resnet_forward,
                                    n_size=N_SIZE, num_classes=NUM_CLASSES))
    logits = fwd(params, x)
    jax.block_until_ready(logits)
    assert logits.shape == (2, NUM_CLASSES) and logits.dtype == jnp.float32
    assert bool(jnp.all(jnp.isfinite(logits)))
    print("KERNEL_OK")
</pallas_src>

<mosaic_0001>
module attributes {stable_mosaic.version = 11 : i64} {
  func.func @_conv_mm_kernel(%arg0: i32, %arg1: memref<128x128xbf16, #tpu.memory_space<vmem>>, %arg2: memref<128x128xbf16, #tpu.memory_space<vmem>>, %arg3: memref<128x128xbf16, #tpu.memory_space<vmem>>, %arg4: memref<8x128xf32, #tpu.memory_space<vmem>>, %arg5: memref<8x128xf32, #tpu.memory_space<vmem>>) attributes {dimension_semantics = [#tpu.dimension_semantics<parallel>], iteration_bounds = array<i64: 4>, scalar_prefetch = 0 : i64, scratch_operands = 0 : i64, tpu.core_type = #tpu.core_type<tc>, window_params = [{transform_indices = @transform_0, window_bounds = array<i64: 128, 128>}, {pipeline_mode = #tpu.pipeline_mode<synchronous>, transform_indices = @transform_1, window_bounds = array<i64: 128, 128>}, {transform_indices = @transform_2, window_bounds = array<i64: 128, 128>}, {transform_indices = @transform_3, window_bounds = array<i64: 8, 128>}, {transform_indices = @transform_4, window_bounds = array<i64: 8, 128>}]} {
    %c0 = arith.constant 0 : index
    %c0_0 = arith.constant 0 : index
    %0 = vector.load %arg1[%c0, %c0_0] : memref<128x128xbf16, #tpu.memory_space<vmem>>, vector<128x128xbf16>
    %c0_1 = arith.constant 0 : index
    %c0_2 = arith.constant 0 : index
    %1 = vector.load %arg2[%c0_1, %c0_2] : memref<128x128xbf16, #tpu.memory_space<vmem>>, vector<128x128xbf16>
    %cst = arith.constant dense<0.000000e+00> : vector<128x128xf32>
    %2 = tpu.matmul %0, %1, %cst {dimension_numbers = #tpu.dot_dimension_numbers<[1], [0], [0], [1], [0, 0, 1, 1], [], []>} : vector<128x128xbf16>, vector<128x128xbf16>, vector<128x128xf32> -> vector<128x128xf32>
    %3 = arith.truncf %2 : vector<128x128xf32> to vector<128x128xbf16>
    %c0_3 = arith.constant 0 : index
    %c0_4 = arith.constant 0 : index
    %4 = vector.load %arg3[%c0_3, %c0_4] : memref<128x128xbf16, #tpu.memory_space<vmem>>, vector<128x128xbf16>
    tpu.vector_store %arg3[%c0_3, %c0_4], %3 {strides = array<i32>} : memref<128x128xbf16, #tpu.memory_space<vmem>>, vector<128x128xbf16>,
    %5 = tpu.iota {dimensions = array<i32: 0>} : vector<8x128xi32>
    %c0_i32 = arith.constant 0 : i32
    %6 = vector.broadcast %c0_i32 : i32 to vector<8x128xi32>
    %7 = arith.cmpi eq, %5, %6 : vector<8x128xi32>
    %cst_5 = arith.constant dense<0.000000e+00> : vector<128xf32>
    %8 = vector.multi_reduction <add>, %2, %cst_5 [0] : vector<128x128xf32> to vector<128xf32>
    %9 = vector.shape_cast %8 : vector<128xf32> to vector<1x128xf32>
    %cst_6 = arith.constant 0.000000e+00 : f32
    %10 = vector.shape_cast %9 : vector<1x128xf32> to vector<1x128xf32>
    %11 = vector.broadcast %10 : vector<1x128xf32> to vector<8x128xf32>
    %12 = vector.broadcast %cst_6 : f32 to vector<8x128xf32>
    %13 = arith.select %7, %11, %12 : vector<8x128xi1>, vector<8x128xf32>
    %c0_7 = arith.constant 0 : index
    %c0_8 = arith.constant 0 : index
    %14 = vector.load %arg4[%c0_7, %c0_8] : memref<8x128xf32, #tpu.memory_space<vmem>>, vector<8x128xf32>
    tpu.vector_store %arg4[%c0_7, %c0_8], %13 {strides = array<i32>} : memref<8x128xf32, #tpu.memory_space<vmem>>, vector<8x128xf32>,
    %c0_i32_9 = arith.constant 0 : i32
    %15 = vector.broadcast %c0_i32_9 : i32 to vector<8x128xi32>
    %16 = arith.cmpi eq, %5, %15 : vector<8x128xi32>
    %17 = arith.mulf %2, %2 : vector<128x128xf32>
    %cst_10 = arith.constant dense<0.000000e+00> : vector<128xf32>
    %18 = vector.multi_reduction <add>, %17, %cst_10 [0] : vector<128x128xf32> to vector<128xf32>
    %19 = vector.shape_cast %18 : vector<128xf32> to vector<1x128xf32>
    %cst_11 = arith.constant 0.000000e+00 : f32
    %20 = vector.shape_cast %19 : vector<1x128xf32> to vector<1x128xf32>
    %21 = vector.broadcast %20 : vector<1x128xf32> to vector<8x128xf32>
    %22 = vector.broadcast %cst_11 : f32 to vector<8x128xf32>
    %23 = arith.select %16, %21, %22 : vector<8x128xi1>, vector<8x128xf32>
    %c0_12 = arith.constant 0 : index
    %c0_13 = arith.constant 0 : index
    %24 = vector.load %arg5[%c0_12, %c0_13] : memref<8x128xf32, #tpu.memory_space<vmem>>, vector<8x128xf32>
    tpu.vector_store %arg5[%c0_12, %c0_13], %23 {strides = array<i32>} : memref<8x128xf32, #tpu.memory_space<vmem>>, vector<8x128xf32>,
    return
  }
  func.func @transform_0(%arg0: i32) -> (i32, i32) {
    %c0_i32 = arith.constant 0 : i32
    %c0_i32_0 = arith.constant 0 : i32
    return %arg0, %c0_i32 : i32, i32
  }
  func.func @transform_1(%arg0: i32) -> (i32, i32) {
    %c0_i32 = arith.constant 0 : i32
    %c0_i32_0 = arith.constant 0 : i32
    %c0_i32_1 = arith.constant 0 : i32
    return %c0_i32, %c0_i32_0 : i32, i32
  }
  func.func @transform_2(%arg0: i32) -> (i32, i32) {
    %c0_i32 = arith.constant 0 : i32
    %c0_i32_0 = arith.constant 0 : i32
    return %arg0, %c0_i32 : i32, i32
  }
  func.func @transform_3(%arg0: i32) -> (i32, i32) {
    %c0_i32 = arith.constant 0 : i32
    %c0_i32_0 = arith.constant 0 : i32
    return %arg0, %c0_i32 : i32, i32
  }
  func.func @transform_4(%arg0: i32) -> (i32, i32) {
    %c0_i32 = arith.constant 0 : i32
    %c0_i32_0 = arith.constant 0 : i32
    return %arg0, %c0_i32 : i32, i32
  }
}

module attributes {stable_mosaic.version = 11 : i64} {
  func.func @_bn_relu_kernel(%arg0: i32, %arg1: memref<256x128xbf16, #tpu.memory_space<vmem>>, %arg2: memref<32x128xf32, #tpu.memory_space<vmem>>, %arg3: memref<32x128xf32, #tpu.memory_space<vmem>>, %arg4: memref<1x128xf32, #tpu.memory_space<vmem>>, %arg5: memref<1x128xf32, #tpu.memory_space<vmem>>, %arg6: memref<256x128xbf16, #tpu.memory_space<vmem>>) attributes {dimension_semantics = [#tpu.dimension_semantics<parallel>], iteration_bounds = array<i64: 2>, scalar_prefetch = 0 : i64, scratch_operands = 0 : i64, tpu.core_type = #tpu.core_type<tc>, window_params = [{transform_indices = @transform_0, window_bounds = array<i64: 256, 128>}, {pipeline_mode = #tpu.pipeline_mode<synchronous>, transform_indices = @transform_1, window_bounds = array<i64: 32, 128>}, {pipeline_mode = #tpu.pipeline_mode<synchronous>, transform_indices = @transform_2, window_bounds = array<i64: 32, 128>}, {pipeline_mode = #tpu.pipeline_mode<synchronous>, transform_indices = @transform_3, window_bounds = array<i64: 1, 128>}, {pipeline_mode = #tpu.pipeline_mode<synchronous>, transform_indices = @transform_4, window_bounds = array<i64: 1, 128>}, {transform_indices = @transform_5, window_bounds = array<i64: 256, 128>}]} {
    %c0 = arith.constant 0 : index
    %c0_0 = arith.constant 0 : index
    %0 = vector.load %arg2[%c0, %c0_0] : memref<32x128xf32, #tpu.memory_space<vmem>>, vector<32x128xf32>
    %cst = arith.constant dense<0.000000e+00> : vector<128xf32>
    %1 = vector.multi_reduction <add>, %0, %cst [0] : vector<32x128xf32> to vector<128xf32>
    %2 = vector.shape_cast %1 : vector<128xf32> to vector<1x128xf32>
    %c0_1 = arith.constant 0 : index
    %c0_2 = arith.constant 0 : index
    %3 = vector.load %arg3[%c0_1, %c0_2] : memref<32x128xf32, #tpu.memory_space<vmem>>, vector<32x128xf32>
    %cst_3 = arith.constant dense<0.000000e+00> : vector<128xf32>
    %4 = vector.multi_reduction <add>, %3, %cst_3 [0] : vector<32x128xf32> to vector<128xf32>
    %5 = vector.shape_cast %4 : vector<128xf32> to vector<1x128xf32>
    %cst_4 = arith.constant 0.001953125 : f32
    %6 = vector.broadcast %cst_4 : f32 to vector<1x128xf32>
    %7 = arith.mulf %2, %6 : vector<1x128xf32>
    %cst_5 = arith.constant 0.001953125 : f32
    %8 = vector.broadcast %cst_5 : f32 to vector<1x128xf32>
    %9 = arith.mulf %5, %8 : vector<1x128xf32>
    %10 = arith.mulf %7, %7 : vector<1x128xf32>
    %11 = arith.subf %9, %10 : vector<1x128xf32>
    %cst_6 = arith.constant 0.000000e+00 : f32
    %12 = vector.broadcast %cst_6 : f32 to vector<1x128xf32>
    %13 = arith.maximumf %11, %12 : vector<1x128xf32>
    %c0_7 = arith.constant 0 : index
    %c0_8 = arith.constant 0 : index
    %14 = vector.load %arg4[%c0_7, %c0_8] : memref<1x128xf32, #tpu.memory_space<vmem>>, vector<1x128xf32>
    %cst_9 = arith.constant 9.99999974E-6 : f32
    %15 = vector.broadcast %cst_9 : f32 to vector<1x128xf32>
    %16 = arith.addf %13, %15 : vector<1x128xf32>
    %17 = math.rsqrt %16 : vector<1x128xf32>
    %18 = arith.mulf %14, %17 : vector<1x128xf32>
    %c0_10 = arith.constant 0 : index
    %c0_11 = arith.constant 0 : index
    %19 = vector.load %arg5[%c0_10, %c0_11] : memref<1x128xf32, #tpu.memory_space<vmem>>, vector<1x128xf32>
    %20 = arith.mulf %7, %18 : vector<1x128xf32>
    %21 = arith.subf %19, %20 : vector<1x128xf32>
    %c0_12 = arith.constant 0 : index
    %c0_13 = arith.constant 0 : index
    %22 = vector.load %arg1[%c0_12, %c0_13] : memref<256x128xbf16, #tpu.memory_space<vmem>>, vector<256x128xbf16>
    %23 = arith.extf %22 : vector<256x128xbf16> to vector<256x128xf32>
    %24 = vector.broadcast %18 : vector<1x128xf32> to vector<256x128xf32>
    %25 = arith.mulf %23, %24 : vector<256x128xf32>
    %26 = vector.broadcast %21 : vector<1x128xf32> to vector<256x128xf32>
    %27 = arith.addf %25, %26 : vector<256x128xf32>
    %cst_14 = arith.constant 0.000000e+00 : f32
    %28 = vector.broadcast %cst_14 : f32 to vector<256x128xf32>
    %29 = arith.maximumf %27, %28 : vector<256x128xf32>
    %30 = arith.truncf %29 : vector<256x128xf32> to vector<256x128xbf16>
    %c0_15 = arith.constant 0 : index
    %c0_16 = arith.constant 0 : index
    %31 = vector.load %arg6[%c0_15, %c0_16] : memref<256x128xbf16, #tpu.memory_space<vmem>>, vector<256x128xbf16>
    tpu.vector_store %arg6[%c0_15, %c0_16], %30 {strides = array<i32>} : memref<256x128xbf16, #tpu.memory_space<vmem>>, vector<256x128xbf16>,
    return
  }
  func.func @transform_0(%arg0: i32) -> (i32, i32) {
    %c0_i32 = arith.constant 0 : i32
    %c0_i32_0 = arith.constant 0 : i32
    return %arg0, %c0_i32 : i32, i32
  }
  func.func @transform_1(%arg0: i32) -> (i32, i32) {
    %c0_i32 = arith.constant 0 : i32
    %c0_i32_0 = arith.constant 0 : i32
    %c0_i32_1 = arith.constant 0 : i32
    return %c0_i32, %c0_i32_0 : i32, i32
  }
  func.func @transform_2(%arg0: i32) -> (i32, i32) {
    %c0_i32 = arith.constant 0 : i32
    %c0_i32_0 = arith.constant 0 : i32
    %c0_i32_1 = arith.constant 0 : i32
    return %c0_i32, %c0_i32_0 : i32, i32
  }
  func.func @transform_3(%arg0: i32) -> (i32, i32) {
    %c0_i32 = arith.constant 0 : i32
    %c0_i32_0 = arith.constant 0 : i32
    %c0_i32_1 = arith.constant 0 : i32
    return %c0_i32, %c0_i32_0 : i32, i32
  }
  func.func @transform_4(%arg0: i32) -> (i32, i32) {
    %c0_i32 = arith.constant 0 : i32
    %c0_i32_0 = arith.constant 0 : i32
    %c0_i32_1 = arith.constant 0 : i32
    return %c0_i32, %c0_i32_0 : i32, i32
  }
  func.func @transform_5(%arg0: i32) -> (i32, i32) {
    %c0_i32 = arith.constant 0 : i32
    %c0_i32_0 = arith.constant 0 : i32
    return %arg0, %c0_i32 : i32, i32
  }
}

module attributes {stable_mosaic.version = 11 : i64} {
  func.func @_conv_mm_kernel(%arg0: i32, %arg1: memref<128x256xbf16, #tpu.memory_space<vmem>>, %arg2: memref<256x128xbf16, #tpu.memory_space<vmem>>, %arg3: memref<128x128xbf16, #tpu.memory_space<vmem>>, %arg4: memref<8x128xf32, #tpu.memory_space<vmem>>, %arg5: memref<8x128xf32, #tpu.memory_space<vmem>>) attributes {dimension_semantics = [#tpu.dimension_semantics<parallel>], iteration_bounds = array<i64: 4>, scalar_prefetch = 0 : i64, scratch_operands = 0 : i64, tpu.core_type = #tpu.core_type<tc>, window_params = [{transform_indices = @transform_0, window_bounds = array<i64: 128, 256>}, {pipeline_mode = #tpu.pipeline_mode<synchronous>, transform_indices = @transform_1, window_bounds = array<i64: 256, 128>}, {transform_indices = @transform_2, window_bounds = array<i64: 128, 128>}, {transform_indices = @transform_3, window_bounds = array<i64: 8, 128>}, {transform_indices = @transform_4, window_bounds = array<i64: 8, 128>}]} {
    %c0 = arith.constant 0 : index
    %c0_0 = arith.constant 0 : index
    %0 = vector.load %arg1[%c0, %c0_0] : memref<128x256xbf16, #tpu.memory_space<vmem>>, vector<128x256xbf16>
    %c0_1 = arith.constant 0 : index
    %c0_2 = arith.constant 0 : index
    %1 = vector.load %arg2[%c0_1, %c0_2] : memref<256x128xbf16, #tpu.memory_space<vmem>>, vector<256x128xbf16>
    %cst = arith.constant dense<0.000000e+00> : vector<128x128xf32>
    %2 = tpu.matmul %0, %1, %cst {dimension_numbers = #tpu.dot_dimension_numbers<[1], [0], [0], [1], [0, 0, 1, 1], [], []>} : vector<128x256xbf16>, vector<256x128xbf16>, vector<128x128xf32> -> vector<128x128xf32>
    %3 = arith.truncf %2 : vector<128x128xf32> to vector<128x128xbf16>
    %c0_3 = arith.constant 0 : index
    %c0_4 = arith.constant 0 : index
    %4 = vector.load %arg3[%c0_3, %c0_4] : memref<128x128xbf16, #tpu.memory_space<vmem>>, vector<128x128xbf16>
    tpu.vector_store %arg3[%c0_3, %c0_4], %3 {strides = array<i32>} : memref<128x128xbf16, #tpu.memory_space<vmem>>, vector<128x128xbf16>,
    %5 = tpu.iota {dimensions = array<i32: 0>} : vector<8x128xi32>
    %c0_i32 = arith.constant 0 : i32
    %6 = vector.broadcast %c0_i32 : i32 to vector<8x128xi32>
    %7 = arith.cmpi eq, %5, %6 : vector<8x128xi32>
    %cst_5 = arith.constant dense<0.000000e+00> : vector<128xf32>
    %8 = vector.multi_reduction <add>, %2, %cst_5 [0] : vector<128x128xf32> to vector<128xf32>
    %9 = vector.shape_cast %8 : vector<128xf32> to vector<1x128xf32>
    %cst_6 = arith.constant 0.000000e+00 : f32
    %10 = vector.shape_cast %9 : vector<1x128xf32> to vector<1x128xf32>
    %11 = vector.broadcast %10 : vector<1x128xf32> to vector<8x128xf32>
    %12 = vector.broadcast %cst_6 : f32 to vector<8x128xf32>
    %13 = arith.select %7, %11, %12 : vector<8x128xi1>, vector<8x128xf32>
    %c0_7 = arith.constant 0 : index
    %c0_8 = arith.constant 0 : index
    %14 = vector.load %arg4[%c0_7, %c0_8] : memref<8x128xf32, #tpu.memory_space<vmem>>, vector<8x128xf32>
    tpu.vector_store %arg4[%c0_7, %c0_8], %13 {strides = array<i32>} : memref<8x128xf32, #tpu.memory_space<vmem>>, vector<8x128xf32>,
    %c0_i32_9 = arith.constant 0 : i32
    %15 = vector.broadcast %c0_i32_9 : i32 to vector<8x128xi32>
    %16 = arith.cmpi eq, %5, %15 : vector<8x128xi32>
    %17 = arith.mulf %2, %2 : vector<128x128xf32>
    %cst_10 = arith.constant dense<0.000000e+00> : vector<128xf32>
    %18 = vector.multi_reduction <add>, %17, %cst_10 [0] : vector<128x128xf32> to vector<128xf32>
    %19 = vector.shape_cast %18 : vector<128xf32> to vector<1x128xf32>
    %cst_11 = arith.constant 0.000000e+00 : f32
    %20 = vector.shape_cast %19 : vector<1x128xf32> to vector<1x128xf32>
    %21 = vector.broadcast %20 : vector<1x128xf32> to vector<8x128xf32>
    %22 = vector.broadcast %cst_11 : f32 to vector<8x128xf32>
    %23 = arith.select %16, %21, %22 : vector<8x128xi1>, vector<8x128xf32>
    %c0_12 = arith.constant 0 : index
    %c0_13 = arith.constant 0 : index
    %24 = vector.load %arg5[%c0_12, %c0_13] : memref<8x128xf32, #tpu.memory_space<vmem>>, vector<8x128xf32>
    tpu.vector_store %arg5[%c0_12, %c0_13], %23 {strides = array<i32>} : memref<8x128xf32, #tpu.memory_space<vmem>>, vector<8x128xf32>,
    return
  }
  func.func @transform_0(%arg0: i32) -> (i32, i32) {
    %c0_i32 = arith.constant 0 : i32
    %c0_i32_0 = arith.constant 0 : i32
    return %arg0, %c0_i32 : i32, i32
  }
  func.func @transform_1(%arg0: i32) -> (i32, i32) {
    %c0_i32 = arith.constant 0 : i32
    %c0_i32_0 = arith.constant 0 : i32
    %c0_i32_1 = arith.constant 0 : i32
    return %c0_i32, %c0_i32_0 : i32, i32
  }
  func.func @transform_2(%arg0: i32) -> (i32, i32) {
    %c0_i32 = arith.constant 0 : i32
    %c0_i32_0 = arith.constant 0 : i32
    return %arg0, %c0_i32 : i32, i32
  }
  func.func @transform_3(%arg0: i32) -> (i32, i32) {
    %c0_i32 = arith.constant 0 : i32
    %c0_i32_0 = arith.constant 0 : i32
    return %arg0, %c0_i32 : i32, i32
  }
  func.func @transform_4(%arg0: i32) -> (i32, i32) {
    %c0_i32 = arith.constant 0 : i32
    %c0_i32_0 = arith.constant 0 : i32
    return %arg0, %c0_i32 : i32, i32
  }
}

module attributes {stable_mosaic.version = 11 : i64} {
  func.func @_conv_mm_kernel(%arg0: i32, %arg1: memref<128x256xbf16, #tpu.memory_space<vmem>>, %arg2: memref<256x128xbf16, #tpu.memory_space<vmem>>, %arg3: memref<128x128xbf16, #tpu.memory_space<vmem>>, %arg4: memref<128x128xbf16, #tpu.memory_space<vmem>>, %arg5: memref<8x128xf32, #tpu.memory_space<vmem>>, %arg6: memref<8x128xf32, #tpu.memory_space<vmem>>) attributes {dimension_semantics = [#tpu.dimension_semantics<parallel>], iteration_bounds = array<i64: 4>, scalar_prefetch = 0 : i64, scratch_operands = 0 : i64, tpu.core_type = #tpu.core_type<tc>, window_params = [{transform_indices = @transform_0, window_bounds = array<i64: 128, 256>}, {pipeline_mode = #tpu.pipeline_mode<synchronous>, transform_indices = @transform_1, window_bounds = array<i64: 256, 128>}, {transform_indices = @transform_2, window_bounds = array<i64: 128, 128>}, {transform_indices = @transform_3, window_bounds = array<i64: 128, 128>}, {transform_indices = @transform_4, window_bounds = array<i64: 8, 128>}, {transform_indices = @transform_5, window_bounds = array<i64: 8, 128>}]} {
    %c0 = arith.constant 0 : index
    %c0_0 = arith.constant 0 : index
    %0 = vector.load %arg1[%c0, %c0_0] : memref<128x256xbf16, #tpu.memory_space<vmem>>, vector<128x256xbf16>
    %c0_1 = arith.constant 0 : index
    %c0_2 = arith.constant 0 : index
    %1 = vector.load %arg2[%c0_1, %c0_2] : memref<256x128xbf16, #tpu.memory_space<vmem>>, vector<256x128xbf16>
    %cst = arith.constant dense<0.000000e+00> : vector<128x128xf32>
    %2 = tpu.matmul %0, %1, %cst {dimension_numbers = #tpu.dot_dimension_numbers<[1], [0], [0], [1], [0, 0, 1, 1], [], []>} : vector<128x256xbf16>, vector<256x128xbf16>, vector<128x128xf32> -> vector<128x128xf32>
    %c0_3 = arith.constant 0 : index
    %c0_4 = arith.constant 0 : index
    %3 = vector.load %arg3[%c0_3, %c0_4] : memref<128x128xbf16, #tpu.memory_space<vmem>>, vector<128x128xbf16>
    %4 = arith.extf %3 : vector<128x128xbf16> to vector<128x128xf32>
    %5 = arith.addf %2, %4 : vector<128x128xf32>
    %6 = arith.truncf %5 : vector<128x128xf32> to vector<128x128xbf16>
    %c0_5 = arith.constant 0 : index
    %c0_6 = arith.constant 0 : index
    %7 = vector.load %arg4[%c0_5, %c0_6] : memref<128x128xbf16, #tpu.memory_space<vmem>>, vector<128x128xbf16>
    tpu.vector_store %arg4[%c0_5, %c0_6], %6 {strides = array<i32>} : memref<128x128xbf16, #tpu.memory_space<vmem>>, vector<128x128xbf16>,
    %8 = tpu.iota {dimensions = array<i32: 0>} : vector<8x128xi32>
    %c0_i32 = arith.constant 0 : i32
    %9 = vector.broadcast %c0_i32 : i32 to vector<8x128xi32>
    %10 = arith.cmpi eq, %8, %9 : vector<8x128xi32>
    %cst_7 = arith.constant dense<0.000000e+00> : vector<128xf32>
    %11 = vector.multi_reduction <add>, %5, %cst_7 [0] : vector<128x128xf32> to vector<128xf32>
    %12 = vector.shape_cast %11 : vector<128xf32> to vector<1x128xf32>
    %cst_8 = arith.constant 0.000000e+00 : f32
    %13 = vector.shape_cast %12 : vector<1x128xf32> to vector<1x128xf32>
    %14 = vector.broadcast %13 : vector<1x128xf32> to vector<8x128xf32>
    %15 = vector.broadcast %cst_8 : f32 to vector<8x128xf32>
    %16 = arith.select %10, %14, %15 : vector<8x128xi1>, vector<8x128xf32>
    %c0_9 = arith.constant 0 : index
    %c0_10 = arith.constant 0 : index
    %17 = vector.load %arg5[%c0_9, %c0_10] : memref<8x128xf32, #tpu.memory_space<vmem>>, vector<8x128xf32>
    tpu.vector_store %arg5[%c0_9, %c0_10], %16 {strides = array<i32>} : memref<8x128xf32, #tpu.memory_space<vmem>>, vector<8x128xf32>,
    %c0_i32_11 = arith.constant 0 : i32
    %18 = vector.broadcast %c0_i32_11 : i32 to vector<8x128xi32>
    %19 = arith.cmpi eq, %8, %18 : vector<8x128xi32>
    %20 = arith.mulf %5, %5 : vector<128x128xf32>
    %cst_12 = arith.constant dense<0.000000e+00> : vector<128xf32>
    %21 = vector.multi_reduction <add>, %20, %cst_12 [0] : vector<128x128xf32> to vector<128xf32>
    %22 = vector.shape_cast %21 : vector<128xf32> to vector<1x128xf32>
    %cst_13 = arith.constant 0.000000e+00 : f32
    %23 = vector.shape_cast %22 : vector<1x128xf32> to vector<1x128xf32>
    %24 = vector.broadcast %23 : vector<1x128xf32> to vector<8x128xf32>
    %25 = vector.broadcast %cst_13 : f32 to vector<8x128xf32>
    %26 = arith.select %19, %24, %25 : vector<8x128xi1>, vector<8x128xf32>
    %c0_14 = arith.constant 0 : index
    %c0_15 = arith.constant 0 : index
    %27 = vector.load %arg6[%c0_14, %c0_15] : memref<8x128xf32, #tpu.memory_space<vmem>>, vector<8x128xf32>
    tpu.vector_store %arg6[%c0_14, %c0_15], %26 {strides = array<i32>} : memref<8x128xf32, #tpu.memory_space<vmem>>, vector<8x128xf32>,
    return
  }
  func.func @transform_0(%arg0: i32) -> (i32, i32) {
    %c0_i32 = arith.constant 0 : i32
    %c0_i32_0 = arith.constant 0 : i32
    return %arg0, %c0_i32 : i32, i32
  }
  func.func @transform_1(%arg0: i32) -> (i32, i32) {
    %c0_i32 = arith.constant 0 : i32
    %c0_i32_0 = arith.constant 0 : i32
    %c0_i32_1 = arith.constant 0 : i32
    return %c0_i32, %c0_i32_0 : i32, i32
  }
  func.func @transform_2(%arg0: i32) -> (i32, i32) {
    %c0_i32 = arith.constant 0 : i32
    %c0_i32_0 = arith.constant 0 : i32
    return %arg0, %c0_i32 : i32, i32
  }
  func.func @transform_3(%arg0: i32) -> (i32, i32) {
    %c0_i32 = arith.constant 0 : i32
    %c0_i32_0 = arith.constant 0 : i32
    return %arg0, %c0_i32 : i32, i32
  }
  func.func @transform_4(%arg0: i32) -> (i32, i32) {
    %c0_i32 = arith.constant 0 : i32
    %c0_i32_0 = arith.constant 0 : i32
    return %arg0, %c0_i32 : i32, i32
  }
  func.func @transform_5(%arg0: i32) -> (i32, i32) {
    %c0_i32 = arith.constant 0 : i32
    %c0_i32_0 = arith.constant 0 : i32
    return %arg0, %c0_i32 : i32, i32
  }
}

module attributes {stable_mosaic.version = 11 : i64} {
  func.func @_conv_mm_kernel(%arg0: i32, %arg1: memref<64x128xbf16, #tpu.memory_space<vmem>>, %arg2: memref<128x128xbf16, #tpu.memory_space<vmem>>, %arg3: memref<64x128xbf16, #tpu.memory_space<vmem>>) attributes {dimension_semantics = [#tpu.dimension_semantics<parallel>], iteration_bounds = array<i64: 2>, scalar_prefetch = 0 : i64, scratch_operands = 0 : i64, tpu.core_type = #tpu.core_type<tc>, window_params = [{transform_indices = @transform_0, window_bounds = array<i64: 64, 128>}, {pipeline_mode = #tpu.pipeline_mode<synchronous>, transform_indices = @transform_1, window_bounds = array<i64: 128, 128>}, {transform_indices = @transform_2, window_bounds = array<i64: 64, 128>}]} {
    %c0 = arith.constant 0 : index
    %c0_0 = arith.constant 0 : index
    %0 = vector.load %arg1[%c0, %c0_0] : memref<64x128xbf16, #tpu.memory_space<vmem>>, vector<64x128xbf16>
    %c0_1 = arith.constant 0 : index
    %c0_2 = arith.constant 0 : index
    %1 = vector.load %arg2[%c0_1, %c0_2] : memref<128x128xbf16, #tpu.memory_space<vmem>>, vector<128x128xbf16>
    %cst = arith.constant dense<0.000000e+00> : vector<64x128xf32>
    %2 = tpu.matmul %0, %1, %cst {dimension_numbers = #tpu.dot_dimension_numbers<[1], [0], [0], [1], [0, 0, 1, 1], [], []>} : vector<64x128xbf16>, vector<128x128xbf16>, vector<64x128xf32> -> vector<64x128xf32>
    %3 = arith.truncf %2 : vector<64x128xf32> to vector<64x128xbf16>
    %c0_3 = arith.constant 0 : index
    %c0_4 = arith.constant 0 : index
    %4 = vector.load %arg3[%c0_3, %c0_4] : memref<64x128xbf16, #tpu.memory_space<vmem>>, vector<64x128xbf16>
    tpu.vector_store %arg3[%c0_3, %c0_4], %3 {strides = array<i32>} : memref<64x128xbf16, #tpu.memory_space<vmem>>, vector<64x128xbf16>,
    return
  }
  func.func @transform_0(%arg0: i32) -> (i32, i32) {
    %c0_i32 = arith.constant 0 : i32
    %c0_i32_0 = arith.constant 0 : i32
    return %arg0, %c0_i32 : i32, i32
  }
  func.func @transform_1(%arg0: i32) -> (i32, i32) {
    %c0_i32 = arith.constant 0 : i32
    %c0_i32_0 = arith.constant 0 : i32
    %c0_i32_1 = arith.constant 0 : i32
    return %c0_i32, %c0_i32_0 : i32, i32
  }
  func.func @transform_2(%arg0: i32) -> (i32, i32) {
    %c0_i32 = arith.constant 0 : i32
    %c0_i32_0 = arith.constant 0 : i32
    return %arg0, %c0_i32 : i32, i32
  }
}

module attributes {stable_mosaic.version = 11 : i64} {
  func.func @_bn_relu_kernel(%arg0: i32, %arg1: memref<64x128xbf16, #tpu.memory_space<vmem>>, %arg2: memref<16x128xf32, #tpu.memory_space<vmem>>, %arg3: memref<16x128xf32, #tpu.memory_space<vmem>>, %arg4: memref<1x128xf32, #tpu.memory_space<vmem>>, %arg5: memref<1x128xf32, #tpu.memory_space<vmem>>, %arg6: memref<64x128xbf16, #tpu.memory_space<vmem>>) attributes {dimension_semantics = [#tpu.dimension_semantics<parallel>], iteration_bounds = array<i64: 2>, scalar_prefetch = 0 : i64, scratch_operands = 0 : i64, tpu.core_type = #tpu.core_type<tc>, window_params = [{transform_indices = @transform_0, window_bounds = array<i64: 64, 128>}, {pipeline_mode = #tpu.pipeline_mode<synchronous>, transform_indices = @transform_1, window_bounds = array<i64: 16, 128>}, {pipeline_mode = #tpu.pipeline_mode<synchronous>, transform_indices = @transform_2, window_bounds = array<i64: 16, 128>}, {pipeline_mode = #tpu.pipeline_mode<synchronous>, transform_indices = @transform_3, window_bounds = array<i64: 1, 128>}, {pipeline_mode = #tpu.pipeline_mode<synchronous>, transform_indices = @transform_4, window_bounds = array<i64: 1, 128>}, {transform_indices = @transform_5, window_bounds = array<i64: 64, 128>}]} {
    %c0 = arith.constant 0 : index
    %c0_0 = arith.constant 0 : index
    %0 = vector.load %arg2[%c0, %c0_0] : memref<16x128xf32, #tpu.memory_space<vmem>>, vector<16x128xf32>
    %cst = arith.constant dense<0.000000e+00> : vector<128xf32>
    %1 = vector.multi_reduction <add>, %0, %cst [0] : vector<16x128xf32> to vector<128xf32>
    %2 = vector.shape_cast %1 : vector<128xf32> to vector<1x128xf32>
    %c0_1 = arith.constant 0 : index
    %c0_2 = arith.constant 0 : index
    %3 = vector.load %arg3[%c0_1, %c0_2] : memref<16x128xf32, #tpu.memory_space<vmem>>, vector<16x128xf32>
    %cst_3 = arith.constant dense<0.000000e+00> : vector<128xf32>
    %4 = vector.multi_reduction <add>, %3, %cst_3 [0] : vector<16x128xf32> to vector<128xf32>
    %5 = vector.shape_cast %4 : vector<128xf32> to vector<1x128xf32>
    %cst_4 = arith.constant 7.812500e-03 : f32
    %6 = vector.broadcast %cst_4 : f32 to vector<1x128xf32>
    %7 = arith.mulf %2, %6 : vector<1x128xf32>
    %cst_5 = arith.constant 7.812500e-03 : f32
    %8 = vector.broadcast %cst_5 : f32 to vector<1x128xf32>
    %9 = arith.mulf %5, %8 : vector<1x128xf32>
    %10 = arith.mulf %7, %7 : vector<1x128xf32>
    %11 = arith.subf %9, %10 : vector<1x128xf32>
    %cst_6 = arith.constant 0.000000e+00 : f32
    %12 = vector.broadcast %cst_6 : f32 to vector<1x128xf32>
    %13 = arith.maximumf %11, %12 : vector<1x128xf32>
    %c0_7 = arith.constant 0 : index
    %c0_8 = arith.constant 0 : index
    %14 = vector.load %arg4[%c0_7, %c0_8] : memref<1x128xf32, #tpu.memory_space<vmem>>, vector<1x128xf32>
    %cst_9 = arith.constant 9.99999974E-6 : f32
    %15 = vector.broadcast %cst_9 : f32 to vector<1x128xf32>
    %16 = arith.addf %13, %15 : vector<1x128xf32>
    %17 = math.rsqrt %16 : vector<1x128xf32>
    %18 = arith.mulf %14, %17 : vector<1x128xf32>
    %c0_10 = arith.constant 0 : index
    %c0_11 = arith.constant 0 : index
    %19 = vector.load %arg5[%c0_10, %c0_11] : memref<1x128xf32, #tpu.memory_space<vmem>>, vector<1x128xf32>
    %20 = arith.mulf %7, %18 : vector<1x128xf32>
    %21 = arith.subf %19, %20 : vector<1x128xf32>
    %c0_12 = arith.constant 0 : index
    %c0_13 = arith.constant 0 : index
    %22 = vector.load %arg1[%c0_12, %c0_13] : memref<64x128xbf16, #tpu.memory_space<vmem>>, vector<64x128xbf16>
    %23 = arith.extf %22 : vector<64x128xbf16> to vector<64x128xf32>
    %24 = vector.broadcast %18 : vector<1x128xf32> to vector<64x128xf32>
    %25 = arith.mulf %23, %24 : vector<64x128xf32>
    %26 = vector.broadcast %21 : vector<1x128xf32> to vector<64x128xf32>
    %27 = arith.addf %25, %26 : vector<64x128xf32>
    %cst_14 = arith.constant 0.000000e+00 : f32
    %28 = vector.broadcast %cst_14 : f32 to vector<64x128xf32>
    %29 = arith.maximumf %27, %28 : vector<64x128xf32>
    %30 = arith.truncf %29 : vector<64x128xf32> to vector<64x128xbf16>
    %c0_15 = arith.constant 0 : index
    %c0_16 = arith.constant 0 : index
    %31 = vector.load %arg6[%c0_15, %c0_16] : memref<64x128xbf16, #tpu.memory_space<vmem>>, vector<64x128xbf16>
    tpu.vector_store %arg6[%c0_15, %c0_16], %30 {strides = array<i32>} : memref<64x128xbf16, #tpu.memory_space<vmem>>, vector<64x128xbf16>,
    return
  }
  func.func @transform_0(%arg0: i32) -> (i32, i32) {
    %c0_i32 = arith.constant 0 : i32
    %c0_i32_0 = arith.constant 0 : i32
    return %arg0, %c0_i32 : i32, i32
  }
  func.func @transform_1(%arg0: i32) -> (i32, i32) {
    %c0_i32 = arith.constant 0 : i32
    %c0_i32_0 = arith.constant 0 : i32
    %c0_i32_1 = arith.constant 0 : i32
    return %c0_i32, %c0_i32_0 : i32, i32
  }
  func.func @transform_2(%arg0: i32) -> (i32, i32) {
    %c0_i32 = arith.constant 0 : i32
    %c0_i32_0 = arith.constant 0 : i32
    %c0_i32_1 = arith.constant 0 : i32
    return %c0_i32, %c0_i32_0 : i32, i32
  }
  func.func @transform_3(%arg0: i32) -> (i32, i32) {
    %c0_i32 = arith.constant 0 : i32
    %c0_i32_0 = arith.constant 0 : i32
    %c0_i32_1 = arith.constant 0 : i32
    return %c0_i32, %c0_i32_0 : i32, i32
  }
  func.func @transform_4(%arg0: i32) -> (i32, i32) {
    %c0_i32 = arith.constant 0 : i32
    %c0_i32_0 = arith.constant 0 : i32
    %c0_i32_1 = arith.constant 0 : i32
    return %c0_i32, %c0_i32_0 : i32, i32
  }
  func.func @transform_5(%arg0: i32) -> (i32, i32) {
    %c0_i32 = arith.constant 0 : i32
    %c0_i32_0 = arith.constant 0 : i32
    return %arg0, %c0_i32 : i32, i32
  }
}

module attributes {stable_mosaic.version = 11 : i64} {
  func.func @_conv_mm_kernel(%arg0: i32, %arg1: memref<64x256xbf16, #tpu.memory_space<vmem>>, %arg2: memref<256x128xbf16, #tpu.memory_space<vmem>>, %arg3: memref<64x128xbf16, #tpu.memory_space<vmem>>, %arg4: memref<8x128xf32, #tpu.memory_space<vmem>>, %arg5: memref<8x128xf32, #tpu.memory_space<vmem>>) attributes {dimension_semantics = [#tpu.dimension_semantics<parallel>], iteration_bounds = array<i64: 2>, scalar_prefetch = 0 : i64, scratch_operands = 0 : i64, tpu.core_type = #tpu.core_type<tc>, window_params = [{transform_indices = @transform_0, window_bounds = array<i64: 64, 256>}, {pipeline_mode = #tpu.pipeline_mode<synchronous>, transform_indices = @transform_1, window_bounds = array<i64: 256, 128>}, {transform_indices = @transform_2, window_bounds = array<i64: 64, 128>}, {transform_indices = @transform_3, window_bounds = array<i64: 8, 128>}, {transform_indices = @transform_4, window_bounds = array<i64: 8, 128>}]} {
    %c0 = arith.constant 0 : index
    %c0_0 = arith.constant 0 : index
    %0 = vector.load %arg1[%c0, %c0_0] : memref<64x256xbf16, #tpu.memory_space<vmem>>, vector<64x256xbf16>
    %c0_1 = arith.constant 0 : index
    %c0_2 = arith.constant 0 : index
    %1 = vector.load %arg2[%c0_1, %c0_2] : memref<256x128xbf16, #tpu.memory_space<vmem>>, vector<256x128xbf16>
    %cst = arith.constant dense<0.000000e+00> : vector<64x128xf32>
    %2 = tpu.matmul %0, %1, %cst {dimension_numbers = #tpu.dot_dimension_numbers<[1], [0], [0], [1], [0, 0, 1, 1], [], []>} : vector<64x256xbf16>, vector<256x128xbf16>, vector<64x128xf32> -> vector<64x128xf32>
    %3 = arith.truncf %2 : vector<64x128xf32> to vector<64x128xbf16>
    %c0_3 = arith.constant 0 : index
    %c0_4 = arith.constant 0 : index
    %4 = vector.load %arg3[%c0_3, %c0_4] : memref<64x128xbf16, #tpu.memory_space<vmem>>, vector<64x128xbf16>
    tpu.vector_store %arg3[%c0_3, %c0_4], %3 {strides = array<i32>} : memref<64x128xbf16, #tpu.memory_space<vmem>>, vector<64x128xbf16>,
    %5 = tpu.iota {dimensions = array<i32: 0>} : vector<8x128xi32>
    %c0_i32 = arith.constant 0 : i32
    %6 = vector.broadcast %c0_i32 : i32 to vector<8x128xi32>
    %7 = arith.cmpi eq, %5, %6 : vector<8x128xi32>
    %cst_5 = arith.constant dense<0.000000e+00> : vector<128xf32>
    %8 = vector.multi_reduction <add>, %2, %cst_5 [0] : vector<64x128xf32> to vector<128xf32>
    %9 = vector.shape_cast %8 : vector<128xf32> to vector<1x128xf32>
    %cst_6 = arith.constant 0.000000e+00 : f32
    %10 = vector.shape_cast %9 : vector<1x128xf32> to vector<1x128xf32>
    %11 = vector.broadcast %10 : vector<1x128xf32> to vector<8x128xf32>
    %12 = vector.broadcast %cst_6 : f32 to vector<8x128xf32>
    %13 = arith.select %7, %11, %12 : vector<8x128xi1>, vector<8x128xf32>
    %c0_7 = arith.constant 0 : index
    %c0_8 = arith.constant 0 : index
    %14 = vector.load %arg4[%c0_7, %c0_8] : memref<8x128xf32, #tpu.memory_space<vmem>>, vector<8x128xf32>
    tpu.vector_store %arg4[%c0_7, %c0_8], %13 {strides = array<i32>} : memref<8x128xf32, #tpu.memory_space<vmem>>, vector<8x128xf32>,
    %c0_i32_9 = arith.constant 0 : i32
    %15 = vector.broadcast %c0_i32_9 : i32 to vector<8x128xi32>
    %16 = arith.cmpi eq, %5, %15 : vector<8x128xi32>
    %17 = arith.mulf %2, %2 : vector<64x128xf32>
    %cst_10 = arith.constant dense<0.000000e+00> : vector<128xf32>
    %18 = vector.multi_reduction <add>, %17, %cst_10 [0] : vector<64x128xf32> to vector<128xf32>
    %19 = vector.shape_cast %18 : vector<128xf32> to vector<1x128xf32>
    %cst_11 = arith.constant 0.000000e+00 : f32
    %20 = vector.shape_cast %19 : vector<1x128xf32> to vector<1x128xf32>
    %21 = vector.broadcast %20 : vector<1x128xf32> to vector<8x128xf32>
    %22 = vector.broadcast %cst_11 : f32 to vector<8x128xf32>
    %23 = arith.select %16, %21, %22 : vector<8x128xi1>, vector<8x128xf32>
    %c0_12 = arith.constant 0 : index
    %c0_13 = arith.constant 0 : index
    %24 = vector.load %arg5[%c0_12, %c0_13] : memref<8x128xf32, #tpu.memory_space<vmem>>, vector<8x128xf32>
    tpu.vector_store %arg5[%c0_12, %c0_13], %23 {strides = array<i32>} : memref<8x128xf32, #tpu.memory_space<vmem>>, vector<8x128xf32>,
    return
  }
  func.func @transform_0(%arg0: i32) -> (i32, i32) {
    %c0_i32 = arith.constant 0 : i32
    %c0_i32_0 = arith.constant 0 : i32
    return %arg0, %c0_i32 : i32, i32
  }
  func.func @transform_1(%arg0: i32) -> (i32, i32) {
    %c0_i32 = arith.constant 0 : i32
    %c0_i32_0 = arith.constant 0 : i32
    %c0_i32_1 = arith.constant 0 : i32
    return %c0_i32, %c0_i32_0 : i32, i32
  }
  func.func @transform_2(%arg0: i32) -> (i32, i32) {
    %c0_i32 = arith.constant 0 : i32
    %c0_i32_0 = arith.constant 0 : i32
    return %arg0, %c0_i32 : i32, i32
  }
  func.func @transform_3(%arg0: i32) -> (i32, i32) {
    %c0_i32 = arith.constant 0 : i32
    %c0_i32_0 = arith.constant 0 : i32
    return %arg0, %c0_i32 : i32, i32
  }
  func.func @transform_4(%arg0: i32) -> (i32, i32) {
    %c0_i32 = arith.constant 0 : i32
    %c0_i32_0 = arith.constant 0 : i32
    return %arg0, %c0_i32 : i32, i32
  }
}

module attributes {stable_mosaic.version = 11 : i64} {
  func.func @_conv_mm_kernel(%arg0: i32, %arg1: memref<64x384xbf16, #tpu.memory_space<vmem>>, %arg2: memref<384x128xbf16, #tpu.memory_space<vmem>>, %arg3: memref<64x128xbf16, #tpu.memory_space<vmem>>, %arg4: memref<64x128xbf16, #tpu.memory_space<vmem>>, %arg5: memref<8x128xf32, #tpu.memory_space<vmem>>, %arg6: memref<8x128xf32, #tpu.memory_space<vmem>>) attributes {dimension_semantics = [#tpu.dimension_semantics<parallel>], iteration_bounds = array<i64: 2>, scalar_prefetch = 0 : i64, scratch_operands = 0 : i64, tpu.core_type = #tpu.core_type<tc>, window_params = [{transform_indices = @transform_0, window_bounds = array<i64: 64, 384>}, {pipeline_mode = #tpu.pipeline_mode<synchronous>, transform_indices = @transform_1, window_bounds = array<i64: 384, 128>}, {transform_indices = @transform_2, window_bounds = array<i64: 64, 128>}, {transform_indices = @transform_3, window_bounds = array<i64: 64, 128>}, {transform_indices = @transform_4, window_bounds = array<i64: 8, 128>}, {transform_indices = @transform_5, window_bounds = array<i64: 8, 128>}]} {
    %c0 = arith.constant 0 : index
    %c0_0 = arith.constant 0 : index
    %0 = vector.load %arg1[%c0, %c0_0] : memref<64x384xbf16, #tpu.memory_space<vmem>>, vector<64x384xbf16>
    %c0_1 = arith.constant 0 : index
    %c0_2 = arith.constant 0 : index
    %1 = vector.load %arg2[%c0_1, %c0_2] : memref<384x128xbf16, #tpu.memory_space<vmem>>, vector<384x128xbf16>
    %cst = arith.constant dense<0.000000e+00> : vector<64x128xf32>
    %2 = tpu.matmul %0, %1, %cst {dimension_numbers = #tpu.dot_dimension_numbers<[1], [0], [0], [1], [0, 0, 1, 1], [], []>} : vector<64x384xbf16>, vector<384x128xbf16>, vector<64x128xf32> -> vector<64x128xf32>
    %c0_3 = arith.constant 0 : index
    %c0_4 = arith.constant 0 : index
    %3 = vector.load %arg3[%c0_3, %c0_4] : memref<64x128xbf16, #tpu.memory_space<vmem>>, vector<64x128xbf16>
    %4 = arith.extf %3 : vector<64x128xbf16> to vector<64x128xf32>
    %5 = arith.addf %2, %4 : vector<64x128xf32>
    %6 = arith.truncf %5 : vector<64x128xf32> to vector<64x128xbf16>
    %c0_5 = arith.constant 0 : index
    %c0_6 = arith.constant 0 : index
    %7 = vector.load %arg4[%c0_5, %c0_6] : memref<64x128xbf16, #tpu.memory_space<vmem>>, vector<64x128xbf16>
    tpu.vector_store %arg4[%c0_5, %c0_6], %6 {strides = array<i32>} : memref<64x128xbf16, #tpu.memory_space<vmem>>, vector<64x128xbf16>,
    %8 = tpu.iota {dimensions = array<i32: 0>} : vector<8x128xi32>
    %c0_i32 = arith.constant 0 : i32
    %9 = vector.broadcast %c0_i32 : i32 to vector<8x128xi32>
    %10 = arith.cmpi eq, %8, %9 : vector<8x128xi32>
    %cst_7 = arith.constant dense<0.000000e+00> : vector<128xf32>
    %11 = vector.multi_reduction <add>, %5, %cst_7 [0] : vector<64x128xf32> to vector<128xf32>
    %12 = vector.shape_cast %11 : vector<128xf32> to vector<1x128xf32>
    %cst_8 = arith.constant 0.000000e+00 : f32
    %13 = vector.shape_cast %12 : vector<1x128xf32> to vector<1x128xf32>
    %14 = vector.broadcast %13 : vector<1x128xf32> to vector<8x128xf32>
    %15 = vector.broadcast %cst_8 : f32 to vector<8x128xf32>
    %16 = arith.select %10, %14, %15 : vector<8x128xi1>, vector<8x128xf32>
    %c0_9 = arith.constant 0 : index
    %c0_10 = arith.constant 0 : index
    %17 = vector.load %arg5[%c0_9, %c0_10] : memref<8x128xf32, #tpu.memory_space<vmem>>, vector<8x128xf32>
    tpu.vector_store %arg5[%c0_9, %c0_10], %16 {strides = array<i32>} : memref<8x128xf32, #tpu.memory_space<vmem>>, vector<8x128xf32>,
    %c0_i32_11 = arith.constant 0 : i32
    %18 = vector.broadcast %c0_i32_11 : i32 to vector<8x128xi32>
    %19 = arith.cmpi eq, %8, %18 : vector<8x128xi32>
    %20 = arith.mulf %5, %5 : vector<64x128xf32>
    %cst_12 = arith.constant dense<0.000000e+00> : vector<128xf32>
    %21 = vector.multi_reduction <add>, %20, %cst_12 [0] : vector<64x128xf32> to vector<128xf32>
    %22 = vector.shape_cast %21 : vector<128xf32> to vector<1x128xf32>
    %cst_13 = arith.constant 0.000000e+00 : f32
    %23 = vector.shape_cast %22 : vector<1x128xf32> to vector<1x128xf32>
    %24 = vector.broadcast %23 : vector<1x128xf32> to vector<8x128xf32>
    %25 = vector.broadcast %cst_13 : f32 to vector<8x128xf32>
    %26 = arith.select %19, %24, %25 : vector<8x128xi1>, vector<8x128xf32>
    %c0_14 = arith.constant 0 : index
    %c0_15 = arith.constant 0 : index
    %27 = vector.load %arg6[%c0_14, %c0_15] : memref<8x128xf32, #tpu.memory_space<vmem>>, vector<8x128xf32>
    tpu.vector_store %arg6[%c0_14, %c0_15], %26 {strides = array<i32>} : memref<8x128xf32, #tpu.memory_space<vmem>>, vector<8x128xf32>,
    return
  }
  func.func @transform_0(%arg0: i32) -> (i32, i32) {
    %c0_i32 = arith.constant 0 : i32
    %c0_i32_0 = arith.constant 0 : i32
    return %arg0, %c0_i32 : i32, i32
  }
  func.func @transform_1(%arg0: i32) -> (i32, i32) {
    %c0_i32 = arith.constant 0 : i32
    %c0_i32_0 = arith.constant 0 : i32
    %c0_i32_1 = arith.constant 0 : i32
    return %c0_i32, %c0_i32_0 : i32, i32
  }
  func.func @transform_2(%arg0: i32) -> (i32, i32) {
    %c0_i32 = arith.constant 0 : i32
    %c0_i32_0 = arith.constant 0 : i32
    return %arg0, %c0_i32 : i32, i32
  }
  func.func @transform_3(%arg0: i32) -> (i32, i32) {
    %c0_i32 = arith.constant 0 : i32
    %c0_i32_0 = arith.constant 0 : i32
    return %arg0, %c0_i32 : i32, i32
  }
  func.func @transform_4(%arg0: i32) -> (i32, i32) {
    %c0_i32 = arith.constant 0 : i32
    %c0_i32_0 = arith.constant 0 : i32
    return %arg0, %c0_i32 : i32, i32
  }
  func.func @transform_5(%arg0: i32) -> (i32, i32) {
    %c0_i32 = arith.constant 0 : i32
    %c0_i32_0 = arith.constant 0 : i32
    return %arg0, %c0_i32 : i32, i32
  }
}

module attributes {stable_mosaic.version = 11 : i64} {
  func.func @_conv_mm_kernel(%arg0: i32, %arg1: memref<16x128xbf16, #tpu.memory_space<vmem>>, %arg2: memref<128x128xbf16, #tpu.memory_space<vmem>>, %arg3: memref<16x128xbf16, #tpu.memory_space<vmem>>) attributes {dimension_semantics = [#tpu.dimension_semantics<parallel>], iteration_bounds = array<i64: 2>, scalar_prefetch = 0 : i64, scratch_operands = 0 : i64, tpu.core_type = #tpu.core_type<tc>, window_params = [{transform_indices = @transform_0, window_bounds = array<i64: 16, 128>}, {pipeline_mode = #tpu.pipeline_mode<synchronous>, transform_indices = @transform_1, window_bounds = array<i64: 128, 128>}, {transform_indices = @transform_2, window_bounds = array<i64: 16, 128>}]} {
    %c0 = arith.constant 0 : index
    %c0_0 = arith.constant 0 : index
    %0 = vector.load %arg1[%c0, %c0_0] : memref<16x128xbf16, #tpu.memory_space<vmem>>, vector<16x128xbf16>
    %c0_1 = arith.constant 0 : index
    %c0_2 = arith.constant 0 : index
    %1 = vector.load %arg2[%c0_1, %c0_2] : memref<128x128xbf16, #tpu.memory_space<vmem>>, vector<128x128xbf16>
    %cst = arith.constant dense<0.000000e+00> : vector<16x128xf32>
    %2 = tpu.matmul %0, %1, %cst {dimension_numbers = #tpu.dot_dimension_numbers<[1], [0], [0], [1], [0, 0, 1, 1], [], []>} : vector<16x128xbf16>, vector<128x128xbf16>, vector<16x128xf32> -> vector<16x128xf32>
    %3 = arith.truncf %2 : vector<16x128xf32> to vector<16x128xbf16>
    %c0_3 = arith.constant 0 : index
    %c0_4 = arith.constant 0 : index
    %4 = vector.load %arg3[%c0_3, %c0_4] : memref<16x128xbf16, #tpu.memory_space<vmem>>, vector<16x128xbf16>
    tpu.vector_store %arg3[%c0_3, %c0_4], %3 {strides = array<i32>} : memref<16x128xbf16, #tpu.memory_space<vmem>>, vector<16x128xbf16>,
    return
  }
  func.func @transform_0(%arg0: i32) -> (i32, i32) {
    %c0_i32 = arith.constant 0 : i32
    %c0_i32_0 = arith.constant 0 : i32
    return %arg0, %c0_i32 : i32, i32
  }
  func.func @transform_1(%arg0: i32) -> (i32, i32) {
    %c0_i32 = arith.constant 0 : i32
    %c0_i32_0 = arith.constant 0 : i32
    %c0_i32_1 = arith.constant 0 : i32
    return %c0_i32, %c0_i32_0 : i32, i32
  }
  func.func @transform_2(%arg0: i32) -> (i32, i32) {
    %c0_i32 = arith.constant 0 : i32
    %c0_i32_0 = arith.constant 0 : i32
    return %arg0, %c0_i32 : i32, i32
  }
}

module attributes {stable_mosaic.version = 11 : i64} {
  func.func @_conv_mm_kernel(%arg0: i32, %arg1: memref<16x384xbf16, #tpu.memory_space<vmem>>, %arg2: memref<384x128xbf16, #tpu.memory_space<vmem>>, %arg3: memref<16x128xbf16, #tpu.memory_space<vmem>>, %arg4: memref<8x128xf32, #tpu.memory_space<vmem>>, %arg5: memref<8x128xf32, #tpu.memory_space<vmem>>) attributes {dimension_semantics = [#tpu.dimension_semantics<parallel>], iteration_bounds = array<i64: 2>, scalar_prefetch = 0 : i64, scratch_operands = 0 : i64, tpu.core_type = #tpu.core_type<tc>, window_params = [{transform_indices = @transform_0, window_bounds = array<i64: 16, 384>}, {pipeline_mode = #tpu.pipeline_mode<synchronous>, transform_indices = @transform_1, window_bounds = array<i64: 384, 128>}, {transform_indices = @transform_2, window_bounds = array<i64: 16, 128>}, {transform_indices = @transform_3, window_bounds = array<i64: 8, 128>}, {transform_indices = @transform_4, window_bounds = array<i64: 8, 128>}]} {
    %c0 = arith.constant 0 : index
    %c0_0 = arith.constant 0 : index
    %0 = vector.load %arg1[%c0, %c0_0] : memref<16x384xbf16, #tpu.memory_space<vmem>>, vector<16x384xbf16>
    %c0_1 = arith.constant 0 : index
    %c0_2 = arith.constant 0 : index
    %1 = vector.load %arg2[%c0_1, %c0_2] : memref<384x128xbf16, #tpu.memory_space<vmem>>, vector<384x128xbf16>
    %cst = arith.constant dense<0.000000e+00> : vector<16x128xf32>
    %2 = tpu.matmul %0, %1, %cst {dimension_numbers = #tpu.dot_dimension_numbers<[1], [0], [0], [1], [0, 0, 1, 1], [], []>} : vector<16x384xbf16>, vector<384x128xbf16>, vector<16x128xf32> -> vector<16x128xf32>
    %3 = arith.truncf %2 : vector<16x128xf32> to vector<16x128xbf16>
    %c0_3 = arith.constant 0 : index
    %c0_4 = arith.constant 0 : index
    %4 = vector.load %arg3[%c0_3, %c0_4] : memref<16x128xbf16, #tpu.memory_space<vmem>>, vector<16x128xbf16>
    tpu.vector_store %arg3[%c0_3, %c0_4], %3 {strides = array<i32>} : memref<16x128xbf16, #tpu.memory_space<vmem>>, vector<16x128xbf16>,
    %5 = tpu.iota {dimensions = array<i32: 0>} : vector<8x128xi32>
    %c0_i32 = arith.constant 0 : i32
    %6 = vector.broadcast %c0_i32 : i32 to vector<8x128xi32>
    %7 = arith.cmpi eq, %5, %6 : vector<8x128xi32>
    %cst_5 = arith.constant dense<0.000000e+00> : vector<128xf32>
    %8 = vector.multi_reduction <add>, %2, %cst_5 [0] : vector<16x128xf32> to vector<128xf32>
    %9 = vector.shape_cast %8 : vector<128xf32> to vector<1x128xf32>
    %cst_6 = arith.constant 0.000000e+00 : f32
    %10 = vector.shape_cast %9 : vector<1x128xf32> to vector<1x128xf32>
    %11 = vector.broadcast %10 : vector<1x128xf32> to vector<8x128xf32>
    %12 = vector.broadcast %cst_6 : f32 to vector<8x128xf32>
    %13 = arith.select %7, %11, %12 : vector<8x128xi1>, vector<8x128xf32>
    %c0_7 = arith.constant 0 : index
    %c0_8 = arith.constant 0 : index
    %14 = vector.load %arg4[%c0_7, %c0_8] : memref<8x128xf32, #tpu.memory_space<vmem>>, vector<8x128xf32>
    tpu.vector_store %arg4[%c0_7, %c0_8], %13 {strides = array<i32>} : memref<8x128xf32, #tpu.memory_space<vmem>>, vector<8x128xf32>,
    %c0_i32_9 = arith.constant 0 : i32
    %15 = vector.broadcast %c0_i32_9 : i32 to vector<8x128xi32>
    %16 = arith.cmpi eq, %5, %15 : vector<8x128xi32>
    %17 = arith.mulf %2, %2 : vector<16x128xf32>
    %cst_10 = arith.constant dense<0.000000e+00> : vector<128xf32>
    %18 = vector.multi_reduction <add>, %17, %cst_10 [0] : vector<16x128xf32> to vector<128xf32>
    %19 = vector.shape_cast %18 : vector<128xf32> to vector<1x128xf32>
    %cst_11 = arith.constant 0.000000e+00 : f32
    %20 = vector.shape_cast %19 : vector<1x128xf32> to vector<1x128xf32>
    %21 = vector.broadcast %20 : vector<1x128xf32> to vector<8x128xf32>
    %22 = vector.broadcast %cst_11 : f32 to vector<8x128xf32>
    %23 = arith.select %16, %21, %22 : vector<8x128xi1>, vector<8x128xf32>
    %c0_12 = arith.constant 0 : index
    %c0_13 = arith.constant 0 : index
    %24 = vector.load %arg5[%c0_12, %c0_13] : memref<8x128xf32, #tpu.memory_space<vmem>>, vector<8x128xf32>
    tpu.vector_store %arg5[%c0_12, %c0_13], %23 {strides = array<i32>} : memref<8x128xf32, #tpu.memory_space<vmem>>, vector<8x128xf32>,
    return
  }
  func.func @transform_0(%arg0: i32) -> (i32, i32) {
    %c0_i32 = arith.constant 0 : i32
    %c0_i32_0 = arith.constant 0 : i32
    return %arg0, %c0_i32 : i32, i32
  }
  func.func @transform_1(%arg0: i32) -> (i32, i32) {
    %c0_i32 = arith.constant 0 : i32
    %c0_i32_0 = arith.constant 0 : i32
    %c0_i32_1 = arith.constant 0 : i32
    return %c0_i32, %c0_i32_0 : i32, i32
  }
  func.func @transform_2(%arg0: i32) -> (i32, i32) {
    %c0_i32 = arith.constant 0 : i32
    %c0_i32_0 = arith.constant 0 : i32
    return %arg0, %c0_i32 : i32, i32
  }
  func.func @transform_3(%arg0: i32) -> (i32, i32) {
    %c0_i32 = arith.constant 0 : i32
    %c0_i32_0 = arith.constant 0 : i32
    return %arg0, %c0_i32 : i32, i32
  }
  func.func @transform_4(%arg0: i32) -> (i32, i32) {
    %c0_i32 = arith.constant 0 : i32
    %c0_i32_0 = arith.constant 0 : i32
    return %arg0, %c0_i32 : i32, i32
  }
}

module attributes {stable_mosaic.version = 11 : i64} {
  func.func @_bn_relu_kernel(%arg0: i32, %arg1: memref<16x128xbf16, #tpu.memory_space<vmem>>, %arg2: memref<16x128xf32, #tpu.memory_space<vmem>>, %arg3: memref<16x128xf32, #tpu.memory_space<vmem>>, %arg4: memref<1x128xf32, #tpu.memory_space<vmem>>, %arg5: memref<1x128xf32, #tpu.memory_space<vmem>>, %arg6: memref<16x128xbf16, #tpu.memory_space<vmem>>) attributes {dimension_semantics = [#tpu.dimension_semantics<parallel>], iteration_bounds = array<i64: 2>, scalar_prefetch = 0 : i64, scratch_operands = 0 : i64, tpu.core_type = #tpu.core_type<tc>, window_params = [{transform_indices = @transform_0, window_bounds = array<i64: 16, 128>}, {pipeline_mode = #tpu.pipeline_mode<synchronous>, transform_indices = @transform_1, window_bounds = array<i64: 16, 128>}, {pipeline_mode = #tpu.pipeline_mode<synchronous>, transform_indices = @transform_2, window_bounds = array<i64: 16, 128>}, {pipeline_mode = #tpu.pipeline_mode<synchronous>, transform_indices = @transform_3, window_bounds = array<i64: 1, 128>}, {pipeline_mode = #tpu.pipeline_mode<synchronous>, transform_indices = @transform_4, window_bounds = array<i64: 1, 128>}, {transform_indices = @transform_5, window_bounds = array<i64: 16, 128>}]} {
    %c0 = arith.constant 0 : index
    %c0_0 = arith.constant 0 : index
    %0 = vector.load %arg2[%c0, %c0_0] : memref<16x128xf32, #tpu.memory_space<vmem>>, vector<16x128xf32>
    %cst = arith.constant dense<0.000000e+00> : vector<128xf32>
    %1 = vector.multi_reduction <add>, %0, %cst [0] : vector<16x128xf32> to vector<128xf32>
    %2 = vector.shape_cast %1 : vector<128xf32> to vector<1x128xf32>
    %c0_1 = arith.constant 0 : index
    %c0_2 = arith.constant 0 : index
    %3 = vector.load %arg3[%c0_1, %c0_2] : memref<16x128xf32, #tpu.memory_space<vmem>>, vector<16x128xf32>
    %cst_3 = arith.constant dense<0.000000e+00> : vector<128xf32>
    %4 = vector.multi_reduction <add>, %3, %cst_3 [0] : vector<16x128xf32> to vector<128xf32>
    %5 = vector.shape_cast %4 : vector<128xf32> to vector<1x128xf32>
    %cst_4 = arith.constant 3.125000e-02 : f32
    %6 = vector.broadcast %cst_4 : f32 to vector<1x128xf32>
    %7 = arith.mulf %2, %6 : vector<1x128xf32>
    %cst_5 = arith.constant 3.125000e-02 : f32
    %8 = vector.broadcast %cst_5 : f32 to vector<1x128xf32>
    %9 = arith.mulf %5, %8 : vector<1x128xf32>
    %10 = arith.mulf %7, %7 : vector<1x128xf32>
    %11 = arith.subf %9, %10 : vector<1x128xf32>
    %cst_6 = arith.constant 0.000000e+00 : f32
    %12 = vector.broadcast %cst_6 : f32 to vector<1x128xf32>
    %13 = arith.maximumf %11, %12 : vector<1x128xf32>
    %c0_7 = arith.constant 0 : index
    %c0_8 = arith.constant 0 : index
    %14 = vector.load %arg4[%c0_7, %c0_8] : memref<1x128xf32, #tpu.memory_space<vmem>>, vector<1x128xf32>
    %cst_9 = arith.constant 9.99999974E-6 : f32
    %15 = vector.broadcast %cst_9 : f32 to vector<1x128xf32>
    %16 = arith.addf %13, %15 : vector<1x128xf32>
    %17 = math.rsqrt %16 : vector<1x128xf32>
    %18 = arith.mulf %14, %17 : vector<1x128xf32>
    %c0_10 = arith.constant 0 : index
    %c0_11 = arith.constant 0 : index
    %19 = vector.load %arg5[%c0_10, %c0_11] : memref<1x128xf32, #tpu.memory_space<vmem>>, vector<1x128xf32>
    %20 = arith.mulf %7, %18 : vector<1x128xf32>
    %21 = arith.subf %19, %20 : vector<1x128xf32>
    %c0_12 = arith.constant 0 : index
    %c0_13 = arith.constant 0 : index
    %22 = vector.load %arg1[%c0_12, %c0_13] : memref<16x128xbf16, #tpu.memory_space<vmem>>, vector<16x128xbf16>
    %23 = arith.extf %22 : vector<16x128xbf16> to vector<16x128xf32>
    %24 = vector.broadcast %18 : vector<1x128xf32> to vector<16x128xf32>
    %25 = arith.mulf %23, %24 : vector<16x128xf32>
    %26 = vector.broadcast %21 : vector<1x128xf32> to vector<16x128xf32>
    %27 = arith.addf %25, %26 : vector<16x128xf32>
    %cst_14 = arith.constant 0.000000e+00 : f32
    %28 = vector.broadcast %cst_14 : f32 to vector<16x128xf32>
    %29 = arith.maximumf %27, %28 : vector<16x128xf32>
    %30 = arith.truncf %29 : vector<16x128xf32> to vector<16x128xbf16>
    %c0_15 = arith.constant 0 : index
    %c0_16 = arith.constant 0 : index
    %31 = vector.load %arg6[%c0_15, %c0_16] : memref<16x128xbf16, #tpu.memory_space<vmem>>, vector<16x128xbf16>
    tpu.vector_store %arg6[%c0_15, %c0_16], %30 {strides = array<i32>} : memref<16x128xbf16, #tpu.memory_space<vmem>>, vector<16x128xbf16>,
    return
  }
  func.func @transform_0(%arg0: i32) -> (i32, i32) {
    %c0_i32 = arith.constant 0 : i32
    %c0_i32_0 = arith.constant 0 : i32
    return %arg0, %c0_i32 : i32, i32
  }
  func.func @transform_1(%arg0: i32) -> (i32, i32) {
    %c0_i32 = arith.constant 0 : i32
    %c0_i32_0 = arith.constant 0 : i32
    %c0_i32_1 = arith.constant 0 : i32
    return %c0_i32, %c0_i32_0 : i32, i32
  }
  func.func @transform_2(%arg0: i32) -> (i32, i32) {
    %c0_i32 = arith.constant 0 : i32
    %c0_i32_0 = arith.constant 0 : i32
    %c0_i32_1 = arith.constant 0 : i32
    return %c0_i32, %c0_i32_0 : i32, i32
  }
  func.func @transform_3(%arg0: i32) -> (i32, i32) {
    %c0_i32 = arith.constant 0 : i32
    %c0_i32_0 = arith.constant 0 : i32
    %c0_i32_1 = arith.constant 0 : i32
    return %c0_i32, %c0_i32_0 : i32, i32
  }
  func.func @transform_4(%arg0: i32) -> (i32, i32) {
    %c0_i32 = arith.constant 0 : i32
    %c0_i32_0 = arith.constant 0 : i32
    %c0_i32_1 = arith.constant 0 : i32
    return %c0_i32, %c0_i32_0 : i32, i32
  }
  func.func @transform_5(%arg0: i32) -> (i32, i32) {
    %c0_i32 = arith.constant 0 : i32
    %c0_i32_0 = arith.constant 0 : i32
    return %arg0, %c0_i32 : i32, i32
  }
}

module attributes {stable_mosaic.version = 11 : i64} {
  func.func @_conv_mm_kernel(%arg0: i32, %arg1: memref<16x640xbf16, #tpu.memory_space<vmem>>, %arg2: memref<640x128xbf16, #tpu.memory_space<vmem>>, %arg3: memref<16x128xbf16, #tpu.memory_space<vmem>>, %arg4: memref<16x128xbf16, #tpu.memory_space<vmem>>, %arg5: memref<8x128xf32, #tpu.memory_space<vmem>>, %arg6: memref<8x128xf32, #tpu.memory_space<vmem>>) attributes {dimension_semantics = [#tpu.dimension_semantics<parallel>], iteration_bounds = array<i64: 2>, scalar_prefetch = 0 : i64, scratch_operands = 0 : i64, tpu.core_type = #tpu.core_type<tc>, window_params = [{transform_indices = @transform_0, window_bounds = array<i64: 16, 640>}, {pipeline_mode = #tpu.pipeline_mode<synchronous>, transform_indices = @transform_1, window_bounds = array<i64: 640, 128>}, {transform_indices = @transform_2, window_bounds = array<i64: 16, 128>}, {transform_indices = @transform_3, window_bounds = array<i64: 16, 128>}, {transform_indices = @transform_4, window_bounds = array<i64: 8, 128>}, {transform_indices = @transform_5, window_bounds = array<i64: 8, 128>}]} {
    %c0 = arith.constant 0 : index
    %c0_0 = arith.constant 0 : index
    %0 = vector.load %arg1[%c0, %c0_0] : memref<16x640xbf16, #tpu.memory_space<vmem>>, vector<16x640xbf16>
    %c0_1 = arith.constant 0 : index
    %c0_2 = arith.constant 0 : index
    %1 = vector.load %arg2[%c0_1, %c0_2] : memref<640x128xbf16, #tpu.memory_space<vmem>>, vector<640x128xbf16>
    %cst = arith.constant dense<0.000000e+00> : vector<16x128xf32>
    %2 = tpu.matmul %0, %1, %cst {dimension_numbers = #tpu.dot_dimension_numbers<[1], [0], [0], [1], [0, 0, 1, 1], [], []>} : vector<16x640xbf16>, vector<640x128xbf16>, vector<16x128xf32> -> vector<16x128xf32>
    %c0_3 = arith.constant 0 : index
    %c0_4 = arith.constant 0 : index
    %3 = vector.load %arg3[%c0_3, %c0_4] : memref<16x128xbf16, #tpu.memory_space<vmem>>, vector<16x128xbf16>
    %4 = arith.extf %3 : vector<16x128xbf16> to vector<16x128xf32>
    %5 = arith.addf %2, %4 : vector<16x128xf32>
    %6 = arith.truncf %5 : vector<16x128xf32> to vector<16x128xbf16>
    %c0_5 = arith.constant 0 : index
    %c0_6 = arith.constant 0 : index
    %7 = vector.load %arg4[%c0_5, %c0_6] : memref<16x128xbf16, #tpu.memory_space<vmem>>, vector<16x128xbf16>
    tpu.vector_store %arg4[%c0_5, %c0_6], %6 {strides = array<i32>} : memref<16x128xbf16, #tpu.memory_space<vmem>>, vector<16x128xbf16>,
    %8 = tpu.iota {dimensions = array<i32: 0>} : vector<8x128xi32>
    %c0_i32 = arith.constant 0 : i32
    %9 = vector.broadcast %c0_i32 : i32 to vector<8x128xi32>
    %10 = arith.cmpi eq, %8, %9 : vector<8x128xi32>
    %cst_7 = arith.constant dense<0.000000e+00> : vector<128xf32>
    %11 = vector.multi_reduction <add>, %5, %cst_7 [0] : vector<16x128xf32> to vector<128xf32>
    %12 = vector.shape_cast %11 : vector<128xf32> to vector<1x128xf32>
    %cst_8 = arith.constant 0.000000e+00 : f32
    %13 = vector.shape_cast %12 : vector<1x128xf32> to vector<1x128xf32>
    %14 = vector.broadcast %13 : vector<1x128xf32> to vector<8x128xf32>
    %15 = vector.broadcast %cst_8 : f32 to vector<8x128xf32>
    %16 = arith.select %10, %14, %15 : vector<8x128xi1>, vector<8x128xf32>
    %c0_9 = arith.constant 0 : index
    %c0_10 = arith.constant 0 : index
    %17 = vector.load %arg5[%c0_9, %c0_10] : memref<8x128xf32, #tpu.memory_space<vmem>>, vector<8x128xf32>
    tpu.vector_store %arg5[%c0_9, %c0_10], %16 {strides = array<i32>} : memref<8x128xf32, #tpu.memory_space<vmem>>, vector<8x128xf32>,
    %c0_i32_11 = arith.constant 0 : i32
    %18 = vector.broadcast %c0_i32_11 : i32 to vector<8x128xi32>
    %19 = arith.cmpi eq, %8, %18 : vector<8x128xi32>
    %20 = arith.mulf %5, %5 : vector<16x128xf32>
    %cst_12 = arith.constant dense<0.000000e+00> : vector<128xf32>
    %21 = vector.multi_reduction <add>, %20, %cst_12 [0] : vector<16x128xf32> to vector<128xf32>
    %22 = vector.shape_cast %21 : vector<128xf32> to vector<1x128xf32>
    %cst_13 = arith.constant 0.000000e+00 : f32
    %23 = vector.shape_cast %22 : vector<1x128xf32> to vector<1x128xf32>
    %24 = vector.broadcast %23 : vector<1x128xf32> to vector<8x128xf32>
    %25 = vector.broadcast %cst_13 : f32 to vector<8x128xf32>
    %26 = arith.select %19, %24, %25 : vector<8x128xi1>, vector<8x128xf32>
    %c0_14 = arith.constant 0 : index
    %c0_15 = arith.constant 0 : index
    %27 = vector.load %arg6[%c0_14, %c0_15] : memref<8x128xf32, #tpu.memory_space<vmem>>, vector<8x128xf32>
    tpu.vector_store %arg6[%c0_14, %c0_15], %26 {strides = array<i32>} : memref<8x128xf32, #tpu.memory_space<vmem>>, vector<8x128xf32>,
    return
  }
  func.func @transform_0(%arg0: i32) -> (i32, i32) {
    %c0_i32 = arith.constant 0 : i32
    %c0_i32_0 = arith.constant 0 : i32
    return %arg0, %c0_i32 : i32, i32
  }
  func.func @transform_1(%arg0: i32) -> (i32, i32) {
    %c0_i32 = arith.constant 0 : i32
    %c0_i32_0 = arith.constant 0 : i32
    %c0_i32_1 = arith.constant 0 : i32
    return %c0_i32, %c0_i32_0 : i32, i32
  }
  func.func @transform_2(%arg0: i32) -> (i32, i32) {
    %c0_i32 = arith.constant 0 : i32
    %c0_i32_0 = arith.constant 0 : i32
    return %arg0, %c0_i32 : i32, i32
  }
  func.func @transform_3(%arg0: i32) -> (i32, i32) {
    %c0_i32 = arith.constant 0 : i32
    %c0_i32_0 = arith.constant 0 : i32
    return %arg0, %c0_i32 : i32, i32
  }
  func.func @transform_4(%arg0: i32) -> (i32, i32) {
    %c0_i32 = arith.constant 0 : i32
    %c0_i32_0 = arith.constant 0 : i32
    return %arg0, %c0_i32 : i32, i32
  }
  func.func @transform_5(%arg0: i32) -> (i32, i32) {
    %c0_i32 = arith.constant 0 : i32
    %c0_i32_0 = arith.constant 0 : i32
    return %arg0, %c0_i32 : i32, i32
  }
}

module attributes {stable_mosaic.version = 11 : i64} {
  func.func @_head_kernel(%arg0: i32, %arg1: memref<2x16x128xbf16, #tpu.memory_space<vmem>>, %arg2: memref<16x128xf32, #tpu.memory_space<vmem>>, %arg3: memref<16x128xf32, #tpu.memory_space<vmem>>, %arg4: memref<1x128xf32, #tpu.memory_space<vmem>>, %arg5: memref<1x128xf32, #tpu.memory_space<vmem>>, %arg6: memref<128x128xf32, #tpu.memory_space<vmem>>, %arg7: memref<1x128xf32, #tpu.memory_space<vmem>>, %arg8: memref<2x128xf32, #tpu.memory_space<vmem>>) attributes {dimension_semantics = [#tpu.dimension_semantics<arbitrary>], iteration_bounds = array<i64: 1>, scalar_prefetch = 0 : i64, scratch_operands = 0 : i64, tpu.core_type = #tpu.core_type<tc>, window_params = [{pipeline_mode = #tpu.pipeline_mode<synchronous>, transform_indices = @transform_0, window_bounds = array<i64: 2, 16, 128>}, {pipeline_mode = #tpu.pipeline_mode<synchronous>, transform_indices = @transform_1, window_bounds = array<i64: 16, 128>}, {pipeline_mode = #tpu.pipeline_mode<synchronous>, transform_indices = @transform_2, window_bounds = array<i64: 16, 128>}, {pipeline_mode = #tpu.pipeline_mode<synchronous>, transform_indices = @transform_3, window_bounds = array<i64: 1, 128>}, {pipeline_mode = #tpu.pipeline_mode<synchronous>, transform_indices = @transform_4, window_bounds = array<i64: 1, 128>}, {pipeline_mode = #tpu.pipeline_mode<synchronous>, transform_indices = @transform_5, window_bounds = array<i64: 128, 128>}, {pipeline_mode = #tpu.pipeline_mode<synchronous>, transform_indices = @transform_6, window_bounds = array<i64: 1, 128>}, {pipeline_mode = #tpu.pipeline_mode<synchronous>, transform_indices = @transform_7, window_bounds = array<i64: 2, 128>}]} {
    %c0 = arith.constant 0 : index
    %c0_0 = arith.constant 0 : index
    %0 = vector.load %arg2[%c0, %c0_0] : memref<16x128xf32, #tpu.memory_space<vmem>>, vector<16x128xf32>
    %cst = arith.constant dense<0.000000e+00> : vector<128xf32>
    %1 = vector.multi_reduction <add>, %0, %cst [0] : vector<16x128xf32> to vector<128xf32>
    %2 = vector.shape_cast %1 : vector<128xf32> to vector<1x128xf32>
    %c0_1 = arith.constant 0 : index
    %c0_2 = arith.constant 0 : index
    %3 = vector.load %arg3[%c0_1, %c0_2] : memref<16x128xf32, #tpu.memory_space<vmem>>, vector<16x128xf32>
    %cst_3 = arith.constant dense<0.000000e+00> : vector<128xf32>
    %4 = vector.multi_reduction <add>, %3, %cst_3 [0] : vector<16x128xf32> to vector<128xf32>
    %5 = vector.shape_cast %4 : vector<128xf32> to vector<1x128xf32>
    %cst_4 = arith.constant 3.125000e-02 : f32
    %6 = vector.broadcast %cst_4 : f32 to vector<1x128xf32>
    %7 = arith.mulf %2, %6 : vector<1x128xf32>
    %cst_5 = arith.constant 3.125000e-02 : f32
    %8 = vector.broadcast %cst_5 : f32 to vector<1x128xf32>
    %9 = arith.mulf %5, %8 : vector<1x128xf32>
    %10 = arith.mulf %7, %7 : vector<1x128xf32>
    %11 = arith.subf %9, %10 : vector<1x128xf32>
    %cst_6 = arith.constant 0.000000e+00 : f32
    %12 = vector.broadcast %cst_6 : f32 to vector<1x128xf32>
    %13 = arith.maximumf %11, %12 : vector<1x128xf32>
    %c0_7 = arith.constant 0 : index
    %c0_8 = arith.constant 0 : index
    %14 = vector.load %arg4[%c0_7, %c0_8] : memref<1x128xf32, #tpu.memory_space<vmem>>, vector<1x128xf32>
    %cst_9 = arith.constant 9.99999974E-6 : f32
    %15 = vector.broadcast %cst_9 : f32 to vector<1x128xf32>
    %16 = arith.addf %13, %15 : vector<1x128xf32>
    %17 = math.rsqrt %16 : vector<1x128xf32>
    %18 = arith.mulf %14, %17 : vector<1x128xf32>
    %c0_10 = arith.constant 0 : index
    %c0_11 = arith.constant 0 : index
    %19 = vector.load %arg5[%c0_10, %c0_11] : memref<1x128xf32, #tpu.memory_space<vmem>>, vector<1x128xf32>
    %20 = arith.mulf %7, %18 : vector<1x128xf32>
    %21 = arith.subf %19, %20 : vector<1x128xf32>
    %c0_12 = arith.constant 0 : index
    %c0_13 = arith.constant 0 : index
    %c0_14 = arith.constant 0 : index
    %22 = vector.load %arg1[%c0_12, %c0_13, %c0_14] : memref<2x16x128xbf16, #tpu.memory_space<vmem>>, vector<2x16x128xbf16>
    %23 = arith.extf %22 : vector<2x16x128xbf16> to vector<2x16x128xf32>
    %24 = vector.shape_cast %18 : vector<1x128xf32> to vector<1x1x128xf32>
    %25 = vector.broadcast %24 : vector<1x1x128xf32> to vector<2x16x128xf32>
    %26 = arith.mulf %23, %25 : vector<2x16x128xf32>
    %27 = vector.shape_cast %21 : vector<1x128xf32> to vector<1x1x128xf32>
    %28 = vector.broadcast %27 : vector<1x1x128xf32> to vector<2x16x128xf32>
    %29 = arith.addf %26, %28 : vector<2x16x128xf32>
    %cst_15 = arith.constant 0.000000e+00 : f32
    %30 = vector.broadcast %cst_15 : f32 to vector<2x16x128xf32>
    %31 = arith.maximumf %29, %30 : vector<2x16x128xf32>
    %cst_16 = arith.constant dense<0.000000e+00> : vector<2x128xf32>
    %32 = vector.multi_reduction <add>, %31, %cst_16 [1] : vector<2x16x128xf32> to vector<2x128xf32>
    %cst_17 = arith.constant 1.600000e+01 : f32
    %33 = vector.broadcast %cst_17 : f32 to vector<2x128xf32>
    %34 = arith.divf %32, %33 : vector<2x128xf32>
    %c0_18 = arith.constant 0 : index
    %c0_19 = arith.constant 0 : index
    %35 = vector.load %arg6[%c0_18, %c0_19] : memref<128x128xf32, #tpu.memory_space<vmem>>, vector<128x128xf32>
    %cst_20 = arith.constant dense<0.000000e+00> : vector<2x128xf32>
    %36 = tpu.matmul %34, %35, %cst_20 {dimension_numbers = #tpu.dot_dimension_numbers<[1], [0], [0], [1], [0, 0, 1, 1], [], []>} : vector<2x128xf32>, vector<128x128xf32>, vector<2x128xf32> -> vector<2x128xf32>
    %c0_21 = arith.constant 0 : index
    %c0_22 = arith.constant 0 : index
    %37 = vector.load %arg7[%c0_21, %c0_22] : memref<1x128xf32, #tpu.memory_space<vmem>>, vector<1x128xf32>
    %38 = vector.broadcast %37 : vector<1x128xf32> to vector<2x128xf32>
    %39 = arith.addf %36, %38 : vector<2x128xf32>
    %c0_23 = arith.constant 0 : index
    %c0_24 = arith.constant 0 : index
    %40 = vector.load %arg8[%c0_23, %c0_24] : memref<2x128xf32, #tpu.memory_space<vmem>>, vector<2x128xf32>
    tpu.vector_store %arg8[%c0_23, %c0_24], %39 {strides = array<i32>} : memref<2x128xf32, #tpu.memory_space<vmem>>, vector<2x128xf32>,
    return
  }
  func.func @transform_0(%arg0: i32) -> (i32, i32, i32) {
    %c0_i32 = arith.constant 0 : i32
    %c0_i32_0 = arith.constant 0 : i32
    %c0_i32_1 = arith.constant 0 : i32
    %c0_i32_2 = arith.constant 0 : i32
    return %c0_i32, %c0_i32_0, %c0_i32_1 : i32, i32, i32
  }
  func.func @transform_1(%arg0: i32) -> (i32, i32) {
    %c0_i32 = arith.constant 0 : i32
    %c0_i32_0 = arith.constant 0 : i32
    %c0_i32_1 = arith.constant 0 : i32
    return %c0_i32, %c0_i32_0 : i32, i32
  }
  func.func @transform_2(%arg0: i32) -> (i32, i32) {
    %c0_i32 = arith.constant 0 : i32
    %c0_i32_0 = arith.constant 0 : i32
    %c0_i32_1 = arith.constant 0 : i32
    return %c0_i32, %c0_i32_0 : i32, i32
  }
  func.func @transform_3(%arg0: i32) -> (i32, i32) {
    %c0_i32 = arith.constant 0 : i32
    %c0_i32_0 = arith.constant 0 : i32
    %c0_i32_1 = arith.constant 0 : i32
    return %c0_i32, %c0_i32_0 : i32, i32
  }
  func.func @transform_4(%arg0: i32) -> (i32, i32) {
    %c0_i32 = arith.constant 0 : i32
    %c0_i32_0 = arith.constant 0 : i32
    %c0_i32_1 = arith.constant 0 : i32
    return %c0_i32, %c0_i32_0 : i32, i32
  }
  func.func @transform_5(%arg0: i32) -> (i32, i32) {
    %c0_i32 = arith.constant 0 : i32
    %c0_i32_0 = arith.constant 0 : i32
    %c0_i32_1 = arith.constant 0 : i32
    return %c0_i32, %c0_i32_0 : i32, i32
  }
  func.func @transform_6(%arg0: i32) -> (i32, i32) {
    %c0_i32 = arith.constant 0 : i32
    %c0_i32_0 = arith.constant 0 : i32
    %c0_i32_1 = arith.constant 0 : i32
    return %c0_i32, %c0_i32_0 : i32, i32
  }
  func.func @transform_7(%arg0: i32) -> (i32, i32) {
    %c0_i32 = arith.constant 0 : i32
    %c0_i32_0 = arith.constant 0 : i32
    %c0_i32_1 = arith.constant 0 : i32
    return %c0_i32, %c0_i32_0 : i32, i32
  }
}

</mosaic_0001>

<llo_original>
// kernel: preact_resnet_forward.17
$region0: #{preact_resnet_forward.17}
  #allocation0 [shape = 'u32[]', space=smem, size = 0x4, offset = 0x4, fixed_abs, tag = 'smem constant byte address 0x4 - core index']
  #allocation1 [shape = 'u32[72,128]{1,0:T(1,128)}', space=vmem, size = 0x9000, scoped, tag = 'internal scratch']
  %s0 = inlined_call_operand.vmem [shape: bf16[512,128], index: 0, kind: input, shape index: {}]
  %s1 = inlined_call_operand.vmem [shape: f32[32,128], index: 1, kind: input, shape index: {}]
  %s2 = inlined_call_operand.vmem [shape: f32[32,128], index: 2, kind: input, shape index: {}]
  %s3 = inlined_call_operand.vmem [shape: f32[1,128], index: 3, kind: input, shape index: {}]
  %s4 = inlined_call_operand.vmem [shape: f32[1,128], index: 4, kind: input, shape index: {}]
  %s5 = inlined_call_operand.vmem [shape: bf16[512,128], index: 5, kind: output, shape index: {}]
  %s6 = sld [smem:[#allocation0]]
  $region53: #{preact_resnet_forward.17} parent=0
    _
  %s8 = ssub.s32 1, %s6
  %s9 = scalar_select 0, %s8, %s6
  loop: start=0, step=1, limit=4
  $region2: #{preact_resnet_forward.17} parent=0 // loop_pre_header
    _
  $region3: #{preact_resnet_forward.17} parent=0 // loop_header
    %s11 = sphi 0, %s15
    %p12 = scmp.ge.s32.totalorder %s11, 4
    %s21 = sphi 0, %s23
    %s24 = sphi 0, %s21
    %s25 = sphi 0, %s24
    %s41 = sphi 0, %s25
    %s45 = sphi 0, %s45
    %s47 = sphi 0, %s45
    %s48 = sphi 0, %s47
    %s62 = sphi 0, %s48
    %s66 = sphi 0, %s66
    %s68 = sphi 0, %s66
    %s69 = sphi 0, %s68
    %s83 = sphi 0, %s69
    %s87 = sphi 0, %s87
    %s89 = sphi 0, %s87
    %s90 = sphi 0, %s89
    %s104 = sphi 0, %s90
    %s108 = sphi 0, %s108
    %s110 = sphi 0, %s108
    %s111 = sphi 0, %s110
    %s125 = sphi 0, %s111
    %s131 = sphi 0, %s133
    %s134 = sphi 0, %s131
    %s135 = sphi 0, %s134
    %s151 = sphi 0, %s135
  $region4: #{preact_resnet_forward.17} parent=0 // loop_header_branch
    %14 = sbr.rel (%p12) target = $region8
  $region5: #{preact_resnet_forward.17} parent=0 // loop_body
    %s16 = ssub.s32 %s11, 1
    %s17 = ssub.s32 %s11, 2
    %s18 = sadd.s32 %s11, 1
    %s19 = ssub.s32 %s11, %s18
    %p20 = scmp.eq.s32.totalorder %s19, 0
    %s22 = sadd.s32 %s21, 1
    %s23 = scalar_select %p20, %s21, %s22
    %p26 = pneg %p20
    %p27 = scmp.eq.s32.totalorder %s11, 1
    %p28 = por %p26, %p27
    %p29 = scmp.ne.s32.totalorder %s21, %s24
    %p30 = scmp.eq.s32.totalorder %s11, 0
    %p31 = por %p29, %p30
    %p32 = scmp.ne.s32.totalorder %s21, %s24
    %p33 = scmp.eq.s32.totalorder %s16, 1
    %p34 = por %p32, %p33
    %p35 = scmp.ne.s32.totalorder %s24, %s25
    %p36 = scmp.eq.s32.totalorder %s16, 0
    %p37 = por %p35, %p36
    %p38 = scmp.ne.s32.totalorder %s24, %s25
    %p39 = scmp.eq.s32.totalorder %s17, 1
    %p40 = por %p38, %p39
    %p42 = scmp.ne.s32.totalorder %s25, %s41
    %p43 = scmp.eq.s32.totalorder %s17, 0
    %p44 = por %p42, %p43
    %s46 = sadd.s32 %s45, 1
    %p49 = scmp.eq.s32.totalorder %s11, 1
    %p50 = scmp.ne.s32.totalorder %s45, %s47
    %p51 = scmp.eq.s32.totalorder %s11, 0
    %p52 = por %p50, %p51
    %p53 = scmp.ne.s32.totalorder %s45, %s47
    %p54 = scmp.eq.s32.totalorder %s16, 1
    %p55 = por %p53, %p54
    %p56 = scmp.ne.s32.totalorder %s47, %s48
    %p57 = scmp.eq.s32.totalorder %s16, 0
    %p58 = por %p56, %p57
    %p59 = scmp.ne.s32.totalorder %s47, %s48
    %p60 = scmp.eq.s32.totalorder %s17, 1
    %p61 = por %p59, %p60
    %p63 = scmp.ne.s32.totalorder %s48, %s62
    %p64 = scmp.eq.s32.totalorder %s17, 0
    %p65 = por %p63, %p64
    %s67 = sadd.s32 %s66, 1
    %p70 = scmp.eq.s32.totalorder %s11, 1
    %p71 = scmp.ne.s32.totalorder %s66, %s68
    %p72 = scmp.eq.s32.totalorder %s11, 0
    %p73 = por %p71, %p72
    %p74 = scmp.ne.s32.totalorder %s66, %s68
    %p75 = scmp.eq.s32.totalorder %s16, 1
    %p76 = por %p74, %p75
    %p77 = scmp.ne.s32.totalorder %s68, %s69
    %p78 = scmp.eq.s32.totalorder %s16, 0
    %p79 = por %p77, %p78
    %p80 = scmp.ne.s32.totalorder %s68, %s69
    %p81 = scmp.eq.s32.totalorder %s17, 1
    %p82 = por %p80, %p81
    %p84 = scmp.ne.s32.totalorder %s69, %s83
    %p85 = scmp.eq.s32.totalorder %s17, 0
    %p86 = por %p84, %p85
    %s88 = sadd.s32 %s87, 1
    %p91 = scmp.eq.s32.totalorder %s11, 1
    %p92 = scmp.ne.s32.totalorder %s87, %s89
    %p93 = scmp.eq.s32.totalorder %s11, 0
    %p94 = por %p92, %p93
    %p95 = scmp.ne.s32.totalorder %s87, %s89
    %p96 = scmp.eq.s32.totalorder %s16, 1
    %p97 = por %p95, %p96
    %p98 = scmp.ne.s32.totalorder %s89, %s90
    %p99 = scmp.eq.s32.totalorder %s16, 0
    %p100 = por %p98, %p99
    %p101 = scmp.ne.s32.totalorder %s89, %s90
    %p102 = scmp.eq.s32.totalorder %s17, 1
    %p103 = por %p101, %p102
    %p105 = scmp.ne.s32.totalorder %s90, %s104
    %p106 = scmp.eq.s32.totalorder %s17, 0
    %p107 = por %p105, %p106
    %s109 = sadd.s32 %s108, 1
    %p112 = scmp.eq.s32.totalorder %s11, 1
    %p113 = scmp.ne.s32.totalorder %s108, %s110
    %p114 = scmp.eq.s32.totalorder %s11, 0
    %p115 = por %p113, %p114
    %p116 = scmp.ne.s32.totalorder %s108, %s110
    %p117 = scmp.eq.s32.totalorder %s16, 1
    %p118 = por %p116, %p117
    %p119 = scmp.ne.s32.totalorder %s110, %s111
    %p120 = scmp.eq.s32.totalorder %s16, 0
    %p121 = por %p119, %p120
    %p122 = scmp.ne.s32.totalorder %s110, %s111
    %p123 = scmp.eq.s32.totalorder %s17, 1
    %p124 = por %p122, %p123
    %p126 = scmp.ne.s32.totalorder %s111, %s125
    %p127 = scmp.eq.s32.totalorder %s17, 0
    %p128 = por %p126, %p127
    %s129 = ssub.s32 %s11, %s18
    %p130 = scmp.eq.s32.totalorder %s129, 0
    %s132 = sadd.s32 %s131, 1
    %s133 = scalar_select %p130, %s131, %s132
    %p136 = pneg %p130
    %p137 = scmp.eq.s32.totalorder %s11, 1
    %p138 = por %p136, %p137
    %p139 = scmp.ne.s32.totalorder %s131, %s134
    %p140 = scmp.eq.s32.totalorder %s11, 0
    %p141 = por %p139, %p140
    %p142 = scmp.ne.s32.totalorder %s131, %s134
    %p143 = scmp.eq.s32.totalorder %s16, 1
    %p144 = por %p142, %p143
    %p145 = scmp.ne.s32.totalorder %s134, %s135
    %p146 = scmp.eq.s32.totalorder %s16, 0
    %p147 = por %p145, %p146
    %p148 = scmp.ne.s32.totalorder %s134, %s135
    %p149 = scmp.eq.s32.totalorder %s17, 1
    %p150 = por %p148, %p149
    %p152 = scmp.ne.s32.totalorder %s135, %s151
    %p153 = scmp.eq.s32.totalorder %s17, 0
    %p154 = por %p152, %p153
    %p155 = scmp.le.s32.totalorder 1, %s11
    %p156 = scmp.lt.s32.totalorder %s11, 3
    %p157 = pnand %p155, %p156
    %p158 = pneg %p157
    // Predicated region
    $region9: #{preact_resnet_forward.17} parent=5 // pred_check
      _
    $region10: #{preact_resnet_forward.17} parent=5 // pred_check_branch
      %160 = sbr.rel (%p157) target = $region12
    $region11: #{preact_resnet_forward.17} parent=5 // pred_region
      %s161 = ssub.s32 %s11, 1
      // Predicated region
      $region13: #{preact_resnet_forward.17} parent=11 // pred_check
        %p162 = pneg %p58
      $region14: #{preact_resnet_forward.17} parent=11 // pred_check_branch
        %164 = sbr.rel (%p162) target = $region16
      $region15: #{preact_resnet_forward.17} parent=11 // pred_region
        _
      $region16: #{preact_resnet_forward.17} parent=11 // pred_fallthru
        _
      // Predicated region
      $region17: #{preact_resnet_forward.17} parent=11 // pred_check
        %p165 = pneg %p79
      $region18: #{preact_resnet_forward.17} parent=11 // pred_check_branch
        %167 = sbr.rel (%p165) target = $region20
      $region19: #{preact_resnet_forward.17} parent=11 // pred_region
        _
      $region20: #{preact_resnet_forward.17} parent=11 // pred_fallthru
        _
      // Predicated region
      $region21: #{preact_resnet_forward.17} parent=11 // pred_check
        %p168 = pneg %p100
      $region22: #{preact_resnet_forward.17} parent=11 // pred_check_branch
        %170 = sbr.rel (%p168) target = $region24
      $region23: #{preact_resnet_forward.17} parent=11 // pred_region
        _
      $region24: #{preact_resnet_forward.17} parent=11 // pred_fallthru
        _
      // Predicated region
      $region25: #{preact_resnet_forward.17} parent=11 // pred_check
        %p171 = pneg %p121
      $region26: #{preact_resnet_forward.17} parent=11 // pred_check_branch
        %173 = sbr.rel (%p171) target = $region28
      $region27: #{preact_resnet_forward.17} parent=11 // pred_region
        _
      $region28: #{preact_resnet_forward.17} parent=11 // pred_fallthru
        _
    $region12: #{preact_resnet_forward.17} parent=5 // pred_fallthru
      _
    %p174 = scmp.lt.s32.totalorder %s11, 2
    // Predicated region
    $region29: #{preact_resnet_forward.17} parent=5 // pred_check
      %p175 = pneg %p174
    $region30: #{preact_resnet_forward.17} parent=5 // pred_check_branch
      %177 = sbr.rel (%p175) target = $region32
    $region31: #{preact_resnet_forward.17} parent=5 // pred_region
      // Predicated region
      $region33: #{preact_resnet_forward.17} parent=31 // pred_check
        %p178 = pneg %p31
      $region34: #{preact_resnet_forward.17} parent=31 // pred_check_branch
        %180 = sbr.rel (%p178) target = $region36
      $region35: #{preact_resnet_forward.17} parent=31 // pred_region
        %s181 = smul.u32 32, %s11
        %p182 = scmp.lt.s32.totalorder %s181, 63
        %s183 = scalar_select %p182, %s181, 63
        %s184 = smul.addr %s183, 4
        %s185 = scalar_lea.vmem %s0, %s184
        %s186 = smul.u32 32, %s11
      $region36: #{preact_resnet_forward.17} parent=31 // pred_fallthru
        _
    $region32: #{preact_resnet_forward.17} parent=5 // pred_fallthru
      _
    %p187 = scmp.le.s32.totalorder 1, %s11
    %p188 = scmp.lt.s32.totalorder %s11, 3
    %p189 = pnand %p187, %p188
    %p190 = pneg %p189
    // Predicated region
    $region37: #{preact_resnet_forward.17} parent=5 // pred_check
      _
    $region38: #{preact_resnet_forward.17} parent=5 // pred_check_branch
      %192 = sbr.rel (%p189) target = $region40
    $region39: #{preact_resnet_forward.17} parent=5 // pred_region
      %s193 = ssub.s32 %s11, 1
      %s194 = smul.u32 32, %s16
      %p195 = scmp.lt.s32.totalorder %s194, 63
      %s196 = scalar_select %p195, %s194, 63
      %s197 = smul.addr %s196, 4
      %s198 = scalar_lea.vmem %s0, %s197
      %p199 = pneg %p37
      %p200 = pneg %p34
      %p201 = pneg %p58
      %p202 = pneg %p55
      %p203 = pneg %p79
      %p204 = pneg %p76
      %p205 = pneg %p100
      %p206 = pneg %p97
      %p207 = pneg %p121
      %p208 = pneg %p118
      %p209 = pneg %p147
      %p210 = pneg %p144
      %s211 = smul.u32 32, %s16
      %p212 = scmp.lt.s32.totalorder %s211, 63
      %s213 = scalar_select %p212, %s211, 63
      %s214 = smul.addr %s213, 4
      %s215 = scalar_lea.vmem %s5, %s214
      %s216 = smul.u32 32, %s16
      %p217 = scmp.lt.s32.totalorder %s216, 63
      %s218 = scalar_select %p217, %s216, 63
      %s219 = smul.addr %s218, 4
      %s220 = scalar_lea.vmem %s0, %s219
      %s221 = smul.u32 32, %s16
      %s222 = smul.u32 32, %s16
      %p223 = scmp.lt.s32.totalorder %s222, 63
      %s224 = scalar_select %p223, %s222, 63
      %s225 = smul.addr %s224, 4
      %s226 = scalar_lea.vmem %s5, %s225
      %s227 = smul.u32 32, %s16
      %v228 = vld [vmem:[%s1] sm:$0xff]
      %v229 = vld [vmem:[%s1 + $0x8] sm:$0xff]
      %v230 = vld [vmem:[%s1 + $0x10] sm:$0xff]
      %v231 = vld [vmem:[%s1 + $0x18] sm:$0xff]
      %v232 = vadd.f32 %v228, %v229
      %v233 = vadd.f32 %v232, %v230
      %v234 = vadd.f32 %v233, %v231
      %v235 = vrot.slane %v234, 4
      %v236 = vadd.f32 %v234, %v235
      %v237 = vrot.slane %v236, 2
      %v238 = vadd.f32 %v236, %v237
      %v239 = vrot.slane %v238, 1
      %v240 = vadd.f32 %v238, %v239
      %v241 = vld [vmem:[%s2] sm:$0xff]
      %v242 = vld [vmem:[%s2 + $0x8] sm:$0xff]
      %v243 = vld [vmem:[%s2 + $0x10] sm:$0xff]
      %v244 = vld [vmem:[%s2 + $0x18] sm:$0xff]
      %v245 = vadd.f32 %v241, %v242
      %v246 = vadd.f32 %v245, %v243
      %v247 = vadd.f32 %v246, %v244
      %v248 = vrot.slane %v247, 4
      %v249 = vadd.f32 %v247, %v248
      %v250 = vrot.slane %v249, 2
      %v251 = vadd.f32 %v249, %v250
      %v252 = vrot.slane %v251, 1
      %v253 = vadd.f32 %v251, %v252
      %v254 = vmul.f32 %v240, 0.001953125
      %v255 = vmul.f32 %v253, 0.001953125
      %v256 = vmul.f32 %v254, %v254
      %v257 = vsub.f32 %v255, %v256
      %v258 = vmax.f32 %v257, 0.0
      %v259 = vld [vmem:[%s3] sm:$0x1]
      %v260 = vadd.f32 %v258, 1e-05
      %v261 = vrsqrt.pop %v260
      %v262 = vmul.f32 %v261, %v260
      %v263 = vmul.f32 %v262, %v261
      %v264 = vmul.f32 0.5, %v263
      %v265 = vsub.f32 1.5, %v264
      %v266 = vmul.f32 %v261, %v265
      %vm267 = vweird.f32 %v260
      %vm268 = vweird.f32 %v261
      %vm269 = vmor %vm267, %vm268
      %v270 = vsel %vm269, %v261, %v266
      %v271 = vmul.f32 %v259, %v270
      %v272 = vld [vmem:[%s4] sm:$0x1]
      %v273 = vmul.f32 %v254, %v271
      %v274 = vsub.f32 %v272, %v273
      %v275 = vld [vmem:[%s220] sm:$0xf]
      %v276 = vld [vmem:[%s220 + $0x4] sm:$0xf]
      %v277 = vld [vmem:[%s220 + $0x8] sm:$0xf]
      %v278 = vld [vmem:[%s220 + $0xc] sm:$0xf]
      %v279 = vld [vmem:[%s220 + $0x10] sm:$0xf]
      %v280 = vld [vmem:[%s220 + $0x14] sm:$0xf]
      %v281 = vld [vmem:[%s220 + $0x18] sm:$0xf]
      %v282 = vld [vmem:[%s220 + $0x1c] sm:$0xf]
      %v283 = vld [vmem:[%s220 + $0x20] sm:$0xf]
      %v284 = vld [vmem:[%s220 + $0x24] sm:$0xf]
      %v285 = vld [vmem:[%s220 + $0x28] sm:$0xf]
      %v286 = vld [vmem:[%s220 + $0x2c] sm:$0xf]
      %v287 = vld [vmem:[%s220 + $0x30] sm:$0xf]
      %v288 = vld [vmem:[%s220 + $0x34] sm:$0xf]
      %v289 = vld [vmem:[%s220 + $0x38] sm:$0xf]
      %v290 = vld [vmem:[%s220 + $0x3c] sm:$0xf]
      %v291 = vld [vmem:[%s220 + $0x40] sm:$0xf]
      %v292 = vld [vmem:[%s220 + $0x44] sm:$0xf]
      %v293 = vld [vmem:[%s220 + $0x48] sm:$0xf]
      %v294 = vld [vmem:[%s220 + $0x4c] sm:$0xf]
      %v295 = vld [vmem:[%s220 + $0x50] sm:$0xf]
      %v296 = vld [vmem:[%s220 + $0x54] sm:$0xf]
      %v297 = vld [vmem:[%s220 + $0x58] sm:$0xf]
      %v298 = vld [vmem:[%s220 + $0x5c] sm:$0xf]
      %v299 = vld [vmem:[%s220 + $0x60] sm:$0xf]
      %v300 = vld [vmem:[%s220 + $0x64] sm:$0xf]
      %v301 = vld [vmem:[%s220 + $0x68] sm:$0xf]
      %v302 = vld [vmem:[%s220 + $0x6c] sm:$0xf]
      %v303 = vld [vmem:[%s220 + $0x70] sm:$0xf]
      %v304 = vld [vmem:[%s220 + $0x74] sm:$0xf]
      %v305 = vld [vmem:[%s220 + $0x78] sm:$0xf]
      %v306 = vld [vmem:[%s220 + $0x7c] sm:$0xf]
      %v307 = vunpack.c.l.bf16 %v275
      %v308 = vunpack.c.l.bf16 %v276
      %v309 = vunpack.c.l.bf16 %v277
      %v310 = vunpack.c.l.bf16 %v278
      %v311 = vunpack.c.l.bf16 %v279
      %v312 = vunpack.c.l.bf16 %v280
      %v313 = vunpack.c.l.bf16 %v281
      %v314 = vunpack.c.l.bf16 %v282
      %v315 = vunpack.c.l.bf16 %v283
      %v316 = vunpack.c.l.bf16 %v284
      %v317 = vunpack.c.l.bf16 %v285
      %v318 = vunpack.c.l.bf16 %v286
      %v319 = vunpack.c.l.bf16 %v287
      %v320 = vunpack.c.l.bf16 %v288
      %v321 = vunpack.c.l.bf16 %v289
      %v322 = vunpack.c.l.bf16 %v290
      %v323 = vunpack.c.l.bf16 %v291
      %v324 = vunpack.c.l.bf16 %v292
      %v325 = vunpack.c.l.bf16 %v293
      %v326 = vunpack.c.l.bf16 %v294
      %v327 = vunpack.c.l.bf16 %v295
      %v328 = vunpack.c.l.bf16 %v296
      %v329 = vunpack.c.l.bf16 %v297
      %v330 = vunpack.c.l.bf16 %v298
      %v331 = vunpack.c.l.bf16 %v299
      %v332 = vunpack.c.l.bf16 %v300
      %v333 = vunpack.c.l.bf16 %v301
      %v334 = vunpack.c.l.bf16 %v302
      %v335 = vunpack.c.l.bf16 %v303
      %v336 = vunpack.c.l.bf16 %v304
      %v337 = vunpack.c.l.bf16 %v305
      %v338 = vunpack.c.l.bf16 %v306
      %v340 = vperm.slane %v271, 0
      %v342 = vmul.f32 %v307, %v340
      %v343 = vmul.f32 %v308, %v340
      %v344 = vmul.f32 %v309, %v340
      %v345 = vmul.f32 %v310, %v340
      %v346 = vmul.f32 %v311, %v340
      %v347 = vmul.f32 %v312, %v340
      %v348 = vmul.f32 %v313, %v340
      %v349 = vmul.f32 %v314, %v340
      %v350 = vmul.f32 %v315, %v340
      %v351 = vmul.f32 %v316, %v340
      %v352 = vmul.f32 %v317, %v340
      %v353 = vmul.f32 %v318, %v340
      %v354 = vmul.f32 %v319, %v340
      %v355 = vmul.f32 %v320, %v340
      %v356 = vmul.f32 %v321, %v340
      %v357 = vmul.f32 %v322, %v340
      %v358 = vmul.f32 %v323, %v340
      %v359 = vmul.f32 %v324, %v340
      %v360 = vmul.f32 %v325, %v340
      %v361 = vmul.f32 %v326, %v340
      %v362 = vmul.f32 %v327, %v340
      %v363 = vmul.f32 %v328, %v340
      %v364 = vmul.f32 %v329, %v340
      %v365 = vmul.f32 %v330, %v340
      %v366 = vmul.f32 %v331, %v340
      %v367 = vmul.f32 %v332, %v340
      %v368 = vmul.f32 %v333, %v340
      %v369 = vmul.f32 %v334, %v340
      %v370 = vmul.f32 %v335, %v340
      %v371 = vmul.f32 %v336, %v340
      %v372 = vmul.f32 %v337, %v340
      %v373 = vmul.f32 %v338, %v340
      %v375 = vperm.slane %v274, 0
      %v377 = vadd.f32 %v342, %v375
      %v378 = vadd.f32 %v343, %v375
      %v379 = vadd.f32 %v344, %v375
      %v380 = vadd.f32 %v345, %v375
      %v381 = vadd.f32 %v346, %v375
      %v382 = vadd.f32 %v347, %v375
      %v383 = vadd.f32 %v348, %v375
      %v384 = vadd.f32 %v349, %v375
      %v385 = vadd.f32 %v350, %v375
      %v386 = vadd.f32 %v351, %v375
      %v387 = vadd.f32 %v352, %v375
      %v388 = vadd.f32 %v353, %v375
      %v389 = vadd.f32 %v354, %v375
      %v390 = vadd.f32 %v355, %v375
      %v391 = vadd.f32 %v356, %v375
      %v392 = vadd.f32 %v357, %v375
      %v393 = vadd.f32 %v358, %v375
      %v394 = vadd.f32 %v359, %v375
      %v395 = vadd.f32 %v360, %v375
      %v396 = vadd.f32 %v361, %v375
      %v397 = vadd.f32 %v362, %v375
      %v398 = vadd.f32 %v363, %v375
      %v399 = vadd.f32 %v364, %v375
      %v400 = vadd.f32 %v365, %v375
      %v401 = vadd.f32 %v366, %v375
      %v402 = vadd.f32 %v367, %v375
      %v403 = vadd.f32 %v368, %v375
      %v404 = vadd.f32 %v369, %v375
      %v405 = vadd.f32 %v370, %v375
      %v406 = vadd.f32 %v371, %v375
      %v407 = vadd.f32 %v372, %v375
      %v408 = vadd.f32 %v373, %v375
      %v409 = vmax.f32 %v377, 0.0
      %v410 = vmax.f32 %v378, 0.0
      %v411 = vmax.f32 %v379, 0.0
      %v412 = vmax.f32 %v380, 0.0
      %v413 = vmax.f32 %v381, 0.0
      %v414 = vmax.f32 %v382, 0.0
      %v415 = vmax.f32 %v383, 0.0
      %v416 = vmax.f32 %v384, 0.0
      %v417 = vmax.f32 %v385, 0.0
      %v418 = vmax.f32 %v386, 0.0
      %v419 = vmax.f32 %v387, 0.0
      %v420 = vmax.f32 %v388, 0.0
      %v421 = vmax.f32 %v389, 0.0
      %v422 = vmax.f32 %v390, 0.0
      %v423 = vmax.f32 %v391, 0.0
      %v424 = vmax.f32 %v392, 0.0
      %v425 = vmax.f32 %v393, 0.0
      %v426 = vmax.f32 %v394, 0.0
      %v427 = vmax.f32 %v395, 0.0
      %v428 = vmax.f32 %v396, 0.0
      %v429 = vmax.f32 %v397, 0.0
      %v430 = vmax.f32 %v398, 0.0
      %v431 = vmax.f32 %v399, 0.0
      %v432 = vmax.f32 %v400, 0.0
      %v433 = vmax.f32 %v401, 0.0
      %v434 = vmax.f32 %v402, 0.0
      %v435 = vmax.f32 %v403, 0.0
      %v436 = vmax.f32 %v404, 0.0
      %v437 = vmax.f32 %v405, 0.0
      %v438 = vmax.f32 %v406, 0.0
      %v439 = vmax.f32 %v407, 0.0
      %v440 = vmax.f32 %v408, 0.0
      %v441 = vpack.c.bf16 %v409, %v409
      %v442 = vpack.c.bf16 %v410, %v410
      %v443 = vpack.c.bf16 %v411, %v411
      %v444 = vpack.c.bf16 %v412, %v412
      %v445 = vpack.c.bf16 %v413, %v413
      %v446 = vpack.c.bf16 %v414, %v414
      %v447 = vpack.c.bf16 %v415, %v415
      %v448 = vpack.c.bf16 %v416, %v416
      %v449 = vpack.c.bf16 %v417, %v417
      %v450 = vpack.c.bf16 %v418, %v418
      %v451 = vpack.c.bf16 %v419, %v419
      %v452 = vpack.c.bf16 %v420, %v420
      %v453 = vpack.c.bf16 %v421, %v421
      %v454 = vpack.c.bf16 %v422, %v422
      %v455 = vpack.c.bf16 %v423, %v423
      %v456 = vpack.c.bf16 %v424, %v424
      %v457 = vpack.c.bf16 %v425, %v425
      %v458 = vpack.c.bf16 %v426, %v426
      %v459 = vpack.c.bf16 %v427, %v427
      %v460 = vpack.c.bf16 %v428, %v428
      %v461 = vpack.c.bf16 %v429, %v429
      %v462 = vpack.c.bf16 %v430, %v430
      %v463 = vpack.c.bf16 %v431, %v431
      %v464 = vpack.c.bf16 %v432, %v432
      %v465 = vpack.c.bf16 %v433, %v433
      %v466 = vpack.c.bf16 %v434, %v434
      %v467 = vpack.c.bf16 %v435, %v435
      %v468 = vpack.c.bf16 %v436, %v436
      %v469 = vpack.c.bf16 %v437, %v437
      %v470 = vpack.c.bf16 %v438, %v438
      %v471 = vpack.c.bf16 %v439, %v439
      %v472 = vpack.c.bf16 %v440, %v440
      %473 = vst [vmem:[%s226] sm:$0xf] %v441
      %474 = vst [vmem:[%s226 + $0x4] sm:$0xf] %v442
      %475 = vst [vmem:[%s226 + $0x8] sm:$0xf] %v443
      %476 = vst [vmem:[%s226 + $0xc] sm:$0xf] %v444
      %477 = vst [vmem:[%s226 + $0x10] sm:$0xf] %v445
      %478 = vst [vmem:[%s226 + $0x14] sm:$0xf] %v446
      %479 = vst [vmem:[%s226 + $0x18] sm:$0xf] %v447
      %480 = vst [vmem:[%s226 + $0x1c] sm:$0xf] %v448
      %481 = vst [vmem:[%s226 + $0x20] sm:$0xf] %v449
      %482 = vst [vmem:[%s226 + $0x24] sm:$0xf] %v450
      %483 = vst [vmem:[%s226 + $0x28] sm:$0xf] %v451
      %484 = vst [vmem:[%s226 + $0x2c] sm:$0xf] %v452
      %485 = vst [vmem:[%s226 + $0x30] sm:$0xf] %v453
      %486 = vst [vmem:[%s226 + $0x34] sm:$0xf] %v454
      %487 = vst [vmem:[%s226 + $0x38] sm:$0xf] %v455
      %488 = vst [vmem:[%s226 + $0x3c] sm:$0xf] %v456
      %489 = vst [vmem:[%s226 + $0x40] sm:$0xf] %v457
      %490 = vst [vmem:[%s226 + $0x44] sm:$0xf] %v458
      %491 = vst [vmem:[%s226 + $0x48] sm:$0xf] %v459
      %492 = vst [vmem:[%s226 + $0x4c] sm:$0xf] %v460
      %493 = vst [vmem:[%s226 + $0x50] sm:$0xf] %v461
      %494 = vst [vmem:[%s226 + $0x54] sm:$0xf] %v462
      %495 = vst [vmem:[%s226 + $0x58] sm:$0xf] %v463
      %496 = vst [vmem:[%s226 + $0x5c] sm:$0xf] %v464
      %497 = vst [vmem:[%s226 + $0x60] sm:$0xf] %v465
      %498 = vst [vmem:[%s226 + $0x64] sm:$0xf] %v466
      %499 = vst [vmem:[%s226 + $0x68] sm:$0xf] %v467
      %500 = vst [vmem:[%s226 + $0x6c] sm:$0xf] %v468
      %501 = vst [vmem:[%s226 + $0x70] sm:$0xf] %v469
      %502 = vst [vmem:[%s226 + $0x74] sm:$0xf] %v470
      %503 = vst [vmem:[%s226 + $0x78] sm:$0xf] %v471
      %504 = vst [vmem:[%s226 + $0x7c] sm:$0xf] %v472
      %s505 = smul.u32 32, %s16
      %p506 = scmp.lt.s32.totalorder %s505, 63
      %s507 = scalar_select %p506, %s505, 63
      %s508 = smul.addr %s507, 4
      %s509 = scalar_lea.vmem %s5, %s508
      // Predicated region
      $region41: #{preact_resnet_forward.17} parent=39 // pred_check
        %p510 = pneg %p144
      $region42: #{preact_resnet_forward.17} parent=39 // pred_check_branch
        %512 = sbr.rel (%p510) target = $region44
      $region43: #{preact_resnet_forward.17} parent=39 // pred_region
        %s513 = smul.u32 32, %s16
      $region44: #{preact_resnet_forward.17} parent=39 // pred_fallthru
        _
    $region40: #{preact_resnet_forward.17} parent=5 // pred_fallthru
      _
    %p514 = scmp.le.s32.totalorder 2, %s11
    // Predicated region
    $region45: #{preact_resnet_forward.17} parent=5 // pred_check
      %p515 = pneg %p514
    $region46: #{preact_resnet_forward.17} parent=5 // pred_check_branch
      %517 = sbr.rel (%p515) target = $region48
    $region47: #{preact_resnet_forward.17} parent=5 // pred_region
      %s518 = ssub.s32 %s11, 2
      // Predicated region
      $region49: #{preact_resnet_forward.17} parent=47 // pred_check
        %p519 = pneg %p150
      $region50: #{preact_resnet_forward.17} parent=47 // pred_check_branch
        %521 = sbr.rel (%p519) target = $region52
      $region51: #{preact_resnet_forward.17} parent=47 // pred_region
        %s522 = smul.u32 32, %s17
        %p523 = scmp.lt.s32.totalorder %s522, 63
        %s524 = scalar_select %p523, %s522, 63
        %s525 = smul.addr %s524, 4
        %s526 = scalar_lea.vmem %s5, %s525
      $region52: #{preact_resnet_forward.17} parent=47 // pred_fallthru
        _
    $region48: #{preact_resnet_forward.17} parent=5 // pred_fallthru
      _
  $region6: #{preact_resnet_forward.17} parent=0 // loop_footer
    %s15 = sadd.s32 1, %s11
  $region7: #{preact_resnet_forward.17} parent=0 // loop_footer_branch
    %10 = sbr.rel target = $region3
  $region8: #{preact_resnet_forward.17} parent=0 // loop_exit
    _

// kernel: preact_resnet_forward.16
$region0: #{preact_resnet_forward.16}
  #allocation0 [shape = 'u32[]', space=smem, size = 0x4, offset = 0x4, fixed_abs, tag = 'smem constant byte address 0x4 - core index']
  #allocation1 [shape = 'u32[72,128]{1,0:T(1,128)}', space=vmem, size = 0x9000, scoped, tag = 'internal scratch']
  %s0 = inlined_call_operand.vmem [shape: bf16[512,128], index: 0, kind: input, shape index: {}]
  %s1 = inlined_call_operand.vmem [shape: bf16[128,128], index: 1, kind: input, shape index: {}]
  %s2 = inlined_call_operand.vmem [shape: bf16[512,128], index: 2, kind: output, shape index: {0}]
  %s3 = inlined_call_operand.vmem [shape: f32[32,128], index: 3, kind: output, shape index: {1}]
  %s4 = inlined_call_operand.vmem [shape: f32[32,128], index: 4, kind: output, shape index: {2}]
  %5 = xla_tuple %s2, %s3, %s4
  %s6 = sld [smem:[#allocation0]]
  $region57: #{preact_resnet_forward.16} parent=0
    _
  %s8 = ssub.s32 1, %s6
  %s9 = scalar_select 0, %s8, %s6
  loop: start=0, step=1, limit=6
  $region2: #{preact_resnet_forward.16} parent=0 // loop_pre_header
    _
  $region3: #{preact_resnet_forward.16} parent=0 // loop_header
    %s11 = sphi 0, %s15
    %p12 = scmp.ge.s32.totalorder %s11, 6
    %s21 = sphi 0, %s23
    %s24 = sphi 0, %s21
    %s25 = sphi 0, %s24
    %s41 = sphi 0, %s25
    %s45 = sphi 0, %s45
    %s47 = sphi 0, %s45
    %s48 = sphi 0, %s47
    %s62 = sphi 0, %s48
    %s68 = sphi 0, %s70
    %s71 = sphi 0, %s68
    %s72 = sphi 0, %s71
    %s88 = sphi 0, %s72
    %s94 = sphi 0, %s96
    %s97 = sphi 0, %s94
    %s98 = sphi 0, %s97
    %s114 = sphi 0, %s98
    %s120 = sphi 0, %s122
    %s123 = sphi 0, %s120
    %s124 = sphi 0, %s123
    %s140 = sphi 0, %s124
  $region4: #{preact_resnet_forward.16} parent=0 // loop_header_branch
    %14 = sbr.rel (%p12) target = $region8
  $region5: #{preact_resnet_forward.16} parent=0 // loop_body
    %s16 = ssub.s32 %s11, 1
    %s17 = ssub.s32 %s11, 2
    %s18 = sadd.s32 %s11, 1
    %s19 = ssub.s32 %s11, %s18
    %p20 = scmp.eq.s32.totalorder %s19, 0
    %s22 = sadd.s32 %s21, 1
    %s23 = scalar_select %p20, %s21, %s22
    %p26 = pneg %p20
    %p27 = scmp.eq.s32.totalorder %s11, 3
    %p28 = por %p26, %p27
    %p29 = scmp.ne.s32.totalorder %s21, %s24
    %p30 = scmp.eq.s32.totalorder %s11, 0
    %p31 = por %p29, %p30
    %p32 = scmp.ne.s32.totalorder %s21, %s24
    %p33 = scmp.eq.s32.totalorder %s16, 3
    %p34 = por %p32, %p33
    %p35 = scmp.ne.s32.totalorder %s24, %s25
    %p36 = scmp.eq.s32.totalorder %s16, 0
    %p37 = por %p35, %p36
    %p38 = scmp.ne.s32.totalorder %s24, %s25
    %p39 = scmp.eq.s32.totalorder %s17, 3
    %p40 = por %p38, %p39
    %p42 = scmp.ne.s32.totalorder %s25, %s41
    %p43 = scmp.eq.s32.totalorder %s17, 0
    %p44 = por %p42, %p43
    %s46 = sadd.s32 %s45, 1
    %p49 = scmp.eq.s32.totalorder %s11, 3
    %p50 = scmp.ne.s32.totalorder %s45, %s47
    %p51 = scmp.eq.s32.totalorder %s11, 0
    %p52 = por %p50, %p51
    %p53 = scmp.ne.s32.totalorder %s45, %s47
    %p54 = scmp.eq.s32.totalorder %s16, 3
    %p55 = por %p53, %p54
    %p56 = scmp.ne.s32.totalorder %s47, %s48
    %p57 = scmp.eq.s32.totalorder %s16, 0
    %p58 = por %p56, %p57
    %p59 = scmp.ne.s32.totalorder %s47, %s48
    %p60 = scmp.eq.s32.totalorder %s17, 3
    %p61 = por %p59, %p60
    %p63 = scmp.ne.s32.totalorder %s48, %s62
    %p64 = scmp.eq.s32.totalorder %s17, 0
    %p65 = por %p63, %p64
    %s66 = ssub.s32 %s11, %s18
    %p67 = scmp.eq.s32.totalorder %s66, 0
    %s69 = sadd.s32 %s68, 1
    %s70 = scalar_select %p67, %s68, %s69
    %p73 = pneg %p67
    %p74 = scmp.eq.s32.totalorder %s11, 3
    %p75 = por %p73, %p74
    %p76 = scmp.ne.s32.totalorder %s68, %s71
    %p77 = scmp.eq.s32.totalorder %s11, 0
    %p78 = por %p76, %p77
    %p79 = scmp.ne.s32.totalorder %s68, %s71
    %p80 = scmp.eq.s32.totalorder %s16, 3
    %p81 = por %p79, %p80
    %p82 = scmp.ne.s32.totalorder %s71, %s72
    %p83 = scmp.eq.s32.totalorder %s16, 0
    %p84 = por %p82, %p83
    %p85 = scmp.ne.s32.totalorder %s71, %s72
    %p86 = scmp.eq.s32.totalorder %s17, 3
    %p87 = por %p85, %p86
    %p89 = scmp.ne.s32.totalorder %s72, %s88
    %p90 = scmp.eq.s32.totalorder %s17, 0
    %p91 = por %p89, %p90
    %s92 = ssub.s32 %s11, %s18
    %p93 = scmp.eq.s32.totalorder %s92, 0
    %s95 = sadd.s32 %s94, 1
    %s96 = scalar_select %p93, %s94, %s95
    %p99 = pneg %p93
    %p100 = scmp.eq.s32.totalorder %s11, 3
    %p101 = por %p99, %p100
    %p102 = scmp.ne.s32.totalorder %s94, %s97
    %p103 = scmp.eq.s32.totalorder %s11, 0
    %p104 = por %p102, %p103
    %p105 = scmp.ne.s32.totalorder %s94, %s97
    %p106 = scmp.eq.s32.totalorder %s16, 3
    %p107 = por %p105, %p106
    %p108 = scmp.ne.s32.totalorder %s97, %s98
    %p109 = scmp.eq.s32.totalorder %s16, 0
    %p110 = por %p108, %p109
    %p111 = scmp.ne.s32.totalorder %s97, %s98
    %p112 = scmp.eq.s32.totalorder %s17, 3
    %p113 = por %p111, %p112
    %p115 = scmp.ne.s32.totalorder %s98, %s114
    %p116 = scmp.eq.s32.totalorder %s17, 0
    %p117 = por %p115, %p116
    %s118 = ssub.s32 %s11, %s18
    %p119 = scmp.eq.s32.totalorder %s118, 0
    %s121 = sadd.s32 %s120, 1
    %s122 = scalar_select %p119, %s120, %s121
    %p125 = pneg %p119
    %p126 = scmp.eq.s32.totalorder %s11, 3
    %p127 = por %p125, %p126
    %p128 = scmp.ne.s32.totalorder %s120, %s123
    %p129 = scmp.eq.s32.totalorder %s11, 0
    %p130 = por %p128, %p129
    %p131 = scmp.ne.s32.totalorder %s120, %s123
    %p132 = scmp.eq.s32.totalorder %s16, 3
    %p133 = por %p131, %p132
    %p134 = scmp.ne.s32.totalorder %s123, %s124
    %p135 = scmp.eq.s32.totalorder %s16, 0
    %p136 = por %p134, %p135
    %p137 = scmp.ne.s32.totalorder %s123, %s124
    %p138 = scmp.eq.s32.totalorder %s17, 3
    %p139 = por %p137, %p138
    %p141 = scmp.ne.s32.totalorder %s124, %s140
    %p142 = scmp.eq.s32.totalorder %s17, 0
    %p143 = por %p141, %p142
    %p144 = scmp.le.s32.totalorder 1, %s11
    %p145 = scmp.lt.s32.totalorder %s11, 5
    %p146 = pnand %p144, %p145
    %p147 = pneg %p146
    // Predicated region
    $region9: #{preact_resnet_forward.16} parent=5 // pred_check
      _
    $region10: #{preact_resnet_forward.16} parent=5 // pred_check_branch
      %149 = sbr.rel (%p146) target = $region12
    $region11: #{preact_resnet_forward.16} parent=5 // pred_region
      %s150 = ssub.s32 %s11, 1
      // Predicated region
      $region13: #{preact_resnet_forward.16} parent=11 // pred_check
        %p151 = pneg %p58
      $region14: #{preact_resnet_forward.16} parent=11 // pred_check_branch
        %153 = sbr.rel (%p151) target = $region16
      $region15: #{preact_resnet_forward.16} parent=11 // pred_region
        _
      $region16: #{preact_resnet_forward.16} parent=11 // pred_fallthru
        _
    $region12: #{preact_resnet_forward.16} parent=5 // pred_fallthru
      _
    %p154 = scmp.lt.s32.totalorder %s11, 4
    // Predicated region
    $region17: #{preact_resnet_forward.16} parent=5 // pred_check
      %p155 = pneg %p154
    $region18: #{preact_resnet_forward.16} parent=5 // pred_check_branch
      %157 = sbr.rel (%p155) target = $region20
    $region19: #{preact_resnet_forward.16} parent=5 // pred_region
      // Predicated region
      $region21: #{preact_resnet_forward.16} parent=19 // pred_check
        %p158 = pneg %p31
      $region22: #{preact_resnet_forward.16} parent=19 // pred_check_branch
        %160 = sbr.rel (%p158) target = $region24
      $region23: #{preact_resnet_forward.16} parent=19 // pred_region
        %s161 = smul.u32 16, %s11
        %p162 = scmp.lt.s32.totalorder %s161, 63
        %s163 = scalar_select %p162, %s161, 63
        %s164 = smul.addr %s163, 4
        %s165 = scalar_lea.vmem %s0, %s164
        %s166 = smul.u32 16, %s11
      $region24: #{preact_resnet_forward.16} parent=19 // pred_fallthru
        _
    $region20: #{preact_resnet_forward.16} parent=5 // pred_fallthru
      _
    %p167 = scmp.le.s32.totalorder 1, %s11
    %p168 = scmp.lt.s32.totalorder %s11, 5
    %p169 = pnand %p167, %p168
    %p170 = pneg %p169
    // Predicated region
    $region25: #{preact_resnet_forward.16} parent=5 // pred_check
      _
    $region26: #{preact_resnet_forward.16} parent=5 // pred_check_branch
      %172 = sbr.rel (%p169) target = $region28
    $region27: #{preact_resnet_forward.16} parent=5 // pred_region
      %s173 = ssub.s32 %s11, 1
      %s174 = smul.u32 16, %s16
      %p175 = scmp.lt.s32.totalorder %s174, 63
      %s176 = scalar_select %p175, %s174, 63
      %s177 = smul.addr %s176, 4
      %s178 = scalar_lea.vmem %s0, %s177
      %p179 = pneg %p37
      %p180 = pneg %p34
      %p181 = pneg %p58
      %p182 = pneg %p55
      %p183 = pneg %p84
      %p184 = pneg %p81
      %s185 = smul.u32 16, %s16
      %p186 = scmp.lt.s32.totalorder %s185, 63
      %s187 = scalar_select %p186, %s185, 63
      %s188 = smul.addr %s187, 4
      %s189 = scalar_lea.vmem %s2, %s188
      %p190 = pneg %p110
      %p191 = pneg %p107
      %p192 = scmp.lt.s32.totalorder %s16, 3
      %s193 = scalar_select %p192, %s16, 3
      %s194 = smul.addr %s193, 8
      %s195 = scalar_lea.vmem %s3, %s194
      %p196 = pneg %p136
      %p197 = pneg %p133
      %p198 = scmp.lt.s32.totalorder %s16, 3
      %s199 = scalar_select %p198, %s16, 3
      %s200 = smul.addr %s199, 8
      %s201 = scalar_lea.vmem %s4, %s200
      %s202 = smul.u32 16, %s16
      %p203 = scmp.lt.s32.totalorder %s202, 63
      %s204 = scalar_select %p203, %s202, 63
      %s205 = smul.addr %s204, 4
      %s206 = scalar_lea.vmem %s0, %s205
      %s207 = smul.u32 16, %s16
      %s208 = smul.u32 16, %s16
      %p209 = scmp.lt.s32.totalorder %s208, 63
      %s210 = scalar_select %p209, %s208, 63
      %s211 = smul.addr %s210, 4
      %s212 = scalar_lea.vmem %s2, %s211
      %s213 = smul.u32 16, %s16
      %p214 = scmp.lt.s32.totalorder %s16, 3
      %s215 = scalar_select %p214, %s16, 3
      %s216 = smul.addr %s215, 8
      %s217 = scalar_lea.vmem %s3, %s216
      %p218 = scmp.lt.s32.totalorder %s16, 3
      %s219 = scalar_select %p218, %s16, 3
      %s220 = smul.addr %s219, 8
      %s221 = scalar_lea.vmem %s4, %s220
      %v222 = vld [vmem:[%s206] sm:$0xf]
      %v223 = vld [vmem:[%s206 + $0x4] sm:$0xf]
      %v224 = vld [vmem:[%s206 + $0x8] sm:$0xf]
      %v225 = vld [vmem:[%s206 + $0xc] sm:$0xf]
      %v226 = vld [vmem:[%s206 + $0x10] sm:$0xf]
      %v227 = vld [vmem:[%s206 + $0x14] sm:$0xf]
      %v228 = vld [vmem:[%s206 + $0x18] sm:$0xf]
      %v229 = vld [vmem:[%s206 + $0x1c] sm:$0xf]
      %v230 = vld [vmem:[%s206 + $0x20] sm:$0xf]
      %v231 = vld [vmem:[%s206 + $0x24] sm:$0xf]
      %v232 = vld [vmem:[%s206 + $0x28] sm:$0xf]
      %v233 = vld [vmem:[%s206 + $0x2c] sm:$0xf]
      %v234 = vld [vmem:[%s206 + $0x30] sm:$0xf]
      %v235 = vld [vmem:[%s206 + $0x34] sm:$0xf]
      %v236 = vld [vmem:[%s206 + $0x38] sm:$0xf]
      %v237 = vld [vmem:[%s206 + $0x3c] sm:$0xf]
      %v238 = vld [vmem:[%s1] sm:$0xf]
      %v239 = vld [vmem:[%s1 + $0x4] sm:$0xf]
      %v240 = vld [vmem:[%s1 + $0x8] sm:$0xf]
      %v241 = vld [vmem:[%s1 + $0xc] sm:$0xf]
      %v242 = vld [vmem:[%s1 + $0x10] sm:$0xf]
      %v243 = vld [vmem:[%s1 + $0x14] sm:$0xf]
      %v244 = vld [vmem:[%s1 + $0x18] sm:$0xf]
      %v245 = vld [vmem:[%s1 + $0x1c] sm:$0xf]
      %v246 = vld [vmem:[%s1 + $0x20] sm:$0xf]
      %v247 = vld [vmem:[%s1 + $0x24] sm:$0xf]
      %v248 = vld [vmem:[%s1 + $0x28] sm:$0xf]
      %v249 = vld [vmem:[%s1 + $0x2c] sm:$0xf]
      %v250 = vld [vmem:[%s1 + $0x30] sm:$0xf]
      %v251 = vld [vmem:[%s1 + $0x34] sm:$0xf]
      %v252 = vld [vmem:[%s1 + $0x38] sm:$0xf]
      %v253 = vld [vmem:[%s1 + $0x3c] sm:$0xf]
      %v270 = vunpack.c.l.b16 %v222
      %v271 = vunpack.c.l.b16 %v223
      %v272 = vunpack.c.l.b16 %v224
      %v273 = vunpack.c.l.b16 %v225
      %v274 = vunpack.c.l.b16 %v226
      %v275 = vunpack.c.l.b16 %v227
      %v276 = vunpack.c.l.b16 %v228
      %v277 = vunpack.c.l.b16 %v229
      %v278 = vunpack.c.l.b16 %v230
      %v279 = vunpack.c.l.b16 %v231
      %v280 = vunpack.c.l.b16 %v232
      %v281 = vunpack.c.l.b16 %v233
      %v282 = vunpack.c.l.b16 %v234
      %v283 = vunpack.c.l.b16 %v235
      %v284 = vunpack.c.l.b16 %v236
      %v285 = vunpack.c.l.b16 %v237
      %v286 = vpack.c.b16 %v271, %v270
      %v287 = vpack.c.b16 %v273, %v272
      %v288 = vpack.c.b16 %v275, %v274
      %v289 = vpack.c.b16 %v277, %v276
      %v290 = vpack.c.b16 %v279, %v278
      %v291 = vpack.c.b16 %v281, %v280
      %v292 = vpack.c.b16 %v283, %v282
      %v293 = vpack.c.b16 %v285, %v284
      %v318 = vunpack.c.l.b16 %v238
      %v319 = vunpack.c.l.b16 %v239
      %v320 = vunpack.c.l.b16 %v240
      %v321 = vunpack.c.l.b16 %v241
      %v322 = vunpack.c.l.b16 %v242
      %v323 = vunpack.c.l.b16 %v243
      %v324 = vunpack.c.l.b16 %v244
      %v325 = vunpack.c.l.b16 %v245
      %v326 = vunpack.c.l.b16 %v246
      %v327 = vunpack.c.l.b16 %v247
      %v328 = vunpack.c.l.b16 %v248
      %v329 = vunpack.c.l.b16 %v249
      %v330 = vunpack.c.l.b16 %v250
      %v331 = vunpack.c.l.b16 %v251
      %v332 = vunpack.c.l.b16 %v252
      %v333 = vunpack.c.l.b16 %v253
      %v334 = vpack.c.b16 %v319, %v318
      %v335 = vpack.c.b16 %v321, %v320
      %v336 = vpack.c.b16 %v323, %v322
      %v337 = vpack.c.b16 %v325, %v324
      %v338 = vpack.c.b16 %v327, %v326
      %v339 = vpack.c.b16 %v329, %v328
      %v340 = vpack.c.b16 %v331, %v330
      %v341 = vpack.c.b16 %v333, %v332
      %350 = vmatpush.bf16.msra.mxu0 %v341
      %351 = vmatpush.bf16.msra.mxu0 %v340
      %352 = vmatpush.bf16.msra.mxu0 %v339
      %353 = vmatpush.bf16.msra.mxu0 %v338
      %354 = vmatpush.bf16.msra.mxu0 %v337
      %355 = vmatpush.bf16.msra.mxu0 %v336
      %356 = vmatpush.bf16.msra.mxu0 %v335
      %357 = vmatpush.bf16.msra.mxu0 %v334
      %358 = vmatmul.bf16.gmra.mxu0 %v286
      %v359 = vpop.f32.mrf.mxu0
      %v360 = vadd.f32 0.0, %v359
      %v361 = vpop.f32.mrf.mxu0
      %v362 = vadd.f32 0.0, %v361
      %363 = vmatmul.bf16.gmra.mxu0 %v287
      %v364 = vpop.f32.mrf.mxu0
      %v365 = vadd.f32 0.0, %v364
      %v366 = vpop.f32.mrf.mxu0
      %v367 = vadd.f32 0.0, %v366
      %368 = vmatmul.bf16.gmra.mxu0 %v288
      %v369 = vpop.f32.mrf.mxu0
      %v370 = vadd.f32 0.0, %v369
      %v371 = vpop.f32.mrf.mxu0
      %v372 = vadd.f32 0.0, %v371
      %373 = vmatmul.bf16.gmra.mxu0 %v289
      %v374 = vpop.f32.mrf.mxu0
      %v375 = vadd.f32 0.0, %v374
      %v376 = vpop.f32.mrf.mxu0
      %v377 = vadd.f32 0.0, %v376
      %378 = vmatmul.bf16.gmra.mxu0 %v290
      %v379 = vpop.f32.mrf.mxu0
      %v380 = vadd.f32 0.0, %v379
      %v381 = vpop.f32.mrf.mxu0
      %v382 = vadd.f32 0.0, %v381
      %383 = vmatmul.bf16.gmra.mxu0 %v291
      %v384 = vpop.f32.mrf.mxu0
      %v385 = vadd.f32 0.0, %v384
      %v386 = vpop.f32.mrf.mxu0
      %v387 = vadd.f32 0.0, %v386
      %388 = vmatmul.bf16.gmra.mxu0 %v292
      %v389 = vpop.f32.mrf.mxu0
      %v390 = vadd.f32 0.0, %v389
      %v391 = vpop.f32.mrf.mxu0
      %v392 = vadd.f32 0.0, %v391
      %393 = vmatmul.bf16.gmra.mxu0 %v293
      %v394 = vpop.f32.mrf.mxu0
      %v395 = vadd.f32 0.0, %v394
      %v396 = vpop.f32.mrf.mxu0
      %v397 = vadd.f32 0.0, %v396
      %398 = vdwg.mxu0
      %v399 = vpack.c.bf16 %v360, %v360
      %v400 = vpack.c.bf16 %v362, %v362
      %v401 = vpack.c.bf16 %v365, %v365
      %v402 = vpack.c.bf16 %v367, %v367
      %v403 = vpack.c.bf16 %v370, %v370
      %v404 = vpack.c.bf16 %v372, %v372
      %v405 = vpack.c.bf16 %v375, %v375
      %v406 = vpack.c.bf16 %v377, %v377
      %v407 = vpack.c.bf16 %v380, %v380
      %v408 = vpack.c.bf16 %v382, %v382
      %v409 = vpack.c.bf16 %v385, %v385
      %v410 = vpack.c.bf16 %v387, %v387
      %v411 = vpack.c.bf16 %v390, %v390
      %v412 = vpack.c.bf16 %v392, %v392
      %v413 = vpack.c.bf16 %v395, %v395
      %v414 = vpack.c.bf16 %v397, %v397
      %415 = vst [vmem:[%s212] sm:$0xf] %v399
      %416 = vst [vmem:[%s212 + $0x4] sm:$0xf] %v400
      %417 = vst [vmem:[%s212 + $0x8] sm:$0xf] %v401
      %418 = vst [vmem:[%s212 + $0xc] sm:$0xf] %v402
      %419 = vst [vmem:[%s212 + $0x10] sm:$0xf] %v403
      %420 = vst [vmem:[%s212 + $0x14] sm:$0xf] %v404
      %421 = vst [vmem:[%s212 + $0x18] sm:$0xf] %v405
      %422 = vst [vmem:[%s212 + $0x1c] sm:$0xf] %v406
      %423 = vst [vmem:[%s212 + $0x20] sm:$0xf] %v407
      %424 = vst [vmem:[%s212 + $0x24] sm:$0xf] %v408
      %425 = vst [vmem:[%s212 + $0x28] sm:$0xf] %v409
      %426 = vst [vmem:[%s212 + $0x2c] sm:$0xf] %v410
      %427 = vst [vmem:[%s212 + $0x30] sm:$0xf] %v411
      %428 = vst [vmem:[%s212 + $0x34] sm:$0xf] %v412
      %429 = vst [vmem:[%s212 + $0x38] sm:$0xf] %v413
      %430 = vst [vmem:[%s212 + $0x3c] sm:$0xf] %v414
      %v431 = vlaneseq
      %v432 = vshrl.u32 %v431, 7
      %vm433 = vcmp.eq.s32.totalorder %v432, 0
      %v434 = vadd.f32 %v360, %v362
      %v435 = vadd.f32 %v434, %v365
      %v436 = vadd.f32 %v435, %v367
      %v437 = vadd.f32 %v436, %v370
      %v438 = vadd.f32 %v437, %v372
      %v439 = vadd.f32 %v438, %v375
      %v440 = vadd.f32 %v439, %v377
      %v441 = vadd.f32 %v440, %v380
      %v442 = vadd.f32 %v441, %v382
      %v443 = vadd.f32 %v442, %v385
      %v444 = vadd.f32 %v443, %v387
      %v445 = vadd.f32 %v444, %v390
      %v446 = vadd.f32 %v445, %v392
      %v447 = vadd.f32 %v446, %v395
      %v448 = vadd.f32 %v447, %v397
      %v449 = vrot.slane %v448, 4
      %v450 = vadd.f32 %v448, %v449
      %v451 = vrot.slane %v450, 2
      %v452 = vadd.f32 %v450, %v451
      %v453 = vrot.slane %v452, 1
      %v454 = vadd.f32 %v452, %v453
      %v455 = vsel %vm433, %v454, 0.0
      %456 = vst [vmem:[%s217] sm:$0xff] %v455
      %v457 = vmul.f32 %v360, %v360
      %v458 = vmul.f32 %v362, %v362
      %v459 = vmul.f32 %v365, %v365
      %v460 = vmul.f32 %v367, %v367
      %v461 = vmul.f32 %v370, %v370
      %v462 = vmul.f32 %v372, %v372
      %v463 = vmul.f32 %v375, %v375
      %v464 = vmul.f32 %v377, %v377
      %v465 = vmul.f32 %v380, %v380
      %v466 = vmul.f32 %v382, %v382
      %v467 = vmul.f32 %v385, %v385
      %v468 = vmul.f32 %v387, %v387
      %v469 = vmul.f32 %v390, %v390
      %v470 = vmul.f32 %v392, %v392
      %v471 = vmul.f32 %v395, %v395
      %v472 = vmul.f32 %v397, %v397
      %v473 = vadd.f32 %v457, %v458
      %v474 = vadd.f32 %v473, %v459
      %v475 = vadd.f32 %v474, %v460
      %v476 = vadd.f32 %v475, %v461
      %v477 = vadd.f32 %v476, %v462
      %v478 = vadd.f32 %v477, %v463
      %v479 = vadd.f32 %v478, %v464
      %v480 = vadd.f32 %v479, %v465
      %v481 = vadd.f32 %v480, %v466
      %v482 = vadd.f32 %v481, %v467
      %v483 = vadd.f32 %v482, %v468
      %v484 = vadd.f32 %v483, %v469
      %v485 = vadd.f32 %v484, %v470
      %v486 = vadd.f32 %v485, %v471
      %v487 = vadd.f32 %v486, %v472
      %v488 = vrot.slane %v487, 4
      %v489 = vadd.f32 %v487, %v488
      %v490 = vrot.slane %v489, 2
      %v491 = vadd.f32 %v489, %v490
      %v492 = vrot.slane %v491, 1
      %v493 = vadd.f32 %v491, %v492
      %v494 = vsel %vm433, %v493, 0.0
      %495 = vst [vmem:[%s221] sm:$0xff] %v494
      %s496 = smul.u32 16, %s16
      %p497 = scmp.lt.s32.totalorder %s496, 63
      %s498 = scalar_select %p497, %s496, 63
      %s499 = smul.addr %s498, 4
      %s500 = scalar_lea.vmem %s2, %s499
      %p501 = scmp.lt.s32.totalorder %s16, 3
      %s502 = scalar_select %p501, %s16, 3
      %s503 = smul.addr %s502, 8
      %s504 = scalar_lea.vmem %s3, %s503
      %p505 = scmp.lt.s32.totalorder %s16, 3
      %s506 = scalar_select %p505, %s16, 3
      %s507 = smul.addr %s506, 8
      %s508 = scalar_lea.vmem %s4, %s507
      // Predicated region
      $region29: #{preact_resnet_forward.16} parent=27 // pred_check
        %p509 = pneg %p81
      $region30: #{preact_resnet_forward.16} parent=27 // pred_check_branch
        %511 = sbr.rel (%p509) target = $region32
      $region31: #{preact_resnet_forward.16} parent=27 // pred_region
        %s512 = smul.u32 16, %s16
      $region32: #{preact_resnet_forward.16} parent=27 // pred_fallthru
        _
      // Predicated region
      $region33: #{preact_resnet_forward.16} parent=27 // pred_check
        %p513 = pneg %p107
      $region34: #{preact_resnet_forward.16} parent=27 // pred_check_branch
        %515 = sbr.rel (%p513) target = $region36
      $region35: #{preact_resnet_forward.16} parent=27 // pred_region
        _
      $region36: #{preact_resnet_forward.16} parent=27 // pred_fallthru
        _
      // Predicated region
      $region37: #{preact_resnet_forward.16} parent=27 // pred_check
        %p516 = pneg %p133
      $region38: #{preact_resnet_forward.16} parent=27 // pred_check_branch
        %518 = sbr.rel (%p516) target = $region40
      $region39: #{preact_resnet_forward.16} parent=27 // pred_region
        _
      $region40: #{preact_resnet_forward.16} parent=27 // pred_fallthru
        _
    $region28: #{preact_resnet_forward.16} parent=5 // pred_fallthru
      _
    %p519 = scmp.le.s32.totalorder 2, %s11
    // Predicated region
    $region41: #{preact_resnet_forward.16} parent=5 // pred_check
      %p520 = pneg %p519
    $region42: #{preact_resnet_forward.16} parent=5 // pred_check_branch
      %522 = sbr.rel (%p520) target = $region44
    $region43: #{preact_resnet_forward.16} parent=5 // pred_region
      %s523 = ssub.s32 %s11, 2
      // Predicated region
      $region45: #{preact_resnet_forward.16} parent=43 // pred_check
        %p524 = pneg %p87
      $region46: #{preact_resnet_forward.16} parent=43 // pred_check_branch
        %526 = sbr.rel (%p524) target = $region48
      $region47: #{preact_resnet_forward.16} parent=43 // pred_region
        %s527 = smul.u32 16, %s17
        %p528 = scmp.lt.s32.totalorder %s527, 63
        %s529 = scalar_select %p528, %s527, 63
        %s530 = smul.addr %s529, 4
        %s531 = scalar_lea.vmem %s2, %s530
      $region48: #{preact_resnet_forward.16} parent=43 // pred_fallthru
        _
      // Predicated region
      $region49: #{preact_resnet_forward.16} parent=43 // pred_check
        %p532 = pneg %p113
      $region50: #{preact_resnet_forward.16} parent=43 // pred_check_branch
        %534 = sbr.rel (%p532) target = $region52
      $region51: #{preact_resnet_forward.16} parent=43 // pred_region
        %p535 = scmp.lt.s32.totalorder %s17, 3
        %s536 = scalar_select %p535, %s17, 3
        %s537 = smul.addr %s536, 8
        %s538 = scalar_lea.vmem %s3, %s537
      $region52: #{preact_resnet_forward.16} parent=43 // pred_fallthru
        _
      // Predicated region
      $region53: #{preact_resnet_forward.16} parent=43 // pred_check
        %p539 = pneg %p139
      $region54: #{preact_resnet_forward.16} parent=43 // pred_check_branch
        %541 = sbr.rel (%p539) target = $region56
      $region55: #{preact_resnet_forward.16} parent=43 // pred_region
        %p542 = scmp.lt.s32.totalorder %s17, 3
        %s543 = scalar_select %p542, %s17, 3
        %s544 = smul.addr %s543, 8
        %s545 = scalar_lea.vmem %s4, %s544
      $region56: #{preact_resnet_forward.16} parent=43 // pred_fallthru
        _
    $region44: #{preact_resnet_forward.16} parent=5 // pred_fallthru
      _
  $region6: #{preact_resnet_forward.16} parent=0 // loop_footer
    %s15 = sadd.s32 1, %s11
  $region7: #{preact_resnet_forward.16} parent=0 // loop_footer_branch
    %10 = sbr.rel target = $region3
  $region8: #{preact_resnet_forward.16} parent=0 // loop_exit
    _

// kernel: preact_resnet_forward.18
$region0: #{preact_resnet_forward.18}
  #allocation0 [shape = 'u32[]', space=smem, size = 0x4, offset = 0x4, fixed_abs, tag = 'smem constant byte address 0x4 - core index']
  #allocation1 [shape = 'u32[72,128]{1,0:T(1,128)}', space=vmem, size = 0x9000, scoped, tag = 'internal scratch']
  %s0 = inlined_call_operand.vmem [shape: bf16[512,256], index: 0, kind: input, shape index: {}]
  %s1 = inlined_call_operand.vmem [shape: bf16[256,128], index: 1, kind: input, shape index: {}]
  %s2 = inlined_call_operand.vmem [shape: bf16[512,128], index: 2, kind: output, shape index: {0}]
  %s3 = inlined_call_operand.vmem [shape: f32[32,128], index: 3, kind: output, shape index: {1}]
  %s4 = inlined_call_operand.vmem [shape: f32[32,128], index: 4, kind: output, shape index: {2}]
  %5 = xla_tuple %s2, %s3, %s4
  %s6 = sld [smem:[#allocation0]]
  $region57: #{preact_resnet_forward.18} parent=0
    _
  %s8 = ssub.s32 1, %s6
  %s9 = scalar_select 0, %s8, %s6
  loop: start=0, step=1, limit=6
  $region2: #{preact_resnet_forward.18} parent=0 // loop_pre_header
    _
  $region3: #{preact_resnet_forward.18} parent=0 // loop_header
    %s11 = sphi 0, %s15
    %p12 = scmp.ge.s32.totalorder %s11, 6
    %s21 = sphi 0, %s23
    %s24 = sphi 0, %s21
    %s25 = sphi 0, %s24
    %s41 = sphi 0, %s25
    %s45 = sphi 0, %s45
    %s47 = sphi 0, %s45
    %s48 = sphi 0, %s47
    %s62 = sphi 0, %s48
    %s68 = sphi 0, %s70
    %s71 = sphi 0, %s68
    %s72 = sphi 0, %s71
    %s88 = sphi 0, %s72
    %s94 = sphi 0, %s96
    %s97 = sphi 0, %s94
    %s98 = sphi 0, %s97
    %s114 = sphi 0, %s98
    %s120 = sphi 0, %s122
    %s123 = sphi 0, %s120
    %s124 = sphi 0, %s123
    %s140 = sphi 0, %s124
  $region4: #{preact_resnet_forward.18} parent=0 // loop_header_branch
    %14 = sbr.rel (%p12) target = $region8
  $region5: #{preact_resnet_forward.18} parent=0 // loop_body
    %s16 = ssub.s32 %s11, 1
    %s17 = ssub.s32 %s11, 2
    %s18 = sadd.s32 %s11, 1
    %s19 = ssub.s32 %s11, %s18
    %p20 = scmp.eq.s32.totalorder %s19, 0
    %s22 = sadd.s32 %s21, 1
    %s23 = scalar_select %p20, %s21, %s22
    %p26 = pneg %p20
    %p27 = scmp.eq.s32.totalorder %s11, 3
    %p28 = por %p26, %p27
    %p29 = scmp.ne.s32.totalorder %s21, %s24
    %p30 = scmp.eq.s32.totalorder %s11, 0
    %p31 = por %p29, %p30
    %p32 = scmp.ne.s32.totalorder %s21, %s24
    %p33 = scmp.eq.s32.totalorder %s16, 3
    %p34 = por %p32, %p33
    %p35 = scmp.ne.s32.totalorder %s24, %s25
    %p36 = scmp.eq.s32.totalorder %s16, 0
    %p37 = por %p35, %p36
    %p38 = scmp.ne.s32.totalorder %s24, %s25
    %p39 = scmp.eq.s32.totalorder %s17, 3
    %p40 = por %p38, %p39
    %p42 = scmp.ne.s32.totalorder %s25, %s41
    %p43 = scmp.eq.s32.totalorder %s17, 0
    %p44 = por %p42, %p43
    %s46 = sadd.s32 %s45, 1
    %p49 = scmp.eq.s32.totalorder %s11, 3
    %p50 = scmp.ne.s32.totalorder %s45, %s47
    %p51 = scmp.eq.s32.totalorder %s11, 0
    %p52 = por %p50, %p51
    %p53 = scmp.ne.s32.totalorder %s45, %s47
    %p54 = scmp.eq.s32.totalorder %s16, 3
    %p55 = por %p53, %p54
    %p56 = scmp.ne.s32.totalorder %s47, %s48
    %p57 = scmp.eq.s32.totalorder %s16, 0
    %p58 = por %p56, %p57
    %p59 = scmp.ne.s32.totalorder %s47, %s48
    %p60 = scmp.eq.s32.totalorder %s17, 3
    %p61 = por %p59, %p60
    %p63 = scmp.ne.s32.totalorder %s48, %s62
    %p64 = scmp.eq.s32.totalorder %s17, 0
    %p65 = por %p63, %p64
    %s66 = ssub.s32 %s11, %s18
    %p67 = scmp.eq.s32.totalorder %s66, 0
    %s69 = sadd.s32 %s68, 1
    %s70 = scalar_select %p67, %s68, %s69
    %p73 = pneg %p67
    %p74 = scmp.eq.s32.totalorder %s11, 3
    %p75 = por %p73, %p74
    %p76 = scmp.ne.s32.totalorder %s68, %s71
    %p77 = scmp.eq.s32.totalorder %s11, 0
    %p78 = por %p76, %p77
    %p79 = scmp.ne.s32.totalorder %s68, %s71
    %p80 = scmp.eq.s32.totalorder %s16, 3
    %p81 = por %p79, %p80
    %p82 = scmp.ne.s32.totalorder %s71, %s72
    %p83 = scmp.eq.s32.totalorder %s16, 0
    %p84 = por %p82, %p83
    %p85 = scmp.ne.s32.totalorder %s71, %s72
    %p86 = scmp.eq.s32.totalorder %s17, 3
    %p87 = por %p85, %p86
    %p89 = scmp.ne.s32.totalorder %s72, %s88
    %p90 = scmp.eq.s32.totalorder %s17, 0
    %p91 = por %p89, %p90
    %s92 = ssub.s32 %s11, %s18
    %p93 = scmp.eq.s32.totalorder %s92, 0
    %s95 = sadd.s32 %s94, 1
    %s96 = scalar_select %p93, %s94, %s95
    %p99 = pneg %p93
    %p100 = scmp.eq.s32.totalorder %s11, 3
    %p101 = por %p99, %p100
    %p102 = scmp.ne.s32.totalorder %s94, %s97
    %p103 = scmp.eq.s32.totalorder %s11, 0
    %p104 = por %p102, %p103
    %p105 = scmp.ne.s32.totalorder %s94, %s97
    %p106 = scmp.eq.s32.totalorder %s16, 3
    %p107 = por %p105, %p106
    %p108 = scmp.ne.s32.totalorder %s97, %s98
    %p109 = scmp.eq.s32.totalorder %s16, 0
    %p110 = por %p108, %p109
    %p111 = scmp.ne.s32.totalorder %s97, %s98
    %p112 = scmp.eq.s32.totalorder %s17, 3
    %p113 = por %p111, %p112
    %p115 = scmp.ne.s32.totalorder %s98, %s114
    %p116 = scmp.eq.s32.totalorder %s17, 0
    %p117 = por %p115, %p116
    %s118 = ssub.s32 %s11, %s18
    %p119 = scmp.eq.s32.totalorder %s118, 0
    %s121 = sadd.s32 %s120, 1
    %s122 = scalar_select %p119, %s120, %s121
    %p125 = pneg %p119
    %p126 = scmp.eq.s32.totalorder %s11, 3
    %p127 = por %p125, %p126
    %p128 = scmp.ne.s32.totalorder %s120, %s123
    %p129 = scmp.eq.s32.totalorder %s11, 0
    %p130 = por %p128, %p129
    %p131 = scmp.ne.s32.totalorder %s120, %s123
    %p132 = scmp.eq.s32.totalorder %s16, 3
    %p133 = por %p131, %p132
    %p134 = scmp.ne.s32.totalorder %s123, %s124
    %p135 = scmp.eq.s32.totalorder %s16, 0
    %p136 = por %p134, %p135
    %p137 = scmp.ne.s32.totalorder %s123, %s124
    %p138 = scmp.eq.s32.totalorder %s17, 3
    %p139 = por %p137, %p138
    %p141 = scmp.ne.s32.totalorder %s124, %s140
    %p142 = scmp.eq.s32.totalorder %s17, 0
    %p143 = por %p141, %p142
    %p144 = scmp.le.s32.totalorder 1, %s11
    %p145 = scmp.lt.s32.totalorder %s11, 5
    %p146 = pnand %p144, %p145
    %p147 = pneg %p146
    // Predicated region
    $region9: #{preact_resnet_forward.18} parent=5 // pred_check
      _
    $region10: #{preact_resnet_forward.18} parent=5 // pred_check_branch
      %149 = sbr.rel (%p146) target = $region12
    $region11: #{preact_resnet_forward.18} parent=5 // pred_region
      %s150 = ssub.s32 %s11, 1
      // Predicated region
      $region13: #{preact_resnet_forward.18} parent=11 // pred_check
        %p151 = pneg %p58
      $region14: #{preact_resnet_forward.18} parent=11 // pred_check_branch
        %153 = sbr.rel (%p151) target = $region16
      $region15: #{preact_resnet_forward.18} parent=11 // pred_region
        _
      $region16: #{preact_resnet_forward.18} parent=11 // pred_fallthru
        _
    $region12: #{preact_resnet_forward.18} parent=5 // pred_fallthru
      _
    %p154 = scmp.lt.s32.totalorder %s11, 4
    // Predicated region
    $region17: #{preact_resnet_forward.18} parent=5 // pred_check
      %p155 = pneg %p154
    $region18: #{preact_resnet_forward.18} parent=5 // pred_check_branch
      %157 = sbr.rel (%p155) target = $region20
    $region19: #{preact_resnet_forward.18} parent=5 // pred_region
      // Predicated region
      $region21: #{preact_resnet_forward.18} parent=19 // pred_check
        %p158 = pneg %p31
      $region22: #{preact_resnet_forward.18} parent=19 // pred_check_branch
        %160 = sbr.rel (%p158) target = $region24
      $region23: #{preact_resnet_forward.18} parent=19 // pred_region
        %s161 = smul.u32 16, %s11
        %p162 = scmp.lt.s32.totalorder %s161, 63
        %s163 = scalar_select %p162, %s161, 63
        %s164 = smul.addr %s163, 2
        %s165 = smul.addr %s164, 4
        %s166 = scalar_lea.vmem %s0, %s165
        %s167 = smul.u32 16, %s11
      $region24: #{preact_resnet_forward.18} parent=19 // pred_fallthru
        _
    $region20: #{preact_resnet_forward.18} parent=5 // pred_fallthru
      _
    %p168 = scmp.le.s32.totalorder 1, %s11
    %p169 = scmp.lt.s32.totalorder %s11, 5
    %p170 = pnand %p168, %p169
    %p171 = pneg %p170
    // Predicated region
    $region25: #{preact_resnet_forward.18} parent=5 // pred_check
      _
    $region26: #{preact_resnet_forward.18} parent=5 // pred_check_branch
      %173 = sbr.rel (%p170) target = $region28
    $region27: #{preact_resnet_forward.18} parent=5 // pred_region
      %s174 = ssub.s32 %s11, 1
      %s175 = smul.u32 16, %s16
      %p176 = scmp.lt.s32.totalorder %s175, 63
      %s177 = scalar_select %p176, %s175, 63
      %s178 = smul.addr %s177, 2
      %s179 = smul.addr %s178, 4
      %s180 = scalar_lea.vmem %s0, %s179
      %p181 = pneg %p37
      %p182 = pneg %p34
      %p183 = pneg %p58
      %p184 = pneg %p55
      %p185 = pneg %p84
      %p186 = pneg %p81
      %s187 = smul.u32 16, %s16
      %p188 = scmp.lt.s32.totalorder %s187, 63
      %s189 = scalar_select %p188, %s187, 63
      %s190 = smul.addr %s189, 4
      %s191 = scalar_lea.vmem %s2, %s190
      %p192 = pneg %p110
      %p193 = pneg %p107
      %p194 = scmp.lt.s32.totalorder %s16, 3
      %s195 = scalar_select %p194, %s16, 3
      %s196 = smul.addr %s195, 8
      %s197 = scalar_lea.vmem %s3, %s196
      %p198 = pneg %p136
      %p199 = pneg %p133
      %p200 = scmp.lt.s32.totalorder %s16, 3
      %s201 = scalar_select %p200, %s16, 3
      %s202 = smul.addr %s201, 8
      %s203 = scalar_lea.vmem %s4, %s202
      %s204 = smul.u32 16, %s16
      %p205 = scmp.lt.s32.totalorder %s204, 63
      %s206 = scalar_select %p205, %s204, 63
      %s207 = smul.addr %s206, 2
      %s208 = smul.addr %s207, 4
      %s209 = scalar_lea.vmem %s0, %s208
      %s210 = smul.u32 16, %s16
      %s211 = smul.u32 16, %s16
      %p212 = scmp.lt.s32.totalorder %s211, 63
      %s213 = scalar_select %p212, %s211, 63
      %s214 = smul.addr %s213, 4
      %s215 = scalar_lea.vmem %s2, %s214
      %s216 = smul.u32 16, %s16
      %p217 = scmp.lt.s32.totalorder %s16, 3
      %s218 = scalar_select %p217, %s16, 3
      %s219 = smul.addr %s218, 8
      %s220 = scalar_lea.vmem %s3, %s219
      %p221 = scmp.lt.s32.totalorder %s16, 3
      %s222 = scalar_select %p221, %s16, 3
      %s223 = smul.addr %s222, 8
      %s224 = scalar_lea.vmem %s4, %s223
      %v225 = vld [vmem:[%s209] sm:$0xff]
      %v226 = vld [vmem:[%s209 + $0x8] sm:$0xff]
      %v227 = vld [vmem:[%s209 + $0x10] sm:$0xff]
      %v228 = vld [vmem:[%s209 + $0x18] sm:$0xff]
      %v229 = vld [vmem:[%s209 + $0x20] sm:$0xff]
      %v230 = vld [vmem:[%s209 + $0x28] sm:$0xff]
      %v231 = vld [vmem:[%s209 + $0x30] sm:$0xff]
      %v232 = vld [vmem:[%s209 + $0x38] sm:$0xff]
      %v233 = vld [vmem:[%s209 + $0x40] sm:$0xff]
      %v234 = vld [vmem:[%s209 + $0x48] sm:$0xff]
      %v235 = vld [vmem:[%s209 + $0x50] sm:$0xff]
      %v236 = vld [vmem:[%s209 + $0x58] sm:$0xff]
      %v237 = vld [vmem:[%s209 + $0x60] sm:$0xff]
      %v238 = vld [vmem:[%s209 + $0x68] sm:$0xff]
      %v239 = vld [vmem:[%s209 + $0x70] sm:$0xff]
      %v240 = vld [vmem:[%s209 + $0x78] sm:$0xff]
      %v241 = vld [vmem:[%s1] sm:$0xf]
      %v242 = vld [vmem:[%s1 + $0x4] sm:$0xf]
      %v243 = vld [vmem:[%s1 + $0x8] sm:$0xf]
      %v244 = vld [vmem:[%s1 + $0xc] sm:$0xf]
      %v245 = vld [vmem:[%s1 + $0x10] sm:$0xf]
      %v246 = vld [vmem:[%s1 + $0x14] sm:$0xf]
      %v247 = vld [vmem:[%s1 + $0x18] sm:$0xf]
      %v248 = vld [vmem:[%s1 + $0x1c] sm:$0xf]
      %v249 = vld [vmem:[%s1 + $0x20] sm:$0xf]
      %v250 = vld [vmem:[%s1 + $0x24] sm:$0xf]
      %v251 = vld [vmem:[%s1 + $0x28] sm:$0xf]
      %v252 = vld [vmem:[%s1 + $0x2c] sm:$0xf]
      %v253 = vld [vmem:[%s1 + $0x30] sm:$0xf]
      %v254 = vld [vmem:[%s1 + $0x34] sm:$0xf]
      %v255 = vld [vmem:[%s1 + $0x38] sm:$0xf]
      %v256 = vld [vmem:[%s1 + $0x3c] sm:$0xf]
      %v257 = vld [vmem:[%s1 + $0x40] sm:$0xf]
      %v258 = vld [vmem:[%s1 + $0x44] sm:$0xf]
      %v259 = vld [vmem:[%s1 + $0x48] sm:$0xf]
      %v260 = vld [vmem:[%s1 + $0x4c] sm:$0xf]
      %v261 = vld [vmem:[%s1 + $0x50] sm:$0xf]
      %v262 = vld [vmem:[%s1 + $0x54] sm:$0xf]
      %v263 = vld [vmem:[%s1 + $0x58] sm:$0xf]
      %v264 = vld [vmem:[%s1 + $0x5c] sm:$0xf]
      %v265 = vld [vmem:[%s1 + $0x60] sm:$0xf]
      %v266 = vld [vmem:[%s1 + $0x64] sm:$0xf]
      %v267 = vld [vmem:[%s1 + $0x68] sm:$0xf]
      %v268 = vld [vmem:[%s1 + $0x6c] sm:$0xf]
      %v269 = vld [vmem:[%s1 + $0x70] sm:$0xf]
      %v270 = vld [vmem:[%s1 + $0x74] sm:$0xf]
      %v271 = vld [vmem:[%s1 + $0x78] sm:$0xf]
      %v272 = vld [vmem:[%s1 + $0x7c] sm:$0xf]
      %v289 = vunpack.c.l.b16 %v225
      %v290 = vunpack.c.h.b16 %v225
      %v291 = vunpack.c.l.b16 %v226
      %v292 = vunpack.c.h.b16 %v226
      %v293 = vunpack.c.l.b16 %v227
      %v294 = vunpack.c.h.b16 %v227
      %v295 = vunpack.c.l.b16 %v228
      %v296 = vunpack.c.h.b16 %v228
      %v297 = vunpack.c.l.b16 %v229
      %v298 = vunpack.c.h.b16 %v229
      %v299 = vunpack.c.l.b16 %v230
      %v300 = vunpack.c.h.b16 %v230
      %v301 = vunpack.c.l.b16 %v231
      %v302 = vunpack.c.h.b16 %v231
      %v303 = vunpack.c.l.b16 %v232
      %v304 = vunpack.c.h.b16 %v232
      %v305 = vunpack.c.l.b16 %v233
      %v306 = vunpack.c.h.b16 %v233
      %v307 = vunpack.c.l.b16 %v234
      %v308 = vunpack.c.h.b16 %v234
      %v309 = vunpack.c.l.b16 %v235
      %v310 = vunpack.c.h.b16 %v235
      %v311 = vunpack.c.l.b16 %v236
      %v312 = vunpack.c.h.b16 %v236
      %v313 = vunpack.c.l.b16 %v237
      %v314 = vunpack.c.h.b16 %v237
      %v315 = vunpack.c.l.b16 %v238
      %v316 = vunpack.c.h.b16 %v238
      %v317 = vunpack.c.l.b16 %v239
      %v318 = vunpack.c.h.b16 %v239
      %v319 = vunpack.c.l.b16 %v240
      %v320 = vunpack.c.h.b16 %v240
      %v321 = vpack.c.b16 %v291, %v289
      %v322 = vpack.c.b16 %v292, %v290
      %v323 = vpack.c.b16 %v295, %v293
      %v324 = vpack.c.b16 %v296, %v294
      %v325 = vpack.c.b16 %v299, %v297
      %v326 = vpack.c.b16 %v300, %v298
      %v327 = vpack.c.b16 %v303, %v301
      %v328 = vpack.c.b16 %v304, %v302
      %v329 = vpack.c.b16 %v307, %v305
      %v330 = vpack.c.b16 %v308, %v306
      %v331 = vpack.c.b16 %v311, %v309
      %v332 = vpack.c.b16 %v312, %v310
      %v333 = vpack.c.b16 %v315, %v313
      %v334 = vpack.c.b16 %v316, %v314
      %v335 = vpack.c.b16 %v319, %v317
      %v336 = vpack.c.b16 %v320, %v318
      %v385 = vunpack.c.l.b16 %v241
      %v386 = vunpack.c.l.b16 %v242
      %v387 = vunpack.c.l.b16 %v243
      %v388 = vunpack.c.l.b16 %v244
      %v389 = vunpack.c.l.b16 %v245
      %v390 = vunpack.c.l.b16 %v246
      %v391 = vunpack.c.l.b16 %v247
      %v392 = vunpack.c.l.b16 %v248
      %v393 = vunpack.c.l.b16 %v249
      %v394 = vunpack.c.l.b16 %v250
      %v395 = vunpack.c.l.b16 %v251
      %v396 = vunpack.c.l.b16 %v252
      %v397 = vunpack.c.l.b16 %v253
      %v398 = vunpack.c.l.b16 %v254
      %v399 = vunpack.c.l.b16 %v255
      %v400 = vunpack.c.l.b16 %v256
      %v401 = vunpack.c.l.b16 %v257
      %v402 = vunpack.c.l.b16 %v258
      %v403 = vunpack.c.l.b16 %v259
      %v404 = vunpack.c.l.b16 %v260
      %v405 = vunpack.c.l.b16 %v261
      %v406 = vunpack.c.l.b16 %v262
      %v407 = vunpack.c.l.b16 %v263
      %v408 = vunpack.c.l.b16 %v264
      %v409 = vunpack.c.l.b16 %v265
      %v410 = vunpack.c.l.b16 %v266
      %v411 = vunpack.c.l.b16 %v267
      %v412 = vunpack.c.l.b16 %v268
      %v413 = vunpack.c.l.b16 %v269
      %v414 = vunpack.c.l.b16 %v270
      %v415 = vunpack.c.l.b16 %v271
      %v416 = vunpack.c.l.b16 %v272
      %v417 = vpack.c.b16 %v386, %v385
      %v418 = vpack.c.b16 %v388, %v387
      %v419 = vpack.c.b16 %v390, %v389
      %v420 = vpack.c.b16 %v392, %v391
      %v421 = vpack.c.b16 %v394, %v393
      %v422 = vpack.c.b16 %v396, %v395
      %v423 = vpack.c.b16 %v398, %v397
      %v424 = vpack.c.b16 %v400, %v399
      %v425 = vpack.c.b16 %v402, %v401
      %v426 = vpack.c.b16 %v404, %v403
      %v427 = vpack.c.b16 %v406, %v405
      %v428 = vpack.c.b16 %v408, %v407
      %v429 = vpack.c.b16 %v410, %v409
      %v430 = vpack.c.b16 %v412, %v411
      %v431 = vpack.c.b16 %v414, %v413
      %v432 = vpack.c.b16 %v416, %v415
      %449 = vmatpush.bf16.msra.mxu0 %v424
      %450 = vmatpush.bf16.msra.mxu0 %v423
      %451 = vmatpush.bf16.msra.mxu0 %v422
      %452 = vmatpush.bf16.msra.mxu0 %v421
      %453 = vmatpush.bf16.msra.mxu0 %v420
      %454 = vmatpush.bf16.msra.mxu0 %v419
      %455 = vmatpush.bf16.msra.mxu0 %v418
      %456 = vmatpush.bf16.msra.mxu0 %v417
      %457 = vmatmul.bf16.gmra.mxu0 %v321
      %v458 = vpop.f32.mrf.mxu0
      %v459 = vadd.f32 0.0, %v458
      %v460 = vpop.f32.mrf.mxu0
      %v461 = vadd.f32 0.0, %v460
      %462 = vmatmul.bf16.gmra.mxu0 %v323
      %v463 = vpop.f32.mrf.mxu0
      %v464 = vadd.f32 0.0, %v463
      %v465 = vpop.f32.mrf.mxu0
      %v466 = vadd.f32 0.0, %v465
      %467 = vmatmul.bf16.gmra.mxu0 %v325
      %v468 = vpop.f32.mrf.mxu0
      %v469 = vadd.f32 0.0, %v468
      %v470 = vpop.f32.mrf.mxu0
      %v471 = vadd.f32 0.0, %v470
      %472 = vmatmul.bf16.gmra.mxu0 %v327
      %v473 = vpop.f32.mrf.mxu0
      %v474 = vadd.f32 0.0, %v473
      %v475 = vpop.f32.mrf.mxu0
      %v476 = vadd.f32 0.0, %v475
      %477 = vmatmul.bf16.gmra.mxu0 %v329
      %v478 = vpop.f32.mrf.mxu0
      %v479 = vadd.f32 0.0, %v478
      %v480 = vpop.f32.mrf.mxu0
      %v481 = vadd.f32 0.0, %v480
      %482 = vmatmul.bf16.gmra.mxu0 %v331
      %v483 = vpop.f32.mrf.mxu0
      %v484 = vadd.f32 0.0, %v483
      %v485 = vpop.f32.mrf.mxu0
      %v486 = vadd.f32 0.0, %v485
      %487 = vmatmul.bf16.gmra.mxu0 %v333
      %v488 = vpop.f32.mrf.mxu0
      %v489 = vadd.f32 0.0, %v488
      %v490 = vpop.f32.mrf.mxu0
      %v491 = vadd.f32 0.0, %v490
      %492 = vmatmul.bf16.gmra.mxu0 %v335
      %v493 = vpop.f32.mrf.mxu0
      %v494 = vadd.f32 0.0, %v493
      %v495 = vpop.f32.mrf.mxu0
      %v496 = vadd.f32 0.0, %v495
      %497 = vdwg.mxu0
      %498 = vmatpush.bf16.msra.mxu0 %v432
      %499 = vmatpush.bf16.msra.mxu0 %v431
      %500 = vmatpush.bf16.msra.mxu0 %v430
      %501 = vmatpush.bf16.msra.mxu0 %v429
      %502 = vmatpush.bf16.msra.mxu0 %v428
      %503 = vmatpush.bf16.msra.mxu0 %v427
      %504 = vmatpush.bf16.msra.mxu0 %v426
      %505 = vmatpush.bf16.msra.mxu0 %v425
      %506 = vmatmul.bf16.gmra.mxu0 %v322
      %v507 = vpop.f32.mrf.mxu0
      %v508 = vadd.f32 %v459, %v507
      %v509 = vpop.f32.mrf.mxu0
      %v510 = vadd.f32 %v461, %v509
      %511 = vmatmul.bf16.gmra.mxu0 %v324
      %v512 = vpop.f32.mrf.mxu0
      %v513 = vadd.f32 %v464, %v512
      %v514 = vpop.f32.mrf.mxu0
      %v515 = vadd.f32 %v466, %v514
      %516 = vmatmul.bf16.gmra.mxu0 %v326
      %v517 = vpop.f32.mrf.mxu0
      %v518 = vadd.f32 %v469, %v517
      %v519 = vpop.f32.mrf.mxu0
      %v520 = vadd.f32 %v471, %v519
      %521 = vmatmul.bf16.gmra.mxu0 %v328
      %v522 = vpop.f32.mrf.mxu0
      %v523 = vadd.f32 %v474, %v522
      %v524 = vpop.f32.mrf.mxu0
      %v525 = vadd.f32 %v476, %v524
      %526 = vmatmul.bf16.gmra.mxu0 %v330
      %v527 = vpop.f32.mrf.mxu0
      %v528 = vadd.f32 %v479, %v527
      %v529 = vpop.f32.mrf.mxu0
      %v530 = vadd.f32 %v481, %v529
      %531 = vmatmul.bf16.gmra.mxu0 %v332
      %v532 = vpop.f32.mrf.mxu0
      %v533 = vadd.f32 %v484, %v532
      %v534 = vpop.f32.mrf.mxu0
      %v535 = vadd.f32 %v486, %v534
      %536 = vmatmul.bf16.gmra.mxu0 %v334
      %v537 = vpop.f32.mrf.mxu0
      %v538 = vadd.f32 %v489, %v537
      %v539 = vpop.f32.mrf.mxu0
      %v540 = vadd.f32 %v491, %v539
      %541 = vmatmul.bf16.gmra.mxu0 %v336
      %v542 = vpop.f32.mrf.mxu0
      %v543 = vadd.f32 %v494, %v542
      %v544 = vpop.f32.mrf.mxu0
      %v545 = vadd.f32 %v496, %v544
      %546 = vdwg.mxu0
      %v547 = vpack.c.bf16 %v508, %v508
      %v548 = vpack.c.bf16 %v510, %v510
      %v549 = vpack.c.bf16 %v513, %v513
      %v550 = vpack.c.bf16 %v515, %v515
      %v551 = vpack.c.bf16 %v518, %v518
      %v552 = vpack.c.bf16 %v520, %v520
      %v553 = vpack.c.bf16 %v523, %v523
      %v554 = vpack.c.bf16 %v525, %v525
      %v555 = vpack.c.bf16 %v528, %v528
      %v556 = vpack.c.bf16 %v530, %v530
      %v557 = vpack.c.bf16 %v533, %v533
      %v558 = vpack.c.bf16 %v535, %v535
      %v559 = vpack.c.bf16 %v538, %v538
      %v560 = vpack.c.bf16 %v540, %v540
      %v561 = vpack.c.bf16 %v543, %v543
      %v562 = vpack.c.bf16 %v545, %v545
      %563 = vst [vmem:[%s215] sm:$0xf] %v547
      %564 = vst [vmem:[%s215 + $0x4] sm:$0xf] %v548
      %565 = vst [vmem:[%s215 + $0x8] sm:$0xf] %v549
      %566 = vst [vmem:[%s215 + $0xc] sm:$0xf] %v550
      %567 = vst [vmem:[%s215 + $0x10] sm:$0xf] %v551
      %568 = vst [vmem:[%s215 + $0x14] sm:$0xf] %v552
      %569 = vst [vmem:[%s215 + $0x18] sm:$0xf] %v553
      %570 = vst [vmem:[%s215 + $0x1c] sm:$0xf] %v554
      %571 = vst [vmem:[%s215 + $0x20] sm:$0xf] %v555
      %572 = vst [vmem:[%s215 + $0x24] sm:$0xf] %v556
      %573 = vst [vmem:[%s215 + $0x28] sm:$0xf] %v557
      %574 = vst [vmem:[%s215 + $0x2c] sm:$0xf] %v558
      %575 = vst [vmem:[%s215 + $0x30] sm:$0xf] %v559
      %576 = vst [vmem:[%s215 + $0x34] sm:$0xf] %v560
      %577 = vst [vmem:[%s215 + $0x38] sm:$0xf] %v561
      %578 = vst [vmem:[%s215 + $0x3c] sm:$0xf] %v562
      %v579 = vlaneseq
      %v580 = vshrl.u32 %v579, 7
      %vm581 = vcmp.eq.s32.totalorder %v580, 0
      %v582 = vadd.f32 %v508, %v510
      %v583 = vadd.f32 %v582, %v513
      %v584 = vadd.f32 %v583, %v515
      %v585 = vadd.f32 %v584, %v518
      %v586 = vadd.f32 %v585, %v520
      %v587 = vadd.f32 %v586, %v523
      %v588 = vadd.f32 %v587, %v525
      %v589 = vadd.f32 %v588, %v528
      %v590 = vadd.f32 %v589, %v530
      %v591 = vadd.f32 %v590, %v533
      %v592 = vadd.f32 %v591, %v535
      %v593 = vadd.f32 %v592, %v538
      %v594 = vadd.f32 %v593, %v540
      %v595 = vadd.f32 %v594, %v543
      %v596 = vadd.f32 %v595, %v545
      %v597 = vrot.slane %v596, 4
      %v598 = vadd.f32 %v596, %v597
      %v599 = vrot.slane %v598, 2
      %v600 = vadd.f32 %v598, %v599
      %v601 = vrot.slane %v600, 1
      %v602 = vadd.f32 %v600, %v601
      %v603 = vsel %vm581, %v602, 0.0
      %604 = vst [vmem:[%s220] sm:$0xff] %v603
      %v605 = vmul.f32 %v508, %v508
      %v606 = vmul.f32 %v510, %v510
      %v607 = vmul.f32 %v513, %v513
      %v608 = vmul.f32 %v515, %v515
      %v609 = vmul.f32 %v518, %v518
      %v610 = vmul.f32 %v520, %v520
      %v611 = vmul.f32 %v523, %v523
      %v612 = vmul.f32 %v525, %v525
      %v613 = vmul.f32 %v528, %v528
      %v614 = vmul.f32 %v530, %v530
      %v615 = vmul.f32 %v533, %v533
      %v616 = vmul.f32 %v535, %v535
      %v617 = vmul.f32 %v538, %v538
      %v618 = vmul.f32 %v540, %v540
      %v619 = vmul.f32 %v543, %v543
      %v620 = vmul.f32 %v545, %v545
      %v621 = vadd.f32 %v605, %v606
      %v622 = vadd.f32 %v621, %v607
      %v623 = vadd.f32 %v622, %v608
      %v624 = vadd.f32 %v623, %v609
      %v625 = vadd.f32 %v624, %v610
      %v626 = vadd.f32 %v625, %v611
      %v627 = vadd.f32 %v626, %v612
      %v628 = vadd.f32 %v627, %v613
      %v629 = vadd.f32 %v628, %v614
      %v630 = vadd.f32 %v629, %v615
      %v631 = vadd.f32 %v630, %v616
      %v632 = vadd.f32 %v631, %v617
      %v633 = vadd.f32 %v632, %v618
      %v634 = vadd.f32 %v633, %v619
      %v635 = vadd.f32 %v634, %v620
      %v636 = vrot.slane %v635, 4
      %v637 = vadd.f32 %v635, %v636
      %v638 = vrot.slane %v637, 2
      %v639 = vadd.f32 %v637, %v638
      %v640 = vrot.slane %v639, 1
      %v641 = vadd.f32 %v639, %v640
      %v642 = vsel %vm581, %v641, 0.0
      %643 = vst [vmem:[%s224] sm:$0xff] %v642
      %s644 = smul.u32 16, %s16
      %p645 = scmp.lt.s32.totalorder %s644, 63
      %s646 = scalar_select %p645, %s644, 63
      %s647 = smul.addr %s646, 4
      %s648 = scalar_lea.vmem %s2, %s647
      %p649 = scmp.lt.s32.totalorder %s16, 3
      %s650 = scalar_select %p649, %s16, 3
      %s651 = smul.addr %s650, 8
      %s652 = scalar_lea.vmem %s3, %s651
      %p653 = scmp.lt.s32.totalorder %s16, 3
      %s654 = scalar_select %p653, %s16, 3
      %s655 = smul.addr %s654, 8
      %s656 = scalar_lea.vmem %s4, %s655
      // Predicated region
      $region29: #{preact_resnet_forward.18} parent=27 // pred_check
        %p657 = pneg %p81
      $region30: #{preact_resnet_forward.18} parent=27 // pred_check_branch
        %659 = sbr.rel (%p657) target = $region32
      $region31: #{preact_resnet_forward.18} parent=27 // pred_region
        %s660 = smul.u32 16, %s16
      $region32: #{preact_resnet_forward.18} parent=27 // pred_fallthru
        _
      // Predicated region
      $region33: #{preact_resnet_forward.18} parent=27 // pred_check
        %p661 = pneg %p107
      $region34: #{preact_resnet_forward.18} parent=27 // pred_check_branch
        %663 = sbr.rel (%p661) target = $region36
      $region35: #{preact_resnet_forward.18} parent=27 // pred_region
        _
      $region36: #{preact_resnet_forward.18} parent=27 // pred_fallthru
        _
      // Predicated region
      $region37: #{preact_resnet_forward.18} parent=27 // pred_check
        %p664 = pneg %p133
      $region38: #{preact_resnet_forward.18} parent=27 // pred_check_branch
        %666 = sbr.rel (%p664) target = $region40
      $region39: #{preact_resnet_forward.18} parent=27 // pred_region
        _
      $region40: #{preact_resnet_forward.18} parent=27 // pred_fallthru
        _
    $region28: #{preact_resnet_forward.18} parent=5 // pred_fallthru
      _
    %p667 = scmp.le.s32.totalorder 2, %s11
    // Predicated region
    $region41: #{preact_resnet_forward.18} parent=5 // pred_check
      %p668 = pneg %p667
    $region42: #{preact_resnet_forward.18} parent=5 // pred_check_branch
      %670 = sbr.rel (%p668) target = $region44
    $region43: #{preact_resnet_forward.18} parent=5 // pred_region
      %s671 = ssub.s32 %s11, 2
      // Predicated region
      $region45: #{preact_resnet_forward.18} parent=43 // pred_check
        %p672 = pneg %p87
      $region46: #{preact_resnet_forward.18} parent=43 // pred_check_branch
        %674 = sbr.rel (%p672) target = $region48
      $region47: #{preact_resnet_forward.18} parent=43 // pred_region
        %s675 = smul.u32 16, %s17
        %p676 = scmp.lt.s32.totalorder %s675, 63
        %s677 = scalar_select %p676, %s675, 63
        %s678 = smul.addr %s677, 4
        %s679 = scalar_lea.vmem %s2, %s678
      $region48: #{preact_resnet_forward.18} parent=43 // pred_fallthru
        _
      // Predicated region
      $region49: #{preact_resnet_forward.18} parent=43 // pred_check
        %p680 = pneg %p113
      $region50: #{preact_resnet_forward.18} parent=43 // pred_check_branch
        %682 = sbr.rel (%p680) target = $region52
      $region51: #{preact_resnet_forward.18} parent=43 // pred_region
        %p683 = scmp.lt.s32.totalorder %s17, 3
        %s684 = scalar_select %p683, %s17, 3
        %s685 = smul.addr %s684, 8
        %s686 = scalar_lea.vmem %s3, %s685
      $region52: #{preact_resnet_forward.18} parent=43 // pred_fallthru
        _
      // Predicated region
      $region53: #{preact_resnet_forward.18} parent=43 // pred_check
        %p687 = pneg %p139
      $region54: #{preact_resnet_forward.18} parent=43 // pred_check_branch
        %689 = sbr.rel (%p687) target = $region56
      $region55: #{preact_resnet_forward.18} parent=43 // pred_region
        %p690 = scmp.lt.s32.totalorder %s17, 3
        %s691 = scalar_select %p690, %s17, 3
        %s692 = smul.addr %s691, 8
        %s693 = scalar_lea.vmem %s4, %s692
      $region56: #{preact_resnet_forward.18} parent=43 // pred_fallthru
        _
    $region44: #{preact_resnet_forward.18} parent=5 // pred_fallthru
      _
  $region6: #{preact_resnet_forward.18} parent=0 // loop_footer
    %s15 = sadd.s32 1, %s11
  $region7: #{preact_resnet_forward.18} parent=0 // loop_footer_branch
    %10 = sbr.rel target = $region3
  $region8: #{preact_resnet_forward.18} parent=0 // loop_exit
    _

// kernel: preact_resnet_forward.20
$region0: #{preact_resnet_forward.20}
  #allocation0 [shape = 'u32[]', space=smem, size = 0x4, offset = 0x4, fixed_abs, tag = 'smem constant byte address 0x4 - core index']
  #allocation1 [shape = 'u32[72,128]{1,0:T(1,128)}', space=vmem, size = 0x9000, scoped, tag = 'internal scratch']
  %s0 = inlined_call_operand.vmem [shape: bf16[512,256], index: 0, kind: input, shape index: {}]
  %s1 = inlined_call_operand.vmem [shape: bf16[256,128], index: 1, kind: input, shape index: {}]
  %s2 = inlined_call_operand.vmem [shape: bf16[512,128], index: 2, kind: input, shape index: {}]
  %s3 = inlined_call_operand.vmem [shape: bf16[512,128], index: 3, kind: output, shape index: {0}]
  %s4 = inlined_call_operand.vmem [shape: f32[32,128], index: 4, kind: output, shape index: {1}]
  %s5 = inlined_call_operand.vmem [shape: f32[32,128], index: 5, kind: output, shape index: {2}]
  %6 = xla_tuple %s3, %s4, %s5
  %s7 = sld [smem:[#allocation0]]
  $region61: #{preact_resnet_forward.20} parent=0
    _
  %s9 = ssub.s32 1, %s7
  %s10 = scalar_select 0, %s9, %s7
  loop: start=0, step=1, limit=6
  $region2: #{preact_resnet_forward.20} parent=0 // loop_pre_header
    _
  $region3: #{preact_resnet_forward.20} parent=0 // loop_header
    %s12 = sphi 0, %s16
    %p13 = scmp.ge.s32.totalorder %s12, 6
    %s22 = sphi 0, %s24
    %s25 = sphi 0, %s22
    %s26 = sphi 0, %s25
    %s42 = sphi 0, %s26
    %s46 = sphi 0, %s46
    %s48 = sphi 0, %s46
    %s49 = sphi 0, %s48
    %s63 = sphi 0, %s49
    %s69 = sphi 0, %s71
    %s72 = sphi 0, %s69
    %s73 = sphi 0, %s72
    %s89 = sphi 0, %s73
    %s95 = sphi 0, %s97
    %s98 = sphi 0, %s95
    %s99 = sphi 0, %s98
    %s115 = sphi 0, %s99
    %s121 = sphi 0, %s123
    %s124 = sphi 0, %s121
    %s125 = sphi 0, %s124
    %s141 = sphi 0, %s125
    %s147 = sphi 0, %s149
    %s150 = sphi 0, %s147
    %s151 = sphi 0, %s150
    %s167 = sphi 0, %s151
  $region4: #{preact_resnet_forward.20} parent=0 // loop_header_branch
    %15 = sbr.rel (%p13) target = $region8
  $region5: #{preact_resnet_forward.20} parent=0 // loop_body
    %s17 = ssub.s32 %s12, 1
    %s18 = ssub.s32 %s12, 2
    %s19 = sadd.s32 %s12, 1
    %s20 = ssub.s32 %s12, %s19
    %p21 = scmp.eq.s32.totalorder %s20, 0
    %s23 = sadd.s32 %s22, 1
    %s24 = scalar_select %p21, %s22, %s23
    %p27 = pneg %p21
    %p28 = scmp.eq.s32.totalorder %s12, 3
    %p29 = por %p27, %p28
    %p30 = scmp.ne.s32.totalorder %s22, %s25
    %p31 = scmp.eq.s32.totalorder %s12, 0
    %p32 = por %p30, %p31
    %p33 = scmp.ne.s32.totalorder %s22, %s25
    %p34 = scmp.eq.s32.totalorder %s17, 3
    %p35 = por %p33, %p34
    %p36 = scmp.ne.s32.totalorder %s25, %s26
    %p37 = scmp.eq.s32.totalorder %s17, 0
    %p38 = por %p36, %p37
    %p39 = scmp.ne.s32.totalorder %s25, %s26
    %p40 = scmp.eq.s32.totalorder %s18, 3
    %p41 = por %p39, %p40
    %p43 = scmp.ne.s32.totalorder %s26, %s42
    %p44 = scmp.eq.s32.totalorder %s18, 0
    %p45 = por %p43, %p44
    %s47 = sadd.s32 %s46, 1
    %p50 = scmp.eq.s32.totalorder %s12, 3
    %p51 = scmp.ne.s32.totalorder %s46, %s48
    %p52 = scmp.eq.s32.totalorder %s12, 0
    %p53 = por %p51, %p52
    %p54 = scmp.ne.s32.totalorder %s46, %s48
    %p55 = scmp.eq.s32.totalorder %s17, 3
    %p56 = por %p54, %p55
    %p57 = scmp.ne.s32.totalorder %s48, %s49
    %p58 = scmp.eq.s32.totalorder %s17, 0
    %p59 = por %p57, %p58
    %p60 = scmp.ne.s32.totalorder %s48, %s49
    %p61 = scmp.eq.s32.totalorder %s18, 3
    %p62 = por %p60, %p61
    %p64 = scmp.ne.s32.totalorder %s49, %s63
    %p65 = scmp.eq.s32.totalorder %s18, 0
    %p66 = por %p64, %p65
    %s67 = ssub.s32 %s12, %s19
    %p68 = scmp.eq.s32.totalorder %s67, 0
    %s70 = sadd.s32 %s69, 1
    %s71 = scalar_select %p68, %s69, %s70
    %p74 = pneg %p68
    %p75 = scmp.eq.s32.totalorder %s12, 3
    %p76 = por %p74, %p75
    %p77 = scmp.ne.s32.totalorder %s69, %s72
    %p78 = scmp.eq.s32.totalorder %s12, 0
    %p79 = por %p77, %p78
    %p80 = scmp.ne.s32.totalorder %s69, %s72
    %p81 = scmp.eq.s32.totalorder %s17, 3
    %p82 = por %p80, %p81
    %p83 = scmp.ne.s32.totalorder %s72, %s73
    %p84 = scmp.eq.s32.totalorder %s17, 0
    %p85 = por %p83, %p84
    %p86 = scmp.ne.s32.totalorder %s72, %s73
    %p87 = scmp.eq.s32.totalorder %s18, 3
    %p88 = por %p86, %p87
    %p90 = scmp.ne.s32.totalorder %s73, %s89
    %p91 = scmp.eq.s32.totalorder %s18, 0
    %p92 = por %p90, %p91
    %s93 = ssub.s32 %s12, %s19
    %p94 = scmp.eq.s32.totalorder %s93, 0
    %s96 = sadd.s32 %s95, 1
    %s97 = scalar_select %p94, %s95, %s96
    %p100 = pneg %p94
    %p101 = scmp.eq.s32.totalorder %s12, 3
    %p102 = por %p100, %p101
    %p103 = scmp.ne.s32.totalorder %s95, %s98
    %p104 = scmp.eq.s32.totalorder %s12, 0
    %p105 = por %p103, %p104
    %p106 = scmp.ne.s32.totalorder %s95, %s98
    %p107 = scmp.eq.s32.totalorder %s17, 3
    %p108 = por %p106, %p107
    %p109 = scmp.ne.s32.totalorder %s98, %s99
    %p110 = scmp.eq.s32.totalorder %s17, 0
    %p111 = por %p109, %p110
    %p112 = scmp.ne.s32.totalorder %s98, %s99
    %p113 = scmp.eq.s32.totalorder %s18, 3
    %p114 = por %p112, %p113
    %p116 = scmp.ne.s32.totalorder %s99, %s115
    %p117 = scmp.eq.s32.totalorder %s18, 0
    %p118 = por %p116, %p117
    %s119 = ssub.s32 %s12, %s19
    %p120 = scmp.eq.s32.totalorder %s119, 0
    %s122 = sadd.s32 %s121, 1
    %s123 = scalar_select %p120, %s121, %s122
    %p126 = pneg %p120
    %p127 = scmp.eq.s32.totalorder %s12, 3
    %p128 = por %p126, %p127
    %p129 = scmp.ne.s32.totalorder %s121, %s124
    %p130 = scmp.eq.s32.totalorder %s12, 0
    %p131 = por %p129, %p130
    %p132 = scmp.ne.s32.totalorder %s121, %s124
    %p133 = scmp.eq.s32.totalorder %s17, 3
    %p134 = por %p132, %p133
    %p135 = scmp.ne.s32.totalorder %s124, %s125
    %p136 = scmp.eq.s32.totalorder %s17, 0
    %p137 = por %p135, %p136
    %p138 = scmp.ne.s32.totalorder %s124, %s125
    %p139 = scmp.eq.s32.totalorder %s18, 3
    %p140 = por %p138, %p139
    %p142 = scmp.ne.s32.totalorder %s125, %s141
    %p143 = scmp.eq.s32.totalorder %s18, 0
    %p144 = por %p142, %p143
    %s145 = ssub.s32 %s12, %s19
    %p146 = scmp.eq.s32.totalorder %s145, 0
    %s148 = sadd.s32 %s147, 1
    %s149 = scalar_select %p146, %s147, %s148
    %p152 = pneg %p146
    %p153 = scmp.eq.s32.totalorder %s12, 3
    %p154 = por %p152, %p153
    %p155 = scmp.ne.s32.totalorder %s147, %s150
    %p156 = scmp.eq.s32.totalorder %s12, 0
    %p157 = por %p155, %p156
    %p158 = scmp.ne.s32.totalorder %s147, %s150
    %p159 = scmp.eq.s32.totalorder %s17, 3
    %p160 = por %p158, %p159
    %p161 = scmp.ne.s32.totalorder %s150, %s151
    %p162 = scmp.eq.s32.totalorder %s17, 0
    %p163 = por %p161, %p162
    %p164 = scmp.ne.s32.totalorder %s150, %s151
    %p165 = scmp.eq.s32.totalorder %s18, 3
    %p166 = por %p164, %p165
    %p168 = scmp.ne.s32.totalorder %s151, %s167
    %p169 = scmp.eq.s32.totalorder %s18, 0
    %p170 = por %p168, %p169
    %p171 = scmp.le.s32.totalorder 1, %s12
    %p172 = scmp.lt.s32.totalorder %s12, 5
    %p173 = pnand %p171, %p172
    %p174 = pneg %p173
    // Predicated region
    $region9: #{preact_resnet_forward.20} parent=5 // pred_check
      _
    $region10: #{preact_resnet_forward.20} parent=5 // pred_check_branch
      %176 = sbr.rel (%p173) target = $region12
    $region11: #{preact_resnet_forward.20} parent=5 // pred_region
      %s177 = ssub.s32 %s12, 1
      // Predicated region
      $region13: #{preact_resnet_forward.20} parent=11 // pred_check
        %p178 = pneg %p59
      $region14: #{preact_resnet_forward.20} parent=11 // pred_check_branch
        %180 = sbr.rel (%p178) target = $region16
      $region15: #{preact_resnet_forward.20} parent=11 // pred_region
        _
      $region16: #{preact_resnet_forward.20} parent=11 // pred_fallthru
        _
    $region12: #{preact_resnet_forward.20} parent=5 // pred_fallthru
      _
    %p181 = scmp.lt.s32.totalorder %s12, 4
    // Predicated region
    $region17: #{preact_resnet_forward.20} parent=5 // pred_check
      %p182 = pneg %p181
    $region18: #{preact_resnet_forward.20} parent=5 // pred_check_branch
      %184 = sbr.rel (%p182) target = $region20
    $region19: #{preact_resnet_forward.20} parent=5 // pred_region
      // Predicated region
      $region21: #{preact_resnet_forward.20} parent=19 // pred_check
        %p185 = pneg %p32
      $region22: #{preact_resnet_forward.20} parent=19 // pred_check_branch
        %187 = sbr.rel (%p185) target = $region24
      $region23: #{preact_resnet_forward.20} parent=19 // pred_region
        %s188 = smul.u32 16, %s12
        %p189 = scmp.lt.s32.totalorder %s188, 63
        %s190 = scalar_select %p189, %s188, 63
        %s191 = smul.addr %s190, 2
        %s192 = smul.addr %s191, 4
        %s193 = scalar_lea.vmem %s0, %s192
        %s194 = smul.u32 16, %s12
      $region24: #{preact_resnet_forward.20} parent=19 // pred_fallthru
        _
      // Predicated region
      $region25: #{preact_resnet_forward.20} parent=19 // pred_check
        %p195 = pneg %p79
      $region26: #{preact_resnet_forward.20} parent=19 // pred_check_branch
        %197 = sbr.rel (%p195) target = $region28
      $region27: #{preact_resnet_forward.20} parent=19 // pred_region
        %s198 = smul.u32 16, %s12
        %p199 = scmp.lt.s32.totalorder %s198, 63
        %s200 = scalar_select %p199, %s198, 63
        %s201 = smul.addr %s200, 4
        %s202 = scalar_lea.vmem %s2, %s201
        %s203 = smul.u32 16, %s12
      $region28: #{preact_resnet_forward.20} parent=19 // pred_fallthru
        _
    $region20: #{preact_resnet_forward.20} parent=5 // pred_fallthru
      _
    %p204 = scmp.le.s32.totalorder 1, %s12
    %p205 = scmp.lt.s32.totalorder %s12, 5
    %p206 = pnand %p204, %p205
    %p207 = pneg %p206
    // Predicated region
    $region29: #{preact_resnet_forward.20} parent=5 // pred_check
      _
    $region30: #{preact_resnet_forward.20} parent=5 // pred_check_branch
      %209 = sbr.rel (%p206) target = $region32
    $region31: #{preact_resnet_forward.20} parent=5 // pred_region
      %s210 = ssub.s32 %s12, 1
      %s211 = smul.u32 16, %s17
      %p212 = scmp.lt.s32.totalorder %s211, 63
      %s213 = scalar_select %p212, %s211, 63
      %s214 = smul.addr %s213, 2
      %s215 = smul.addr %s214, 4
      %s216 = scalar_lea.vmem %s0, %s215
      %p217 = pneg %p38
      %p218 = pneg %p35
      %p219 = pneg %p59
      %p220 = pneg %p56
      %s221 = smul.u32 16, %s17
      %p222 = scmp.lt.s32.totalorder %s221, 63
      %s223 = scalar_select %p222, %s221, 63
      %s224 = smul.addr %s223, 4
      %s225 = scalar_lea.vmem %s2, %s224
      %p226 = pneg %p85
      %p227 = pneg %p82
      %p228 = pneg %p111
      %p229 = pneg %p108
      %s230 = smul.u32 16, %s17
      %p231 = scmp.lt.s32.totalorder %s230, 63
      %s232 = scalar_select %p231, %s230, 63
      %s233 = smul.addr %s232, 4
      %s234 = scalar_lea.vmem %s3, %s233
      %p235 = pneg %p137
      %p236 = pneg %p134
      %p237 = scmp.lt.s32.totalorder %s17, 3
      %s238 = scalar_select %p237, %s17, 3
      %s239 = smul.addr %s238, 8
      %s240 = scalar_lea.vmem %s4, %s239
      %p241 = pneg %p163
      %p242 = pneg %p160
      %p243 = scmp.lt.s32.totalorder %s17, 3
      %s244 = scalar_select %p243, %s17, 3
      %s245 = smul.addr %s244, 8
      %s246 = scalar_lea.vmem %s5, %s245
      %s247 = smul.u32 16, %s17
      %p248 = scmp.lt.s32.totalorder %s247, 63
      %s249 = scalar_select %p248, %s247, 63
      %s250 = smul.addr %s249, 2
      %s251 = smul.addr %s250, 4
      %s252 = scalar_lea.vmem %s0, %s251
      %s253 = smul.u32 16, %s17
      %s254 = smul.u32 16, %s17
      %p255 = scmp.lt.s32.totalorder %s254, 63
      %s256 = scalar_select %p255, %s254, 63
      %s257 = smul.addr %s256, 4
      %s258 = scalar_lea.vmem %s2, %s257
      %s259 = smul.u32 16, %s17
      %s260 = smul.u32 16, %s17
      %p261 = scmp.lt.s32.totalorder %s260, 63
      %s262 = scalar_select %p261, %s260, 63
      %s263 = smul.addr %s262, 4
      %s264 = scalar_lea.vmem %s3, %s263
      %s265 = smul.u32 16, %s17
      %p266 = scmp.lt.s32.totalorder %s17, 3
      %s267 = scalar_select %p266, %s17, 3
      %s268 = smul.addr %s267, 8
      %s269 = scalar_lea.vmem %s4, %s268
      %p270 = scmp.lt.s32.totalorder %s17, 3
      %s271 = scalar_select %p270, %s17, 3
      %s272 = smul.addr %s271, 8
      %s273 = scalar_lea.vmem %s5, %s272
      %v274 = vld [vmem:[%s252] sm:$0xff]
      %v275 = vld [vmem:[%s252 + $0x8] sm:$0xff]
      %v276 = vld [vmem:[%s252 + $0x10] sm:$0xff]
      %v277 = vld [vmem:[%s252 + $0x18] sm:$0xff]
      %v278 = vld [vmem:[%s252 + $0x20] sm:$0xff]
      %v279 = vld [vmem:[%s252 + $0x28] sm:$0xff]
      %v280 = vld [vmem:[%s252 + $0x30] sm:$0xff]
      %v281 = vld [vmem:[%s252 + $0x38] sm:$0xff]
      %v282 = vld [vmem:[%s252 + $0x40] sm:$0xff]
      %v283 = vld [vmem:[%s252 + $0x48] sm:$0xff]
      %v284 = vld [vmem:[%s252 + $0x50] sm:$0xff]
      %v285 = vld [vmem:[%s252 + $0x58] sm:$0xff]
      %v286 = vld [vmem:[%s252 + $0x60] sm:$0xff]
      %v287 = vld [vmem:[%s252 + $0x68] sm:$0xff]
      %v288 = vld [vmem:[%s252 + $0x70] sm:$0xff]
      %v289 = vld [vmem:[%s252 + $0x78] sm:$0xff]
      %v290 = vld [vmem:[%s1] sm:$0xf]
      %v291 = vld [vmem:[%s1 + $0x4] sm:$0xf]
      %v292 = vld [vmem:[%s1 + $0x8] sm:$0xf]
      %v293 = vld [vmem:[%s1 + $0xc] sm:$0xf]
      %v294 = vld [vmem:[%s1 + $0x10] sm:$0xf]
      %v295 = vld [vmem:[%s1 + $0x14] sm:$0xf]
      %v296 = vld [vmem:[%s1 + $0x18] sm:$0xf]
      %v297 = vld [vmem:[%s1 + $0x1c] sm:$0xf]
      %v298 = vld [vmem:[%s1 + $0x20] sm:$0xf]
      %v299 = vld [vmem:[%s1 + $0x24] sm:$0xf]
      %v300 = vld [vmem:[%s1 + $0x28] sm:$0xf]
      %v301 = vld [vmem:[%s1 + $0x2c] sm:$0xf]
      %v302 = vld [vmem:[%s1 + $0x30] sm:$0xf]
      %v303 = vld [vmem:[%s1 + $0x34] sm:$0xf]
      %v304 = vld [vmem:[%s1 + $0x38] sm:$0xf]
      %v305 = vld [vmem:[%s1 + $0x3c] sm:$0xf]
      %v306 = vld [vmem:[%s1 + $0x40] sm:$0xf]
      %v307 = vld [vmem:[%s1 + $0x44] sm:$0xf]
      %v308 = vld [vmem:[%s1 + $0x48] sm:$0xf]
      %v309 = vld [vmem:[%s1 + $0x4c] sm:$0xf]
      %v310 = vld [vmem:[%s1 + $0x50] sm:$0xf]
      %v311 = vld [vmem:[%s1 + $0x54] sm:$0xf]
      %v312 = vld [vmem:[%s1 + $0x58] sm:$0xf]
      %v313 = vld [vmem:[%s1 + $0x5c] sm:$0xf]
      %v314 = vld [vmem:[%s1 + $0x60] sm:$0xf]
      %v315 = vld [vmem:[%s1 + $0x64] sm:$0xf]
      %v316 = vld [vmem:[%s1 + $0x68] sm:$0xf]
      %v317 = vld [vmem:[%s1 + $0x6c] sm:$0xf]
      %v318 = vld [vmem:[%s1 + $0x70] sm:$0xf]
      %v319 = vld [vmem:[%s1 + $0x74] sm:$0xf]
      %v320 = vld [vmem:[%s1 + $0x78] sm:$0xf]
      %v321 = vld [vmem:[%s1 + $0x7c] sm:$0xf]
      %v322 = vld [vmem:[%s258] sm:$0xf]
      %v323 = vld [vmem:[%s258 + $0x4] sm:$0xf]
      %v324 = vld [vmem:[%s258 + $0x8] sm:$0xf]
      %v325 = vld [vmem:[%s258 + $0xc] sm:$0xf]
      %v326 = vld [vmem:[%s258 + $0x10] sm:$0xf]
      %v327 = vld [vmem:[%s258 + $0x14] sm:$0xf]
      %v328 = vld [vmem:[%s258 + $0x18] sm:$0xf]
      %v329 = vld [vmem:[%s258 + $0x1c] sm:$0xf]
      %v330 = vld [vmem:[%s258 + $0x20] sm:$0xf]
      %v331 = vld [vmem:[%s258 + $0x24] sm:$0xf]
      %v332 = vld [vmem:[%s258 + $0x28] sm:$0xf]
      %v333 = vld [vmem:[%s258 + $0x2c] sm:$0xf]
      %v334 = vld [vmem:[%s258 + $0x30] sm:$0xf]
      %v335 = vld [vmem:[%s258 + $0x34] sm:$0xf]
      %v336 = vld [vmem:[%s258 + $0x38] sm:$0xf]
      %v337 = vld [vmem:[%s258 + $0x3c] sm:$0xf]
      %v338 = vunpack.c.l.bf16 %v322
      %v339 = vunpack.c.l.bf16 %v323
      %v340 = vunpack.c.l.bf16 %v324
      %v341 = vunpack.c.l.bf16 %v325
      %v342 = vunpack.c.l.bf16 %v326
      %v343 = vunpack.c.l.bf16 %v327
      %v344 = vunpack.c.l.bf16 %v328
      %v345 = vunpack.c.l.bf16 %v329
      %v346 = vunpack.c.l.bf16 %v330
      %v347 = vunpack.c.l.bf16 %v331
      %v348 = vunpack.c.l.bf16 %v332
      %v349 = vunpack.c.l.bf16 %v333
      %v350 = vunpack.c.l.bf16 %v334
      %v351 = vunpack.c.l.bf16 %v335
      %v352 = vunpack.c.l.bf16 %v336
      %v353 = vunpack.c.l.bf16 %v337
      %v370 = vunpack.c.l.b16 %v274
      %v371 = vunpack.c.h.b16 %v274
      %v372 = vunpack.c.l.b16 %v275
      %v373 = vunpack.c.h.b16 %v275
      %v374 = vunpack.c.l.b16 %v276
      %v375 = vunpack.c.h.b16 %v276
      %v376 = vunpack.c.l.b16 %v277
      %v377 = vunpack.c.h.b16 %v277
      %v378 = vunpack.c.l.b16 %v278
      %v379 = vunpack.c.h.b16 %v278
      %v380 = vunpack.c.l.b16 %v279
      %v381 = vunpack.c.h.b16 %v279
      %v382 = vunpack.c.l.b16 %v280
      %v383 = vunpack.c.h.b16 %v280
      %v384 = vunpack.c.l.b16 %v281
      %v385 = vunpack.c.h.b16 %v281
      %v386 = vunpack.c.l.b16 %v282
      %v387 = vunpack.c.h.b16 %v282
      %v388 = vunpack.c.l.b16 %v283
      %v389 = vunpack.c.h.b16 %v283
      %v390 = vunpack.c.l.b16 %v284
      %v391 = vunpack.c.h.b16 %v284
      %v392 = vunpack.c.l.b16 %v285
      %v393 = vunpack.c.h.b16 %v285
      %v394 = vunpack.c.l.b16 %v286
      %v395 = vunpack.c.h.b16 %v286
      %v396 = vunpack.c.l.b16 %v287
      %v397 = vunpack.c.h.b16 %v287
      %v398 = vunpack.c.l.b16 %v288
      %v399 = vunpack.c.h.b16 %v288
      %v400 = vunpack.c.l.b16 %v289
      %v401 = vunpack.c.h.b16 %v289
      %v402 = vpack.c.b16 %v372, %v370
      %v403 = vpack.c.b16 %v373, %v371
      %v404 = vpack.c.b16 %v376, %v374
      %v405 = vpack.c.b16 %v377, %v375
      %v406 = vpack.c.b16 %v380, %v378
      %v407 = vpack.c.b16 %v381, %v379
      %v408 = vpack.c.b16 %v384, %v382
      %v409 = vpack.c.b16 %v385, %v383
      %v410 = vpack.c.b16 %v388, %v386
      %v411 = vpack.c.b16 %v389, %v387
      %v412 = vpack.c.b16 %v392, %v390
      %v413 = vpack.c.b16 %v393, %v391
      %v414 = vpack.c.b16 %v396, %v394
      %v415 = vpack.c.b16 %v397, %v395
      %v416 = vpack.c.b16 %v400, %v398
      %v417 = vpack.c.b16 %v401, %v399
      %v466 = vunpack.c.l.b16 %v290
      %v467 = vunpack.c.l.b16 %v291
      %v468 = vunpack.c.l.b16 %v292
      %v469 = vunpack.c.l.b16 %v293
      %v470 = vunpack.c.l.b16 %v294
      %v471 = vunpack.c.l.b16 %v295
      %v472 = vunpack.c.l.b16 %v296
      %v473 = vunpack.c.l.b16 %v297
      %v474 = vunpack.c.l.b16 %v298
      %v475 = vunpack.c.l.b16 %v299
      %v476 = vunpack.c.l.b16 %v300
      %v477 = vunpack.c.l.b16 %v301
      %v478 = vunpack.c.l.b16 %v302
      %v479 = vunpack.c.l.b16 %v303
      %v480 = vunpack.c.l.b16 %v304
      %v481 = vunpack.c.l.b16 %v305
      %v482 = vunpack.c.l.b16 %v306
      %v483 = vunpack.c.l.b16 %v307
      %v484 = vunpack.c.l.b16 %v308
      %v485 = vunpack.c.l.b16 %v309
      %v486 = vunpack.c.l.b16 %v310
      %v487 = vunpack.c.l.b16 %v311
      %v488 = vunpack.c.l.b16 %v312
      %v489 = vunpack.c.l.b16 %v313
      %v490 = vunpack.c.l.b16 %v314
      %v491 = vunpack.c.l.b16 %v315
      %v492 = vunpack.c.l.b16 %v316
      %v493 = vunpack.c.l.b16 %v317
      %v494 = vunpack.c.l.b16 %v318
      %v495 = vunpack.c.l.b16 %v319
      %v496 = vunpack.c.l.b16 %v320
      %v497 = vunpack.c.l.b16 %v321
      %v498 = vpack.c.b16 %v467, %v466
      %v499 = vpack.c.b16 %v469, %v468
      %v500 = vpack.c.b16 %v471, %v470
      %v501 = vpack.c.b16 %v473, %v472
      %v502 = vpack.c.b16 %v475, %v474
      %v503 = vpack.c.b16 %v477, %v476
      %v504 = vpack.c.b16 %v479, %v478
      %v505 = vpack.c.b16 %v481, %v480
      %v506 = vpack.c.b16 %v483, %v482
      %v507 = vpack.c.b16 %v485, %v484
      %v508 = vpack.c.b16 %v487, %v486
      %v509 = vpack.c.b16 %v489, %v488
      %v510 = vpack.c.b16 %v491, %v490
      %v511 = vpack.c.b16 %v493, %v492
      %v512 = vpack.c.b16 %v495, %v494
      %v513 = vpack.c.b16 %v497, %v496
      %530 = vmatpush.bf16.msra.mxu0 %v505
      %531 = vmatpush.bf16.msra.mxu0 %v504
      %532 = vmatpush.bf16.msra.mxu0 %v503
      %533 = vmatpush.bf16.msra.mxu0 %v502
      %534 = vmatpush.bf16.msra.mxu0 %v501
      %535 = vmatpush.bf16.msra.mxu0 %v500
      %536 = vmatpush.bf16.msra.mxu0 %v499
      %537 = vmatpush.bf16.msra.mxu0 %v498
      %538 = vmatmul.bf16.gmra.mxu0 %v402
      %v539 = vpop.f32.mrf.mxu0
      %v540 = vadd.f32 %v338, %v539
      %v541 = vpop.f32.mrf.mxu0
      %v542 = vadd.f32 %v339, %v541
      %543 = vmatmul.bf16.gmra.mxu0 %v404
      %v544 = vpop.f32.mrf.mxu0
      %v545 = vadd.f32 %v340, %v544
      %v546 = vpop.f32.mrf.mxu0
      %v547 = vadd.f32 %v341, %v546
      %548 = vmatmul.bf16.gmra.mxu0 %v406
      %v549 = vpop.f32.mrf.mxu0
      %v550 = vadd.f32 %v342, %v549
      %v551 = vpop.f32.mrf.mxu0
      %v552 = vadd.f32 %v343, %v551
      %553 = vmatmul.bf16.gmra.mxu0 %v408
      %v554 = vpop.f32.mrf.mxu0
      %v555 = vadd.f32 %v344, %v554
      %v556 = vpop.f32.mrf.mxu0
      %v557 = vadd.f32 %v345, %v556
      %558 = vmatmul.bf16.gmra.mxu0 %v410
      %v559 = vpop.f32.mrf.mxu0
      %v560 = vadd.f32 %v346, %v559
      %v561 = vpop.f32.mrf.mxu0
      %v562 = vadd.f32 %v347, %v561
      %563 = vmatmul.bf16.gmra.mxu0 %v412
      %v564 = vpop.f32.mrf.mxu0
      %v565 = vadd.f32 %v348, %v564
      %v566 = vpop.f32.mrf.mxu0
      %v567 = vadd.f32 %v349, %v566
      %568 = vmatmul.bf16.gmra.mxu0 %v414
      %v569 = vpop.f32.mrf.mxu0
      %v570 = vadd.f32 %v350, %v569
      %v571 = vpop.f32.mrf.mxu0
      %v572 = vadd.f32 %v351, %v571
      %573 = vmatmul.bf16.gmra.mxu0 %v416
      %v574 = vpop.f32.mrf.mxu0
      %v575 = vadd.f32 %v352, %v574
      %v576 = vpop.f32.mrf.mxu0
      %v577 = vadd.f32 %v353, %v576
      %578 = vdwg.mxu0
      %579 = vmatpush.bf16.msra.mxu0 %v513
      %580 = vmatpush.bf16.msra.mxu0 %v512
      %581 = vmatpush.bf16.msra.mxu0 %v511
      %582 = vmatpush.bf16.msra.mxu0 %v510
      %583 = vmatpush.bf16.msra.mxu0 %v509
      %584 = vmatpush.bf16.msra.mxu0 %v508
      %585 = vmatpush.bf16.msra.mxu0 %v507
      %586 = vmatpush.bf16.msra.mxu0 %v506
      %587 = vmatmul.bf16.gmra.mxu0 %v403
      %v588 = vpop.f32.mrf.mxu0
      %v589 = vadd.f32 %v540, %v588
      %v590 = vpop.f32.mrf.mxu0
      %v591 = vadd.f32 %v542, %v590
      %592 = vmatmul.bf16.gmra.mxu0 %v405
      %v593 = vpop.f32.mrf.mxu0
      %v594 = vadd.f32 %v545, %v593
      %v595 = vpop.f32.mrf.mxu0
      %v596 = vadd.f32 %v547, %v595
      %597 = vmatmul.bf16.gmra.mxu0 %v407
      %v598 = vpop.f32.mrf.mxu0
      %v599 = vadd.f32 %v550, %v598
      %v600 = vpop.f32.mrf.mxu0
      %v601 = vadd.f32 %v552, %v600
      %602 = vmatmul.bf16.gmra.mxu0 %v409
      %v603 = vpop.f32.mrf.mxu0
      %v604 = vadd.f32 %v555, %v603
      %v605 = vpop.f32.mrf.mxu0
      %v606 = vadd.f32 %v557, %v605
      %607 = vmatmul.bf16.gmra.mxu0 %v411
      %v608 = vpop.f32.mrf.mxu0
      %v609 = vadd.f32 %v560, %v608
      %v610 = vpop.f32.mrf.mxu0
      %v611 = vadd.f32 %v562, %v610
      %612 = vmatmul.bf16.gmra.mxu0 %v413
      %v613 = vpop.f32.mrf.mxu0
      %v614 = vadd.f32 %v565, %v613
      %v615 = vpop.f32.mrf.mxu0
      %v616 = vadd.f32 %v567, %v615
      %617 = vmatmul.bf16.gmra.mxu0 %v415
      %v618 = vpop.f32.mrf.mxu0
      %v619 = vadd.f32 %v570, %v618
      %v620 = vpop.f32.mrf.mxu0
      %v621 = vadd.f32 %v572, %v620
      %622 = vmatmul.bf16.gmra.mxu0 %v417
      %v623 = vpop.f32.mrf.mxu0
      %v624 = vadd.f32 %v575, %v623
      %v625 = vpop.f32.mrf.mxu0
      %v626 = vadd.f32 %v577, %v625
      %627 = vdwg.mxu0
      %v628 = vpack.c.bf16 %v589, %v589
      %v629 = vpack.c.bf16 %v591, %v591
      %v630 = vpack.c.bf16 %v594, %v594
      %v631 = vpack.c.bf16 %v596, %v596
      %v632 = vpack.c.bf16 %v599, %v599
      %v633 = vpack.c.bf16 %v601, %v601
      %v634 = vpack.c.bf16 %v604, %v604
      %v635 = vpack.c.bf16 %v606, %v606
      %v636 = vpack.c.bf16 %v609, %v609
      %v637 = vpack.c.bf16 %v611, %v611
      %v638 = vpack.c.bf16 %v614, %v614
      %v639 = vpack.c.bf16 %v616, %v616
      %v640 = vpack.c.bf16 %v619, %v619
      %v641 = vpack.c.bf16 %v621, %v621
      %v642 = vpack.c.bf16 %v624, %v624
      %v643 = vpack.c.bf16 %v626, %v626
      %644 = vst [vmem:[%s264] sm:$0xf] %v628
      %645 = vst [vmem:[%s264 + $0x4] sm:$0xf] %v629
      %646 = vst [vmem:[%s264 + $0x8] sm:$0xf] %v630
      %647 = vst [vmem:[%s264 + $0xc] sm:$0xf] %v631
      %648 = vst [vmem:[%s264 + $0x10] sm:$0xf] %v632
      %649 = vst [vmem:[%s264 + $0x14] sm:$0xf] %v633
      %650 = vst [vmem:[%s264 + $0x18] sm:$0xf] %v634
      %651 = vst [vmem:[%s264 + $0x1c] sm:$0xf] %v635
      %652 = vst [vmem:[%s264 + $0x20] sm:$0xf] %v636
      %653 = vst [vmem:[%s264 + $0x24] sm:$0xf] %v637
      %654 = vst [vmem:[%s264 + $0x28] sm:$0xf] %v638
      %655 = vst [vmem:[%s264 + $0x2c] sm:$0xf] %v639
      %656 = vst [vmem:[%s264 + $0x30] sm:$0xf] %v640
      %657 = vst [vmem:[%s264 + $0x34] sm:$0xf] %v641
      %658 = vst [vmem:[%s264 + $0x38] sm:$0xf] %v642
      %659 = vst [vmem:[%s264 + $0x3c] sm:$0xf] %v643
      %v660 = vlaneseq
      %v661 = vshrl.u32 %v660, 7
      %vm662 = vcmp.eq.s32.totalorder %v661, 0
      %v663 = vadd.f32 %v589, %v591
      %v664 = vadd.f32 %v663, %v594
      %v665 = vadd.f32 %v664, %v596
      %v666 = vadd.f32 %v665, %v599
      %v667 = vadd.f32 %v666, %v601
      %v668 = vadd.f32 %v667, %v604
      %v669 = vadd.f32 %v668, %v606
      %v670 = vadd.f32 %v669, %v609
      %v671 = vadd.f32 %v670, %v611
      %v672 = vadd.f32 %v671, %v614
      %v673 = vadd.f32 %v672, %v616
      %v674 = vadd.f32 %v673, %v619
      %v675 = vadd.f32 %v674, %v621
      %v676 = vadd.f32 %v675, %v624
      %v677 = vadd.f32 %v676, %v626
      %v678 = vrot.slane %v677, 4
      %v679 = vadd.f32 %v677, %v678
      %v680 = vrot.slane %v679, 2
      %v681 = vadd.f32 %v679, %v680
      %v682 = vrot.slane %v681, 1
      %v683 = vadd.f32 %v681, %v682
      %v684 = vsel %vm662, %v683, 0.0
      %685 = vst [vmem:[%s269] sm:$0xff] %v684
      %v686 = vmul.f32 %v589, %v589
      %v687 = vmul.f32 %v591, %v591
      %v688 = vmul.f32 %v594, %v594
      %v689 = vmul.f32 %v596, %v596
      %v690 = vmul.f32 %v599, %v599
      %v691 = vmul.f32 %v601, %v601
      %v692 = vmul.f32 %v604, %v604
      %v693 = vmul.f32 %v606, %v606
      %v694 = vmul.f32 %v609, %v609
      %v695 = vmul.f32 %v611, %v611
      %v696 = vmul.f32 %v614, %v614
      %v697 = vmul.f32 %v616, %v616
      %v698 = vmul.f32 %v619, %v619
      %v699 = vmul.f32 %v621, %v621
      %v700 = vmul.f32 %v624, %v624
      %v701 = vmul.f32 %v626, %v626
      %v702 = vadd.f32 %v686, %v687
      %v703 = vadd.f32 %v702, %v688
      %v704 = vadd.f32 %v703, %v689
      %v705 = vadd.f32 %v704, %v690
      %v706 = vadd.f32 %v705, %v691
      %v707 = vadd.f32 %v706, %v692
      %v708 = vadd.f32 %v707, %v693
      %v709 = vadd.f32 %v708, %v694
      %v710 = vadd.f32 %v709, %v695
      %v711 = vadd.f32 %v710, %v696
      %v712 = vadd.f32 %v711, %v697
      %v713 = vadd.f32 %v712, %v698
      %v714 = vadd.f32 %v713, %v699
      %v715 = vadd.f32 %v714, %v700
      %v716 = vadd.f32 %v715, %v701
      %v717 = vrot.slane %v716, 4
      %v718 = vadd.f32 %v716, %v717
      %v719 = vrot.slane %v718, 2
      %v720 = vadd.f32 %v718, %v719
      %v721 = vrot.slane %v720, 1
      %v722 = vadd.f32 %v720, %v721
      %v723 = vsel %vm662, %v722, 0.0
      %724 = vst [vmem:[%s273] sm:$0xff] %v723
      %s725 = smul.u32 16, %s17
      %p726 = scmp.lt.s32.totalorder %s725, 63
      %s727 = scalar_select %p726, %s725, 63
      %s728 = smul.addr %s727, 4
      %s729 = scalar_lea.vmem %s3, %s728
      %p730 = scmp.lt.s32.totalorder %s17, 3
      %s731 = scalar_select %p730, %s17, 3
      %s732 = smul.addr %s731, 8
      %s733 = scalar_lea.vmem %s4, %s732
      %p734 = scmp.lt.s32.totalorder %s17, 3
      %s735 = scalar_select %p734, %s17, 3
      %s736 = smul.addr %s735, 8
      %s737 = scalar_lea.vmem %s5, %s736
      // Predicated region
      $region33: #{preact_resnet_forward.20} parent=31 // pred_check
        %p738 = pneg %p108
      $region34: #{preact_resnet_forward.20} parent=31 // pred_check_branch
        %740 = sbr.rel (%p738) target = $region36
      $region35: #{preact_resnet_forward.20} parent=31 // pred_region
        %s741 = smul.u32 16, %s17
      $region36: #{preact_resnet_forward.20} parent=31 // pred_fallthru
        _
      // Predicated region
      $region37: #{preact_resnet_forward.20} parent=31 // pred_check
        %p742 = pneg %p134
      $region38: #{preact_resnet_forward.20} parent=31 // pred_check_branch
        %744 = sbr.rel (%p742) target = $region40
      $region39: #{preact_resnet_forward.20} parent=31 // pred_region
        _
      $region40: #{preact_resnet_forward.20} parent=31 // pred_fallthru
        _
      // Predicated region
      $region41: #{preact_resnet_forward.20} parent=31 // pred_check
        %p745 = pneg %p160
      $region42: #{preact_resnet_forward.20} parent=31 // pred_check_branch
        %747 = sbr.rel (%p745) target = $region44
      $region43: #{preact_resnet_forward.20} parent=31 // pred_region
        _
      $region44: #{preact_resnet_forward.20} parent=31 // pred_fallthru
        _
    $region32: #{preact_resnet_forward.20} parent=5 // pred_fallthru
      _
    %p748 = scmp.le.s32.totalorder 2, %s12
    // Predicated region
    $region45: #{preact_resnet_forward.20} parent=5 // pred_check
      %p749 = pneg %p748
    $region46: #{preact_resnet_forward.20} parent=5 // pred_check_branch
      %751 = sbr.rel (%p749) target = $region48
    $region47: #{preact_resnet_forward.20} parent=5 // pred_region
      %s752 = ssub.s32 %s12, 2
      // Predicated region
      $region49: #{preact_resnet_forward.20} parent=47 // pred_check
        %p753 = pneg %p114
      $region50: #{preact_resnet_forward.20} parent=47 // pred_check_branch
        %755 = sbr.rel (%p753) target = $region52
      $region51: #{preact_resnet_forward.20} parent=47 // pred_region
        %s756 = smul.u32 16, %s18
        %p757 = scmp.lt.s32.totalorder %s756, 63
        %s758 = scalar_select %p757, %s756, 63
        %s759 = smul.addr %s758, 4
        %s760 = scalar_lea.vmem %s3, %s759
      $region52: #{preact_resnet_forward.20} parent=47 // pred_fallthru
        _
      // Predicated region
      $region53: #{preact_resnet_forward.20} parent=47 // pred_check
        %p761 = pneg %p140
      $region54: #{preact_resnet_forward.20} parent=47 // pred_check_branch
        %763 = sbr.rel (%p761) target = $region56
      $region55: #{preact_resnet_forward.20} parent=47 // pred_region
        %p764 = scmp.lt.s32.totalorder %s18, 3
        %s765 = scalar_select %p764, %s18, 3
        %s766 = smul.addr %s765, 8
        %s767 = scalar_lea.vmem %s4, %s766
      $region56: #{preact_resnet_forward.20} parent=47 // pred_fallthru
        _
      // Predicated region
      $region57: #{preact_resnet_forward.20} parent=47 // pred_check
        %p768 = pneg %p166
      $region58: #{preact_resnet_forward.20} parent=47 // pred_check_branch
        %770 = sbr.rel (%p768) target = $region60
      $region59: #{preact_resnet_forward.20} parent=47 // pred_region
        %p771 = scmp.lt.s32.totalorder %s18, 3
        %s772 = scalar_select %p771, %s18, 3
        %s773 = smul.addr %s772, 8
        %s774 = scalar_lea.vmem %s5, %s773
      $region60: #{preact_resnet_forward.20} parent=47 // pred_fallthru
        _
    $region48: #{preact_resnet_forward.20} parent=5 // pred_fallthru
      _
  $region6: #{preact_resnet_forward.20} parent=0 // loop_footer
    %s16 = sadd.s32 1, %s12
  $region7: #{preact_resnet_forward.20} parent=0 // loop_footer_branch
    %11 = sbr.rel target = $region3
  $region8: #{preact_resnet_forward.20} parent=0 // loop_exit
    _

// kernel: preact_resnet_forward.22
$region0: #{preact_resnet_forward.22}
  #allocation0 [shape = 'u32[]', space=smem, size = 0x4, offset = 0x4, fixed_abs, tag = 'smem constant byte address 0x4 - core index']
  #allocation1 [shape = 'u32[72,128]{1,0:T(1,128)}', space=vmem, size = 0x9000, scoped, tag = 'internal scratch']
  %s0 = inlined_call_operand.vmem [shape: bf16[128,128], index: 0, kind: input, shape index: {}]
  %s1 = inlined_call_operand.vmem [shape: bf16[128,128], index: 1, kind: input, shape index: {}]
  %s2 = inlined_call_operand.vmem [shape: bf16[128,128], index: 2, kind: output, shape index: {}]
  %s3 = sld [smem:[#allocation0]]
  $region41: #{preact_resnet_forward.22} parent=0
    _
  %s5 = ssub.s32 1, %s3
  %s6 = scalar_select 0, %s5, %s3
  loop: start=0, step=1, limit=4
  $region2: #{preact_resnet_forward.22} parent=0 // loop_pre_header
    _
  $region3: #{preact_resnet_forward.22} parent=0 // loop_header
    %s8 = sphi 0, %s12
    %p9 = scmp.ge.s32.totalorder %s8, 4
    %s18 = sphi 0, %s20
    %s21 = sphi 0, %s18
    %s22 = sphi 0, %s21
    %s38 = sphi 0, %s22
    %s42 = sphi 0, %s42
    %s44 = sphi 0, %s42
    %s45 = sphi 0, %s44
    %s59 = sphi 0, %s45
    %s65 = sphi 0, %s67
    %s68 = sphi 0, %s65
    %s69 = sphi 0, %s68
    %s85 = sphi 0, %s69
  $region4: #{preact_resnet_forward.22} parent=0 // loop_header_branch
    %11 = sbr.rel (%p9) target = $region8
  $region5: #{preact_resnet_forward.22} parent=0 // loop_body
    %s13 = ssub.s32 %s8, 1
    %s14 = ssub.s32 %s8, 2
    %s15 = sadd.s32 %s8, 1
    %s16 = ssub.s32 %s8, %s15
    %p17 = scmp.eq.s32.totalorder %s16, 0
    %s19 = sadd.s32 %s18, 1
    %s20 = scalar_select %p17, %s18, %s19
    %p23 = pneg %p17
    %p24 = scmp.eq.s32.totalorder %s8, 1
    %p25 = por %p23, %p24
    %p26 = scmp.ne.s32.totalorder %s18, %s21
    %p27 = scmp.eq.s32.totalorder %s8, 0
    %p28 = por %p26, %p27
    %p29 = scmp.ne.s32.totalorder %s18, %s21
    %p30 = scmp.eq.s32.totalorder %s13, 1
    %p31 = por %p29, %p30
    %p32 = scmp.ne.s32.totalorder %s21, %s22
    %p33 = scmp.eq.s32.totalorder %s13, 0
    %p34 = por %p32, %p33
    %p35 = scmp.ne.s32.totalorder %s21, %s22
    %p36 = scmp.eq.s32.totalorder %s14, 1
    %p37 = por %p35, %p36
    %p39 = scmp.ne.s32.totalorder %s22, %s38
    %p40 = scmp.eq.s32.totalorder %s14, 0
    %p41 = por %p39, %p40
    %s43 = sadd.s32 %s42, 1
    %p46 = scmp.eq.s32.totalorder %s8, 1
    %p47 = scmp.ne.s32.totalorder %s42, %s44
    %p48 = scmp.eq.s32.totalorder %s8, 0
    %p49 = por %p47, %p48
    %p50 = scmp.ne.s32.totalorder %s42, %s44
    %p51 = scmp.eq.s32.totalorder %s13, 1
    %p52 = por %p50, %p51
    %p53 = scmp.ne.s32.totalorder %s44, %s45
    %p54 = scmp.eq.s32.totalorder %s13, 0
    %p55 = por %p53, %p54
    %p56 = scmp.ne.s32.totalorder %s44, %s45
    %p57 = scmp.eq.s32.totalorder %s14, 1
    %p58 = por %p56, %p57
    %p60 = scmp.ne.s32.totalorder %s45, %s59
    %p61 = scmp.eq.s32.totalorder %s14, 0
    %p62 = por %p60, %p61
    %s63 = ssub.s32 %s8, %s15
    %p64 = scmp.eq.s32.totalorder %s63, 0
    %s66 = sadd.s32 %s65, 1
    %s67 = scalar_select %p64, %s65, %s66
    %p70 = pneg %p64
    %p71 = scmp.eq.s32.totalorder %s8, 1
    %p72 = por %p70, %p71
    %p73 = scmp.ne.s32.totalorder %s65, %s68
    %p74 = scmp.eq.s32.totalorder %s8, 0
    %p75 = por %p73, %p74
    %p76 = scmp.ne.s32.totalorder %s65, %s68
    %p77 = scmp.eq.s32.totalorder %s13, 1
    %p78 = por %p76, %p77
    %p79 = scmp.ne.s32.totalorder %s68, %s69
    %p80 = scmp.eq.s32.totalorder %s13, 0
    %p81 = por %p79, %p80
    %p82 = scmp.ne.s32.totalorder %s68, %s69
    %p83 = scmp.eq.s32.totalorder %s14, 1
    %p84 = por %p82, %p83
    %p86 = scmp.ne.s32.totalorder %s69, %s85
    %p87 = scmp.eq.s32.totalorder %s14, 0
    %p88 = por %p86, %p87
    %p89 = scmp.le.s32.totalorder 1, %s8
    %p90 = scmp.lt.s32.totalorder %s8, 3
    %p91 = pnand %p89, %p90
    %p92 = pneg %p91
    // Predicated region
    $region9: #{preact_resnet_forward.22} parent=5 // pred_check
      _
    $region10: #{preact_resnet_forward.22} parent=5 // pred_check_branch
      %94 = sbr.rel (%p91) target = $region12
    $region11: #{preact_resnet_forward.22} parent=5 // pred_region
      %s95 = ssub.s32 %s8, 1
      // Predicated region
      $region13: #{preact_resnet_forward.22} parent=11 // pred_check
        %p96 = pneg %p55
      $region14: #{preact_resnet_forward.22} parent=11 // pred_check_branch
        %98 = sbr.rel (%p96) target = $region16
      $region15: #{preact_resnet_forward.22} parent=11 // pred_region
        _
      $region16: #{preact_resnet_forward.22} parent=11 // pred_fallthru
        _
    $region12: #{preact_resnet_forward.22} parent=5 // pred_fallthru
      _
    %p99 = scmp.lt.s32.totalorder %s8, 2
    // Predicated region
    $region17: #{preact_resnet_forward.22} parent=5 // pred_check
      %p100 = pneg %p99
    $region18: #{preact_resnet_forward.22} parent=5 // pred_check_branch
      %102 = sbr.rel (%p100) target = $region20
    $region19: #{preact_resnet_forward.22} parent=5 // pred_region
      // Predicated region
      $region21: #{preact_resnet_forward.22} parent=19 // pred_check
        %p103 = pneg %p28
      $region22: #{preact_resnet_forward.22} parent=19 // pred_check_branch
        %105 = sbr.rel (%p103) target = $region24
      $region23: #{preact_resnet_forward.22} parent=19 // pred_region
        %s106 = smul.u32 8, %s8
        %p107 = scmp.lt.s32.totalorder %s106, 15
        %s108 = scalar_select %p107, %s106, 15
        %s109 = smul.addr %s108, 4
        %s110 = scalar_lea.vmem %s0, %s109
        %s111 = smul.u32 8, %s8
      $region24: #{preact_resnet_forward.22} parent=19 // pred_fallthru
        _
    $region20: #{preact_resnet_forward.22} parent=5 // pred_fallthru
      _
    %p112 = scmp.le.s32.totalorder 1, %s8
    %p113 = scmp.lt.s32.totalorder %s8, 3
    %p114 = pnand %p112, %p113
    %p115 = pneg %p114
    // Predicated region
    $region25: #{preact_resnet_forward.22} parent=5 // pred_check
      _
    $region26: #{preact_resnet_forward.22} parent=5 // pred_check_branch
      %117 = sbr.rel (%p114) target = $region28
    $region27: #{preact_resnet_forward.22} parent=5 // pred_region
      %s118 = ssub.s32 %s8, 1
      %s119 = smul.u32 8, %s13
      %p120 = scmp.lt.s32.totalorder %s119, 15
      %s121 = scalar_select %p120, %s119, 15
      %s122 = smul.addr %s121, 4
      %s123 = scalar_lea.vmem %s0, %s122
      %p124 = pneg %p34
      %p125 = pneg %p31
      %p126 = pneg %p55
      %p127 = pneg %p52
      %p128 = pneg %p81
      %p129 = pneg %p78
      %s130 = smul.u32 8, %s13
      %p131 = scmp.lt.s32.totalorder %s130, 15
      %s132 = scalar_select %p131, %s130, 15
      %s133 = smul.addr %s132, 4
      %s134 = scalar_lea.vmem %s2, %s133
      %s135 = smul.u32 8, %s13
      %p136 = scmp.lt.s32.totalorder %s135, 15
      %s137 = scalar_select %p136, %s135, 15
      %s138 = smul.addr %s137, 4
      %s139 = scalar_lea.vmem %s0, %s138
      %s140 = smul.u32 8, %s13
      %s141 = smul.u32 8, %s13
      %p142 = scmp.lt.s32.totalorder %s141, 15
      %s143 = scalar_select %p142, %s141, 15
      %s144 = smul.addr %s143, 4
      %s145 = scalar_lea.vmem %s2, %s144
      %s146 = smul.u32 8, %s13
      %v147 = vld [vmem:[%s139] sm:$0xf]
      %v148 = vld [vmem:[%s139 + $0x4] sm:$0xf]
      %v149 = vld [vmem:[%s139 + $0x8] sm:$0xf]
      %v150 = vld [vmem:[%s139 + $0xc] sm:$0xf]
      %v151 = vld [vmem:[%s139 + $0x10] sm:$0xf]
      %v152 = vld [vmem:[%s139 + $0x14] sm:$0xf]
      %v153 = vld [vmem:[%s139 + $0x18] sm:$0xf]
      %v154 = vld [vmem:[%s139 + $0x1c] sm:$0xf]
      %v155 = vld [vmem:[%s1] sm:$0xf]
      %v156 = vld [vmem:[%s1 + $0x4] sm:$0xf]
      %v157 = vld [vmem:[%s1 + $0x8] sm:$0xf]
      %v158 = vld [vmem:[%s1 + $0xc] sm:$0xf]
      %v159 = vld [vmem:[%s1 + $0x10] sm:$0xf]
      %v160 = vld [vmem:[%s1 + $0x14] sm:$0xf]
      %v161 = vld [vmem:[%s1 + $0x18] sm:$0xf]
      %v162 = vld [vmem:[%s1 + $0x1c] sm:$0xf]
      %v163 = vld [vmem:[%s1 + $0x20] sm:$0xf]
      %v164 = vld [vmem:[%s1 + $0x24] sm:$0xf]
      %v165 = vld [vmem:[%s1 + $0x28] sm:$0xf]
      %v166 = vld [vmem:[%s1 + $0x2c] sm:$0xf]
      %v167 = vld [vmem:[%s1 + $0x30] sm:$0xf]
      %v168 = vld [vmem:[%s1 + $0x34] sm:$0xf]
      %v169 = vld [vmem:[%s1 + $0x38] sm:$0xf]
      %v170 = vld [vmem:[%s1 + $0x3c] sm:$0xf]
      %v179 = vunpack.c.l.b16 %v147
      %v180 = vunpack.c.l.b16 %v148
      %v181 = vunpack.c.l.b16 %v149
      %v182 = vunpack.c.l.b16 %v150
      %v183 = vunpack.c.l.b16 %v151
      %v184 = vunpack.c.l.b16 %v152
      %v185 = vunpack.c.l.b16 %v153
      %v186 = vunpack.c.l.b16 %v154
      %v187 = vpack.c.b16 %v180, %v179
      %v188 = vpack.c.b16 %v182, %v181
      %v189 = vpack.c.b16 %v184, %v183
      %v190 = vpack.c.b16 %v186, %v185
      %v211 = vunpack.c.l.b16 %v155
      %v212 = vunpack.c.l.b16 %v156
      %v213 = vunpack.c.l.b16 %v157
      %v214 = vunpack.c.l.b16 %v158
      %v215 = vunpack.c.l.b16 %v159
      %v216 = vunpack.c.l.b16 %v160
      %v217 = vunpack.c.l.b16 %v161
      %v218 = vunpack.c.l.b16 %v162
      %v219 = vunpack.c.l.b16 %v163
      %v220 = vunpack.c.l.b16 %v164
      %v221 = vunpack.c.l.b16 %v165
      %v222 = vunpack.c.l.b16 %v166
      %v223 = vunpack.c.l.b16 %v167
      %v224 = vunpack.c.l.b16 %v168
      %v225 = vunpack.c.l.b16 %v169
      %v226 = vunpack.c.l.b16 %v170
      %v227 = vpack.c.b16 %v212, %v211
      %v228 = vpack.c.b16 %v214, %v213
      %v229 = vpack.c.b16 %v216, %v215
      %v230 = vpack.c.b16 %v218, %v217
      %v231 = vpack.c.b16 %v220, %v219
      %v232 = vpack.c.b16 %v222, %v221
      %v233 = vpack.c.b16 %v224, %v223
      %v234 = vpack.c.b16 %v226, %v225
      %243 = vmatpush.bf16.msra.mxu0 %v234
      %244 = vmatpush.bf16.msra.mxu0 %v233
      %245 = vmatpush.bf16.msra.mxu0 %v232
      %246 = vmatpush.bf16.msra.mxu0 %v231
      %247 = vmatpush.bf16.msra.mxu0 %v230
      %248 = vmatpush.bf16.msra.mxu0 %v229
      %249 = vmatpush.bf16.msra.mxu0 %v228
      %250 = vmatpush.bf16.msra.mxu0 %v227
      %251 = vmatmul.bf16.gmra.mxu0 %v187
      %v252 = vpop.f32.mrf.mxu0
      %v253 = vadd.f32 0.0, %v252
      %v254 = vpop.f32.mrf.mxu0
      %v255 = vadd.f32 0.0, %v254
      %256 = vmatmul.bf16.gmra.mxu0 %v188
      %v257 = vpop.f32.mrf.mxu0
      %v258 = vadd.f32 0.0, %v257
      %v259 = vpop.f32.mrf.mxu0
      %v260 = vadd.f32 0.0, %v259
      %261 = vmatmul.bf16.gmra.mxu0 %v189
      %v262 = vpop.f32.mrf.mxu0
      %v263 = vadd.f32 0.0, %v262
      %v264 = vpop.f32.mrf.mxu0
      %v265 = vadd.f32 0.0, %v264
      %266 = vmatmul.bf16.gmra.mxu0 %v190
      %v267 = vpop.f32.mrf.mxu0
      %v268 = vadd.f32 0.0, %v267
      %v269 = vpop.f32.mrf.mxu0
      %v270 = vadd.f32 0.0, %v269
      %271 = vdwg.mxu0
      %v272 = vpack.c.bf16 %v253, %v253
      %v273 = vpack.c.bf16 %v255, %v255
      %v274 = vpack.c.bf16 %v258, %v258
      %v275 = vpack.c.bf16 %v260, %v260
      %v276 = vpack.c.bf16 %v263, %v263
      %v277 = vpack.c.bf16 %v265, %v265
      %v278 = vpack.c.bf16 %v268, %v268
      %v279 = vpack.c.bf16 %v270, %v270
      %280 = vst [vmem:[%s145] sm:$0xf] %v272
      %281 = vst [vmem:[%s145 + $0x4] sm:$0xf] %v273
      %282 = vst [vmem:[%s145 + $0x8] sm:$0xf] %v274
      %283 = vst [vmem:[%s145 + $0xc] sm:$0xf] %v275
      %284 = vst [vmem:[%s145 + $0x10] sm:$0xf] %v276
      %285 = vst [vmem:[%s145 + $0x14] sm:$0xf] %v277
      %286 = vst [vmem:[%s145 + $0x18] sm:$0xf] %v278
      %287 = vst [vmem:[%s145 + $0x1c] sm:$0xf] %v279
      %s288 = smul.u32 8, %s13
      %p289 = scmp.lt.s32.totalorder %s288, 15
      %s290 = scalar_select %p289, %s288, 15
      %s291 = smul.addr %s290, 4
      %s292 = scalar_lea.vmem %s2, %s291
      // Predicated region
      $region29: #{preact_resnet_forward.22} parent=27 // pred_check
        %p293 = pneg %p78
      $region30: #{preact_resnet_forward.22} parent=27 // pred_check_branch
        %295 = sbr.rel (%p293) target = $region32
      $region31: #{preact_resnet_forward.22} parent=27 // pred_region
        %s296 = smul.u32 8, %s13
      $region32: #{preact_resnet_forward.22} parent=27 // pred_fallthru
        _
    $region28: #{preact_resnet_forward.22} parent=5 // pred_fallthru
      _
    %p297 = scmp.le.s32.totalorder 2, %s8
    // Predicated region
    $region33: #{preact_resnet_forward.22} parent=5 // pred_check
      %p298 = pneg %p297
    $region34: #{preact_resnet_forward.22} parent=5 // pred_check_branch
      %300 = sbr.rel (%p298) target = $region36
    $region35: #{preact_resnet_forward.22} parent=5 // pred_region
      %s301 = ssub.s32 %s8, 2
      // Predicated region
      $region37: #{preact_resnet_forward.22} parent=35 // pred_check
        %p302 = pneg %p84
      $region38: #{preact_resnet_forward.22} parent=35 // pred_check_branch
        %304 = sbr.rel (%p302) target = $region40
      $region39: #{preact_resnet_forward.22} parent=35 // pred_region
        %s305 = smul.u32 8, %s14
        %p306 = scmp.lt.s32.totalorder %s305, 15
        %s307 = scalar_select %p306, %s305, 15
        %s308 = smul.addr %s307, 4
        %s309 = scalar_lea.vmem %s2, %s308
      $region40: #{preact_resnet_forward.22} parent=35 // pred_fallthru
        _
    $region36: #{preact_resnet_forward.22} parent=5 // pred_fallthru
      _
  $region6: #{preact_resnet_forward.22} parent=0 // loop_footer
    %s12 = sadd.s32 1, %s8
  $region7: #{preact_resnet_forward.22} parent=0 // loop_footer_branch
    %7 = sbr.rel target = $region3
  $region8: #{preact_resnet_forward.22} parent=0 // loop_exit
    _

// kernel: preact_resnet_forward.24
$region0: #{preact_resnet_forward.24}
  #allocation0 [shape = 'u32[]', space=smem, size = 0x4, offset = 0x4, fixed_abs, tag = 'smem constant byte address 0x4 - core index']
  #allocation1 [shape = 'u32[72,128]{1,0:T(1,128)}', space=vmem, size = 0x9000, scoped, tag = 'internal scratch']
  %s0 = inlined_call_operand.vmem [shape: bf16[128,128], index: 0, kind: input, shape index: {}]
  %s1 = inlined_call_operand.vmem [shape: f32[16,128], index: 1, kind: input, shape index: {}]
  %s2 = inlined_call_operand.vmem [shape: f32[16,128], index: 2, kind: input, shape index: {}]
  %s3 = inlined_call_operand.vmem [shape: f32[1,128], index: 3, kind: input, shape index: {}]
  %s4 = inlined_call_operand.vmem [shape: f32[1,128], index: 4, kind: input, shape index: {}]
  %s5 = inlined_call_operand.vmem [shape: bf16[128,128], index: 5, kind: output, shape index: {}]
  %s6 = sld [smem:[#allocation0]]
  $region53: #{preact_resnet_forward.24} parent=0
    _
  %s8 = ssub.s32 1, %s6
  %s9 = scalar_select 0, %s8, %s6
  loop: start=0, step=1, limit=4
  $region2: #{preact_resnet_forward.24} parent=0 // loop_pre_header
    _
  $region3: #{preact_resnet_forward.24} parent=0 // loop_header
    %s11 = sphi 0, %s15
    %p12 = scmp.ge.s32.totalorder %s11, 4
    %s21 = sphi 0, %s23
    %s24 = sphi 0, %s21
    %s25 = sphi 0, %s24
    %s41 = sphi 0, %s25
    %s45 = sphi 0, %s45
    %s47 = sphi 0, %s45
    %s48 = sphi 0, %s47
    %s62 = sphi 0, %s48
    %s66 = sphi 0, %s66
    %s68 = sphi 0, %s66
    %s69 = sphi 0, %s68
    %s83 = sphi 0, %s69
    %s87 = sphi 0, %s87
    %s89 = sphi 0, %s87
    %s90 = sphi 0, %s89
    %s104 = sphi 0, %s90
    %s108 = sphi 0, %s108
    %s110 = sphi 0, %s108
    %s111 = sphi 0, %s110
    %s125 = sphi 0, %s111
    %s131 = sphi 0, %s133
    %s134 = sphi 0, %s131
    %s135 = sphi 0, %s134
    %s151 = sphi 0, %s135
  $region4: #{preact_resnet_forward.24} parent=0 // loop_header_branch
    %14 = sbr.rel (%p12) target = $region8
  $region5: #{preact_resnet_forward.24} parent=0 // loop_body
    %s16 = ssub.s32 %s11, 1
    %s17 = ssub.s32 %s11, 2
    %s18 = sadd.s32 %s11, 1
    %s19 = ssub.s32 %s11, %s18
    %p20 = scmp.eq.s32.totalorder %s19, 0
    %s22 = sadd.s32 %s21, 1
    %s23 = scalar_select %p20, %s21, %s22
    %p26 = pneg %p20
    %p27 = scmp.eq.s32.totalorder %s11, 1
    %p28 = por %p26, %p27
    %p29 = scmp.ne.s32.totalorder %s21, %s24
    %p30 = scmp.eq.s32.totalorder %s11, 0
    %p31 = por %p29, %p30
    %p32 = scmp.ne.s32.totalorder %s21, %s24
    %p33 = scmp.eq.s32.totalorder %s16, 1
    %p34 = por %p32, %p33
    %p35 = scmp.ne.s32.totalorder %s24, %s25
    %p36 = scmp.eq.s32.totalorder %s16, 0
    %p37 = por %p35, %p36
    %p38 = scmp.ne.s32.totalorder %s24, %s25
    %p39 = scmp.eq.s32.totalorder %s17, 1
    %p40 = por %p38, %p39
    %p42 = scmp.ne.s32.totalorder %s25, %s41
    %p43 = scmp.eq.s32.totalorder %s17, 0
    %p44 = por %p42, %p43
    %s46 = sadd.s32 %s45, 1
    %p49 = scmp.eq.s32.totalorder %s11, 1
    %p50 = scmp.ne.s32.totalorder %s45, %s47
    %p51 = scmp.eq.s32.totalorder %s11, 0
    %p52 = por %p50, %p51
    %p53 = scmp.ne.s32.totalorder %s45, %s47
    %p54 = scmp.eq.s32.totalorder %s16, 1
    %p55 = por %p53, %p54
    %p56 = scmp.ne.s32.totalorder %s47, %s48
    %p57 = scmp.eq.s32.totalorder %s16, 0
    %p58 = por %p56, %p57
    %p59 = scmp.ne.s32.totalorder %s47, %s48
    %p60 = scmp.eq.s32.totalorder %s17, 1
    %p61 = por %p59, %p60
    %p63 = scmp.ne.s32.totalorder %s48, %s62
    %p64 = scmp.eq.s32.totalorder %s17, 0
    %p65 = por %p63, %p64
    %s67 = sadd.s32 %s66, 1
    %p70 = scmp.eq.s32.totalorder %s11, 1
    %p71 = scmp.ne.s32.totalorder %s66, %s68
    %p72 = scmp.eq.s32.totalorder %s11, 0
    %p73 = por %p71, %p72
    %p74 = scmp.ne.s32.totalorder %s66, %s68
    %p75 = scmp.eq.s32.totalorder %s16, 1
    %p76 = por %p74, %p75
    %p77 = scmp.ne.s32.totalorder %s68, %s69
    %p78 = scmp.eq.s32.totalorder %s16, 0
    %p79 = por %p77, %p78
    %p80 = scmp.ne.s32.totalorder %s68, %s69
    %p81 = scmp.eq.s32.totalorder %s17, 1
    %p82 = por %p80, %p81
    %p84 = scmp.ne.s32.totalorder %s69, %s83
    %p85 = scmp.eq.s32.totalorder %s17, 0
    %p86 = por %p84, %p85
    %s88 = sadd.s32 %s87, 1
    %p91 = scmp.eq.s32.totalorder %s11, 1
    %p92 = scmp.ne.s32.totalorder %s87, %s89
    %p93 = scmp.eq.s32.totalorder %s11, 0
    %p94 = por %p92, %p93
    %p95 = scmp.ne.s32.totalorder %s87, %s89
    %p96 = scmp.eq.s32.totalorder %s16, 1
    %p97 = por %p95, %p96
    %p98 = scmp.ne.s32.totalorder %s89, %s90
    %p99 = scmp.eq.s32.totalorder %s16, 0
    %p100 = por %p98, %p99
    %p101 = scmp.ne.s32.totalorder %s89, %s90
    %p102 = scmp.eq.s32.totalorder %s17, 1
    %p103 = por %p101, %p102
    %p105 = scmp.ne.s32.totalorder %s90, %s104
    %p106 = scmp.eq.s32.totalorder %s17, 0
    %p107 = por %p105, %p106
    %s109 = sadd.s32 %s108, 1
    %p112 = scmp.eq.s32.totalorder %s11, 1
    %p113 = scmp.ne.s32.totalorder %s108, %s110
    %p114 = scmp.eq.s32.totalorder %s11, 0
    %p115 = por %p113, %p114
    %p116 = scmp.ne.s32.totalorder %s108, %s110
    %p117 = scmp.eq.s32.totalorder %s16, 1
    %p118 = por %p116, %p117
    %p119 = scmp.ne.s32.totalorder %s110, %s111
    %p120 = scmp.eq.s32.totalorder %s16, 0
    %p121 = por %p119, %p120
    %p122 = scmp.ne.s32.totalorder %s110, %s111
    %p123 = scmp.eq.s32.totalorder %s17, 1
    %p124 = por %p122, %p123
    %p126 = scmp.ne.s32.totalorder %s111, %s125
    %p127 = scmp.eq.s32.totalorder %s17, 0
    %p128 = por %p126, %p127
    %s129 = ssub.s32 %s11, %s18
    %p130 = scmp.eq.s32.totalorder %s129, 0
    %s132 = sadd.s32 %s131, 1
    %s133 = scalar_select %p130, %s131, %s132
    %p136 = pneg %p130
    %p137 = scmp.eq.s32.totalorder %s11, 1
    %p138 = por %p136, %p137
    %p139 = scmp.ne.s32.totalorder %s131, %s134
    %p140 = scmp.eq.s32.totalorder %s11, 0
    %p141 = por %p139, %p140
    %p142 = scmp.ne.s32.totalorder %s131, %s134
    %p143 = scmp.eq.s32.totalorder %s16, 1
    %p144 = por %p142, %p143
    %p145 = scmp.ne.s32.totalorder %s134, %s135
    %p146 = scmp.eq.s32.totalorder %s16, 0
    %p147 = por %p145, %p146
    %p148 = scmp.ne.s32.totalorder %s134, %s135
    %p149 = scmp.eq.s32.totalorder %s17, 1
    %p150 = por %p148, %p149
    %p152 = scmp.ne.s32.totalorder %s135, %s151
    %p153 = scmp.eq.s32.totalorder %s17, 0
    %p154 = por %p152, %p153
    %p155 = scmp.le.s32.totalorder 1, %s11
    %p156 = scmp.lt.s32.totalorder %s11, 3
    %p157 = pnand %p155, %p156
    %p158 = pneg %p157
    // Predicated region
    $region9: #{preact_resnet_forward.24} parent=5 // pred_check
      _
    $region10: #{preact_resnet_forward.24} parent=5 // pred_check_branch
      %160 = sbr.rel (%p157) target = $region12
    $region11: #{preact_resnet_forward.24} parent=5 // pred_region
      %s161 = ssub.s32 %s11, 1
      // Predicated region
      $region13: #{preact_resnet_forward.24} parent=11 // pred_check
        %p162 = pneg %p58
      $region14: #{preact_resnet_forward.24} parent=11 // pred_check_branch
        %164 = sbr.rel (%p162) target = $region16
      $region15: #{preact_resnet_forward.24} parent=11 // pred_region
        _
      $region16: #{preact_resnet_forward.24} parent=11 // pred_fallthru
        _
      // Predicated region
      $region17: #{preact_resnet_forward.24} parent=11 // pred_check
        %p165 = pneg %p79
      $region18: #{preact_resnet_forward.24} parent=11 // pred_check_branch
        %167 = sbr.rel (%p165) target = $region20
      $region19: #{preact_resnet_forward.24} parent=11 // pred_region
        _
      $region20: #{preact_resnet_forward.24} parent=11 // pred_fallthru
        _
      // Predicated region
      $region21: #{preact_resnet_forward.24} parent=11 // pred_check
        %p168 = pneg %p100
      $region22: #{preact_resnet_forward.24} parent=11 // pred_check_branch
        %170 = sbr.rel (%p168) target = $region24
      $region23: #{preact_resnet_forward.24} parent=11 // pred_region
        _
      $region24: #{preact_resnet_forward.24} parent=11 // pred_fallthru
        _
      // Predicated region
      $region25: #{preact_resnet_forward.24} parent=11 // pred_check
        %p171 = pneg %p121
      $region26: #{preact_resnet_forward.24} parent=11 // pred_check_branch
        %173 = sbr.rel (%p171) target = $region28
      $region27: #{preact_resnet_forward.24} parent=11 // pred_region
        _
      $region28: #{preact_resnet_forward.24} parent=11 // pred_fallthru
        _
    $region12: #{preact_resnet_forward.24} parent=5 // pred_fallthru
      _
    %p174 = scmp.lt.s32.totalorder %s11, 2
    // Predicated region
    $region29: #{preact_resnet_forward.24} parent=5 // pred_check
      %p175 = pneg %p174
    $region30: #{preact_resnet_forward.24} parent=5 // pred_check_branch
      %177 = sbr.rel (%p175) target = $region32
    $region31: #{preact_resnet_forward.24} parent=5 // pred_region
      // Predicated region
      $region33: #{preact_resnet_forward.24} parent=31 // pred_check
        %p178 = pneg %p31
      $region34: #{preact_resnet_forward.24} parent=31 // pred_check_branch
        %180 = sbr.rel (%p178) target = $region36
      $region35: #{preact_resnet_forward.24} parent=31 // pred_region
        %s181 = smul.u32 8, %s11
        %p182 = scmp.lt.s32.totalorder %s181, 15
        %s183 = scalar_select %p182, %s181, 15
        %s184 = smul.addr %s183, 4
        %s185 = scalar_lea.vmem %s0, %s184
        %s186 = smul.u32 8, %s11
      $region36: #{preact_resnet_forward.24} parent=31 // pred_fallthru
        _
    $region32: #{preact_resnet_forward.24} parent=5 // pred_fallthru
      _
    %p187 = scmp.le.s32.totalorder 1, %s11
    %p188 = scmp.lt.s32.totalorder %s11, 3
    %p189 = pnand %p187, %p188
    %p190 = pneg %p189
    // Predicated region
    $region37: #{preact_resnet_forward.24} parent=5 // pred_check
      _
    $region38: #{preact_resnet_forward.24} parent=5 // pred_check_branch
      %192 = sbr.rel (%p189) target = $region40
    $region39: #{preact_resnet_forward.24} parent=5 // pred_region
      %s193 = ssub.s32 %s11, 1
      %s194 = smul.u32 8, %s16
      %p195 = scmp.lt.s32.totalorder %s194, 15
      %s196 = scalar_select %p195, %s194, 15
      %s197 = smul.addr %s196, 4
      %s198 = scalar_lea.vmem %s0, %s197
      %p199 = pneg %p37
      %p200 = pneg %p34
      %p201 = pneg %p58
      %p202 = pneg %p55
      %p203 = pneg %p79
      %p204 = pneg %p76
      %p205 = pneg %p100
      %p206 = pneg %p97
      %p207 = pneg %p121
      %p208 = pneg %p118
      %p209 = pneg %p147
      %p210 = pneg %p144
      %s211 = smul.u32 8, %s16
      %p212 = scmp.lt.s32.totalorder %s211, 15
      %s213 = scalar_select %p212, %s211, 15
      %s214 = smul.addr %s213, 4
      %s215 = scalar_lea.vmem %s5, %s214
      %s216 = smul.u32 8, %s16
      %p217 = scmp.lt.s32.totalorder %s216, 15
      %s218 = scalar_select %p217, %s216, 15
      %s219 = smul.addr %s218, 4
      %s220 = scalar_lea.vmem %s0, %s219
      %s221 = smul.u32 8, %s16
      %s222 = smul.u32 8, %s16
      %p223 = scmp.lt.s32.totalorder %s222, 15
      %s224 = scalar_select %p223, %s222, 15
      %s225 = smul.addr %s224, 4
      %s226 = scalar_lea.vmem %s5, %s225
      %s227 = smul.u32 8, %s16
      %v228 = vld [vmem:[%s1] sm:$0xff]
      %v229 = vld [vmem:[%s1 + $0x8] sm:$0xff]
      %v230 = vadd.f32 %v228, %v229
      %v231 = vrot.slane %v230, 4
      %v232 = vadd.f32 %v230, %v231
      %v233 = vrot.slane %v232, 2
      %v234 = vadd.f32 %v232, %v233
      %v235 = vrot.slane %v234, 1
      %v236 = vadd.f32 %v234, %v235
      %v237 = vld [vmem:[%s2] sm:$0xff]
      %v238 = vld [vmem:[%s2 + $0x8] sm:$0xff]
      %v239 = vadd.f32 %v237, %v238
      %v240 = vrot.slane %v239, 4
      %v241 = vadd.f32 %v239, %v240
      %v242 = vrot.slane %v241, 2
      %v243 = vadd.f32 %v241, %v242
      %v244 = vrot.slane %v243, 1
      %v245 = vadd.f32 %v243, %v244
      %v246 = vmul.f32 %v236, 0.0078125
      %v247 = vmul.f32 %v245, 0.0078125
      %v248 = vmul.f32 %v246, %v246
      %v249 = vsub.f32 %v247, %v248
      %v250 = vmax.f32 %v249, 0.0
      %v251 = vld [vmem:[%s3] sm:$0x1]
      %v252 = vadd.f32 %v250, 1e-05
      %v253 = vrsqrt.pop %v252
      %v254 = vmul.f32 %v253, %v252
      %v255 = vmul.f32 %v254, %v253
      %v256 = vmul.f32 0.5, %v255
      %v257 = vsub.f32 1.5, %v256
      %v258 = vmul.f32 %v253, %v257
      %vm259 = vweird.f32 %v252
      %vm260 = vweird.f32 %v253
      %vm261 = vmor %vm259, %vm260
      %v262 = vsel %vm261, %v253, %v258
      %v263 = vmul.f32 %v251, %v262
      %v264 = vld [vmem:[%s4] sm:$0x1]
      %v265 = vmul.f32 %v246, %v263
      %v266 = vsub.f32 %v264, %v265
      %v267 = vld [vmem:[%s220] sm:$0xf]
      %v268 = vld [vmem:[%s220 + $0x4] sm:$0xf]
      %v269 = vld [vmem:[%s220 + $0x8] sm:$0xf]
      %v270 = vld [vmem:[%s220 + $0xc] sm:$0xf]
      %v271 = vld [vmem:[%s220 + $0x10] sm:$0xf]
      %v272 = vld [vmem:[%s220 + $0x14] sm:$0xf]
      %v273 = vld [vmem:[%s220 + $0x18] sm:$0xf]
      %v274 = vld [vmem:[%s220 + $0x1c] sm:$0xf]
      %v275 = vunpack.c.l.bf16 %v267
      %v276 = vunpack.c.l.bf16 %v268
      %v277 = vunpack.c.l.bf16 %v269
      %v278 = vunpack.c.l.bf16 %v270
      %v279 = vunpack.c.l.bf16 %v271
      %v280 = vunpack.c.l.bf16 %v272
      %v281 = vunpack.c.l.bf16 %v273
      %v282 = vunpack.c.l.bf16 %v274
      %v284 = vperm.slane %v263, 0
      %v286 = vmul.f32 %v275, %v284
      %v287 = vmul.f32 %v276, %v284
      %v288 = vmul.f32 %v277, %v284
      %v289 = vmul.f32 %v278, %v284
      %v290 = vmul.f32 %v279, %v284
      %v291 = vmul.f32 %v280, %v284
      %v292 = vmul.f32 %v281, %v284
      %v293 = vmul.f32 %v282, %v284
      %v295 = vperm.slane %v266, 0
      %v297 = vadd.f32 %v286, %v295
      %v298 = vadd.f32 %v287, %v295
      %v299 = vadd.f32 %v288, %v295
      %v300 = vadd.f32 %v289, %v295
      %v301 = vadd.f32 %v290, %v295
      %v302 = vadd.f32 %v291, %v295
      %v303 = vadd.f32 %v292, %v295
      %v304 = vadd.f32 %v293, %v295
      %v305 = vmax.f32 %v297, 0.0
      %v306 = vmax.f32 %v298, 0.0
      %v307 = vmax.f32 %v299, 0.0
      %v308 = vmax.f32 %v300, 0.0
      %v309 = vmax.f32 %v301, 0.0
      %v310 = vmax.f32 %v302, 0.0
      %v311 = vmax.f32 %v303, 0.0
      %v312 = vmax.f32 %v304, 0.0
      %v313 = vpack.c.bf16 %v305, %v305
      %v314 = vpack.c.bf16 %v306, %v306
      %v315 = vpack.c.bf16 %v307, %v307
      %v316 = vpack.c.bf16 %v308, %v308
      %v317 = vpack.c.bf16 %v309, %v309
      %v318 = vpack.c.bf16 %v310, %v310
      %v319 = vpack.c.bf16 %v311, %v311
      %v320 = vpack.c.bf16 %v312, %v312
      %321 = vst [vmem:[%s226] sm:$0xf] %v313
      %322 = vst [vmem:[%s226 + $0x4] sm:$0xf] %v314
      %323 = vst [vmem:[%s226 + $0x8] sm:$0xf] %v315
      %324 = vst [vmem:[%s226 + $0xc] sm:$0xf] %v316
      %325 = vst [vmem:[%s226 + $0x10] sm:$0xf] %v317
      %326 = vst [vmem:[%s226 + $0x14] sm:$0xf] %v318
      %327 = vst [vmem:[%s226 + $0x18] sm:$0xf] %v319
      %328 = vst [vmem:[%s226 + $0x1c] sm:$0xf] %v320
      %s329 = smul.u32 8, %s16
      %p330 = scmp.lt.s32.totalorder %s329, 15
      %s331 = scalar_select %p330, %s329, 15
      %s332 = smul.addr %s331, 4
      %s333 = scalar_lea.vmem %s5, %s332
      // Predicated region
      $region41: #{preact_resnet_forward.24} parent=39 // pred_check
        %p334 = pneg %p144
      $region42: #{preact_resnet_forward.24} parent=39 // pred_check_branch
        %336 = sbr.rel (%p334) target = $region44
      $region43: #{preact_resnet_forward.24} parent=39 // pred_region
        %s337 = smul.u32 8, %s16
      $region44: #{preact_resnet_forward.24} parent=39 // pred_fallthru
        _
    $region40: #{preact_resnet_forward.24} parent=5 // pred_fallthru
      _
    %p338 = scmp.le.s32.totalorder 2, %s11
    // Predicated region
    $region45: #{preact_resnet_forward.24} parent=5 // pred_check
      %p339 = pneg %p338
    $region46: #{preact_resnet_forward.24} parent=5 // pred_check_branch
      %341 = sbr.rel (%p339) target = $region48
    $region47: #{preact_resnet_forward.24} parent=5 // pred_region
      %s342 = ssub.s32 %s11, 2
      // Predicated region
      $region49: #{preact_resnet_forward.24} parent=47 // pred_check
        %p343 = pneg %p150
      $region50: #{preact_resnet_forward.24} parent=47 // pred_check_branch
        %345 = sbr.rel (%p343) target = $region52
      $region51: #{preact_resnet_forward.24} parent=47 // pred_region
        %s346 = smul.u32 8, %s17
        %p347 = scmp.lt.s32.totalorder %s346, 15
        %s348 = scalar_select %p347, %s346, 15
        %s349 = smul.addr %s348, 4
        %s350 = scalar_lea.vmem %s5, %s349
      $region52: #{preact_resnet_forward.24} parent=47 // pred_fallthru
        _
    $region48: #{preact_resnet_forward.24} parent=5 // pred_fallthru
      _
  $region6: #{preact_resnet_forward.24} parent=0 // loop_footer
    %s15 = sadd.s32 1, %s11
  $region7: #{preact_resnet_forward.24} parent=0 // loop_footer_branch
    %10 = sbr.rel target = $region3
  $region8: #{preact_resnet_forward.24} parent=0 // loop_exit
    _

// kernel: preact_resnet_forward.23
$region0: #{preact_resnet_forward.23}
  #allocation0 [shape = 'u32[]', space=smem, size = 0x4, offset = 0x4, fixed_abs, tag = 'smem constant byte address 0x4 - core index']
  #allocation1 [shape = 'u32[72,128]{1,0:T(1,128)}', space=vmem, size = 0x9000, scoped, tag = 'internal scratch']
  %s0 = inlined_call_operand.vmem [shape: bf16[128,256], index: 0, kind: input, shape index: {}]
  %s1 = inlined_call_operand.vmem [shape: bf16[256,128], index: 1, kind: input, shape index: {}]
  %s2 = inlined_call_operand.vmem [shape: bf16[128,128], index: 2, kind: output, shape index: {0}]
  %s3 = inlined_call_operand.vmem [shape: f32[16,128], index: 3, kind: output, shape index: {1}]
  %s4 = inlined_call_operand.vmem [shape: f32[16,128], index: 4, kind: output, shape index: {2}]
  %5 = xla_tuple %s2, %s3, %s4
  %s6 = sld [smem:[#allocation0]]
  $region57: #{preact_resnet_forward.23} parent=0
    _
  %s8 = ssub.s32 1, %s6
  %s9 = scalar_select 0, %s8, %s6
  loop: start=0, step=1, limit=4
  $region2: #{preact_resnet_forward.23} parent=0 // loop_pre_header
    _
  $region3: #{preact_resnet_forward.23} parent=0 // loop_header
    %s11 = sphi 0, %s15
    %p12 = scmp.ge.s32.totalorder %s11, 4
    %s21 = sphi 0, %s23
    %s24 = sphi 0, %s21
    %s25 = sphi 0, %s24
    %s41 = sphi 0, %s25
    %s45 = sphi 0, %s45
    %s47 = sphi 0, %s45
    %s48 = sphi 0, %s47
    %s62 = sphi 0, %s48
    %s68 = sphi 0, %s70
    %s71 = sphi 0, %s68
    %s72 = sphi 0, %s71
    %s88 = sphi 0, %s72
    %s94 = sphi 0, %s96
    %s97 = sphi 0, %s94
    %s98 = sphi 0, %s97
    %s114 = sphi 0, %s98
    %s120 = sphi 0, %s122
    %s123 = sphi 0, %s120
    %s124 = sphi 0, %s123
    %s140 = sphi 0, %s124
  $region4: #{preact_resnet_forward.23} parent=0 // loop_header_branch
    %14 = sbr.rel (%p12) target = $region8
  $region5: #{preact_resnet_forward.23} parent=0 // loop_body
    %s16 = ssub.s32 %s11, 1
    %s17 = ssub.s32 %s11, 2
    %s18 = sadd.s32 %s11, 1
    %s19 = ssub.s32 %s11, %s18
    %p20 = scmp.eq.s32.totalorder %s19, 0
    %s22 = sadd.s32 %s21, 1
    %s23 = scalar_select %p20, %s21, %s22
    %p26 = pneg %p20
    %p27 = scmp.eq.s32.totalorder %s11, 1
    %p28 = por %p26, %p27
    %p29 = scmp.ne.s32.totalorder %s21, %s24
    %p30 = scmp.eq.s32.totalorder %s11, 0
    %p31 = por %p29, %p30
    %p32 = scmp.ne.s32.totalorder %s21, %s24
    %p33 = scmp.eq.s32.totalorder %s16, 1
    %p34 = por %p32, %p33
    %p35 = scmp.ne.s32.totalorder %s24, %s25
    %p36 = scmp.eq.s32.totalorder %s16, 0
    %p37 = por %p35, %p36
    %p38 = scmp.ne.s32.totalorder %s24, %s25
    %p39 = scmp.eq.s32.totalorder %s17, 1
    %p40 = por %p38, %p39
    %p42 = scmp.ne.s32.totalorder %s25, %s41
    %p43 = scmp.eq.s32.totalorder %s17, 0
    %p44 = por %p42, %p43
    %s46 = sadd.s32 %s45, 1
    %p49 = scmp.eq.s32.totalorder %s11, 1
    %p50 = scmp.ne.s32.totalorder %s45, %s47
    %p51 = scmp.eq.s32.totalorder %s11, 0
    %p52 = por %p50, %p51
    %p53 = scmp.ne.s32.totalorder %s45, %s47
    %p54 = scmp.eq.s32.totalorder %s16, 1
    %p55 = por %p53, %p54
    %p56 = scmp.ne.s32.totalorder %s47, %s48
    %p57 = scmp.eq.s32.totalorder %s16, 0
    %p58 = por %p56, %p57
    %p59 = scmp.ne.s32.totalorder %s47, %s48
    %p60 = scmp.eq.s32.totalorder %s17, 1
    %p61 = por %p59, %p60
    %p63 = scmp.ne.s32.totalorder %s48, %s62
    %p64 = scmp.eq.s32.totalorder %s17, 0
    %p65 = por %p63, %p64
    %s66 = ssub.s32 %s11, %s18
    %p67 = scmp.eq.s32.totalorder %s66, 0
    %s69 = sadd.s32 %s68, 1
    %s70 = scalar_select %p67, %s68, %s69
    %p73 = pneg %p67
    %p74 = scmp.eq.s32.totalorder %s11, 1
    %p75 = por %p73, %p74
    %p76 = scmp.ne.s32.totalorder %s68, %s71
    %p77 = scmp.eq.s32.totalorder %s11, 0
    %p78 = por %p76, %p77
    %p79 = scmp.ne.s32.totalorder %s68, %s71
    %p80 = scmp.eq.s32.totalorder %s16, 1
    %p81 = por %p79, %p80
    %p82 = scmp.ne.s32.totalorder %s71, %s72
    %p83 = scmp.eq.s32.totalorder %s16, 0
    %p84 = por %p82, %p83
    %p85 = scmp.ne.s32.totalorder %s71, %s72
    %p86 = scmp.eq.s32.totalorder %s17, 1
    %p87 = por %p85, %p86
    %p89 = scmp.ne.s32.totalorder %s72, %s88
    %p90 = scmp.eq.s32.totalorder %s17, 0
    %p91 = por %p89, %p90
    %s92 = ssub.s32 %s11, %s18
    %p93 = scmp.eq.s32.totalorder %s92, 0
    %s95 = sadd.s32 %s94, 1
    %s96 = scalar_select %p93, %s94, %s95
    %p99 = pneg %p93
    %p100 = scmp.eq.s32.totalorder %s11, 1
    %p101 = por %p99, %p100
    %p102 = scmp.ne.s32.totalorder %s94, %s97
    %p103 = scmp.eq.s32.totalorder %s11, 0
    %p104 = por %p102, %p103
    %p105 = scmp.ne.s32.totalorder %s94, %s97
    %p106 = scmp.eq.s32.totalorder %s16, 1
    %p107 = por %p105, %p106
    %p108 = scmp.ne.s32.totalorder %s97, %s98
    %p109 = scmp.eq.s32.totalorder %s16, 0
    %p110 = por %p108, %p109
    %p111 = scmp.ne.s32.totalorder %s97, %s98
    %p112 = scmp.eq.s32.totalorder %s17, 1
    %p113 = por %p111, %p112
    %p115 = scmp.ne.s32.totalorder %s98, %s114
    %p116 = scmp.eq.s32.totalorder %s17, 0
    %p117 = por %p115, %p116
    %s118 = ssub.s32 %s11, %s18
    %p119 = scmp.eq.s32.totalorder %s118, 0
    %s121 = sadd.s32 %s120, 1
    %s122 = scalar_select %p119, %s120, %s121
    %p125 = pneg %p119
    %p126 = scmp.eq.s32.totalorder %s11, 1
    %p127 = por %p125, %p126
    %p128 = scmp.ne.s32.totalorder %s120, %s123
    %p129 = scmp.eq.s32.totalorder %s11, 0
    %p130 = por %p128, %p129
    %p131 = scmp.ne.s32.totalorder %s120, %s123
    %p132 = scmp.eq.s32.totalorder %s16, 1
    %p133 = por %p131, %p132
    %p134 = scmp.ne.s32.totalorder %s123, %s124
    %p135 = scmp.eq.s32.totalorder %s16, 0
    %p136 = por %p134, %p135
    %p137 = scmp.ne.s32.totalorder %s123, %s124
    %p138 = scmp.eq.s32.totalorder %s17, 1
    %p139 = por %p137, %p138
    %p141 = scmp.ne.s32.totalorder %s124, %s140
    %p142 = scmp.eq.s32.totalorder %s17, 0
    %p143 = por %p141, %p142
    %p144 = scmp.le.s32.totalorder 1, %s11
    %p145 = scmp.lt.s32.totalorder %s11, 3
    %p146 = pnand %p144, %p145
    %p147 = pneg %p146
    // Predicated region
    $region9: #{preact_resnet_forward.23} parent=5 // pred_check
      _
    $region10: #{preact_resnet_forward.23} parent=5 // pred_check_branch
      %149 = sbr.rel (%p146) target = $region12
    $region11: #{preact_resnet_forward.23} parent=5 // pred_region
      %s150 = ssub.s32 %s11, 1
      // Predicated region
      $region13: #{preact_resnet_forward.23} parent=11 // pred_check
        %p151 = pneg %p58
      $region14: #{preact_resnet_forward.23} parent=11 // pred_check_branch
        %153 = sbr.rel (%p151) target = $region16
      $region15: #{preact_resnet_forward.23} parent=11 // pred_region
        _
      $region16: #{preact_resnet_forward.23} parent=11 // pred_fallthru
        _
    $region12: #{preact_resnet_forward.23} parent=5 // pred_fallthru
      _
    %p154 = scmp.lt.s32.totalorder %s11, 2
    // Predicated region
    $region17: #{preact_resnet_forward.23} parent=5 // pred_check
      %p155 = pneg %p154
    $region18: #{preact_resnet_forward.23} parent=5 // pred_check_branch
      %157 = sbr.rel (%p155) target = $region20
    $region19: #{preact_resnet_forward.23} parent=5 // pred_region
      // Predicated region
      $region21: #{preact_resnet_forward.23} parent=19 // pred_check
        %p158 = pneg %p31
      $region22: #{preact_resnet_forward.23} parent=19 // pred_check_branch
        %160 = sbr.rel (%p158) target = $region24
      $region23: #{preact_resnet_forward.23} parent=19 // pred_region
        %s161 = smul.u32 8, %s11
        %p162 = scmp.lt.s32.totalorder %s161, 15
        %s163 = scalar_select %p162, %s161, 15
        %s164 = smul.addr %s163, 2
        %s165 = smul.addr %s164, 4
        %s166 = scalar_lea.vmem %s0, %s165
        %s167 = smul.u32 8, %s11
      $region24: #{preact_resnet_forward.23} parent=19 // pred_fallthru
        _
    $region20: #{preact_resnet_forward.23} parent=5 // pred_fallthru
      _
    %p168 = scmp.le.s32.totalorder 1, %s11
    %p169 = scmp.lt.s32.totalorder %s11, 3
    %p170 = pnand %p168, %p169
    %p171 = pneg %p170
    // Predicated region
    $region25: #{preact_resnet_forward.23} parent=5 // pred_check
      _
    $region26: #{preact_resnet_forward.23} parent=5 // pred_check_branch
      %173 = sbr.rel (%p170) target = $region28
    $region27: #{preact_resnet_forward.23} parent=5 // pred_region
      %s174 = ssub.s32 %s11, 1
      %s175 = smul.u32 8, %s16
      %p176 = scmp.lt.s32.totalorder %s175, 15
      %s177 = scalar_select %p176, %s175, 15
      %s178 = smul.addr %s177, 2
      %s179 = smul.addr %s178, 4
      %s180 = scalar_lea.vmem %s0, %s179
      %p181 = pneg %p37
      %p182 = pneg %p34
      %p183 = pneg %p58
      %p184 = pneg %p55
      %p185 = pneg %p84
      %p186 = pneg %p81
      %s187 = smul.u32 8, %s16
      %p188 = scmp.lt.s32.totalorder %s187, 15
      %s189 = scalar_select %p188, %s187, 15
      %s190 = smul.addr %s189, 4
      %s191 = scalar_lea.vmem %s2, %s190
      %p192 = pneg %p110
      %p193 = pneg %p107
      %p194 = scmp.lt.s32.totalorder %s16, 1
      %s195 = scalar_select %p194, %s16, 1
      %s196 = smul.addr %s195, 8
      %s197 = scalar_lea.vmem %s3, %s196
      %p198 = pneg %p136
      %p199 = pneg %p133
      %p200 = scmp.lt.s32.totalorder %s16, 1
      %s201 = scalar_select %p200, %s16, 1
      %s202 = smul.addr %s201, 8
      %s203 = scalar_lea.vmem %s4, %s202
      %s204 = smul.u32 8, %s16
      %p205 = scmp.lt.s32.totalorder %s204, 15
      %s206 = scalar_select %p205, %s204, 15
      %s207 = smul.addr %s206, 2
      %s208 = smul.addr %s207, 4
      %s209 = scalar_lea.vmem %s0, %s208
      %s210 = smul.u32 8, %s16
      %s211 = smul.u32 8, %s16
      %p212 = scmp.lt.s32.totalorder %s211, 15
      %s213 = scalar_select %p212, %s211, 15
      %s214 = smul.addr %s213, 4
      %s215 = scalar_lea.vmem %s2, %s214
      %s216 = smul.u32 8, %s16
      %p217 = scmp.lt.s32.totalorder %s16, 1
      %s218 = scalar_select %p217, %s16, 1
      %s219 = smul.addr %s218, 8
      %s220 = scalar_lea.vmem %s3, %s219
      %p221 = scmp.lt.s32.totalorder %s16, 1
      %s222 = scalar_select %p221, %s16, 1
      %s223 = smul.addr %s222, 8
      %s224 = scalar_lea.vmem %s4, %s223
      %v225 = vld [vmem:[%s209] sm:$0xff]
      %v226 = vld [vmem:[%s209 + $0x8] sm:$0xff]
      %v227 = vld [vmem:[%s209 + $0x10] sm:$0xff]
      %v228 = vld [vmem:[%s209 + $0x18] sm:$0xff]
      %v229 = vld [vmem:[%s209 + $0x20] sm:$0xff]
      %v230 = vld [vmem:[%s209 + $0x28] sm:$0xff]
      %v231 = vld [vmem:[%s209 + $0x30] sm:$0xff]
      %v232 = vld [vmem:[%s209 + $0x38] sm:$0xff]
      %v233 = vld [vmem:[%s1] sm:$0xf]
      %v234 = vld [vmem:[%s1 + $0x4] sm:$0xf]
      %v235 = vld [vmem:[%s1 + $0x8] sm:$0xf]
      %v236 = vld [vmem:[%s1 + $0xc] sm:$0xf]
      %v237 = vld [vmem:[%s1 + $0x10] sm:$0xf]
      %v238 = vld [vmem:[%s1 + $0x14] sm:$0xf]
      %v239 = vld [vmem:[%s1 + $0x18] sm:$0xf]
      %v240 = vld [vmem:[%s1 + $0x1c] sm:$0xf]
      %v241 = vld [vmem:[%s1 + $0x20] sm:$0xf]
      %v242 = vld [vmem:[%s1 + $0x24] sm:$0xf]
      %v243 = vld [vmem:[%s1 + $0x28] sm:$0xf]
      %v244 = vld [vmem:[%s1 + $0x2c] sm:$0xf]
      %v245 = vld [vmem:[%s1 + $0x30] sm:$0xf]
      %v246 = vld [vmem:[%s1 + $0x34] sm:$0xf]
      %v247 = vld [vmem:[%s1 + $0x38] sm:$0xf]
      %v248 = vld [vmem:[%s1 + $0x3c] sm:$0xf]
      %v249 = vld [vmem:[%s1 + $0x40] sm:$0xf]
      %v250 = vld [vmem:[%s1 + $0x44] sm:$0xf]
      %v251 = vld [vmem:[%s1 + $0x48] sm:$0xf]
      %v252 = vld [vmem:[%s1 + $0x4c] sm:$0xf]
      %v253 = vld [vmem:[%s1 + $0x50] sm:$0xf]
      %v254 = vld [vmem:[%s1 + $0x54] sm:$0xf]
      %v255 = vld [vmem:[%s1 + $0x58] sm:$0xf]
      %v256 = vld [vmem:[%s1 + $0x5c] sm:$0xf]
      %v257 = vld [vmem:[%s1 + $0x60] sm:$0xf]
      %v258 = vld [vmem:[%s1 + $0x64] sm:$0xf]
      %v259 = vld [vmem:[%s1 + $0x68] sm:$0xf]
      %v260 = vld [vmem:[%s1 + $0x6c] sm:$0xf]
      %v261 = vld [vmem:[%s1 + $0x70] sm:$0xf]
      %v262 = vld [vmem:[%s1 + $0x74] sm:$0xf]
      %v263 = vld [vmem:[%s1 + $0x78] sm:$0xf]
      %v264 = vld [vmem:[%s1 + $0x7c] sm:$0xf]
      %v273 = vunpack.c.l.b16 %v225
      %v274 = vunpack.c.h.b16 %v225
      %v275 = vunpack.c.l.b16 %v226
      %v276 = vunpack.c.h.b16 %v226
      %v277 = vunpack.c.l.b16 %v227
      %v278 = vunpack.c.h.b16 %v227
      %v279 = vunpack.c.l.b16 %v228
      %v280 = vunpack.c.h.b16 %v228
      %v281 = vunpack.c.l.b16 %v229
      %v282 = vunpack.c.h.b16 %v229
      %v283 = vunpack.c.l.b16 %v230
      %v284 = vunpack.c.h.b16 %v230
      %v285 = vunpack.c.l.b16 %v231
      %v286 = vunpack.c.h.b16 %v231
      %v287 = vunpack.c.l.b16 %v232
      %v288 = vunpack.c.h.b16 %v232
      %v289 = vpack.c.b16 %v275, %v273
      %v290 = vpack.c.b16 %v276, %v274
      %v291 = vpack.c.b16 %v279, %v277
      %v292 = vpack.c.b16 %v280, %v278
      %v293 = vpack.c.b16 %v283, %v281
      %v294 = vpack.c.b16 %v284, %v282
      %v295 = vpack.c.b16 %v287, %v285
      %v296 = vpack.c.b16 %v288, %v286
      %v337 = vunpack.c.l.b16 %v233
      %v338 = vunpack.c.l.b16 %v234
      %v339 = vunpack.c.l.b16 %v235
      %v340 = vunpack.c.l.b16 %v236
      %v341 = vunpack.c.l.b16 %v237
      %v342 = vunpack.c.l.b16 %v238
      %v343 = vunpack.c.l.b16 %v239
      %v344 = vunpack.c.l.b16 %v240
      %v345 = vunpack.c.l.b16 %v241
      %v346 = vunpack.c.l.b16 %v242
      %v347 = vunpack.c.l.b16 %v243
      %v348 = vunpack.c.l.b16 %v244
      %v349 = vunpack.c.l.b16 %v245
      %v350 = vunpack.c.l.b16 %v246
      %v351 = vunpack.c.l.b16 %v247
      %v352 = vunpack.c.l.b16 %v248
      %v353 = vunpack.c.l.b16 %v249
      %v354 = vunpack.c.l.b16 %v250
      %v355 = vunpack.c.l.b16 %v251
      %v356 = vunpack.c.l.b16 %v252
      %v357 = vunpack.c.l.b16 %v253
      %v358 = vunpack.c.l.b16 %v254
      %v359 = vunpack.c.l.b16 %v255
      %v360 = vunpack.c.l.b16 %v256
      %v361 = vunpack.c.l.b16 %v257
      %v362 = vunpack.c.l.b16 %v258
      %v363 = vunpack.c.l.b16 %v259
      %v364 = vunpack.c.l.b16 %v260
      %v365 = vunpack.c.l.b16 %v261
      %v366 = vunpack.c.l.b16 %v262
      %v367 = vunpack.c.l.b16 %v263
      %v368 = vunpack.c.l.b16 %v264
      %v369 = vpack.c.b16 %v338, %v337
      %v370 = vpack.c.b16 %v340, %v339
      %v371 = vpack.c.b16 %v342, %v341
      %v372 = vpack.c.b16 %v344, %v343
      %v373 = vpack.c.b16 %v346, %v345
      %v374 = vpack.c.b16 %v348, %v347
      %v375 = vpack.c.b16 %v350, %v349
      %v376 = vpack.c.b16 %v352, %v351
      %v377 = vpack.c.b16 %v354, %v353
      %v378 = vpack.c.b16 %v356, %v355
      %v379 = vpack.c.b16 %v358, %v357
      %v380 = vpack.c.b16 %v360, %v359
      %v381 = vpack.c.b16 %v362, %v361
      %v382 = vpack.c.b16 %v364, %v363
      %v383 = vpack.c.b16 %v366, %v365
      %v384 = vpack.c.b16 %v368, %v367
      %401 = vmatpush.bf16.msra.mxu0 %v376
      %402 = vmatpush.bf16.msra.mxu0 %v375
      %403 = vmatpush.bf16.msra.mxu0 %v374
      %404 = vmatpush.bf16.msra.mxu0 %v373
      %405 = vmatpush.bf16.msra.mxu0 %v372
      %406 = vmatpush.bf16.msra.mxu0 %v371
      %407 = vmatpush.bf16.msra.mxu0 %v370
      %408 = vmatpush.bf16.msra.mxu0 %v369
      %409 = vmatmul.bf16.gmra.mxu0 %v289
      %v410 = vpop.f32.mrf.mxu0
      %v411 = vadd.f32 0.0, %v410
      %v412 = vpop.f32.mrf.mxu0
      %v413 = vadd.f32 0.0, %v412
      %414 = vmatmul.bf16.gmra.mxu0 %v291
      %v415 = vpop.f32.mrf.mxu0
      %v416 = vadd.f32 0.0, %v415
      %v417 = vpop.f32.mrf.mxu0
      %v418 = vadd.f32 0.0, %v417
      %419 = vmatmul.bf16.gmra.mxu0 %v293
      %v420 = vpop.f32.mrf.mxu0
      %v421 = vadd.f32 0.0, %v420
      %v422 = vpop.f32.mrf.mxu0
      %v423 = vadd.f32 0.0, %v422
      %424 = vmatmul.bf16.gmra.mxu0 %v295
      %v425 = vpop.f32.mrf.mxu0
      %v426 = vadd.f32 0.0, %v425
      %v427 = vpop.f32.mrf.mxu0
      %v428 = vadd.f32 0.0, %v427
      %429 = vdwg.mxu0
      %430 = vmatpush.bf16.msra.mxu0 %v384
      %431 = vmatpush.bf16.msra.mxu0 %v383
      %432 = vmatpush.bf16.msra.mxu0 %v382
      %433 = vmatpush.bf16.msra.mxu0 %v381
      %434 = vmatpush.bf16.msra.mxu0 %v380
      %435 = vmatpush.bf16.msra.mxu0 %v379
      %436 = vmatpush.bf16.msra.mxu0 %v378
      %437 = vmatpush.bf16.msra.mxu0 %v377
      %438 = vmatmul.bf16.gmra.mxu0 %v290
      %v439 = vpop.f32.mrf.mxu0
      %v440 = vadd.f32 %v411, %v439
      %v441 = vpop.f32.mrf.mxu0
      %v442 = vadd.f32 %v413, %v441
      %443 = vmatmul.bf16.gmra.mxu0 %v292
      %v444 = vpop.f32.mrf.mxu0
      %v445 = vadd.f32 %v416, %v444
      %v446 = vpop.f32.mrf.mxu0
      %v447 = vadd.f32 %v418, %v446
      %448 = vmatmul.bf16.gmra.mxu0 %v294
      %v449 = vpop.f32.mrf.mxu0
      %v450 = vadd.f32 %v421, %v449
      %v451 = vpop.f32.mrf.mxu0
      %v452 = vadd.f32 %v423, %v451
      %453 = vmatmul.bf16.gmra.mxu0 %v296
      %v454 = vpop.f32.mrf.mxu0
      %v455 = vadd.f32 %v426, %v454
      %v456 = vpop.f32.mrf.mxu0
      %v457 = vadd.f32 %v428, %v456
      %458 = vdwg.mxu0
      %v459 = vpack.c.bf16 %v440, %v440
      %v460 = vpack.c.bf16 %v442, %v442
      %v461 = vpack.c.bf16 %v445, %v445
      %v462 = vpack.c.bf16 %v447, %v447
      %v463 = vpack.c.bf16 %v450, %v450
      %v464 = vpack.c.bf16 %v452, %v452
      %v465 = vpack.c.bf16 %v455, %v455
      %v466 = vpack.c.bf16 %v457, %v457
      %467 = vst [vmem:[%s215] sm:$0xf] %v459
      %468 = vst [vmem:[%s215 + $0x4] sm:$0xf] %v460
      %469 = vst [vmem:[%s215 + $0x8] sm:$0xf] %v461
      %470 = vst [vmem:[%s215 + $0xc] sm:$0xf] %v462
      %471 = vst [vmem:[%s215 + $0x10] sm:$0xf] %v463
      %472 = vst [vmem:[%s215 + $0x14] sm:$0xf] %v464
      %473 = vst [vmem:[%s215 + $0x18] sm:$0xf] %v465
      %474 = vst [vmem:[%s215 + $0x1c] sm:$0xf] %v466
      %v475 = vlaneseq
      %v476 = vshrl.u32 %v475, 7
      %vm477 = vcmp.eq.s32.totalorder %v476, 0
      %v478 = vadd.f32 %v440, %v442
      %v479 = vadd.f32 %v478, %v445
      %v480 = vadd.f32 %v479, %v447
      %v481 = vadd.f32 %v480, %v450
      %v482 = vadd.f32 %v481, %v452
      %v483 = vadd.f32 %v482, %v455
      %v484 = vadd.f32 %v483, %v457
      %v485 = vrot.slane %v484, 4
      %v486 = vadd.f32 %v484, %v485
      %v487 = vrot.slane %v486, 2
      %v488 = vadd.f32 %v486, %v487
      %v489 = vrot.slane %v488, 1
      %v490 = vadd.f32 %v488, %v489
      %v491 = vsel %vm477, %v490, 0.0
      %492 = vst [vmem:[%s220] sm:$0xff] %v491
      %v493 = vmul.f32 %v440, %v440
      %v494 = vmul.f32 %v442, %v442
      %v495 = vmul.f32 %v445, %v445
      %v496 = vmul.f32 %v447, %v447
      %v497 = vmul.f32 %v450, %v450
      %v498 = vmul.f32 %v452, %v452
      %v499 = vmul.f32 %v455, %v455
      %v500 = vmul.f32 %v457, %v457
      %v501 = vadd.f32 %v493, %v494
      %v502 = vadd.f32 %v501, %v495
      %v503 = vadd.f32 %v502, %v496
      %v504 = vadd.f32 %v503, %v497
      %v505 = vadd.f32 %v504, %v498
      %v506 = vadd.f32 %v505, %v499
      %v507 = vadd.f32 %v506, %v500
      %v508 = vrot.slane %v507, 4
      %v509 = vadd.f32 %v507, %v508
      %v510 = vrot.slane %v509, 2
      %v511 = vadd.f32 %v509, %v510
      %v512 = vrot.slane %v511, 1
      %v513 = vadd.f32 %v511, %v512
      %v514 = vsel %vm477, %v513, 0.0
      %515 = vst [vmem:[%s224] sm:$0xff] %v514
      %s516 = smul.u32 8, %s16
      %p517 = scmp.lt.s32.totalorder %s516, 15
      %s518 = scalar_select %p517, %s516, 15
      %s519 = smul.addr %s518, 4
      %s520 = scalar_lea.vmem %s2, %s519
      %p521 = scmp.lt.s32.totalorder %s16, 1
      %s522 = scalar_select %p521, %s16, 1
      %s523 = smul.addr %s522, 8
      %s524 = scalar_lea.vmem %s3, %s523
      %p525 = scmp.lt.s32.totalorder %s16, 1
      %s526 = scalar_select %p525, %s16, 1
      %s527 = smul.addr %s526, 8
      %s528 = scalar_lea.vmem %s4, %s527
      // Predicated region
      $region29: #{preact_resnet_forward.23} parent=27 // pred_check
        %p529 = pneg %p81
      $region30: #{preact_resnet_forward.23} parent=27 // pred_check_branch
        %531 = sbr.rel (%p529) target = $region32
      $region31: #{preact_resnet_forward.23} parent=27 // pred_region
        %s532 = smul.u32 8, %s16
      $region32: #{preact_resnet_forward.23} parent=27 // pred_fallthru
        _
      // Predicated region
      $region33: #{preact_resnet_forward.23} parent=27 // pred_check
        %p533 = pneg %p107
      $region34: #{preact_resnet_forward.23} parent=27 // pred_check_branch
        %535 = sbr.rel (%p533) target = $region36
      $region35: #{preact_resnet_forward.23} parent=27 // pred_region
        _
      $region36: #{preact_resnet_forward.23} parent=27 // pred_fallthru
        _
      // Predicated region
      $region37: #{preact_resnet_forward.23} parent=27 // pred_check
        %p536 = pneg %p133
      $region38: #{preact_resnet_forward.23} parent=27 // pred_check_branch
        %538 = sbr.rel (%p536) target = $region40
      $region39: #{preact_resnet_forward.23} parent=27 // pred_region
        _
      $region40: #{preact_resnet_forward.23} parent=27 // pred_fallthru
        _
    $region28: #{preact_resnet_forward.23} parent=5 // pred_fallthru
      _
    %p539 = scmp.le.s32.totalorder 2, %s11
    // Predicated region
    $region41: #{preact_resnet_forward.23} parent=5 // pred_check
      %p540 = pneg %p539
    $region42: #{preact_resnet_forward.23} parent=5 // pred_check_branch
      %542 = sbr.rel (%p540) target = $region44
    $region43: #{preact_resnet_forward.23} parent=5 // pred_region
      %s543 = ssub.s32 %s11, 2
      // Predicated region
      $region45: #{preact_resnet_forward.23} parent=43 // pred_check
        %p544 = pneg %p87
      $region46: #{preact_resnet_forward.23} parent=43 // pred_check_branch
        %546 = sbr.rel (%p544) target = $region48
      $region47: #{preact_resnet_forward.23} parent=43 // pred_region
        %s547 = smul.u32 8, %s17
        %p548 = scmp.lt.s32.totalorder %s547, 15
        %s549 = scalar_select %p548, %s547, 15
        %s550 = smul.addr %s549, 4
        %s551 = scalar_lea.vmem %s2, %s550
      $region48: #{preact_resnet_forward.23} parent=43 // pred_fallthru
        _
      // Predicated region
      $region49: #{preact_resnet_forward.23} parent=43 // pred_check
        %p552 = pneg %p113
      $region50: #{preact_resnet_forward.23} parent=43 // pred_check_branch
        %554 = sbr.rel (%p552) target = $region52
      $region51: #{preact_resnet_forward.23} parent=43 // pred_region
        %p555 = scmp.lt.s32.totalorder %s17, 1
        %s556 = scalar_select %p555, %s17, 1
        %s557 = smul.addr %s556, 8
        %s558 = scalar_lea.vmem %s3, %s557
      $region52: #{preact_resnet_forward.23} parent=43 // pred_fallthru
        _
      // Predicated region
      $region53: #{preact_resnet_forward.23} parent=43 // pred_check
        %p559 = pneg %p139
      $region54: #{preact_resnet_forward.23} parent=43 // pred_check_branch
        %561 = sbr.rel (%p559) target = $region56
      $region55: #{preact_resnet_forward.23} parent=43 // pred_region
        %p562 = scmp.lt.s32.totalorder %s17, 1
        %s563 = scalar_select %p562, %s17, 1
        %s564 = smul.addr %s563, 8
        %s565 = scalar_lea.vmem %s4, %s564
      $region56: #{preact_resnet_forward.23} parent=43 // pred_fallthru
        _
    $region44: #{preact_resnet_forward.23} parent=5 // pred_fallthru
      _
  $region6: #{preact_resnet_forward.23} parent=0 // loop_footer
    %s15 = sadd.s32 1, %s11
  $region7: #{preact_resnet_forward.23} parent=0 // loop_footer_branch
    %10 = sbr.rel target = $region3
  $region8: #{preact_resnet_forward.23} parent=0 // loop_exit
    _

// kernel: preact_resnet_forward.27
$region0: #{preact_resnet_forward.27}
  #allocation0 [shape = 'u32[]', space=smem, size = 0x4, offset = 0x4, fixed_abs, tag = 'smem constant byte address 0x4 - core index']
  #allocation1 [shape = 'u32[72,128]{1,0:T(1,128)}', space=vmem, size = 0x9000, scoped, tag = 'internal scratch']
  %s0 = inlined_call_operand.vmem [shape: bf16[32,128], index: 0, kind: input, shape index: {}]
  %s1 = inlined_call_operand.vmem [shape: bf16[128,128], index: 1, kind: input, shape index: {}]
  %s2 = inlined_call_operand.vmem [shape: bf16[32,128], index: 2, kind: output, shape index: {}]
  %s3 = sld [smem:[#allocation0]]
  $region41: #{preact_resnet_forward.27} parent=0
    _
  %s5 = ssub.s32 1, %s3
  %s6 = scalar_select 0, %s5, %s3
  loop: start=0, step=1, limit=4
  $region2: #{preact_resnet_forward.27} parent=0 // loop_pre_header
    _
  $region3: #{preact_resnet_forward.27} parent=0 // loop_header
    %s8 = sphi 0, %s12
    %p9 = scmp.ge.s32.totalorder %s8, 4
    %s18 = sphi 0, %s20
    %s21 = sphi 0, %s18
    %s22 = sphi 0, %s21
    %s38 = sphi 0, %s22
    %s42 = sphi 0, %s42
    %s44 = sphi 0, %s42
    %s45 = sphi 0, %s44
    %s59 = sphi 0, %s45
    %s65 = sphi 0, %s67
    %s68 = sphi 0, %s65
    %s69 = sphi 0, %s68
    %s85 = sphi 0, %s69
  $region4: #{preact_resnet_forward.27} parent=0 // loop_header_branch
    %11 = sbr.rel (%p9) target = $region8
  $region5: #{preact_resnet_forward.27} parent=0 // loop_body
    %s13 = ssub.s32 %s8, 1
    %s14 = ssub.s32 %s8, 2
    %s15 = sadd.s32 %s8, 1
    %s16 = ssub.s32 %s8, %s15
    %p17 = scmp.eq.s32.totalorder %s16, 0
    %s19 = sadd.s32 %s18, 1
    %s20 = scalar_select %p17, %s18, %s19
    %p23 = pneg %p17
    %p24 = scmp.eq.s32.totalorder %s8, 1
    %p25 = por %p23, %p24
    %p26 = scmp.ne.s32.totalorder %s18, %s21
    %p27 = scmp.eq.s32.totalorder %s8, 0
    %p28 = por %p26, %p27
    %p29 = scmp.ne.s32.totalorder %s18, %s21
    %p30 = scmp.eq.s32.totalorder %s13, 1
    %p31 = por %p29, %p30
    %p32 = scmp.ne.s32.totalorder %s21, %s22
    %p33 = scmp.eq.s32.totalorder %s13, 0
    %p34 = por %p32, %p33
    %p35 = scmp.ne.s32.totalorder %s21, %s22
    %p36 = scmp.eq.s32.totalorder %s14, 1
    %p37 = por %p35, %p36
    %p39 = scmp.ne.s32.totalorder %s22, %s38
    %p40 = scmp.eq.s32.totalorder %s14, 0
    %p41 = por %p39, %p40
    %s43 = sadd.s32 %s42, 1
    %p46 = scmp.eq.s32.totalorder %s8, 1
    %p47 = scmp.ne.s32.totalorder %s42, %s44
    %p48 = scmp.eq.s32.totalorder %s8, 0
    %p49 = por %p47, %p48
    %p50 = scmp.ne.s32.totalorder %s42, %s44
    %p51 = scmp.eq.s32.totalorder %s13, 1
    %p52 = por %p50, %p51
    %p53 = scmp.ne.s32.totalorder %s44, %s45
    %p54 = scmp.eq.s32.totalorder %s13, 0
    %p55 = por %p53, %p54
    %p56 = scmp.ne.s32.totalorder %s44, %s45
    %p57 = scmp.eq.s32.totalorder %s14, 1
    %p58 = por %p56, %p57
    %p60 = scmp.ne.s32.totalorder %s45, %s59
    %p61 = scmp.eq.s32.totalorder %s14, 0
    %p62 = por %p60, %p61
    %s63 = ssub.s32 %s8, %s15
    %p64 = scmp.eq.s32.totalorder %s63, 0
    %s66 = sadd.s32 %s65, 1
    %s67 = scalar_select %p64, %s65, %s66
    %p70 = pneg %p64
    %p71 = scmp.eq.s32.totalorder %s8, 1
    %p72 = por %p70, %p71
    %p73 = scmp.ne.s32.totalorder %s65, %s68
    %p74 = scmp.eq.s32.totalorder %s8, 0
    %p75 = por %p73, %p74
    %p76 = scmp.ne.s32.totalorder %s65, %s68
    %p77 = scmp.eq.s32.totalorder %s13, 1
    %p78 = por %p76, %p77
    %p79 = scmp.ne.s32.totalorder %s68, %s69
    %p80 = scmp.eq.s32.totalorder %s13, 0
    %p81 = por %p79, %p80
    %p82 = scmp.ne.s32.totalorder %s68, %s69
    %p83 = scmp.eq.s32.totalorder %s14, 1
    %p84 = por %p82, %p83
    %p86 = scmp.ne.s32.totalorder %s69, %s85
    %p87 = scmp.eq.s32.totalorder %s14, 0
    %p88 = por %p86, %p87
    %p89 = scmp.le.s32.totalorder 1, %s8
    %p90 = scmp.lt.s32.totalorder %s8, 3
    %p91 = pnand %p89, %p90
    %p92 = pneg %p91
    // Predicated region
    $region9: #{preact_resnet_forward.27} parent=5 // pred_check
      _
    $region10: #{preact_resnet_forward.27} parent=5 // pred_check_branch
      %94 = sbr.rel (%p91) target = $region12
    $region11: #{preact_resnet_forward.27} parent=5 // pred_region
      %s95 = ssub.s32 %s8, 1
      // Predicated region
      $region13: #{preact_resnet_forward.27} parent=11 // pred_check
        %p96 = pneg %p55
      $region14: #{preact_resnet_forward.27} parent=11 // pred_check_branch
        %98 = sbr.rel (%p96) target = $region16
      $region15: #{preact_resnet_forward.27} parent=11 // pred_region
        _
      $region16: #{preact_resnet_forward.27} parent=11 // pred_fallthru
        _
    $region12: #{preact_resnet_forward.27} parent=5 // pred_fallthru
      _
    %p99 = scmp.lt.s32.totalorder %s8, 2
    // Predicated region
    $region17: #{preact_resnet_forward.27} parent=5 // pred_check
      %p100 = pneg %p99
    $region18: #{preact_resnet_forward.27} parent=5 // pred_check_branch
      %102 = sbr.rel (%p100) target = $region20
    $region19: #{preact_resnet_forward.27} parent=5 // pred_region
      // Predicated region
      $region21: #{preact_resnet_forward.27} parent=19 // pred_check
        %p103 = pneg %p28
      $region22: #{preact_resnet_forward.27} parent=19 // pred_check_branch
        %105 = sbr.rel (%p103) target = $region24
      $region23: #{preact_resnet_forward.27} parent=19 // pred_region
        %s106 = smul.u32 2, %s8
        %p107 = scmp.lt.s32.totalorder %s106, 3
        %s108 = scalar_select %p107, %s106, 3
        %s109 = smul.addr %s108, 4
        %s110 = scalar_lea.vmem %s0, %s109
        %s111 = smul.u32 2, %s8
      $region24: #{preact_resnet_forward.27} parent=19 // pred_fallthru
        _
    $region20: #{preact_resnet_forward.27} parent=5 // pred_fallthru
      _
    %p112 = scmp.le.s32.totalorder 1, %s8
    %p113 = scmp.lt.s32.totalorder %s8, 3
    %p114 = pnand %p112, %p113
    %p115 = pneg %p114
    // Predicated region
    $region25: #{preact_resnet_forward.27} parent=5 // pred_check
      _
    $region26: #{preact_resnet_forward.27} parent=5 // pred_check_branch
      %117 = sbr.rel (%p114) target = $region28
    $region27: #{preact_resnet_forward.27} parent=5 // pred_region
      %s118 = ssub.s32 %s8, 1
      %s119 = smul.u32 2, %s13
      %p120 = scmp.lt.s32.totalorder %s119, 3
      %s121 = scalar_select %p120, %s119, 3
      %s122 = smul.addr %s121, 4
      %s123 = scalar_lea.vmem %s0, %s122
      %p124 = pneg %p34
      %p125 = pneg %p31
      %p126 = pneg %p55
      %p127 = pneg %p52
      %p128 = pneg %p81
      %p129 = pneg %p78
      %s130 = smul.u32 2, %s13
      %p131 = scmp.lt.s32.totalorder %s130, 3
      %s132 = scalar_select %p131, %s130, 3
      %s133 = smul.addr %s132, 4
      %s134 = scalar_lea.vmem %s2, %s133
      %s135 = smul.u32 2, %s13
      %p136 = scmp.lt.s32.totalorder %s135, 3
      %s137 = scalar_select %p136, %s135, 3
      %s138 = smul.addr %s137, 4
      %s139 = scalar_lea.vmem %s0, %s138
      %s140 = smul.u32 2, %s13
      %s141 = smul.u32 2, %s13
      %p142 = scmp.lt.s32.totalorder %s141, 3
      %s143 = scalar_select %p142, %s141, 3
      %s144 = smul.addr %s143, 4
      %s145 = scalar_lea.vmem %s2, %s144
      %s146 = smul.u32 2, %s13
      %v147 = vld [vmem:[%s139] sm:$0xf]
      %v148 = vld [vmem:[%s139 + $0x4] sm:$0xf]
      %v149 = vld [vmem:[%s1] sm:$0xf]
      %v150 = vld [vmem:[%s1 + $0x4] sm:$0xf]
      %v151 = vld [vmem:[%s1 + $0x8] sm:$0xf]
      %v152 = vld [vmem:[%s1 + $0xc] sm:$0xf]
      %v153 = vld [vmem:[%s1 + $0x10] sm:$0xf]
      %v154 = vld [vmem:[%s1 + $0x14] sm:$0xf]
      %v155 = vld [vmem:[%s1 + $0x18] sm:$0xf]
      %v156 = vld [vmem:[%s1 + $0x1c] sm:$0xf]
      %v157 = vld [vmem:[%s1 + $0x20] sm:$0xf]
      %v158 = vld [vmem:[%s1 + $0x24] sm:$0xf]
      %v159 = vld [vmem:[%s1 + $0x28] sm:$0xf]
      %v160 = vld [vmem:[%s1 + $0x2c] sm:$0xf]
      %v161 = vld [vmem:[%s1 + $0x30] sm:$0xf]
      %v162 = vld [vmem:[%s1 + $0x34] sm:$0xf]
      %v163 = vld [vmem:[%s1 + $0x38] sm:$0xf]
      %v164 = vld [vmem:[%s1 + $0x3c] sm:$0xf]
      %v167 = vunpack.c.l.b16 %v147
      %v168 = vunpack.c.l.b16 %v148
      %v169 = vpack.c.b16 %v168, %v167
      %v187 = vunpack.c.l.b16 %v149
      %v188 = vunpack.c.l.b16 %v150
      %v189 = vunpack.c.l.b16 %v151
      %v190 = vunpack.c.l.b16 %v152
      %v191 = vunpack.c.l.b16 %v153
      %v192 = vunpack.c.l.b16 %v154
      %v193 = vunpack.c.l.b16 %v155
      %v194 = vunpack.c.l.b16 %v156
      %v195 = vunpack.c.l.b16 %v157
      %v196 = vunpack.c.l.b16 %v158
      %v197 = vunpack.c.l.b16 %v159
      %v198 = vunpack.c.l.b16 %v160
      %v199 = vunpack.c.l.b16 %v161
      %v200 = vunpack.c.l.b16 %v162
      %v201 = vunpack.c.l.b16 %v163
      %v202 = vunpack.c.l.b16 %v164
      %v203 = vpack.c.b16 %v188, %v187
      %v204 = vpack.c.b16 %v190, %v189
      %v205 = vpack.c.b16 %v192, %v191
      %v206 = vpack.c.b16 %v194, %v193
      %v207 = vpack.c.b16 %v196, %v195
      %v208 = vpack.c.b16 %v198, %v197
      %v209 = vpack.c.b16 %v200, %v199
      %v210 = vpack.c.b16 %v202, %v201
      %219 = vmatpush.bf16.msra.mxu0 %v210
      %220 = vmatpush.bf16.msra.mxu0 %v209
      %221 = vmatpush.bf16.msra.mxu0 %v208
      %222 = vmatpush.bf16.msra.mxu0 %v207
      %223 = vmatpush.bf16.msra.mxu0 %v206
      %224 = vmatpush.bf16.msra.mxu0 %v205
      %225 = vmatpush.bf16.msra.mxu0 %v204
      %226 = vmatpush.bf16.msra.mxu0 %v203
      %227 = vmatmul.bf16.gmra.mxu0 %v169
      %v228 = vpop.f32.mrf.mxu0
      %v229 = vadd.f32 0.0, %v228
      %v230 = vpop.f32.mrf.mxu0
      %v231 = vadd.f32 0.0, %v230
      %232 = vdwg.mxu0
      %v233 = vpack.c.bf16 %v229, %v229
      %v234 = vpack.c.bf16 %v231, %v231
      %235 = vst [vmem:[%s145] sm:$0xf] %v233
      %236 = vst [vmem:[%s145 + $0x4] sm:$0xf] %v234
      %s237 = smul.u32 2, %s13
      %p238 = scmp.lt.s32.totalorder %s237, 3
      %s239 = scalar_select %p238, %s237, 3
      %s240 = smul.addr %s239, 4
      %s241 = scalar_lea.vmem %s2, %s240
      // Predicated region
      $region29: #{preact_resnet_forward.27} parent=27 // pred_check
        %p242 = pneg %p78
      $region30: #{preact_resnet_forward.27} parent=27 // pred_check_branch
        %244 = sbr.rel (%p242) target = $region32
      $region31: #{preact_resnet_forward.27} parent=27 // pred_region
        %s245 = smul.u32 2, %s13
      $region32: #{preact_resnet_forward.27} parent=27 // pred_fallthru
        _
    $region28: #{preact_resnet_forward.27} parent=5 // pred_fallthru
      _
    %p246 = scmp.le.s32.totalorder 2, %s8
    // Predicated region
    $region33: #{preact_resnet_forward.27} parent=5 // pred_check
      %p247 = pneg %p246
    $region34: #{preact_resnet_forward.27} parent=5 // pred_check_branch
      %249 = sbr.rel (%p247) target = $region36
    $region35: #{preact_resnet_forward.27} parent=5 // pred_region
      %s250 = ssub.s32 %s8, 2
      // Predicated region
      $region37: #{preact_resnet_forward.27} parent=35 // pred_check
        %p251 = pneg %p84
      $region38: #{preact_resnet_forward.27} parent=35 // pred_check_branch
        %253 = sbr.rel (%p251) target = $region40
      $region39: #{preact_resnet_forward.27} parent=35 // pred_region
        %s254 = smul.u32 2, %s14
        %p255 = scmp.lt.s32.totalorder %s254, 3
        %s256 = scalar_select %p255, %s254, 3
        %s257 = smul.addr %s256, 4
        %s258 = scalar_lea.vmem %s2, %s257
      $region40: #{preact_resnet_forward.27} parent=35 // pred_fallthru
        _
    $region36: #{preact_resnet_forward.27} parent=5 // pred_fallthru
      _
  $region6: #{preact_resnet_forward.27} parent=0 // loop_footer
    %s12 = sadd.s32 1, %s8
  $region7: #{preact_resnet_forward.27} parent=0 // loop_footer_branch
    %7 = sbr.rel target = $region3
  $region8: #{preact_resnet_forward.27} parent=0 // loop_exit
    _

// kernel: preact_resnet_forward.25
$region0: #{preact_resnet_forward.25}
  #allocation0 [shape = 'u32[]', space=smem, size = 0x4, offset = 0x4, fixed_abs, tag = 'smem constant byte address 0x4 - core index']
  #allocation1 [shape = 'u32[72,128]{1,0:T(1,128)}', space=vmem, size = 0x9000, scoped, tag = 'internal scratch']
  %s0 = inlined_call_operand.vmem [shape: bf16[128,384], index: 0, kind: input, shape index: {}]
  %s1 = inlined_call_operand.vmem [shape: bf16[384,128], index: 1, kind: input, shape index: {}]
  %s2 = inlined_call_operand.vmem [shape: bf16[128,128], index: 2, kind: input, shape index: {}]
  %s3 = inlined_call_operand.vmem [shape: bf16[128,128], index: 3, kind: output, shape index: {0}]
  %s4 = inlined_call_operand.vmem [shape: f32[16,128], index: 4, kind: output, shape index: {1}]
  %s5 = inlined_call_operand.vmem [shape: f32[16,128], index: 5, kind: output, shape index: {2}]
  %6 = xla_tuple %s3, %s4, %s5
  %s7 = sld [smem:[#allocation0]]
  $region61: #{preact_resnet_forward.25} parent=0
    _
  %s9 = ssub.s32 1, %s7
  %s10 = scalar_select 0, %s9, %s7
  loop: start=0, step=1, limit=4
  $region2: #{preact_resnet_forward.25} parent=0 // loop_pre_header
    _
  $region3: #{preact_resnet_forward.25} parent=0 // loop_header
    %s12 = sphi 0, %s16
    %p13 = scmp.ge.s32.totalorder %s12, 4
    %s22 = sphi 0, %s24
    %s25 = sphi 0, %s22
    %s26 = sphi 0, %s25
    %s42 = sphi 0, %s26
    %s46 = sphi 0, %s46
    %s48 = sphi 0, %s46
    %s49 = sphi 0, %s48
    %s63 = sphi 0, %s49
    %s69 = sphi 0, %s71
    %s72 = sphi 0, %s69
    %s73 = sphi 0, %s72
    %s89 = sphi 0, %s73
    %s95 = sphi 0, %s97
    %s98 = sphi 0, %s95
    %s99 = sphi 0, %s98
    %s115 = sphi 0, %s99
    %s121 = sphi 0, %s123
    %s124 = sphi 0, %s121
    %s125 = sphi 0, %s124
    %s141 = sphi 0, %s125
    %s147 = sphi 0, %s149
    %s150 = sphi 0, %s147
    %s151 = sphi 0, %s150
    %s167 = sphi 0, %s151
  $region4: #{preact_resnet_forward.25} parent=0 // loop_header_branch
    %15 = sbr.rel (%p13) target = $region8
  $region5: #{preact_resnet_forward.25} parent=0 // loop_body
    %s17 = ssub.s32 %s12, 1
    %s18 = ssub.s32 %s12, 2
    %s19 = sadd.s32 %s12, 1
    %s20 = ssub.s32 %s12, %s19
    %p21 = scmp.eq.s32.totalorder %s20, 0
    %s23 = sadd.s32 %s22, 1
    %s24 = scalar_select %p21, %s22, %s23
    %p27 = pneg %p21
    %p28 = scmp.eq.s32.totalorder %s12, 1
    %p29 = por %p27, %p28
    %p30 = scmp.ne.s32.totalorder %s22, %s25
    %p31 = scmp.eq.s32.totalorder %s12, 0
    %p32 = por %p30, %p31
    %p33 = scmp.ne.s32.totalorder %s22, %s25
    %p34 = scmp.eq.s32.totalorder %s17, 1
    %p35 = por %p33, %p34
    %p36 = scmp.ne.s32.totalorder %s25, %s26
    %p37 = scmp.eq.s32.totalorder %s17, 0
    %p38 = por %p36, %p37
    %p39 = scmp.ne.s32.totalorder %s25, %s26
    %p40 = scmp.eq.s32.totalorder %s18, 1
    %p41 = por %p39, %p40
    %p43 = scmp.ne.s32.totalorder %s26, %s42
    %p44 = scmp.eq.s32.totalorder %s18, 0
    %p45 = por %p43, %p44
    %s47 = sadd.s32 %s46, 1
    %p50 = scmp.eq.s32.totalorder %s12, 1
    %p51 = scmp.ne.s32.totalorder %s46, %s48
    %p52 = scmp.eq.s32.totalorder %s12, 0
    %p53 = por %p51, %p52
    %p54 = scmp.ne.s32.totalorder %s46, %s48
    %p55 = scmp.eq.s32.totalorder %s17, 1
    %p56 = por %p54, %p55
    %p57 = scmp.ne.s32.totalorder %s48, %s49
    %p58 = scmp.eq.s32.totalorder %s17, 0
    %p59 = por %p57, %p58
    %p60 = scmp.ne.s32.totalorder %s48, %s49
    %p61 = scmp.eq.s32.totalorder %s18, 1
    %p62 = por %p60, %p61
    %p64 = scmp.ne.s32.totalorder %s49, %s63
    %p65 = scmp.eq.s32.totalorder %s18, 0
    %p66 = por %p64, %p65
    %s67 = ssub.s32 %s12, %s19
    %p68 = scmp.eq.s32.totalorder %s67, 0
    %s70 = sadd.s32 %s69, 1
    %s71 = scalar_select %p68, %s69, %s70
    %p74 = pneg %p68
    %p75 = scmp.eq.s32.totalorder %s12, 1
    %p76 = por %p74, %p75
    %p77 = scmp.ne.s32.totalorder %s69, %s72
    %p78 = scmp.eq.s32.totalorder %s12, 0
    %p79 = por %p77, %p78
    %p80 = scmp.ne.s32.totalorder %s69, %s72
    %p81 = scmp.eq.s32.totalorder %s17, 1
    %p82 = por %p80, %p81
    %p83 = scmp.ne.s32.totalorder %s72, %s73
    %p84 = scmp.eq.s32.totalorder %s17, 0
    %p85 = por %p83, %p84
    %p86 = scmp.ne.s32.totalorder %s72, %s73
    %p87 = scmp.eq.s32.totalorder %s18, 1
    %p88 = por %p86, %p87
    %p90 = scmp.ne.s32.totalorder %s73, %s89
    %p91 = scmp.eq.s32.totalorder %s18, 0
    %p92 = por %p90, %p91
    %s93 = ssub.s32 %s12, %s19
    %p94 = scmp.eq.s32.totalorder %s93, 0
    %s96 = sadd.s32 %s95, 1
    %s97 = scalar_select %p94, %s95, %s96
    %p100 = pneg %p94
    %p101 = scmp.eq.s32.totalorder %s12, 1
    %p102 = por %p100, %p101
    %p103 = scmp.ne.s32.totalorder %s95, %s98
    %p104 = scmp.eq.s32.totalorder %s12, 0
    %p105 = por %p103, %p104
    %p106 = scmp.ne.s32.totalorder %s95, %s98
    %p107 = scmp.eq.s32.totalorder %s17, 1
    %p108 = por %p106, %p107
    %p109 = scmp.ne.s32.totalorder %s98, %s99
    %p110 = scmp.eq.s32.totalorder %s17, 0
    %p111 = por %p109, %p110
    %p112 = scmp.ne.s32.totalorder %s98, %s99
    %p113 = scmp.eq.s32.totalorder %s18, 1
    %p114 = por %p112, %p113
    %p116 = scmp.ne.s32.totalorder %s99, %s115
    %p117 = scmp.eq.s32.totalorder %s18, 0
    %p118 = por %p116, %p117
    %s119 = ssub.s32 %s12, %s19
    %p120 = scmp.eq.s32.totalorder %s119, 0
    %s122 = sadd.s32 %s121, 1
    %s123 = scalar_select %p120, %s121, %s122
    %p126 = pneg %p120
    %p127 = scmp.eq.s32.totalorder %s12, 1
    %p128 = por %p126, %p127
    %p129 = scmp.ne.s32.totalorder %s121, %s124
    %p130 = scmp.eq.s32.totalorder %s12, 0
    %p131 = por %p129, %p130
    %p132 = scmp.ne.s32.totalorder %s121, %s124
    %p133 = scmp.eq.s32.totalorder %s17, 1
    %p134 = por %p132, %p133
    %p135 = scmp.ne.s32.totalorder %s124, %s125
    %p136 = scmp.eq.s32.totalorder %s17, 0
    %p137 = por %p135, %p136
    %p138 = scmp.ne.s32.totalorder %s124, %s125
    %p139 = scmp.eq.s32.totalorder %s18, 1
    %p140 = por %p138, %p139
    %p142 = scmp.ne.s32.totalorder %s125, %s141
    %p143 = scmp.eq.s32.totalorder %s18, 0
    %p144 = por %p142, %p143
    %s145 = ssub.s32 %s12, %s19
    %p146 = scmp.eq.s32.totalorder %s145, 0
    %s148 = sadd.s32 %s147, 1
    %s149 = scalar_select %p146, %s147, %s148
    %p152 = pneg %p146
    %p153 = scmp.eq.s32.totalorder %s12, 1
    %p154 = por %p152, %p153
    %p155 = scmp.ne.s32.totalorder %s147, %s150
    %p156 = scmp.eq.s32.totalorder %s12, 0
    %p157 = por %p155, %p156
    %p158 = scmp.ne.s32.totalorder %s147, %s150
    %p159 = scmp.eq.s32.totalorder %s17, 1
    %p160 = por %p158, %p159
    %p161 = scmp.ne.s32.totalorder %s150, %s151
    %p162 = scmp.eq.s32.totalorder %s17, 0
    %p163 = por %p161, %p162
    %p164 = scmp.ne.s32.totalorder %s150, %s151
    %p165 = scmp.eq.s32.totalorder %s18, 1
    %p166 = por %p164, %p165
    %p168 = scmp.ne.s32.totalorder %s151, %s167
    %p169 = scmp.eq.s32.totalorder %s18, 0
    %p170 = por %p168, %p169
    %p171 = scmp.le.s32.totalorder 1, %s12
    %p172 = scmp.lt.s32.totalorder %s12, 3
    %p173 = pnand %p171, %p172
    %p174 = pneg %p173
    // Predicated region
    $region9: #{preact_resnet_forward.25} parent=5 // pred_check
      _
    $region10: #{preact_resnet_forward.25} parent=5 // pred_check_branch
      %176 = sbr.rel (%p173) target = $region12
    $region11: #{preact_resnet_forward.25} parent=5 // pred_region
      %s177 = ssub.s32 %s12, 1
      // Predicated region
      $region13: #{preact_resnet_forward.25} parent=11 // pred_check
        %p178 = pneg %p59
      $region14: #{preact_resnet_forward.25} parent=11 // pred_check_branch
        %180 = sbr.rel (%p178) target = $region16
      $region15: #{preact_resnet_forward.25} parent=11 // pred_region
        _
      $region16: #{preact_resnet_forward.25} parent=11 // pred_fallthru
        _
    $region12: #{preact_resnet_forward.25} parent=5 // pred_fallthru
      _
    %p181 = scmp.lt.s32.totalorder %s12, 2
    // Predicated region
    $region17: #{preact_resnet_forward.25} parent=5 // pred_check
      %p182 = pneg %p181
    $region18: #{preact_resnet_forward.25} parent=5 // pred_check_branch
      %184 = sbr.rel (%p182) target = $region20
    $region19: #{preact_resnet_forward.25} parent=5 // pred_region
      // Predicated region
      $region21: #{preact_resnet_forward.25} parent=19 // pred_check
        %p185 = pneg %p32
      $region22: #{preact_resnet_forward.25} parent=19 // pred_check_branch
        %187 = sbr.rel (%p185) target = $region24
      $region23: #{preact_resnet_forward.25} parent=19 // pred_region
        %s188 = smul.u32 8, %s12
        %p189 = scmp.lt.s32.totalorder %s188, 15
        %s190 = scalar_select %p189, %s188, 15
        %s191 = smul.addr %s190, 3
        %s192 = smul.addr %s191, 4
        %s193 = scalar_lea.vmem %s0, %s192
        %s194 = smul.u32 8, %s12
      $region24: #{preact_resnet_forward.25} parent=19 // pred_fallthru
        _
      // Predicated region
      $region25: #{preact_resnet_forward.25} parent=19 // pred_check
        %p195 = pneg %p79
      $region26: #{preact_resnet_forward.25} parent=19 // pred_check_branch
        %197 = sbr.rel (%p195) target = $region28
      $region27: #{preact_resnet_forward.25} parent=19 // pred_region
        %s198 = smul.u32 8, %s12
        %p199 = scmp.lt.s32.totalorder %s198, 15
        %s200 = scalar_select %p199, %s198, 15
        %s201 = smul.addr %s200, 4
        %s202 = scalar_lea.vmem %s2, %s201
        %s203 = smul.u32 8, %s12
      $region28: #{preact_resnet_forward.25} parent=19 // pred_fallthru
        _
    $region20: #{preact_resnet_forward.25} parent=5 // pred_fallthru
      _
    %p204 = scmp.le.s32.totalorder 1, %s12
    %p205 = scmp.lt.s32.totalorder %s12, 3
    %p206 = pnand %p204, %p205
    %p207 = pneg %p206
    // Predicated region
    $region29: #{preact_resnet_forward.25} parent=5 // pred_check
      _
    $region30: #{preact_resnet_forward.25} parent=5 // pred_check_branch
      %209 = sbr.rel (%p206) target = $region32
    $region31: #{preact_resnet_forward.25} parent=5 // pred_region
      %s210 = ssub.s32 %s12, 1
      %s211 = smul.u32 8, %s17
      %p212 = scmp.lt.s32.totalorder %s211, 15
      %s213 = scalar_select %p212, %s211, 15
      %s214 = smul.addr %s213, 3
      %s215 = smul.addr %s214, 4
      %s216 = scalar_lea.vmem %s0, %s215
      %p217 = pneg %p38
      %p218 = pneg %p35
      %p219 = pneg %p59
      %p220 = pneg %p56
      %s221 = smul.u32 8, %s17
      %p222 = scmp.lt.s32.totalorder %s221, 15
      %s223 = scalar_select %p222, %s221, 15
      %s224 = smul.addr %s223, 4
      %s225 = scalar_lea.vmem %s2, %s224
      %p226 = pneg %p85
      %p227 = pneg %p82
      %p228 = pneg %p111
      %p229 = pneg %p108
      %s230 = smul.u32 8, %s17
      %p231 = scmp.lt.s32.totalorder %s230, 15
      %s232 = scalar_select %p231, %s230, 15
      %s233 = smul.addr %s232, 4
      %s234 = scalar_lea.vmem %s3, %s233
      %p235 = pneg %p137
      %p236 = pneg %p134
      %p237 = scmp.lt.s32.totalorder %s17, 1
      %s238 = scalar_select %p237, %s17, 1
      %s239 = smul.addr %s238, 8
      %s240 = scalar_lea.vmem %s4, %s239
      %p241 = pneg %p163
      %p242 = pneg %p160
      %p243 = scmp.lt.s32.totalorder %s17, 1
      %s244 = scalar_select %p243, %s17, 1
      %s245 = smul.addr %s244, 8
      %s246 = scalar_lea.vmem %s5, %s245
      %s247 = smul.u32 8, %s17
      %p248 = scmp.lt.s32.totalorder %s247, 15
      %s249 = scalar_select %p248, %s247, 15
      %s250 = smul.addr %s249, 3
      %s251 = smul.addr %s250, 4
      %s252 = scalar_lea.vmem %s0, %s251
      %s253 = smul.u32 8, %s17
      %s254 = smul.u32 8, %s17
      %p255 = scmp.lt.s32.totalorder %s254, 15
      %s256 = scalar_select %p255, %s254, 15
      %s257 = smul.addr %s256, 4
      %s258 = scalar_lea.vmem %s2, %s257
      %s259 = smul.u32 8, %s17
      %s260 = smul.u32 8, %s17
      %p261 = scmp.lt.s32.totalorder %s260, 15
      %s262 = scalar_select %p261, %s260, 15
      %s263 = smul.addr %s262, 4
      %s264 = scalar_lea.vmem %s3, %s263
      %s265 = smul.u32 8, %s17
      %p266 = scmp.lt.s32.totalorder %s17, 1
      %s267 = scalar_select %p266, %s17, 1
      %s268 = smul.addr %s267, 8
      %s269 = scalar_lea.vmem %s4, %s268
      %p270 = scmp.lt.s32.totalorder %s17, 1
      %s271 = scalar_select %p270, %s17, 1
      %s272 = smul.addr %s271, 8
      %s273 = scalar_lea.vmem %s5, %s272
      %v274 = vld [vmem:[%s252] sm:$0xff]
      %v275 = vld [vmem:[%s252 + $0x8] sm:$0xf]
      %v276 = vld [vmem:[%s252 + $0xc] sm:$0xff]
      %v277 = vld [vmem:[%s252 + $0x14] sm:$0xf]
      %v278 = vld [vmem:[%s252 + $0x18] sm:$0xff]
      %v279 = vld [vmem:[%s252 + $0x20] sm:$0xf]
      %v280 = vld [vmem:[%s252 + $0x24] sm:$0xff]
      %v281 = vld [vmem:[%s252 + $0x2c] sm:$0xf]
      %v282 = vld [vmem:[%s252 + $0x30] sm:$0xff]
      %v283 = vld [vmem:[%s252 + $0x38] sm:$0xf]
      %v284 = vld [vmem:[%s252 + $0x3c] sm:$0xff]
      %v285 = vld [vmem:[%s252 + $0x44] sm:$0xf]
      %v286 = vld [vmem:[%s252 + $0x48] sm:$0xff]
      %v287 = vld [vmem:[%s252 + $0x50] sm:$0xf]
      %v288 = vld [vmem:[%s252 + $0x54] sm:$0xff]
      %v289 = vld [vmem:[%s252 + $0x5c] sm:$0xf]
      %v290 = vld [vmem:[%s1] sm:$0xf]
      %v291 = vld [vmem:[%s1 + $0x4] sm:$0xf]
      %v292 = vld [vmem:[%s1 + $0x8] sm:$0xf]
      %v293 = vld [vmem:[%s1 + $0xc] sm:$0xf]
      %v294 = vld [vmem:[%s1 + $0x10] sm:$0xf]
      %v295 = vld [vmem:[%s1 + $0x14] sm:$0xf]
      %v296 = vld [vmem:[%s1 + $0x18] sm:$0xf]
      %v297 = vld [vmem:[%s1 + $0x1c] sm:$0xf]
      %v298 = vld [vmem:[%s1 + $0x20] sm:$0xf]
      %v299 = vld [vmem:[%s1 + $0x24] sm:$0xf]
      %v300 = vld [vmem:[%s1 + $0x28] sm:$0xf]
      %v301 = vld [vmem:[%s1 + $0x2c] sm:$0xf]
      %v302 = vld [vmem:[%s1 + $0x30] sm:$0xf]
      %v303 = vld [vmem:[%s1 + $0x34] sm:$0xf]
      %v304 = vld [vmem:[%s1 + $0x38] sm:$0xf]
      %v305 = vld [vmem:[%s1 + $0x3c] sm:$0xf]
      %v306 = vld [vmem:[%s1 + $0x40] sm:$0xf]
      %v307 = vld [vmem:[%s1 + $0x44] sm:$0xf]
      %v308 = vld [vmem:[%s1 + $0x48] sm:$0xf]
      %v309 = vld [vmem:[%s1 + $0x4c] sm:$0xf]
      %v310 = vld [vmem:[%s1 + $0x50] sm:$0xf]
      %v311 = vld [vmem:[%s1 + $0x54] sm:$0xf]
      %v312 = vld [vmem:[%s1 + $0x58] sm:$0xf]
      %v313 = vld [vmem:[%s1 + $0x5c] sm:$0xf]
      %v314 = vld [vmem:[%s1 + $0x60] sm:$0xf]
      %v315 = vld [vmem:[%s1 + $0x64] sm:$0xf]
      %v316 = vld [vmem:[%s1 + $0x68] sm:$0xf]
      %v317 = vld [vmem:[%s1 + $0x6c] sm:$0xf]
      %v318 = vld [vmem:[%s1 + $0x70] sm:$0xf]
      %v319 = vld [vmem:[%s1 + $0x74] sm:$0xf]
      %v320 = vld [vmem:[%s1 + $0x78] sm:$0xf]
      %v321 = vld [vmem:[%s1 + $0x7c] sm:$0xf]
      %v322 = vld [vmem:[%s1 + $0x80] sm:$0xf]
      %v323 = vld [vmem:[%s1 + $0x84] sm:$0xf]
      %v324 = vld [vmem:[%s1 + $0x88] sm:$0xf]
      %v325 = vld [vmem:[%s1 + $0x8c] sm:$0xf]
      %v326 = vld [vmem:[%s1 + $0x90] sm:$0xf]
      %v327 = vld [vmem:[%s1 + $0x94] sm:$0xf]
      %v328 = vld [vmem:[%s1 + $0x98] sm:$0xf]
      %v329 = vld [vmem:[%s1 + $0x9c] sm:$0xf]
      %v330 = vld [vmem:[%s1 + $0xa0] sm:$0xf]
      %v331 = vld [vmem:[%s1 + $0xa4] sm:$0xf]
      %v332 = vld [vmem:[%s1 + $0xa8] sm:$0xf]
      %v333 = vld [vmem:[%s1 + $0xac] sm:$0xf]
      %v334 = vld [vmem:[%s1 + $0xb0] sm:$0xf]
      %v335 = vld [vmem:[%s1 + $0xb4] sm:$0xf]
      %v336 = vld [vmem:[%s1 + $0xb8] sm:$0xf]
      %v337 = vld [vmem:[%s1 + $0xbc] sm:$0xf]
      %v338 = vld [vmem:[%s258] sm:$0xf]
      %v339 = vld [vmem:[%s258 + $0x4] sm:$0xf]
      %v340 = vld [vmem:[%s258 + $0x8] sm:$0xf]
      %v341 = vld [vmem:[%s258 + $0xc] sm:$0xf]
      %v342 = vld [vmem:[%s258 + $0x10] sm:$0xf]
      %v343 = vld [vmem:[%s258 + $0x14] sm:$0xf]
      %v344 = vld [vmem:[%s258 + $0x18] sm:$0xf]
      %v345 = vld [vmem:[%s258 + $0x1c] sm:$0xf]
      %v346 = vunpack.c.l.bf16 %v338
      %v347 = vunpack.c.l.bf16 %v339
      %v348 = vunpack.c.l.bf16 %v340
      %v349 = vunpack.c.l.bf16 %v341
      %v350 = vunpack.c.l.bf16 %v342
      %v351 = vunpack.c.l.bf16 %v343
      %v352 = vunpack.c.l.bf16 %v344
      %v353 = vunpack.c.l.bf16 %v345
      %v370 = vunpack.c.l.b16 %v274
      %v371 = vunpack.c.h.b16 %v274
      %v372 = vunpack.c.l.b16 %v275
      %v373 = vunpack.c.l.b16 %v276
      %v374 = vunpack.c.h.b16 %v276
      %v375 = vunpack.c.l.b16 %v277
      %v376 = vunpack.c.l.b16 %v278
      %v377 = vunpack.c.h.b16 %v278
      %v378 = vunpack.c.l.b16 %v279
      %v379 = vunpack.c.l.b16 %v280
      %v380 = vunpack.c.h.b16 %v280
      %v381 = vunpack.c.l.b16 %v281
      %v382 = vunpack.c.l.b16 %v282
      %v383 = vunpack.c.h.b16 %v282
      %v384 = vunpack.c.l.b16 %v283
      %v385 = vunpack.c.l.b16 %v284
      %v386 = vunpack.c.h.b16 %v284
      %v387 = vunpack.c.l.b16 %v285
      %v388 = vunpack.c.l.b16 %v286
      %v389 = vunpack.c.h.b16 %v286
      %v390 = vunpack.c.l.b16 %v287
      %v391 = vunpack.c.l.b16 %v288
      %v392 = vunpack.c.h.b16 %v288
      %v393 = vunpack.c.l.b16 %v289
      %v394 = vpack.c.b16 %v373, %v370
      %v395 = vpack.c.b16 %v374, %v371
      %v396 = vpack.c.b16 %v375, %v372
      %v397 = vpack.c.b16 %v379, %v376
      %v398 = vpack.c.b16 %v380, %v377
      %v399 = vpack.c.b16 %v381, %v378
      %v400 = vpack.c.b16 %v385, %v382
      %v401 = vpack.c.b16 %v386, %v383
      %v402 = vpack.c.b16 %v387, %v384
      %v403 = vpack.c.b16 %v391, %v388
      %v404 = vpack.c.b16 %v392, %v389
      %v405 = vpack.c.b16 %v393, %v390
      %v466 = vunpack.c.l.b16 %v290
      %v467 = vunpack.c.l.b16 %v291
      %v468 = vunpack.c.l.b16 %v292
      %v469 = vunpack.c.l.b16 %v293
      %v470 = vunpack.c.l.b16 %v294
      %v471 = vunpack.c.l.b16 %v295
      %v472 = vunpack.c.l.b16 %v296
      %v473 = vunpack.c.l.b16 %v297
      %v474 = vunpack.c.l.b16 %v298
      %v475 = vunpack.c.l.b16 %v299
      %v476 = vunpack.c.l.b16 %v300
      %v477 = vunpack.c.l.b16 %v301
      %v478 = vunpack.c.l.b16 %v302
      %v479 = vunpack.c.l.b16 %v303
      %v480 = vunpack.c.l.b16 %v304
      %v481 = vunpack.c.l.b16 %v305
      %v482 = vunpack.c.l.b16 %v306
      %v483 = vunpack.c.l.b16 %v307
      %v484 = vunpack.c.l.b16 %v308
      %v485 = vunpack.c.l.b16 %v309
      %v486 = vunpack.c.l.b16 %v310
      %v487 = vunpack.c.l.b16 %v311
      %v488 = vunpack.c.l.b16 %v312
      %v489 = vunpack.c.l.b16 %v313
      %v490 = vunpack.c.l.b16 %v314
      %v491 = vunpack.c.l.b16 %v315
      %v492 = vunpack.c.l.b16 %v316
      %v493 = vunpack.c.l.b16 %v317
      %v494 = vunpack.c.l.b16 %v318
      %v495 = vunpack.c.l.b16 %v319
      %v496 = vunpack.c.l.b16 %v320
      %v497 = vunpack.c.l.b16 %v321
      %v498 = vunpack.c.l.b16 %v322
      %v499 = vunpack.c.l.b16 %v323
      %v500 = vunpack.c.l.b16 %v324
      %v501 = vunpack.c.l.b16 %v325
      %v502 = vunpack.c.l.b16 %v326
      %v503 = vunpack.c.l.b16 %v327
      %v504 = vunpack.c.l.b16 %v328
      %v505 = vunpack.c.l.b16 %v329
      %v506 = vunpack.c.l.b16 %v330
      %v507 = vunpack.c.l.b16 %v331
      %v508 = vunpack.c.l.b16 %v332
      %v509 = vunpack.c.l.b16 %v333
      %v510 = vunpack.c.l.b16 %v334
      %v511 = vunpack.c.l.b16 %v335
      %v512 = vunpack.c.l.b16 %v336
      %v513 = vunpack.c.l.b16 %v337
      %v514 = vpack.c.b16 %v467, %v466
      %v515 = vpack.c.b16 %v469, %v468
      %v516 = vpack.c.b16 %v471, %v470
      %v517 = vpack.c.b16 %v473, %v472
      %v518 = vpack.c.b16 %v475, %v474
      %v519 = vpack.c.b16 %v477, %v476
      %v520 = vpack.c.b16 %v479, %v478
      %v521 = vpack.c.b16 %v481, %v480
      %v522 = vpack.c.b16 %v483, %v482
      %v523 = vpack.c.b16 %v485, %v484
      %v524 = vpack.c.b16 %v487, %v486
      %v525 = vpack.c.b16 %v489, %v488
      %v526 = vpack.c.b16 %v491, %v490
      %v527 = vpack.c.b16 %v493, %v492
      %v528 = vpack.c.b16 %v495, %v494
      %v529 = vpack.c.b16 %v497, %v496
      %v530 = vpack.c.b16 %v499, %v498
      %v531 = vpack.c.b16 %v501, %v500
      %v532 = vpack.c.b16 %v503, %v502
      %v533 = vpack.c.b16 %v505, %v504
      %v534 = vpack.c.b16 %v507, %v506
      %v535 = vpack.c.b16 %v509, %v508
      %v536 = vpack.c.b16 %v511, %v510
      %v537 = vpack.c.b16 %v513, %v512
      %562 = vmatpush.bf16.msra.mxu0 %v521
      %563 = vmatpush.bf16.msra.mxu0 %v520
      %564 = vmatpush.bf16.msra.mxu0 %v519
      %565 = vmatpush.bf16.msra.mxu0 %v518
      %566 = vmatpush.bf16.msra.mxu0 %v517
      %567 = vmatpush.bf16.msra.mxu0 %v516
      %568 = vmatpush.bf16.msra.mxu0 %v515
      %569 = vmatpush.bf16.msra.mxu0 %v514
      %570 = vmatmul.bf16.gmra.mxu0 %v394
      %v571 = vpop.f32.mrf.mxu0
      %v572 = vadd.f32 %v346, %v571
      %v573 = vpop.f32.mrf.mxu0
      %v574 = vadd.f32 %v347, %v573
      %575 = vmatmul.bf16.gmra.mxu0 %v397
      %v576 = vpop.f32.mrf.mxu0
      %v577 = vadd.f32 %v348, %v576
      %v578 = vpop.f32.mrf.mxu0
      %v579 = vadd.f32 %v349, %v578
      %580 = vmatmul.bf16.gmra.mxu0 %v400
      %v581 = vpop.f32.mrf.mxu0
      %v582 = vadd.f32 %v350, %v581
      %v583 = vpop.f32.mrf.mxu0
      %v584 = vadd.f32 %v351, %v583
      %585 = vmatmul.bf16.gmra.mxu0 %v403
      %v586 = vpop.f32.mrf.mxu0
      %v587 = vadd.f32 %v352, %v586
      %v588 = vpop.f32.mrf.mxu0
      %v589 = vadd.f32 %v353, %v588
      %590 = vdwg.mxu0
      %591 = vmatpush.bf16.msra.mxu0 %v529
      %592 = vmatpush.bf16.msra.mxu0 %v528
      %593 = vmatpush.bf16.msra.mxu0 %v527
      %594 = vmatpush.bf16.msra.mxu0 %v526
      %595 = vmatpush.bf16.msra.mxu0 %v525
      %596 = vmatpush.bf16.msra.mxu0 %v524
      %597 = vmatpush.bf16.msra.mxu0 %v523
      %598 = vmatpush.bf16.msra.mxu0 %v522
      %599 = vmatmul.bf16.gmra.mxu0 %v395
      %v600 = vpop.f32.mrf.mxu0
      %v601 = vadd.f32 %v572, %v600
      %v602 = vpop.f32.mrf.mxu0
      %v603 = vadd.f32 %v574, %v602
      %604 = vmatmul.bf16.gmra.mxu0 %v398
      %v605 = vpop.f32.mrf.mxu0
      %v606 = vadd.f32 %v577, %v605
      %v607 = vpop.f32.mrf.mxu0
      %v608 = vadd.f32 %v579, %v607
      %609 = vmatmul.bf16.gmra.mxu0 %v401
      %v610 = vpop.f32.mrf.mxu0
      %v611 = vadd.f32 %v582, %v610
      %v612 = vpop.f32.mrf.mxu0
      %v613 = vadd.f32 %v584, %v612
      %614 = vmatmul.bf16.gmra.mxu0 %v404
      %v615 = vpop.f32.mrf.mxu0
      %v616 = vadd.f32 %v587, %v615
      %v617 = vpop.f32.mrf.mxu0
      %v618 = vadd.f32 %v589, %v617
      %619 = vdwg.mxu0
      %620 = vmatpush.bf16.msra.mxu0 %v537
      %621 = vmatpush.bf16.msra.mxu0 %v536
      %622 = vmatpush.bf16.msra.mxu0 %v535
      %623 = vmatpush.bf16.msra.mxu0 %v534
      %624 = vmatpush.bf16.msra.mxu0 %v533
      %625 = vmatpush.bf16.msra.mxu0 %v532
      %626 = vmatpush.bf16.msra.mxu0 %v531
      %627 = vmatpush.bf16.msra.mxu0 %v530
      %628 = vmatmul.bf16.gmra.mxu0 %v396
      %v629 = vpop.f32.mrf.mxu0
      %v630 = vadd.f32 %v601, %v629
      %v631 = vpop.f32.mrf.mxu0
      %v632 = vadd.f32 %v603, %v631
      %633 = vmatmul.bf16.gmra.mxu0 %v399
      %v634 = vpop.f32.mrf.mxu0
      %v635 = vadd.f32 %v606, %v634
      %v636 = vpop.f32.mrf.mxu0
      %v637 = vadd.f32 %v608, %v636
      %638 = vmatmul.bf16.gmra.mxu0 %v402
      %v639 = vpop.f32.mrf.mxu0
      %v640 = vadd.f32 %v611, %v639
      %v641 = vpop.f32.mrf.mxu0
      %v642 = vadd.f32 %v613, %v641
      %643 = vmatmul.bf16.gmra.mxu0 %v405
      %v644 = vpop.f32.mrf.mxu0
      %v645 = vadd.f32 %v616, %v644
      %v646 = vpop.f32.mrf.mxu0
      %v647 = vadd.f32 %v618, %v646
      %648 = vdwg.mxu0
      %v649 = vpack.c.bf16 %v630, %v630
      %v650 = vpack.c.bf16 %v632, %v632
      %v651 = vpack.c.bf16 %v635, %v635
      %v652 = vpack.c.bf16 %v637, %v637
      %v653 = vpack.c.bf16 %v640, %v640
      %v654 = vpack.c.bf16 %v642, %v642
      %v655 = vpack.c.bf16 %v645, %v645
      %v656 = vpack.c.bf16 %v647, %v647
      %657 = vst [vmem:[%s264] sm:$0xf] %v649
      %658 = vst [vmem:[%s264 + $0x4] sm:$0xf] %v650
      %659 = vst [vmem:[%s264 + $0x8] sm:$0xf] %v651
      %660 = vst [vmem:[%s264 + $0xc] sm:$0xf] %v652
      %661 = vst [vmem:[%s264 + $0x10] sm:$0xf] %v653
      %662 = vst [vmem:[%s264 + $0x14] sm:$0xf] %v654
      %663 = vst [vmem:[%s264 + $0x18] sm:$0xf] %v655
      %664 = vst [vmem:[%s264 + $0x1c] sm:$0xf] %v656
      %v665 = vlaneseq
      %v666 = vshrl.u32 %v665, 7
      %vm667 = vcmp.eq.s32.totalorder %v666, 0
      %v668 = vadd.f32 %v630, %v632
      %v669 = vadd.f32 %v668, %v635
      %v670 = vadd.f32 %v669, %v637
      %v671 = vadd.f32 %v670, %v640
      %v672 = vadd.f32 %v671, %v642
      %v673 = vadd.f32 %v672, %v645
      %v674 = vadd.f32 %v673, %v647
      %v675 = vrot.slane %v674, 4
      %v676 = vadd.f32 %v674, %v675
      %v677 = vrot.slane %v676, 2
      %v678 = vadd.f32 %v676, %v677
      %v679 = vrot.slane %v678, 1
      %v680 = vadd.f32 %v678, %v679
      %v681 = vsel %vm667, %v680, 0.0
      %682 = vst [vmem:[%s269] sm:$0xff] %v681
      %v683 = vmul.f32 %v630, %v630
      %v684 = vmul.f32 %v632, %v632
      %v685 = vmul.f32 %v635, %v635
      %v686 = vmul.f32 %v637, %v637
      %v687 = vmul.f32 %v640, %v640
      %v688 = vmul.f32 %v642, %v642
      %v689 = vmul.f32 %v645, %v645
      %v690 = vmul.f32 %v647, %v647
      %v691 = vadd.f32 %v683, %v684
      %v692 = vadd.f32 %v691, %v685
      %v693 = vadd.f32 %v692, %v686
      %v694 = vadd.f32 %v693, %v687
      %v695 = vadd.f32 %v694, %v688
      %v696 = vadd.f32 %v695, %v689
      %v697 = vadd.f32 %v696, %v690
      %v698 = vrot.slane %v697, 4
      %v699 = vadd.f32 %v697, %v698
      %v700 = vrot.slane %v699, 2
      %v701 = vadd.f32 %v699, %v700
      %v702 = vrot.slane %v701, 1
      %v703 = vadd.f32 %v701, %v702
      %v704 = vsel %vm667, %v703, 0.0
      %705 = vst [vmem:[%s273] sm:$0xff] %v704
      %s706 = smul.u32 8, %s17
      %p707 = scmp.lt.s32.totalorder %s706, 15
      %s708 = scalar_select %p707, %s706, 15
      %s709 = smul.addr %s708, 4
      %s710 = scalar_lea.vmem %s3, %s709
      %p711 = scmp.lt.s32.totalorder %s17, 1
      %s712 = scalar_select %p711, %s17, 1
      %s713 = smul.addr %s712, 8
      %s714 = scalar_lea.vmem %s4, %s713
      %p715 = scmp.lt.s32.totalorder %s17, 1
      %s716 = scalar_select %p715, %s17, 1
      %s717 = smul.addr %s716, 8
      %s718 = scalar_lea.vmem %s5, %s717
      // Predicated region
      $region33: #{preact_resnet_forward.25} parent=31 // pred_check
        %p719 = pneg %p108
      $region34: #{preact_resnet_forward.25} parent=31 // pred_check_branch
        %721 = sbr.rel (%p719) target = $region36
      $region35: #{preact_resnet_forward.25} parent=31 // pred_region
        %s722 = smul.u32 8, %s17
      $region36: #{preact_resnet_forward.25} parent=31 // pred_fallthru
        _
      // Predicated region
      $region37: #{preact_resnet_forward.25} parent=31 // pred_check
        %p723 = pneg %p134
      $region38: #{preact_resnet_forward.25} parent=31 // pred_check_branch
        %725 = sbr.rel (%p723) target = $region40
      $region39: #{preact_resnet_forward.25} parent=31 // pred_region
        _
      $region40: #{preact_resnet_forward.25} parent=31 // pred_fallthru
        _
      // Predicated region
      $region41: #{preact_resnet_forward.25} parent=31 // pred_check
        %p726 = pneg %p160
      $region42: #{preact_resnet_forward.25} parent=31 // pred_check_branch
        %728 = sbr.rel (%p726) target = $region44
      $region43: #{preact_resnet_forward.25} parent=31 // pred_region
        _
      $region44: #{preact_resnet_forward.25} parent=31 // pred_fallthru
        _
    $region32: #{preact_resnet_forward.25} parent=5 // pred_fallthru
      _
    %p729 = scmp.le.s32.totalorder 2, %s12
    // Predicated region
    $region45: #{preact_resnet_forward.25} parent=5 // pred_check
      %p730 = pneg %p729
    $region46: #{preact_resnet_forward.25} parent=5 // pred_check_branch
      %732 = sbr.rel (%p730) target = $region48
    $region47: #{preact_resnet_forward.25} parent=5 // pred_region
      %s733 = ssub.s32 %s12, 2
      // Predicated region
      $region49: #{preact_resnet_forward.25} parent=47 // pred_check
        %p734 = pneg %p114
      $region50: #{preact_resnet_forward.25} parent=47 // pred_check_branch
        %736 = sbr.rel (%p734) target = $region52
      $region51: #{preact_resnet_forward.25} parent=47 // pred_region
        %s737 = smul.u32 8, %s18
        %p738 = scmp.lt.s32.totalorder %s737, 15
        %s739 = scalar_select %p738, %s737, 15
        %s740 = smul.addr %s739, 4
        %s741 = scalar_lea.vmem %s3, %s740
      $region52: #{preact_resnet_forward.25} parent=47 // pred_fallthru
        _
      // Predicated region
      $region53: #{preact_resnet_forward.25} parent=47 // pred_check
        %p742 = pneg %p140
      $region54: #{preact_resnet_forward.25} parent=47 // pred_check_branch
        %744 = sbr.rel (%p742) target = $region56
      $region55: #{preact_resnet_forward.25} parent=47 // pred_region
        %p745 = scmp.lt.s32.totalorder %s18, 1
        %s746 = scalar_select %p745, %s18, 1
        %s747 = smul.addr %s746, 8
        %s748 = scalar_lea.vmem %s4, %s747
      $region56: #{preact_resnet_forward.25} parent=47 // pred_fallthru
        _
      // Predicated region
      $region57: #{preact_resnet_forward.25} parent=47 // pred_check
        %p749 = pneg %p166
      $region58: #{preact_resnet_forward.25} parent=47 // pred_check_branch
        %751 = sbr.rel (%p749) target = $region60
      $region59: #{preact_resnet_forward.25} parent=47 // pred_region
        %p752 = scmp.lt.s32.totalorder %s18, 1
        %s753 = scalar_select %p752, %s18, 1
        %s754 = smul.addr %s753, 8
        %s755 = scalar_lea.vmem %s5, %s754
      $region60: #{preact_resnet_forward.25} parent=47 // pred_fallthru
        _
    $region48: #{preact_resnet_forward.25} parent=5 // pred_fallthru
      _
  $region6: #{preact_resnet_forward.25} parent=0 // loop_footer
    %s16 = sadd.s32 1, %s12
  $region7: #{preact_resnet_forward.25} parent=0 // loop_footer_branch
    %11 = sbr.rel target = $region3
  $region8: #{preact_resnet_forward.25} parent=0 // loop_exit
    _

// kernel: preact_resnet_forward.29
$region0: #{preact_resnet_forward.29}
  #allocation0 [shape = 'u32[]', space=smem, size = 0x4, offset = 0x4, fixed_abs, tag = 'smem constant byte address 0x4 - core index']
  #allocation1 [shape = 'u32[72,128]{1,0:T(1,128)}', space=vmem, size = 0x9000, scoped, tag = 'internal scratch']
  %s0 = inlined_call_operand.vmem [shape: bf16[32,128], index: 0, kind: input, shape index: {}]
  %s1 = inlined_call_operand.vmem [shape: f32[16,128], index: 1, kind: input, shape index: {}]
  %s2 = inlined_call_operand.vmem [shape: f32[16,128], index: 2, kind: input, shape index: {}]
  %s3 = inlined_call_operand.vmem [shape: f32[1,128], index: 3, kind: input, shape index: {}]
  %s4 = inlined_call_operand.vmem [shape: f32[1,128], index: 4, kind: input, shape index: {}]
  %s5 = inlined_call_operand.vmem [shape: bf16[32,128], index: 5, kind: output, shape index: {}]
  %s6 = sld [smem:[#allocation0]]
  $region53: #{preact_resnet_forward.29} parent=0
    _
  %s8 = ssub.s32 1, %s6
  %s9 = scalar_select 0, %s8, %s6
  loop: start=0, step=1, limit=4
  $region2: #{preact_resnet_forward.29} parent=0 // loop_pre_header
    _
  $region3: #{preact_resnet_forward.29} parent=0 // loop_header
    %s11 = sphi 0, %s15
    %p12 = scmp.ge.s32.totalorder %s11, 4
    %s21 = sphi 0, %s23
    %s24 = sphi 0, %s21
    %s25 = sphi 0, %s24
    %s41 = sphi 0, %s25
    %s45 = sphi 0, %s45
    %s47 = sphi 0, %s45
    %s48 = sphi 0, %s47
    %s62 = sphi 0, %s48
    %s66 = sphi 0, %s66
    %s68 = sphi 0, %s66
    %s69 = sphi 0, %s68
    %s83 = sphi 0, %s69
    %s87 = sphi 0, %s87
    %s89 = sphi 0, %s87
    %s90 = sphi 0, %s89
    %s104 = sphi 0, %s90
    %s108 = sphi 0, %s108
    %s110 = sphi 0, %s108
    %s111 = sphi 0, %s110
    %s125 = sphi 0, %s111
    %s131 = sphi 0, %s133
    %s134 = sphi 0, %s131
    %s135 = sphi 0, %s134
    %s151 = sphi 0, %s135
  $region4: #{preact_resnet_forward.29} parent=0 // loop_header_branch
    %14 = sbr.rel (%p12) target = $region8
  $region5: #{preact_resnet_forward.29} parent=0 // loop_body
    %s16 = ssub.s32 %s11, 1
    %s17 = ssub.s32 %s11, 2
    %s18 = sadd.s32 %s11, 1
    %s19 = ssub.s32 %s11, %s18
    %p20 = scmp.eq.s32.totalorder %s19, 0
    %s22 = sadd.s32 %s21, 1
    %s23 = scalar_select %p20, %s21, %s22
    %p26 = pneg %p20
    %p27 = scmp.eq.s32.totalorder %s11, 1
    %p28 = por %p26, %p27
    %p29 = scmp.ne.s32.totalorder %s21, %s24
    %p30 = scmp.eq.s32.totalorder %s11, 0
    %p31 = por %p29, %p30
    %p32 = scmp.ne.s32.totalorder %s21, %s24
    %p33 = scmp.eq.s32.totalorder %s16, 1
    %p34 = por %p32, %p33
    %p35 = scmp.ne.s32.totalorder %s24, %s25
    %p36 = scmp.eq.s32.totalorder %s16, 0
    %p37 = por %p35, %p36
    %p38 = scmp.ne.s32.totalorder %s24, %s25
    %p39 = scmp.eq.s32.totalorder %s17, 1
    %p40 = por %p38, %p39
    %p42 = scmp.ne.s32.totalorder %s25, %s41
    %p43 = scmp.eq.s32.totalorder %s17, 0
    %p44 = por %p42, %p43
    %s46 = sadd.s32 %s45, 1
    %p49 = scmp.eq.s32.totalorder %s11, 1
    %p50 = scmp.ne.s32.totalorder %s45, %s47
    %p51 = scmp.eq.s32.totalorder %s11, 0
    %p52 = por %p50, %p51
    %p53 = scmp.ne.s32.totalorder %s45, %s47
    %p54 = scmp.eq.s32.totalorder %s16, 1
    %p55 = por %p53, %p54
    %p56 = scmp.ne.s32.totalorder %s47, %s48
    %p57 = scmp.eq.s32.totalorder %s16, 0
    %p58 = por %p56, %p57
    %p59 = scmp.ne.s32.totalorder %s47, %s48
    %p60 = scmp.eq.s32.totalorder %s17, 1
    %p61 = por %p59, %p60
    %p63 = scmp.ne.s32.totalorder %s48, %s62
    %p64 = scmp.eq.s32.totalorder %s17, 0
    %p65 = por %p63, %p64
    %s67 = sadd.s32 %s66, 1
    %p70 = scmp.eq.s32.totalorder %s11, 1
    %p71 = scmp.ne.s32.totalorder %s66, %s68
    %p72 = scmp.eq.s32.totalorder %s11, 0
    %p73 = por %p71, %p72
    %p74 = scmp.ne.s32.totalorder %s66, %s68
    %p75 = scmp.eq.s32.totalorder %s16, 1
    %p76 = por %p74, %p75
    %p77 = scmp.ne.s32.totalorder %s68, %s69
    %p78 = scmp.eq.s32.totalorder %s16, 0
    %p79 = por %p77, %p78
    %p80 = scmp.ne.s32.totalorder %s68, %s69
    %p81 = scmp.eq.s32.totalorder %s17, 1
    %p82 = por %p80, %p81
    %p84 = scmp.ne.s32.totalorder %s69, %s83
    %p85 = scmp.eq.s32.totalorder %s17, 0
    %p86 = por %p84, %p85
    %s88 = sadd.s32 %s87, 1
    %p91 = scmp.eq.s32.totalorder %s11, 1
    %p92 = scmp.ne.s32.totalorder %s87, %s89
    %p93 = scmp.eq.s32.totalorder %s11, 0
    %p94 = por %p92, %p93
    %p95 = scmp.ne.s32.totalorder %s87, %s89
    %p96 = scmp.eq.s32.totalorder %s16, 1
    %p97 = por %p95, %p96
    %p98 = scmp.ne.s32.totalorder %s89, %s90
    %p99 = scmp.eq.s32.totalorder %s16, 0
    %p100 = por %p98, %p99
    %p101 = scmp.ne.s32.totalorder %s89, %s90
    %p102 = scmp.eq.s32.totalorder %s17, 1
    %p103 = por %p101, %p102
    %p105 = scmp.ne.s32.totalorder %s90, %s104
    %p106 = scmp.eq.s32.totalorder %s17, 0
    %p107 = por %p105, %p106
    %s109 = sadd.s32 %s108, 1
    %p112 = scmp.eq.s32.totalorder %s11, 1
    %p113 = scmp.ne.s32.totalorder %s108, %s110
    %p114 = scmp.eq.s32.totalorder %s11, 0
    %p115 = por %p113, %p114
    %p116 = scmp.ne.s32.totalorder %s108, %s110
    %p117 = scmp.eq.s32.totalorder %s16, 1
    %p118 = por %p116, %p117
    %p119 = scmp.ne.s32.totalorder %s110, %s111
    %p120 = scmp.eq.s32.totalorder %s16, 0
    %p121 = por %p119, %p120
    %p122 = scmp.ne.s32.totalorder %s110, %s111
    %p123 = scmp.eq.s32.totalorder %s17, 1
    %p124 = por %p122, %p123
    %p126 = scmp.ne.s32.totalorder %s111, %s125
    %p127 = scmp.eq.s32.totalorder %s17, 0
    %p128 = por %p126, %p127
    %s129 = ssub.s32 %s11, %s18
    %p130 = scmp.eq.s32.totalorder %s129, 0
    %s132 = sadd.s32 %s131, 1
    %s133 = scalar_select %p130, %s131, %s132
    %p136 = pneg %p130
    %p137 = scmp.eq.s32.totalorder %s11, 1
    %p138 = por %p136, %p137
    %p139 = scmp.ne.s32.totalorder %s131, %s134
    %p140 = scmp.eq.s32.totalorder %s11, 0
    %p141 = por %p139, %p140
    %p142 = scmp.ne.s32.totalorder %s131, %s134
    %p143 = scmp.eq.s32.totalorder %s16, 1
    %p144 = por %p142, %p143
    %p145 = scmp.ne.s32.totalorder %s134, %s135
    %p146 = scmp.eq.s32.totalorder %s16, 0
    %p147 = por %p145, %p146
    %p148 = scmp.ne.s32.totalorder %s134, %s135
    %p149 = scmp.eq.s32.totalorder %s17, 1
    %p150 = por %p148, %p149
    %p152 = scmp.ne.s32.totalorder %s135, %s151
    %p153 = scmp.eq.s32.totalorder %s17, 0
    %p154 = por %p152, %p153
    %p155 = scmp.le.s32.totalorder 1, %s11
    %p156 = scmp.lt.s32.totalorder %s11, 3
    %p157 = pnand %p155, %p156
    %p158 = pneg %p157
    // Predicated region
    $region9: #{preact_resnet_forward.29} parent=5 // pred_check
      _
    $region10: #{preact_resnet_forward.29} parent=5 // pred_check_branch
      %160 = sbr.rel (%p157) target = $region12
    $region11: #{preact_resnet_forward.29} parent=5 // pred_region
      %s161 = ssub.s32 %s11, 1
      // Predicated region
      $region13: #{preact_resnet_forward.29} parent=11 // pred_check
        %p162 = pneg %p58
      $region14: #{preact_resnet_forward.29} parent=11 // pred_check_branch
        %164 = sbr.rel (%p162) target = $region16
      $region15: #{preact_resnet_forward.29} parent=11 // pred_region
        _
      $region16: #{preact_resnet_forward.29} parent=11 // pred_fallthru
        _
      // Predicated region
      $region17: #{preact_resnet_forward.29} parent=11 // pred_check
        %p165 = pneg %p79
      $region18: #{preact_resnet_forward.29} parent=11 // pred_check_branch
        %167 = sbr.rel (%p165) target = $region20
      $region19: #{preact_resnet_forward.29} parent=11 // pred_region
        _
      $region20: #{preact_resnet_forward.29} parent=11 // pred_fallthru
        _
      // Predicated region
      $region21: #{preact_resnet_forward.29} parent=11 // pred_check
        %p168 = pneg %p100
      $region22: #{preact_resnet_forward.29} parent=11 // pred_check_branch
        %170 = sbr.rel (%p168) target = $region24
      $region23: #{preact_resnet_forward.29} parent=11 // pred_region
        _
      $region24: #{preact_resnet_forward.29} parent=11 // pred_fallthru
        _
      // Predicated region
      $region25: #{preact_resnet_forward.29} parent=11 // pred_check
        %p171 = pneg %p121
      $region26: #{preact_resnet_forward.29} parent=11 // pred_check_branch
        %173 = sbr.rel (%p171) target = $region28
      $region27: #{preact_resnet_forward.29} parent=11 // pred_region
        _
      $region28: #{preact_resnet_forward.29} parent=11 // pred_fallthru
        _
    $region12: #{preact_resnet_forward.29} parent=5 // pred_fallthru
      _
    %p174 = scmp.lt.s32.totalorder %s11, 2
    // Predicated region
    $region29: #{preact_resnet_forward.29} parent=5 // pred_check
      %p175 = pneg %p174
    $region30: #{preact_resnet_forward.29} parent=5 // pred_check_branch
      %177 = sbr.rel (%p175) target = $region32
    $region31: #{preact_resnet_forward.29} parent=5 // pred_region
      // Predicated region
      $region33: #{preact_resnet_forward.29} parent=31 // pred_check
        %p178 = pneg %p31
      $region34: #{preact_resnet_forward.29} parent=31 // pred_check_branch
        %180 = sbr.rel (%p178) target = $region36
      $region35: #{preact_resnet_forward.29} parent=31 // pred_region
        %s181 = smul.u32 2, %s11
        %p182 = scmp.lt.s32.totalorder %s181, 3
        %s183 = scalar_select %p182, %s181, 3
        %s184 = smul.addr %s183, 4
        %s185 = scalar_lea.vmem %s0, %s184
        %s186 = smul.u32 2, %s11
      $region36: #{preact_resnet_forward.29} parent=31 // pred_fallthru
        _
    $region32: #{preact_resnet_forward.29} parent=5 // pred_fallthru
      _
    %p187 = scmp.le.s32.totalorder 1, %s11
    %p188 = scmp.lt.s32.totalorder %s11, 3
    %p189 = pnand %p187, %p188
    %p190 = pneg %p189
    // Predicated region
    $region37: #{preact_resnet_forward.29} parent=5 // pred_check
      _
    $region38: #{preact_resnet_forward.29} parent=5 // pred_check_branch
      %192 = sbr.rel (%p189) target = $region40
    $region39: #{preact_resnet_forward.29} parent=5 // pred_region
      %s193 = ssub.s32 %s11, 1
      %s194 = smul.u32 2, %s16
      %p195 = scmp.lt.s32.totalorder %s194, 3
      %s196 = scalar_select %p195, %s194, 3
      %s197 = smul.addr %s196, 4
      %s198 = scalar_lea.vmem %s0, %s197
      %p199 = pneg %p37
      %p200 = pneg %p34
      %p201 = pneg %p58
      %p202 = pneg %p55
      %p203 = pneg %p79
      %p204 = pneg %p76
      %p205 = pneg %p100
      %p206 = pneg %p97
      %p207 = pneg %p121
      %p208 = pneg %p118
      %p209 = pneg %p147
      %p210 = pneg %p144
      %s211 = smul.u32 2, %s16
      %p212 = scmp.lt.s32.totalorder %s211, 3
      %s213 = scalar_select %p212, %s211, 3
      %s214 = smul.addr %s213, 4
      %s215 = scalar_lea.vmem %s5, %s214
      %s216 = smul.u32 2, %s16
      %p217 = scmp.lt.s32.totalorder %s216, 3
      %s218 = scalar_select %p217, %s216, 3
      %s219 = smul.addr %s218, 4
      %s220 = scalar_lea.vmem %s0, %s219
      %s221 = smul.u32 2, %s16
      %s222 = smul.u32 2, %s16
      %p223 = scmp.lt.s32.totalorder %s222, 3
      %s224 = scalar_select %p223, %s222, 3
      %s225 = smul.addr %s224, 4
      %s226 = scalar_lea.vmem %s5, %s225
      %s227 = smul.u32 2, %s16
      %v228 = vld [vmem:[%s1] sm:$0xff]
      %v229 = vld [vmem:[%s1 + $0x8] sm:$0xff]
      %v230 = vadd.f32 %v228, %v229
      %v231 = vrot.slane %v230, 4
      %v232 = vadd.f32 %v230, %v231
      %v233 = vrot.slane %v232, 2
      %v234 = vadd.f32 %v232, %v233
      %v235 = vrot.slane %v234, 1
      %v236 = vadd.f32 %v234, %v235
      %v237 = vld [vmem:[%s2] sm:$0xff]
      %v238 = vld [vmem:[%s2 + $0x8] sm:$0xff]
      %v239 = vadd.f32 %v237, %v238
      %v240 = vrot.slane %v239, 4
      %v241 = vadd.f32 %v239, %v240
      %v242 = vrot.slane %v241, 2
      %v243 = vadd.f32 %v241, %v242
      %v244 = vrot.slane %v243, 1
      %v245 = vadd.f32 %v243, %v244
      %v246 = vmul.f32 %v236, 0.03125
      %v247 = vmul.f32 %v245, 0.03125
      %v248 = vmul.f32 %v246, %v246
      %v249 = vsub.f32 %v247, %v248
      %v250 = vmax.f32 %v249, 0.0
      %v251 = vld [vmem:[%s3] sm:$0x1]
      %v252 = vadd.f32 %v250, 1e-05
      %v253 = vrsqrt.pop %v252
      %v254 = vmul.f32 %v253, %v252
      %v255 = vmul.f32 %v254, %v253
      %v256 = vmul.f32 0.5, %v255
      %v257 = vsub.f32 1.5, %v256
      %v258 = vmul.f32 %v253, %v257
      %vm259 = vweird.f32 %v252
      %vm260 = vweird.f32 %v253
      %vm261 = vmor %vm259, %vm260
      %v262 = vsel %vm261, %v253, %v258
      %v263 = vmul.f32 %v251, %v262
      %v264 = vld [vmem:[%s4] sm:$0x1]
      %v265 = vmul.f32 %v246, %v263
      %v266 = vsub.f32 %v264, %v265
      %v267 = vld [vmem:[%s220] sm:$0xf]
      %v268 = vld [vmem:[%s220 + $0x4] sm:$0xf]
      %v269 = vunpack.c.l.bf16 %v267
      %v270 = vunpack.c.l.bf16 %v268
      %v272 = vperm.slane %v263, 0
      %v274 = vmul.f32 %v269, %v272
      %v275 = vmul.f32 %v270, %v272
      %v277 = vperm.slane %v266, 0
      %v279 = vadd.f32 %v274, %v277
      %v280 = vadd.f32 %v275, %v277
      %v281 = vmax.f32 %v279, 0.0
      %v282 = vmax.f32 %v280, 0.0
      %v283 = vpack.c.bf16 %v281, %v281
      %v284 = vpack.c.bf16 %v282, %v282
      %285 = vst [vmem:[%s226] sm:$0xf] %v283
      %286 = vst [vmem:[%s226 + $0x4] sm:$0xf] %v284
      %s287 = smul.u32 2, %s16
      %p288 = scmp.lt.s32.totalorder %s287, 3
      %s289 = scalar_select %p288, %s287, 3
      %s290 = smul.addr %s289, 4
      %s291 = scalar_lea.vmem %s5, %s290
      // Predicated region
      $region41: #{preact_resnet_forward.29} parent=39 // pred_check
        %p292 = pneg %p144
      $region42: #{preact_resnet_forward.29} parent=39 // pred_check_branch
        %294 = sbr.rel (%p292) target = $region44
      $region43: #{preact_resnet_forward.29} parent=39 // pred_region
        %s295 = smul.u32 2, %s16
      $region44: #{preact_resnet_forward.29} parent=39 // pred_fallthru
        _
    $region40: #{preact_resnet_forward.29} parent=5 // pred_fallthru
      _
    %p296 = scmp.le.s32.totalorder 2, %s11
    // Predicated region
    $region45: #{preact_resnet_forward.29} parent=5 // pred_check
      %p297 = pneg %p296
    $region46: #{preact_resnet_forward.29} parent=5 // pred_check_branch
      %299 = sbr.rel (%p297) target = $region48
    $region47: #{preact_resnet_forward.29} parent=5 // pred_region
      %s300 = ssub.s32 %s11, 2
      // Predicated region
      $region49: #{preact_resnet_forward.29} parent=47 // pred_check
        %p301 = pneg %p150
      $region50: #{preact_resnet_forward.29} parent=47 // pred_check_branch
        %303 = sbr.rel (%p301) target = $region52
      $region51: #{preact_resnet_forward.29} parent=47 // pred_region
        %s304 = smul.u32 2, %s17
        %p305 = scmp.lt.s32.totalorder %s304, 3
        %s306 = scalar_select %p305, %s304, 3
        %s307 = smul.addr %s306, 4
        %s308 = scalar_lea.vmem %s5, %s307
      $region52: #{preact_resnet_forward.29} parent=47 // pred_fallthru
        _
    $region48: #{preact_resnet_forward.29} parent=5 // pred_fallthru
      _
  $region6: #{preact_resnet_forward.29} parent=0 // loop_footer
    %s15 = sadd.s32 1, %s11
  $region7: #{preact_resnet_forward.29} parent=0 // loop_footer_branch
    %10 = sbr.rel target = $region3
  $region8: #{preact_resnet_forward.29} parent=0 // loop_exit
    _

// kernel: preact_resnet_forward.28
$region0: #{preact_resnet_forward.28}
  #allocation0 [shape = 'u32[]', space=smem, size = 0x4, offset = 0x4, fixed_abs, tag = 'smem constant byte address 0x4 - core index']
  #allocation1 [shape = 'u32[72,128]{1,0:T(1,128)}', space=vmem, size = 0x9000, scoped, tag = 'internal scratch']
  %s0 = inlined_call_operand.vmem [shape: bf16[32,384], index: 0, kind: input, shape index: {}]
  %s1 = inlined_call_operand.vmem [shape: bf16[384,128], index: 1, kind: input, shape index: {}]
  %s2 = inlined_call_operand.vmem [shape: bf16[32,128], index: 2, kind: output, shape index: {0}]
  %s3 = inlined_call_operand.vmem [shape: f32[16,128], index: 3, kind: output, shape index: {1}]
  %s4 = inlined_call_operand.vmem [shape: f32[16,128], index: 4, kind: output, shape index: {2}]
  %5 = xla_tuple %s2, %s3, %s4
  %s6 = sld [smem:[#allocation0]]
  $region57: #{preact_resnet_forward.28} parent=0
    _
  %s8 = ssub.s32 1, %s6
  %s9 = scalar_select 0, %s8, %s6
  loop: start=0, step=1, limit=4
  $region2: #{preact_resnet_forward.28} parent=0 // loop_pre_header
    _
  $region3: #{preact_resnet_forward.28} parent=0 // loop_header
    %s11 = sphi 0, %s15
    %p12 = scmp.ge.s32.totalorder %s11, 4
    %s21 = sphi 0, %s23
    %s24 = sphi 0, %s21
    %s25 = sphi 0, %s24
    %s41 = sphi 0, %s25
    %s45 = sphi 0, %s45
    %s47 = sphi 0, %s45
    %s48 = sphi 0, %s47
    %s62 = sphi 0, %s48
    %s68 = sphi 0, %s70
    %s71 = sphi 0, %s68
    %s72 = sphi 0, %s71
    %s88 = sphi 0, %s72
    %s94 = sphi 0, %s96
    %s97 = sphi 0, %s94
    %s98 = sphi 0, %s97
    %s114 = sphi 0, %s98
    %s120 = sphi 0, %s122
    %s123 = sphi 0, %s120
    %s124 = sphi 0, %s123
    %s140 = sphi 0, %s124
  $region4: #{preact_resnet_forward.28} parent=0 // loop_header_branch
    %14 = sbr.rel (%p12) target = $region8
  $region5: #{preact_resnet_forward.28} parent=0 // loop_body
    %s16 = ssub.s32 %s11, 1
    %s17 = ssub.s32 %s11, 2
    %s18 = sadd.s32 %s11, 1
    %s19 = ssub.s32 %s11, %s18
    %p20 = scmp.eq.s32.totalorder %s19, 0
    %s22 = sadd.s32 %s21, 1
    %s23 = scalar_select %p20, %s21, %s22
    %p26 = pneg %p20
    %p27 = scmp.eq.s32.totalorder %s11, 1
    %p28 = por %p26, %p27
    %p29 = scmp.ne.s32.totalorder %s21, %s24
    %p30 = scmp.eq.s32.totalorder %s11, 0
    %p31 = por %p29, %p30
    %p32 = scmp.ne.s32.totalorder %s21, %s24
    %p33 = scmp.eq.s32.totalorder %s16, 1
    %p34 = por %p32, %p33
    %p35 = scmp.ne.s32.totalorder %s24, %s25
    %p36 = scmp.eq.s32.totalorder %s16, 0
    %p37 = por %p35, %p36
    %p38 = scmp.ne.s32.totalorder %s24, %s25
    %p39 = scmp.eq.s32.totalorder %s17, 1
    %p40 = por %p38, %p39
    %p42 = scmp.ne.s32.totalorder %s25, %s41
    %p43 = scmp.eq.s32.totalorder %s17, 0
    %p44 = por %p42, %p43
    %s46 = sadd.s32 %s45, 1
    %p49 = scmp.eq.s32.totalorder %s11, 1
    %p50 = scmp.ne.s32.totalorder %s45, %s47
    %p51 = scmp.eq.s32.totalorder %s11, 0
    %p52 = por %p50, %p51
    %p53 = scmp.ne.s32.totalorder %s45, %s47
    %p54 = scmp.eq.s32.totalorder %s16, 1
    %p55 = por %p53, %p54
    %p56 = scmp.ne.s32.totalorder %s47, %s48
    %p57 = scmp.eq.s32.totalorder %s16, 0
    %p58 = por %p56, %p57
    %p59 = scmp.ne.s32.totalorder %s47, %s48
    %p60 = scmp.eq.s32.totalorder %s17, 1
    %p61 = por %p59, %p60
    %p63 = scmp.ne.s32.totalorder %s48, %s62
    %p64 = scmp.eq.s32.totalorder %s17, 0
    %p65 = por %p63, %p64
    %s66 = ssub.s32 %s11, %s18
    %p67 = scmp.eq.s32.totalorder %s66, 0
    %s69 = sadd.s32 %s68, 1
    %s70 = scalar_select %p67, %s68, %s69
    %p73 = pneg %p67
    %p74 = scmp.eq.s32.totalorder %s11, 1
    %p75 = por %p73, %p74
    %p76 = scmp.ne.s32.totalorder %s68, %s71
    %p77 = scmp.eq.s32.totalorder %s11, 0
    %p78 = por %p76, %p77
    %p79 = scmp.ne.s32.totalorder %s68, %s71
    %p80 = scmp.eq.s32.totalorder %s16, 1
    %p81 = por %p79, %p80
    %p82 = scmp.ne.s32.totalorder %s71, %s72
    %p83 = scmp.eq.s32.totalorder %s16, 0
    %p84 = por %p82, %p83
    %p85 = scmp.ne.s32.totalorder %s71, %s72
    %p86 = scmp.eq.s32.totalorder %s17, 1
    %p87 = por %p85, %p86
    %p89 = scmp.ne.s32.totalorder %s72, %s88
    %p90 = scmp.eq.s32.totalorder %s17, 0
    %p91 = por %p89, %p90
    %s92 = ssub.s32 %s11, %s18
    %p93 = scmp.eq.s32.totalorder %s92, 0
    %s95 = sadd.s32 %s94, 1
    %s96 = scalar_select %p93, %s94, %s95
    %p99 = pneg %p93
    %p100 = scmp.eq.s32.totalorder %s11, 1
    %p101 = por %p99, %p100
    %p102 = scmp.ne.s32.totalorder %s94, %s97
    %p103 = scmp.eq.s32.totalorder %s11, 0
    %p104 = por %p102, %p103
    %p105 = scmp.ne.s32.totalorder %s94, %s97
    %p106 = scmp.eq.s32.totalorder %s16, 1
    %p107 = por %p105, %p106
    %p108 = scmp.ne.s32.totalorder %s97, %s98
    %p109 = scmp.eq.s32.totalorder %s16, 0
    %p110 = por %p108, %p109
    %p111 = scmp.ne.s32.totalorder %s97, %s98
    %p112 = scmp.eq.s32.totalorder %s17, 1
    %p113 = por %p111, %p112
    %p115 = scmp.ne.s32.totalorder %s98, %s114
    %p116 = scmp.eq.s32.totalorder %s17, 0
    %p117 = por %p115, %p116
    %s118 = ssub.s32 %s11, %s18
    %p119 = scmp.eq.s32.totalorder %s118, 0
    %s121 = sadd.s32 %s120, 1
    %s122 = scalar_select %p119, %s120, %s121
    %p125 = pneg %p119
    %p126 = scmp.eq.s32.totalorder %s11, 1
    %p127 = por %p125, %p126
    %p128 = scmp.ne.s32.totalorder %s120, %s123
    %p129 = scmp.eq.s32.totalorder %s11, 0
    %p130 = por %p128, %p129
    %p131 = scmp.ne.s32.totalorder %s120, %s123
    %p132 = scmp.eq.s32.totalorder %s16, 1
    %p133 = por %p131, %p132
    %p134 = scmp.ne.s32.totalorder %s123, %s124
    %p135 = scmp.eq.s32.totalorder %s16, 0
    %p136 = por %p134, %p135
    %p137 = scmp.ne.s32.totalorder %s123, %s124
    %p138 = scmp.eq.s32.totalorder %s17, 1
    %p139 = por %p137, %p138
    %p141 = scmp.ne.s32.totalorder %s124, %s140
    %p142 = scmp.eq.s32.totalorder %s17, 0
    %p143 = por %p141, %p142
    %p144 = scmp.le.s32.totalorder 1, %s11
    %p145 = scmp.lt.s32.totalorder %s11, 3
    %p146 = pnand %p144, %p145
    %p147 = pneg %p146
    // Predicated region
    $region9: #{preact_resnet_forward.28} parent=5 // pred_check
      _
    $region10: #{preact_resnet_forward.28} parent=5 // pred_check_branch
      %149 = sbr.rel (%p146) target = $region12
    $region11: #{preact_resnet_forward.28} parent=5 // pred_region
      %s150 = ssub.s32 %s11, 1
      // Predicated region
      $region13: #{preact_resnet_forward.28} parent=11 // pred_check
        %p151 = pneg %p58
      $region14: #{preact_resnet_forward.28} parent=11 // pred_check_branch
        %153 = sbr.rel (%p151) target = $region16
      $region15: #{preact_resnet_forward.28} parent=11 // pred_region
        _
      $region16: #{preact_resnet_forward.28} parent=11 // pred_fallthru
        _
    $region12: #{preact_resnet_forward.28} parent=5 // pred_fallthru
      _
    %p154 = scmp.lt.s32.totalorder %s11, 2
    // Predicated region
    $region17: #{preact_resnet_forward.28} parent=5 // pred_check
      %p155 = pneg %p154
    $region18: #{preact_resnet_forward.28} parent=5 // pred_check_branch
      %157 = sbr.rel (%p155) target = $region20
    $region19: #{preact_resnet_forward.28} parent=5 // pred_region
      // Predicated region
      $region21: #{preact_resnet_forward.28} parent=19 // pred_check
        %p158 = pneg %p31
      $region22: #{preact_resnet_forward.28} parent=19 // pred_check_branch
        %160 = sbr.rel (%p158) target = $region24
      $region23: #{preact_resnet_forward.28} parent=19 // pred_region
        %s161 = smul.u32 2, %s11
        %p162 = scmp.lt.s32.totalorder %s161, 3
        %s163 = scalar_select %p162, %s161, 3
        %s164 = smul.addr %s163, 3
        %s165 = smul.addr %s164, 4
        %s166 = scalar_lea.vmem %s0, %s165
        %s167 = smul.u32 2, %s11
      $region24: #{preact_resnet_forward.28} parent=19 // pred_fallthru
        _
    $region20: #{preact_resnet_forward.28} parent=5 // pred_fallthru
      _
    %p168 = scmp.le.s32.totalorder 1, %s11
    %p169 = scmp.lt.s32.totalorder %s11, 3
    %p170 = pnand %p168, %p169
    %p171 = pneg %p170
    // Predicated region
    $region25: #{preact_resnet_forward.28} parent=5 // pred_check
      _
    $region26: #{preact_resnet_forward.28} parent=5 // pred_check_branch
      %173 = sbr.rel (%p170) target = $region28
    $region27: #{preact_resnet_forward.28} parent=5 // pred_region
      %s174 = ssub.s32 %s11, 1
      %s175 = smul.u32 2, %s16
      %p176 = scmp.lt.s32.totalorder %s175, 3
      %s177 = scalar_select %p176, %s175, 3
      %s178 = smul.addr %s177, 3
      %s179 = smul.addr %s178, 4
      %s180 = scalar_lea.vmem %s0, %s179
      %p181 = pneg %p37
      %p182 = pneg %p34
      %p183 = pneg %p58
      %p184 = pneg %p55
      %p185 = pneg %p84
      %p186 = pneg %p81
      %s187 = smul.u32 2, %s16
      %p188 = scmp.lt.s32.totalorder %s187, 3
      %s189 = scalar_select %p188, %s187, 3
      %s190 = smul.addr %s189, 4
      %s191 = scalar_lea.vmem %s2, %s190
      %p192 = pneg %p110
      %p193 = pneg %p107
      %p194 = scmp.lt.s32.totalorder %s16, 1
      %s195 = scalar_select %p194, %s16, 1
      %s196 = smul.addr %s195, 8
      %s197 = scalar_lea.vmem %s3, %s196
      %p198 = pneg %p136
      %p199 = pneg %p133
      %p200 = scmp.lt.s32.totalorder %s16, 1
      %s201 = scalar_select %p200, %s16, 1
      %s202 = smul.addr %s201, 8
      %s203 = scalar_lea.vmem %s4, %s202
      %s204 = smul.u32 2, %s16
      %p205 = scmp.lt.s32.totalorder %s204, 3
      %s206 = scalar_select %p205, %s204, 3
      %s207 = smul.addr %s206, 3
      %s208 = smul.addr %s207, 4
      %s209 = scalar_lea.vmem %s0, %s208
      %s210 = smul.u32 2, %s16
      %s211 = smul.u32 2, %s16
      %p212 = scmp.lt.s32.totalorder %s211, 3
      %s213 = scalar_select %p212, %s211, 3
      %s214 = smul.addr %s213, 4
      %s215 = scalar_lea.vmem %s2, %s214
      %s216 = smul.u32 2, %s16
      %p217 = scmp.lt.s32.totalorder %s16, 1
      %s218 = scalar_select %p217, %s16, 1
      %s219 = smul.addr %s218, 8
      %s220 = scalar_lea.vmem %s3, %s219
      %p221 = scmp.lt.s32.totalorder %s16, 1
      %s222 = scalar_select %p221, %s16, 1
      %s223 = smul.addr %s222, 8
      %s224 = scalar_lea.vmem %s4, %s223
      %v225 = vld [vmem:[%s209] sm:$0xff]
      %v226 = vld [vmem:[%s209 + $0x8] sm:$0xf]
      %v227 = vld [vmem:[%s209 + $0xc] sm:$0xff]
      %v228 = vld [vmem:[%s209 + $0x14] sm:$0xf]
      %v229 = vld [vmem:[%s1] sm:$0xf]
      %v230 = vld [vmem:[%s1 + $0x4] sm:$0xf]
      %v231 = vld [vmem:[%s1 + $0x8] sm:$0xf]
      %v232 = vld [vmem:[%s1 + $0xc] sm:$0xf]
      %v233 = vld [vmem:[%s1 + $0x10] sm:$0xf]
      %v234 = vld [vmem:[%s1 + $0x14] sm:$0xf]
      %v235 = vld [vmem:[%s1 + $0x18] sm:$0xf]
      %v236 = vld [vmem:[%s1 + $0x1c] sm:$0xf]
      %v237 = vld [vmem:[%s1 + $0x20] sm:$0xf]
      %v238 = vld [vmem:[%s1 + $0x24] sm:$0xf]
      %v239 = vld [vmem:[%s1 + $0x28] sm:$0xf]
      %v240 = vld [vmem:[%s1 + $0x2c] sm:$0xf]
      %v241 = vld [vmem:[%s1 + $0x30] sm:$0xf]
      %v242 = vld [vmem:[%s1 + $0x34] sm:$0xf]
      %v243 = vld [vmem:[%s1 + $0x38] sm:$0xf]
      %v244 = vld [vmem:[%s1 + $0x3c] sm:$0xf]
      %v245 = vld [vmem:[%s1 + $0x40] sm:$0xf]
      %v246 = vld [vmem:[%s1 + $0x44] sm:$0xf]
      %v247 = vld [vmem:[%s1 + $0x48] sm:$0xf]
      %v248 = vld [vmem:[%s1 + $0x4c] sm:$0xf]
      %v249 = vld [vmem:[%s1 + $0x50] sm:$0xf]
      %v250 = vld [vmem:[%s1 + $0x54] sm:$0xf]
      %v251 = vld [vmem:[%s1 + $0x58] sm:$0xf]
      %v252 = vld [vmem:[%s1 + $0x5c] sm:$0xf]
      %v253 = vld [vmem:[%s1 + $0x60] sm:$0xf]
      %v254 = vld [vmem:[%s1 + $0x64] sm:$0xf]
      %v255 = vld [vmem:[%s1 + $0x68] sm:$0xf]
      %v256 = vld [vmem:[%s1 + $0x6c] sm:$0xf]
      %v257 = vld [vmem:[%s1 + $0x70] sm:$0xf]
      %v258 = vld [vmem:[%s1 + $0x74] sm:$0xf]
      %v259 = vld [vmem:[%s1 + $0x78] sm:$0xf]
      %v260 = vld [vmem:[%s1 + $0x7c] sm:$0xf]
      %v261 = vld [vmem:[%s1 + $0x80] sm:$0xf]
      %v262 = vld [vmem:[%s1 + $0x84] sm:$0xf]
      %v263 = vld [vmem:[%s1 + $0x88] sm:$0xf]
      %v264 = vld [vmem:[%s1 + $0x8c] sm:$0xf]
      %v265 = vld [vmem:[%s1 + $0x90] sm:$0xf]
      %v266 = vld [vmem:[%s1 + $0x94] sm:$0xf]
      %v267 = vld [vmem:[%s1 + $0x98] sm:$0xf]
      %v268 = vld [vmem:[%s1 + $0x9c] sm:$0xf]
      %v269 = vld [vmem:[%s1 + $0xa0] sm:$0xf]
      %v270 = vld [vmem:[%s1 + $0xa4] sm:$0xf]
      %v271 = vld [vmem:[%s1 + $0xa8] sm:$0xf]
      %v272 = vld [vmem:[%s1 + $0xac] sm:$0xf]
      %v273 = vld [vmem:[%s1 + $0xb0] sm:$0xf]
      %v274 = vld [vmem:[%s1 + $0xb4] sm:$0xf]
      %v275 = vld [vmem:[%s1 + $0xb8] sm:$0xf]
      %v276 = vld [vmem:[%s1 + $0xbc] sm:$0xf]
      %v281 = vunpack.c.l.b16 %v225
      %v282 = vunpack.c.h.b16 %v225
      %v283 = vunpack.c.l.b16 %v226
      %v284 = vunpack.c.l.b16 %v227
      %v285 = vunpack.c.h.b16 %v227
      %v286 = vunpack.c.l.b16 %v228
      %v287 = vpack.c.b16 %v284, %v281
      %v288 = vpack.c.b16 %v285, %v282
      %v289 = vpack.c.b16 %v286, %v283
      %v341 = vunpack.c.l.b16 %v229
      %v342 = vunpack.c.l.b16 %v230
      %v343 = vunpack.c.l.b16 %v231
      %v344 = vunpack.c.l.b16 %v232
      %v345 = vunpack.c.l.b16 %v233
      %v346 = vunpack.c.l.b16 %v234
      %v347 = vunpack.c.l.b16 %v235
      %v348 = vunpack.c.l.b16 %v236
      %v349 = vunpack.c.l.b16 %v237
      %v350 = vunpack.c.l.b16 %v238
      %v351 = vunpack.c.l.b16 %v239
      %v352 = vunpack.c.l.b16 %v240
      %v353 = vunpack.c.l.b16 %v241
      %v354 = vunpack.c.l.b16 %v242
      %v355 = vunpack.c.l.b16 %v243
      %v356 = vunpack.c.l.b16 %v244
      %v357 = vunpack.c.l.b16 %v245
      %v358 = vunpack.c.l.b16 %v246
      %v359 = vunpack.c.l.b16 %v247
      %v360 = vunpack.c.l.b16 %v248
      %v361 = vunpack.c.l.b16 %v249
      %v362 = vunpack.c.l.b16 %v250
      %v363 = vunpack.c.l.b16 %v251
      %v364 = vunpack.c.l.b16 %v252
      %v365 = vunpack.c.l.b16 %v253
      %v366 = vunpack.c.l.b16 %v254
      %v367 = vunpack.c.l.b16 %v255
      %v368 = vunpack.c.l.b16 %v256
      %v369 = vunpack.c.l.b16 %v257
      %v370 = vunpack.c.l.b16 %v258
      %v371 = vunpack.c.l.b16 %v259
      %v372 = vunpack.c.l.b16 %v260
      %v373 = vunpack.c.l.b16 %v261
      %v374 = vunpack.c.l.b16 %v262
      %v375 = vunpack.c.l.b16 %v263
      %v376 = vunpack.c.l.b16 %v264
      %v377 = vunpack.c.l.b16 %v265
      %v378 = vunpack.c.l.b16 %v266
      %v379 = vunpack.c.l.b16 %v267
      %v380 = vunpack.c.l.b16 %v268
      %v381 = vunpack.c.l.b16 %v269
      %v382 = vunpack.c.l.b16 %v270
      %v383 = vunpack.c.l.b16 %v271
      %v384 = vunpack.c.l.b16 %v272
      %v385 = vunpack.c.l.b16 %v273
      %v386 = vunpack.c.l.b16 %v274
      %v387 = vunpack.c.l.b16 %v275
      %v388 = vunpack.c.l.b16 %v276
      %v389 = vpack.c.b16 %v342, %v341
      %v390 = vpack.c.b16 %v344, %v343
      %v391 = vpack.c.b16 %v346, %v345
      %v392 = vpack.c.b16 %v348, %v347
      %v393 = vpack.c.b16 %v350, %v349
      %v394 = vpack.c.b16 %v352, %v351
      %v395 = vpack.c.b16 %v354, %v353
      %v396 = vpack.c.b16 %v356, %v355
      %v397 = vpack.c.b16 %v358, %v357
      %v398 = vpack.c.b16 %v360, %v359
      %v399 = vpack.c.b16 %v362, %v361
      %v400 = vpack.c.b16 %v364, %v363
      %v401 = vpack.c.b16 %v366, %v365
      %v402 = vpack.c.b16 %v368, %v367
      %v403 = vpack.c.b16 %v370, %v369
      %v404 = vpack.c.b16 %v372, %v371
      %v405 = vpack.c.b16 %v374, %v373
      %v406 = vpack.c.b16 %v376, %v375
      %v407 = vpack.c.b16 %v378, %v377
      %v408 = vpack.c.b16 %v380, %v379
      %v409 = vpack.c.b16 %v382, %v381
      %v410 = vpack.c.b16 %v384, %v383
      %v411 = vpack.c.b16 %v386, %v385
      %v412 = vpack.c.b16 %v388, %v387
      %437 = vmatpush.bf16.msra.mxu0 %v396
      %438 = vmatpush.bf16.msra.mxu0 %v395
      %439 = vmatpush.bf16.msra.mxu0 %v394
      %440 = vmatpush.bf16.msra.mxu0 %v393
      %441 = vmatpush.bf16.msra.mxu0 %v392
      %442 = vmatpush.bf16.msra.mxu0 %v391
      %443 = vmatpush.bf16.msra.mxu0 %v390
      %444 = vmatpush.bf16.msra.mxu0 %v389
      %445 = vmatmul.bf16.gmra.mxu0 %v287
      %v446 = vpop.f32.mrf.mxu0
      %v447 = vadd.f32 0.0, %v446
      %v448 = vpop.f32.mrf.mxu0
      %v449 = vadd.f32 0.0, %v448
      %450 = vdwg.mxu0
      %451 = vmatpush.bf16.msra.mxu0 %v404
      %452 = vmatpush.bf16.msra.mxu0 %v403
      %453 = vmatpush.bf16.msra.mxu0 %v402
      %454 = vmatpush.bf16.msra.mxu0 %v401
      %455 = vmatpush.bf16.msra.mxu0 %v400
      %456 = vmatpush.bf16.msra.mxu0 %v399
      %457 = vmatpush.bf16.msra.mxu0 %v398
      %458 = vmatpush.bf16.msra.mxu0 %v397
      %459 = vmatmul.bf16.gmra.mxu0 %v288
      %v460 = vpop.f32.mrf.mxu0
      %v461 = vadd.f32 %v447, %v460
      %v462 = vpop.f32.mrf.mxu0
      %v463 = vadd.f32 %v449, %v462
      %464 = vdwg.mxu0
      %465 = vmatpush.bf16.msra.mxu0 %v412
      %466 = vmatpush.bf16.msra.mxu0 %v411
      %467 = vmatpush.bf16.msra.mxu0 %v410
      %468 = vmatpush.bf16.msra.mxu0 %v409
      %469 = vmatpush.bf16.msra.mxu0 %v408
      %470 = vmatpush.bf16.msra.mxu0 %v407
      %471 = vmatpush.bf16.msra.mxu0 %v406
      %472 = vmatpush.bf16.msra.mxu0 %v405
      %473 = vmatmul.bf16.gmra.mxu0 %v289
      %v474 = vpop.f32.mrf.mxu0
      %v475 = vadd.f32 %v461, %v474
      %v476 = vpop.f32.mrf.mxu0
      %v477 = vadd.f32 %v463, %v476
      %478 = vdwg.mxu0
      %v479 = vpack.c.bf16 %v475, %v475
      %v480 = vpack.c.bf16 %v477, %v477
      %481 = vst [vmem:[%s215] sm:$0xf] %v479
      %482 = vst [vmem:[%s215 + $0x4] sm:$0xf] %v480
      %v483 = vlaneseq
      %v484 = vshrl.u32 %v483, 7
      %vm485 = vcmp.eq.s32.totalorder %v484, 0
      %v486 = vadd.f32 %v475, %v477
      %v487 = vrot.slane %v486, 4
      %v488 = vadd.f32 %v486, %v487
      %v489 = vrot.slane %v488, 2
      %v490 = vadd.f32 %v488, %v489
      %v491 = vrot.slane %v490, 1
      %v492 = vadd.f32 %v490, %v491
      %v493 = vsel %vm485, %v492, 0.0
      %494 = vst [vmem:[%s220] sm:$0xff] %v493
      %v495 = vmul.f32 %v475, %v475
      %v496 = vmul.f32 %v477, %v477
      %v497 = vadd.f32 %v495, %v496
      %v498 = vrot.slane %v497, 4
      %v499 = vadd.f32 %v497, %v498
      %v500 = vrot.slane %v499, 2
      %v501 = vadd.f32 %v499, %v500
      %v502 = vrot.slane %v501, 1
      %v503 = vadd.f32 %v501, %v502
      %v504 = vsel %vm485, %v503, 0.0
      %505 = vst [vmem:[%s224] sm:$0xff] %v504
      %s506 = smul.u32 2, %s16
      %p507 = scmp.lt.s32.totalorder %s506, 3
      %s508 = scalar_select %p507, %s506, 3
      %s509 = smul.addr %s508, 4
      %s510 = scalar_lea.vmem %s2, %s509
      %p511 = scmp.lt.s32.totalorder %s16, 1
      %s512 = scalar_select %p511, %s16, 1
      %s513 = smul.addr %s512, 8
      %s514 = scalar_lea.vmem %s3, %s513
      %p515 = scmp.lt.s32.totalorder %s16, 1
      %s516 = scalar_select %p515, %s16, 1
      %s517 = smul.addr %s516, 8
      %s518 = scalar_lea.vmem %s4, %s517
      // Predicated region
      $region29: #{preact_resnet_forward.28} parent=27 // pred_check
        %p519 = pneg %p81
      $region30: #{preact_resnet_forward.28} parent=27 // pred_check_branch
        %521 = sbr.rel (%p519) target = $region32
      $region31: #{preact_resnet_forward.28} parent=27 // pred_region
        %s522 = smul.u32 2, %s16
      $region32: #{preact_resnet_forward.28} parent=27 // pred_fallthru
        _
      // Predicated region
      $region33: #{preact_resnet_forward.28} parent=27 // pred_check
        %p523 = pneg %p107
      $region34: #{preact_resnet_forward.28} parent=27 // pred_check_branch
        %525 = sbr.rel (%p523) target = $region36
      $region35: #{preact_resnet_forward.28} parent=27 // pred_region
        _
      $region36: #{preact_resnet_forward.28} parent=27 // pred_fallthru
        _
      // Predicated region
      $region37: #{preact_resnet_forward.28} parent=27 // pred_check
        %p526 = pneg %p133
      $region38: #{preact_resnet_forward.28} parent=27 // pred_check_branch
        %528 = sbr.rel (%p526) target = $region40
      $region39: #{preact_resnet_forward.28} parent=27 // pred_region
        _
      $region40: #{preact_resnet_forward.28} parent=27 // pred_fallthru
        _
    $region28: #{preact_resnet_forward.28} parent=5 // pred_fallthru
      _
    %p529 = scmp.le.s32.totalorder 2, %s11
    // Predicated region
    $region41: #{preact_resnet_forward.28} parent=5 // pred_check
      %p530 = pneg %p529
    $region42: #{preact_resnet_forward.28} parent=5 // pred_check_branch
      %532 = sbr.rel (%p530) target = $region44
    $region43: #{preact_resnet_forward.28} parent=5 // pred_region
      %s533 = ssub.s32 %s11, 2
      // Predicated region
      $region45: #{preact_resnet_forward.28} parent=43 // pred_check
        %p534 = pneg %p87
      $region46: #{preact_resnet_forward.28} parent=43 // pred_check_branch
        %536 = sbr.rel (%p534) target = $region48
      $region47: #{preact_resnet_forward.28} parent=43 // pred_region
        %s537 = smul.u32 2, %s17
        %p538 = scmp.lt.s32.totalorder %s537, 3
        %s539 = scalar_select %p538, %s537, 3
        %s540 = smul.addr %s539, 4
        %s541 = scalar_lea.vmem %s2, %s540
      $region48: #{preact_resnet_forward.28} parent=43 // pred_fallthru
        _
      // Predicated region
      $region49: #{preact_resnet_forward.28} parent=43 // pred_check
        %p542 = pneg %p113
      $region50: #{preact_resnet_forward.28} parent=43 // pred_check_branch
        %544 = sbr.rel (%p542) target = $region52
      $region51: #{preact_resnet_forward.28} parent=43 // pred_region
        %p545 = scmp.lt.s32.totalorder %s17, 1
        %s546 = scalar_select %p545, %s17, 1
        %s547 = smul.addr %s546, 8
        %s548 = scalar_lea.vmem %s3, %s547
      $region52: #{preact_resnet_forward.28} parent=43 // pred_fallthru
        _
      // Predicated region
      $region53: #{preact_resnet_forward.28} parent=43 // pred_check
        %p549 = pneg %p139
      $region54: #{preact_resnet_forward.28} parent=43 // pred_check_branch
        %551 = sbr.rel (%p549) target = $region56
      $region55: #{preact_resnet_forward.28} parent=43 // pred_region
        %p552 = scmp.lt.s32.totalorder %s17, 1
        %s553 = scalar_select %p552, %s17, 1
        %s554 = smul.addr %s553, 8
        %s555 = scalar_lea.vmem %s4, %s554
      $region56: #{preact_resnet_forward.28} parent=43 // pred_fallthru
        _
    $region44: #{preact_resnet_forward.28} parent=5 // pred_fallthru
      _
  $region6: #{preact_resnet_forward.28} parent=0 // loop_footer
    %s15 = sadd.s32 1, %s11
  $region7: #{preact_resnet_forward.28} parent=0 // loop_footer_branch
    %10 = sbr.rel target = $region3
  $region8: #{preact_resnet_forward.28} parent=0 // loop_exit
    _

// kernel: preact_resnet_forward.30
$region0: #{preact_resnet_forward.30}
  #allocation0 [shape = 'u32[]', space=smem, size = 0x4, offset = 0x4, fixed_abs, tag = 'smem constant byte address 0x4 - core index']
  #allocation1 [shape = 'u32[72,128]{1,0:T(1,128)}', space=vmem, size = 0x9000, scoped, tag = 'internal scratch']
  %s0 = inlined_call_operand.vmem [shape: bf16[32,640], index: 0, kind: input, shape index: {}]
  %s1 = inlined_call_operand.vmem [shape: bf16[640,128], index: 1, kind: input, shape index: {}]
  %s2 = inlined_call_operand.vmem [shape: bf16[32,128], index: 2, kind: input, shape index: {}]
  %s3 = inlined_call_operand.vmem [shape: bf16[32,128], index: 3, kind: output, shape index: {0}]
  %s4 = inlined_call_operand.vmem [shape: f32[16,128], index: 4, kind: output, shape index: {1}]
  %s5 = inlined_call_operand.vmem [shape: f32[16,128], index: 5, kind: output, shape index: {2}]
  %6 = xla_tuple %s3, %s4, %s5
  %s7 = sld [smem:[#allocation0]]
  $region61: #{preact_resnet_forward.30} parent=0
    _
  %s9 = ssub.s32 1, %s7
  %s10 = scalar_select 0, %s9, %s7
  loop: start=0, step=1, limit=4
  $region2: #{preact_resnet_forward.30} parent=0 // loop_pre_header
    _
  $region3: #{preact_resnet_forward.30} parent=0 // loop_header
    %s12 = sphi 0, %s16
    %p13 = scmp.ge.s32.totalorder %s12, 4
    %s22 = sphi 0, %s24
    %s25 = sphi 0, %s22
    %s26 = sphi 0, %s25
    %s42 = sphi 0, %s26
    %s46 = sphi 0, %s46
    %s48 = sphi 0, %s46
    %s49 = sphi 0, %s48
    %s63 = sphi 0, %s49
    %s69 = sphi 0, %s71
    %s72 = sphi 0, %s69
    %s73 = sphi 0, %s72
    %s89 = sphi 0, %s73
    %s95 = sphi 0, %s97
    %s98 = sphi 0, %s95
    %s99 = sphi 0, %s98
    %s115 = sphi 0, %s99
    %s121 = sphi 0, %s123
    %s124 = sphi 0, %s121
    %s125 = sphi 0, %s124
    %s141 = sphi 0, %s125
    %s147 = sphi 0, %s149
    %s150 = sphi 0, %s147
    %s151 = sphi 0, %s150
    %s167 = sphi 0, %s151
  $region4: #{preact_resnet_forward.30} parent=0 // loop_header_branch
    %15 = sbr.rel (%p13) target = $region8
  $region5: #{preact_resnet_forward.30} parent=0 // loop_body
    %s17 = ssub.s32 %s12, 1
    %s18 = ssub.s32 %s12, 2
    %s19 = sadd.s32 %s12, 1
    %s20 = ssub.s32 %s12, %s19
    %p21 = scmp.eq.s32.totalorder %s20, 0
    %s23 = sadd.s32 %s22, 1
    %s24 = scalar_select %p21, %s22, %s23
    %p27 = pneg %p21
    %p28 = scmp.eq.s32.totalorder %s12, 1
    %p29 = por %p27, %p28
    %p30 = scmp.ne.s32.totalorder %s22, %s25
    %p31 = scmp.eq.s32.totalorder %s12, 0
    %p32 = por %p30, %p31
    %p33 = scmp.ne.s32.totalorder %s22, %s25
    %p34 = scmp.eq.s32.totalorder %s17, 1
    %p35 = por %p33, %p34
    %p36 = scmp.ne.s32.totalorder %s25, %s26
    %p37 = scmp.eq.s32.totalorder %s17, 0
    %p38 = por %p36, %p37
    %p39 = scmp.ne.s32.totalorder %s25, %s26
    %p40 = scmp.eq.s32.totalorder %s18, 1
    %p41 = por %p39, %p40
    %p43 = scmp.ne.s32.totalorder %s26, %s42
    %p44 = scmp.eq.s32.totalorder %s18, 0
    %p45 = por %p43, %p44
    %s47 = sadd.s32 %s46, 1
    %p50 = scmp.eq.s32.totalorder %s12, 1
    %p51 = scmp.ne.s32.totalorder %s46, %s48
    %p52 = scmp.eq.s32.totalorder %s12, 0
    %p53 = por %p51, %p52
    %p54 = scmp.ne.s32.totalorder %s46, %s48
    %p55 = scmp.eq.s32.totalorder %s17, 1
    %p56 = por %p54, %p55
    %p57 = scmp.ne.s32.totalorder %s48, %s49
    %p58 = scmp.eq.s32.totalorder %s17, 0
    %p59 = por %p57, %p58
    %p60 = scmp.ne.s32.totalorder %s48, %s49
    %p61 = scmp.eq.s32.totalorder %s18, 1
    %p62 = por %p60, %p61
    %p64 = scmp.ne.s32.totalorder %s49, %s63
    %p65 = scmp.eq.s32.totalorder %s18, 0
    %p66 = por %p64, %p65
    %s67 = ssub.s32 %s12, %s19
    %p68 = scmp.eq.s32.totalorder %s67, 0
    %s70 = sadd.s32 %s69, 1
    %s71 = scalar_select %p68, %s69, %s70
    %p74 = pneg %p68
    %p75 = scmp.eq.s32.totalorder %s12, 1
    %p76 = por %p74, %p75
    %p77 = scmp.ne.s32.totalorder %s69, %s72
    %p78 = scmp.eq.s32.totalorder %s12, 0
    %p79 = por %p77, %p78
    %p80 = scmp.ne.s32.totalorder %s69, %s72
    %p81 = scmp.eq.s32.totalorder %s17, 1
    %p82 = por %p80, %p81
    %p83 = scmp.ne.s32.totalorder %s72, %s73
    %p84 = scmp.eq.s32.totalorder %s17, 0
    %p85 = por %p83, %p84
    %p86 = scmp.ne.s32.totalorder %s72, %s73
    %p87 = scmp.eq.s32.totalorder %s18, 1
    %p88 = por %p86, %p87
    %p90 = scmp.ne.s32.totalorder %s73, %s89
    %p91 = scmp.eq.s32.totalorder %s18, 0
    %p92 = por %p90, %p91
    %s93 = ssub.s32 %s12, %s19
    %p94 = scmp.eq.s32.totalorder %s93, 0
    %s96 = sadd.s32 %s95, 1
    %s97 = scalar_select %p94, %s95, %s96
    %p100 = pneg %p94
    %p101 = scmp.eq.s32.totalorder %s12, 1
    %p102 = por %p100, %p101
    %p103 = scmp.ne.s32.totalorder %s95, %s98
    %p104 = scmp.eq.s32.totalorder %s12, 0
    %p105 = por %p103, %p104
    %p106 = scmp.ne.s32.totalorder %s95, %s98
    %p107 = scmp.eq.s32.totalorder %s17, 1
    %p108 = por %p106, %p107
    %p109 = scmp.ne.s32.totalorder %s98, %s99
    %p110 = scmp.eq.s32.totalorder %s17, 0
    %p111 = por %p109, %p110
    %p112 = scmp.ne.s32.totalorder %s98, %s99
    %p113 = scmp.eq.s32.totalorder %s18, 1
    %p114 = por %p112, %p113
    %p116 = scmp.ne.s32.totalorder %s99, %s115
    %p117 = scmp.eq.s32.totalorder %s18, 0
    %p118 = por %p116, %p117
    %s119 = ssub.s32 %s12, %s19
    %p120 = scmp.eq.s32.totalorder %s119, 0
    %s122 = sadd.s32 %s121, 1
    %s123 = scalar_select %p120, %s121, %s122
    %p126 = pneg %p120
    %p127 = scmp.eq.s32.totalorder %s12, 1
    %p128 = por %p126, %p127
    %p129 = scmp.ne.s32.totalorder %s121, %s124
    %p130 = scmp.eq.s32.totalorder %s12, 0
    %p131 = por %p129, %p130
    %p132 = scmp.ne.s32.totalorder %s121, %s124
    %p133 = scmp.eq.s32.totalorder %s17, 1
    %p134 = por %p132, %p133
    %p135 = scmp.ne.s32.totalorder %s124, %s125
    %p136 = scmp.eq.s32.totalorder %s17, 0
    %p137 = por %p135, %p136
    %p138 = scmp.ne.s32.totalorder %s124, %s125
    %p139 = scmp.eq.s32.totalorder %s18, 1
    %p140 = por %p138, %p139
    %p142 = scmp.ne.s32.totalorder %s125, %s141
    %p143 = scmp.eq.s32.totalorder %s18, 0
    %p144 = por %p142, %p143
    %s145 = ssub.s32 %s12, %s19
    %p146 = scmp.eq.s32.totalorder %s145, 0
    %s148 = sadd.s32 %s147, 1
    %s149 = scalar_select %p146, %s147, %s148
    %p152 = pneg %p146
    %p153 = scmp.eq.s32.totalorder %s12, 1
    %p154 = por %p152, %p153
    %p155 = scmp.ne.s32.totalorder %s147, %s150
    %p156 = scmp.eq.s32.totalorder %s12, 0
    %p157 = por %p155, %p156
    %p158 = scmp.ne.s32.totalorder %s147, %s150
    %p159 = scmp.eq.s32.totalorder %s17, 1
    %p160 = por %p158, %p159
    %p161 = scmp.ne.s32.totalorder %s150, %s151
    %p162 = scmp.eq.s32.totalorder %s17, 0
    %p163 = por %p161, %p162
    %p164 = scmp.ne.s32.totalorder %s150, %s151
    %p165 = scmp.eq.s32.totalorder %s18, 1
    %p166 = por %p164, %p165
    %p168 = scmp.ne.s32.totalorder %s151, %s167
    %p169 = scmp.eq.s32.totalorder %s18, 0
    %p170 = por %p168, %p169
    %p171 = scmp.le.s32.totalorder 1, %s12
    %p172 = scmp.lt.s32.totalorder %s12, 3
    %p173 = pnand %p171, %p172
    %p174 = pneg %p173
    // Predicated region
    $region9: #{preact_resnet_forward.30} parent=5 // pred_check
      _
    $region10: #{preact_resnet_forward.30} parent=5 // pred_check_branch
      %176 = sbr.rel (%p173) target = $region12
    $region11: #{preact_resnet_forward.30} parent=5 // pred_region
      %s177 = ssub.s32 %s12, 1
      // Predicated region
      $region13: #{preact_resnet_forward.30} parent=11 // pred_check
        %p178 = pneg %p59
      $region14: #{preact_resnet_forward.30} parent=11 // pred_check_branch
        %180 = sbr.rel (%p178) target = $region16
      $region15: #{preact_resnet_forward.30} parent=11 // pred_region
        _
      $region16: #{preact_resnet_forward.30} parent=11 // pred_fallthru
        _
    $region12: #{preact_resnet_forward.30} parent=5 // pred_fallthru
      _
    %p181 = scmp.lt.s32.totalorder %s12, 2
    // Predicated region
    $region17: #{preact_resnet_forward.30} parent=5 // pred_check
      %p182 = pneg %p181
    $region18: #{preact_resnet_forward.30} parent=5 // pred_check_branch
      %184 = sbr.rel (%p182) target = $region20
    $region19: #{preact_resnet_forward.30} parent=5 // pred_region
      // Predicated region
      $region21: #{preact_resnet_forward.30} parent=19 // pred_check
        %p185 = pneg %p32
      $region22: #{preact_resnet_forward.30} parent=19 // pred_check_branch
        %187 = sbr.rel (%p185) target = $region24
      $region23: #{preact_resnet_forward.30} parent=19 // pred_region
        %s188 = smul.u32 2, %s12
        %p189 = scmp.lt.s32.totalorder %s188, 3
        %s190 = scalar_select %p189, %s188, 3
        %s191 = smul.addr %s190, 5
        %s192 = smul.addr %s191, 4
        %s193 = scalar_lea.vmem %s0, %s192
        %s194 = smul.u32 2, %s12
      $region24: #{preact_resnet_forward.30} parent=19 // pred_fallthru
        _
      // Predicated region
      $region25: #{preact_resnet_forward.30} parent=19 // pred_check
        %p195 = pneg %p79
      $region26: #{preact_resnet_forward.30} parent=19 // pred_check_branch
        %197 = sbr.rel (%p195) target = $region28
      $region27: #{preact_resnet_forward.30} parent=19 // pred_region
        %s198 = smul.u32 2, %s12
        %p199 = scmp.lt.s32.totalorder %s198, 3
        %s200 = scalar_select %p199, %s198, 3
        %s201 = smul.addr %s200, 4
        %s202 = scalar_lea.vmem %s2, %s201
        %s203 = smul.u32 2, %s12
      $region28: #{preact_resnet_forward.30} parent=19 // pred_fallthru
        _
    $region20: #{preact_resnet_forward.30} parent=5 // pred_fallthru
      _
    %p204 = scmp.le.s32.totalorder 1, %s12
    %p205 = scmp.lt.s32.totalorder %s12, 3
    %p206 = pnand %p204, %p205
    %p207 = pneg %p206
    // Predicated region
    $region29: #{preact_resnet_forward.30} parent=5 // pred_check
      _
    $region30: #{preact_resnet_forward.30} parent=5 // pred_check_branch
      %209 = sbr.rel (%p206) target = $region32
    $region31: #{preact_resnet_forward.30} parent=5 // pred_region
      %s210 = ssub.s32 %s12, 1
      %s211 = smul.u32 2, %s17
      %p212 = scmp.lt.s32.totalorder %s211, 3
      %s213 = scalar_select %p212, %s211, 3
      %s214 = smul.addr %s213, 5
      %s215 = smul.addr %s214, 4
      %s216 = scalar_lea.vmem %s0, %s215
      %p217 = pneg %p38
      %p218 = pneg %p35
      %p219 = pneg %p59
      %p220 = pneg %p56
      %s221 = smul.u32 2, %s17
      %p222 = scmp.lt.s32.totalorder %s221, 3
      %s223 = scalar_select %p222, %s221, 3
      %s224 = smul.addr %s223, 4
      %s225 = scalar_lea.vmem %s2, %s224
      %p226 = pneg %p85
      %p227 = pneg %p82
      %p228 = pneg %p111
      %p229 = pneg %p108
      %s230 = smul.u32 2, %s17
      %p231 = scmp.lt.s32.totalorder %s230, 3
      %s232 = scalar_select %p231, %s230, 3
      %s233 = smul.addr %s232, 4
      %s234 = scalar_lea.vmem %s3, %s233
      %p235 = pneg %p137
      %p236 = pneg %p134
      %p237 = scmp.lt.s32.totalorder %s17, 1
      %s238 = scalar_select %p237, %s17, 1
      %s239 = smul.addr %s238, 8
      %s240 = scalar_lea.vmem %s4, %s239
      %p241 = pneg %p163
      %p242 = pneg %p160
      %p243 = scmp.lt.s32.totalorder %s17, 1
      %s244 = scalar_select %p243, %s17, 1
      %s245 = smul.addr %s244, 8
      %s246 = scalar_lea.vmem %s5, %s245
      %s247 = smul.u32 2, %s17
      %p248 = scmp.lt.s32.totalorder %s247, 3
      %s249 = scalar_select %p248, %s247, 3
      %s250 = smul.addr %s249, 5
      %s251 = smul.addr %s250, 4
      %s252 = scalar_lea.vmem %s0, %s251
      %s253 = smul.u32 2, %s17
      %s254 = smul.u32 2, %s17
      %p255 = scmp.lt.s32.totalorder %s254, 3
      %s256 = scalar_select %p255, %s254, 3
      %s257 = smul.addr %s256, 4
      %s258 = scalar_lea.vmem %s2, %s257
      %s259 = smul.u32 2, %s17
      %s260 = smul.u32 2, %s17
      %p261 = scmp.lt.s32.totalorder %s260, 3
      %s262 = scalar_select %p261, %s260, 3
      %s263 = smul.addr %s262, 4
      %s264 = scalar_lea.vmem %s3, %s263
      %s265 = smul.u32 2, %s17
      %p266 = scmp.lt.s32.totalorder %s17, 1
      %s267 = scalar_select %p266, %s17, 1
      %s268 = smul.addr %s267, 8
      %s269 = scalar_lea.vmem %s4, %s268
      %p270 = scmp.lt.s32.totalorder %s17, 1
      %s271 = scalar_select %p270, %s17, 1
      %s272 = smul.addr %s271, 8
      %s273 = scalar_lea.vmem %s5, %s272
      %v274 = vld [vmem:[%s252] sm:$0xff]
      %v275 = vld [vmem:[%s252 + $0x8] sm:$0xff]
      %v276 = vld [vmem:[%s252 + $0x10] sm:$0xf]
      %v277 = vld [vmem:[%s252 + $0x14] sm:$0xff]
      %v278 = vld [vmem:[%s252 + $0x1c] sm:$0xff]
      %v279 = vld [vmem:[%s252 + $0x24] sm:$0xf]
      %v280 = vld [vmem:[%s1] sm:$0xf]
      %v281 = vld [vmem:[%s1 + $0x4] sm:$0xf]
      %v282 = vld [vmem:[%s1 + $0x8] sm:$0xf]
      %v283 = vld [vmem:[%s1 + $0xc] sm:$0xf]
      %v284 = vld [vmem:[%s1 + $0x10] sm:$0xf]
      %v285 = vld [vmem:[%s1 + $0x14] sm:$0xf]
      %v286 = vld [vmem:[%s1 + $0x18] sm:$0xf]
      %v287 = vld [vmem:[%s1 + $0x1c] sm:$0xf]
      %v288 = vld [vmem:[%s1 + $0x20] sm:$0xf]
      %v289 = vld [vmem:[%s1 + $0x24] sm:$0xf]
      %v290 = vld [vmem:[%s1 + $0x28] sm:$0xf]
      %v291 = vld [vmem:[%s1 + $0x2c] sm:$0xf]
      %v292 = vld [vmem:[%s1 + $0x30] sm:$0xf]
      %v293 = vld [vmem:[%s1 + $0x34] sm:$0xf]
      %v294 = vld [vmem:[%s1 + $0x38] sm:$0xf]
      %v295 = vld [vmem:[%s1 + $0x3c] sm:$0xf]
      %v296 = vld [vmem:[%s1 + $0x40] sm:$0xf]
      %v297 = vld [vmem:[%s1 + $0x44] sm:$0xf]
      %v298 = vld [vmem:[%s1 + $0x48] sm:$0xf]
      %v299 = vld [vmem:[%s1 + $0x4c] sm:$0xf]
      %v300 = vld [vmem:[%s1 + $0x50] sm:$0xf]
      %v301 = vld [vmem:[%s1 + $0x54] sm:$0xf]
      %v302 = vld [vmem:[%s1 + $0x58] sm:$0xf]
      %v303 = vld [vmem:[%s1 + $0x5c] sm:$0xf]
      %v304 = vld [vmem:[%s1 + $0x60] sm:$0xf]
      %v305 = vld [vmem:[%s1 + $0x64] sm:$0xf]
      %v306 = vld [vmem:[%s1 + $0x68] sm:$0xf]
      %v307 = vld [vmem:[%s1 + $0x6c] sm:$0xf]
      %v308 = vld [vmem:[%s1 + $0x70] sm:$0xf]
      %v309 = vld [vmem:[%s1 + $0x74] sm:$0xf]
      %v310 = vld [vmem:[%s1 + $0x78] sm:$0xf]
      %v311 = vld [vmem:[%s1 + $0x7c] sm:$0xf]
      %v312 = vld [vmem:[%s1 + $0x80] sm:$0xf]
      %v313 = vld [vmem:[%s1 + $0x84] sm:$0xf]
      %v314 = vld [vmem:[%s1 + $0x88] sm:$0xf]
      %v315 = vld [vmem:[%s1 + $0x8c] sm:$0xf]
      %v316 = vld [vmem:[%s1 + $0x90] sm:$0xf]
      %v317 = vld [vmem:[%s1 + $0x94] sm:$0xf]
      %v318 = vld [vmem:[%s1 + $0x98] sm:$0xf]
      %v319 = vld [vmem:[%s1 + $0x9c] sm:$0xf]
      %v320 = vld [vmem:[%s1 + $0xa0] sm:$0xf]
      %v321 = vld [vmem:[%s1 + $0xa4] sm:$0xf]
      %v322 = vld [vmem:[%s1 + $0xa8] sm:$0xf]
      %v323 = vld [vmem:[%s1 + $0xac] sm:$0xf]
      %v324 = vld [vmem:[%s1 + $0xb0] sm:$0xf]
      %v325 = vld [vmem:[%s1 + $0xb4] sm:$0xf]
      %v326 = vld [vmem:[%s1 + $0xb8] sm:$0xf]
      %v327 = vld [vmem:[%s1 + $0xbc] sm:$0xf]
      %v328 = vld [vmem:[%s1 + $0xc0] sm:$0xf]
      %v329 = vld [vmem:[%s1 + $0xc4] sm:$0xf]
      %v330 = vld [vmem:[%s1 + $0xc8] sm:$0xf]
      %v331 = vld [vmem:[%s1 + $0xcc] sm:$0xf]
      %v332 = vld [vmem:[%s1 + $0xd0] sm:$0xf]
      %v333 = vld [vmem:[%s1 + $0xd4] sm:$0xf]
      %v334 = vld [vmem:[%s1 + $0xd8] sm:$0xf]
      %v335 = vld [vmem:[%s1 + $0xdc] sm:$0xf]
      %v336 = vld [vmem:[%s1 + $0xe0] sm:$0xf]
      %v337 = vld [vmem:[%s1 + $0xe4] sm:$0xf]
      %v338 = vld [vmem:[%s1 + $0xe8] sm:$0xf]
      %v339 = vld [vmem:[%s1 + $0xec] sm:$0xf]
      %v340 = vld [vmem:[%s1 + $0xf0] sm:$0xf]
      %v341 = vld [vmem:[%s1 + $0xf4] sm:$0xf]
      %v342 = vld [vmem:[%s1 + $0xf8] sm:$0xf]
      %v343 = vld [vmem:[%s1 + $0xfc] sm:$0xf]
      %v344 = vld [vmem:[%s1 + $0x100] sm:$0xf]
      %v345 = vld [vmem:[%s1 + $0x104] sm:$0xf]
      %v346 = vld [vmem:[%s1 + $0x108] sm:$0xf]
      %v347 = vld [vmem:[%s1 + $0x10c] sm:$0xf]
      %v348 = vld [vmem:[%s1 + $0x110] sm:$0xf]
      %v349 = vld [vmem:[%s1 + $0x114] sm:$0xf]
      %v350 = vld [vmem:[%s1 + $0x118] sm:$0xf]
      %v351 = vld [vmem:[%s1 + $0x11c] sm:$0xf]
      %v352 = vld [vmem:[%s1 + $0x120] sm:$0xf]
      %v353 = vld [vmem:[%s1 + $0x124] sm:$0xf]
      %v354 = vld [vmem:[%s1 + $0x128] sm:$0xf]
      %v355 = vld [vmem:[%s1 + $0x12c] sm:$0xf]
      %v356 = vld [vmem:[%s1 + $0x130] sm:$0xf]
      %v357 = vld [vmem:[%s1 + $0x134] sm:$0xf]
      %v358 = vld [vmem:[%s1 + $0x138] sm:$0xf]
      %v359 = vld [vmem:[%s1 + $0x13c] sm:$0xf]
      %v360 = vld [vmem:[%s258] sm:$0xf]
      %v361 = vld [vmem:[%s258 + $0x4] sm:$0xf]
      %v362 = vunpack.c.l.bf16 %v360
      %v363 = vunpack.c.l.bf16 %v361
      %v370 = vunpack.c.l.b16 %v274
      %v371 = vunpack.c.h.b16 %v274
      %v372 = vunpack.c.l.b16 %v275
      %v373 = vunpack.c.h.b16 %v275
      %v374 = vunpack.c.l.b16 %v276
      %v375 = vunpack.c.l.b16 %v277
      %v376 = vunpack.c.h.b16 %v277
      %v377 = vunpack.c.l.b16 %v278
      %v378 = vunpack.c.h.b16 %v278
      %v379 = vunpack.c.l.b16 %v279
      %v380 = vpack.c.b16 %v375, %v370
      %v381 = vpack.c.b16 %v376, %v371
      %v382 = vpack.c.b16 %v377, %v372
      %v383 = vpack.c.b16 %v378, %v373
      %v384 = vpack.c.b16 %v379, %v374
      %v470 = vunpack.c.l.b16 %v280
      %v471 = vunpack.c.l.b16 %v281
      %v472 = vunpack.c.l.b16 %v282
      %v473 = vunpack.c.l.b16 %v283
      %v474 = vunpack.c.l.b16 %v284
      %v475 = vunpack.c.l.b16 %v285
      %v476 = vunpack.c.l.b16 %v286
      %v477 = vunpack.c.l.b16 %v287
      %v478 = vunpack.c.l.b16 %v288
      %v479 = vunpack.c.l.b16 %v289
      %v480 = vunpack.c.l.b16 %v290
      %v481 = vunpack.c.l.b16 %v291
      %v482 = vunpack.c.l.b16 %v292
      %v483 = vunpack.c.l.b16 %v293
      %v484 = vunpack.c.l.b16 %v294
      %v485 = vunpack.c.l.b16 %v295
      %v486 = vunpack.c.l.b16 %v296
      %v487 = vunpack.c.l.b16 %v297
      %v488 = vunpack.c.l.b16 %v298
      %v489 = vunpack.c.l.b16 %v299
      %v490 = vunpack.c.l.b16 %v300
      %v491 = vunpack.c.l.b16 %v301
      %v492 = vunpack.c.l.b16 %v302
      %v493 = vunpack.c.l.b16 %v303
      %v494 = vunpack.c.l.b16 %v304
      %v495 = vunpack.c.l.b16 %v305
      %v496 = vunpack.c.l.b16 %v306
      %v497 = vunpack.c.l.b16 %v307
      %v498 = vunpack.c.l.b16 %v308
      %v499 = vunpack.c.l.b16 %v309
      %v500 = vunpack.c.l.b16 %v310
      %v501 = vunpack.c.l.b16 %v311
      %v502 = vunpack.c.l.b16 %v312
      %v503 = vunpack.c.l.b16 %v313
      %v504 = vunpack.c.l.b16 %v314
      %v505 = vunpack.c.l.b16 %v315
      %v506 = vunpack.c.l.b16 %v316
      %v507 = vunpack.c.l.b16 %v317
      %v508 = vunpack.c.l.b16 %v318
      %v509 = vunpack.c.l.b16 %v319
      %v510 = vunpack.c.l.b16 %v320
      %v511 = vunpack.c.l.b16 %v321
      %v512 = vunpack.c.l.b16 %v322
      %v513 = vunpack.c.l.b16 %v323
      %v514 = vunpack.c.l.b16 %v324
      %v515 = vunpack.c.l.b16 %v325
      %v516 = vunpack.c.l.b16 %v326
      %v517 = vunpack.c.l.b16 %v327
      %v518 = vunpack.c.l.b16 %v328
      %v519 = vunpack.c.l.b16 %v329
      %v520 = vunpack.c.l.b16 %v330
      %v521 = vunpack.c.l.b16 %v331
      %v522 = vunpack.c.l.b16 %v332
      %v523 = vunpack.c.l.b16 %v333
      %v524 = vunpack.c.l.b16 %v334
      %v525 = vunpack.c.l.b16 %v335
      %v526 = vunpack.c.l.b16 %v336
      %v527 = vunpack.c.l.b16 %v337
      %v528 = vunpack.c.l.b16 %v338
      %v529 = vunpack.c.l.b16 %v339
      %v530 = vunpack.c.l.b16 %v340
      %v531 = vunpack.c.l.b16 %v341
      %v532 = vunpack.c.l.b16 %v342
      %v533 = vunpack.c.l.b16 %v343
      %v534 = vunpack.c.l.b16 %v344
      %v535 = vunpack.c.l.b16 %v345
      %v536 = vunpack.c.l.b16 %v346
      %v537 = vunpack.c.l.b16 %v347
      %v538 = vunpack.c.l.b16 %v348
      %v539 = vunpack.c.l.b16 %v349
      %v540 = vunpack.c.l.b16 %v350
      %v541 = vunpack.c.l.b16 %v351
      %v542 = vunpack.c.l.b16 %v352
      %v543 = vunpack.c.l.b16 %v353
      %v544 = vunpack.c.l.b16 %v354
      %v545 = vunpack.c.l.b16 %v355
      %v546 = vunpack.c.l.b16 %v356
      %v547 = vunpack.c.l.b16 %v357
      %v548 = vunpack.c.l.b16 %v358
      %v549 = vunpack.c.l.b16 %v359
      %v550 = vpack.c.b16 %v471, %v470
      %v551 = vpack.c.b16 %v473, %v472
      %v552 = vpack.c.b16 %v475, %v474
      %v553 = vpack.c.b16 %v477, %v476
      %v554 = vpack.c.b16 %v479, %v478
      %v555 = vpack.c.b16 %v481, %v480
      %v556 = vpack.c.b16 %v483, %v482
      %v557 = vpack.c.b16 %v485, %v484
      %v558 = vpack.c.b16 %v487, %v486
      %v559 = vpack.c.b16 %v489, %v488
      %v560 = vpack.c.b16 %v491, %v490
      %v561 = vpack.c.b16 %v493, %v492
      %v562 = vpack.c.b16 %v495, %v494
      %v563 = vpack.c.b16 %v497, %v496
      %v564 = vpack.c.b16 %v499, %v498
      %v565 = vpack.c.b16 %v501, %v500
      %v566 = vpack.c.b16 %v503, %v502
      %v567 = vpack.c.b16 %v505, %v504
      %v568 = vpack.c.b16 %v507, %v506
      %v569 = vpack.c.b16 %v509, %v508
      %v570 = vpack.c.b16 %v511, %v510
      %v571 = vpack.c.b16 %v513, %v512
      %v572 = vpack.c.b16 %v515, %v514
      %v573 = vpack.c.b16 %v517, %v516
      %v574 = vpack.c.b16 %v519, %v518
      %v575 = vpack.c.b16 %v521, %v520
      %v576 = vpack.c.b16 %v523, %v522
      %v577 = vpack.c.b16 %v525, %v524
      %v578 = vpack.c.b16 %v527, %v526
      %v579 = vpack.c.b16 %v529, %v528
      %v580 = vpack.c.b16 %v531, %v530
      %v581 = vpack.c.b16 %v533, %v532
      %v582 = vpack.c.b16 %v535, %v534
      %v583 = vpack.c.b16 %v537, %v536
      %v584 = vpack.c.b16 %v539, %v538
      %v585 = vpack.c.b16 %v541, %v540
      %v586 = vpack.c.b16 %v543, %v542
      %v587 = vpack.c.b16 %v545, %v544
      %v588 = vpack.c.b16 %v547, %v546
      %v589 = vpack.c.b16 %v549, %v548
      %630 = vmatpush.bf16.msra.mxu0 %v557
      %631 = vmatpush.bf16.msra.mxu0 %v556
      %632 = vmatpush.bf16.msra.mxu0 %v555
      %633 = vmatpush.bf16.msra.mxu0 %v554
      %634 = vmatpush.bf16.msra.mxu0 %v553
      %635 = vmatpush.bf16.msra.mxu0 %v552
      %636 = vmatpush.bf16.msra.mxu0 %v551
      %637 = vmatpush.bf16.msra.mxu0 %v550
      %638 = vmatmul.bf16.gmra.mxu0 %v380
      %v639 = vpop.f32.mrf.mxu0
      %v640 = vadd.f32 %v362, %v639
      %v641 = vpop.f32.mrf.mxu0
      %v642 = vadd.f32 %v363, %v641
      %643 = vdwg.mxu0
      %644 = vmatpush.bf16.msra.mxu0 %v565
      %645 = vmatpush.bf16.msra.mxu0 %v564
      %646 = vmatpush.bf16.msra.mxu0 %v563
      %647 = vmatpush.bf16.msra.mxu0 %v562
      %648 = vmatpush.bf16.msra.mxu0 %v561
      %649 = vmatpush.bf16.msra.mxu0 %v560
      %650 = vmatpush.bf16.msra.mxu0 %v559
      %651 = vmatpush.bf16.msra.mxu0 %v558
      %652 = vmatmul.bf16.gmra.mxu0 %v381
      %v653 = vpop.f32.mrf.mxu0
      %v654 = vadd.f32 %v640, %v653
      %v655 = vpop.f32.mrf.mxu0
      %v656 = vadd.f32 %v642, %v655
      %657 = vdwg.mxu0
      %658 = vmatpush.bf16.msra.mxu0 %v573
      %659 = vmatpush.bf16.msra.mxu0 %v572
      %660 = vmatpush.bf16.msra.mxu0 %v571
      %661 = vmatpush.bf16.msra.mxu0 %v570
      %662 = vmatpush.bf16.msra.mxu0 %v569
      %663 = vmatpush.bf16.msra.mxu0 %v568
      %664 = vmatpush.bf16.msra.mxu0 %v567
      %665 = vmatpush.bf16.msra.mxu0 %v566
      %666 = vmatmul.bf16.gmra.mxu0 %v382
      %v667 = vpop.f32.mrf.mxu0
      %v668 = vadd.f32 %v654, %v667
      %v669 = vpop.f32.mrf.mxu0
      %v670 = vadd.f32 %v656, %v669
      %671 = vdwg.mxu0
      %672 = vmatpush.bf16.msra.mxu0 %v581
      %673 = vmatpush.bf16.msra.mxu0 %v580
      %674 = vmatpush.bf16.msra.mxu0 %v579
      %675 = vmatpush.bf16.msra.mxu0 %v578
      %676 = vmatpush.bf16.msra.mxu0 %v577
      %677 = vmatpush.bf16.msra.mxu0 %v576
      %678 = vmatpush.bf16.msra.mxu0 %v575
      %679 = vmatpush.bf16.msra.mxu0 %v574
      %680 = vmatmul.bf16.gmra.mxu0 %v383
      %v681 = vpop.f32.mrf.mxu0
      %v682 = vadd.f32 %v668, %v681
      %v683 = vpop.f32.mrf.mxu0
      %v684 = vadd.f32 %v670, %v683
      %685 = vdwg.mxu0
      %686 = vmatpush.bf16.msra.mxu0 %v589
      %687 = vmatpush.bf16.msra.mxu0 %v588
      %688 = vmatpush.bf16.msra.mxu0 %v587
      %689 = vmatpush.bf16.msra.mxu0 %v586
      %690 = vmatpush.bf16.msra.mxu0 %v585
      %691 = vmatpush.bf16.msra.mxu0 %v584
      %692 = vmatpush.bf16.msra.mxu0 %v583
      %693 = vmatpush.bf16.msra.mxu0 %v582
      %694 = vmatmul.bf16.gmra.mxu0 %v384
      %v695 = vpop.f32.mrf.mxu0
      %v696 = vadd.f32 %v682, %v695
      %v697 = vpop.f32.mrf.mxu0
      %v698 = vadd.f32 %v684, %v697
      %699 = vdwg.mxu0
      %v700 = vpack.c.bf16 %v696, %v696
      %v701 = vpack.c.bf16 %v698, %v698
      %702 = vst [vmem:[%s264] sm:$0xf] %v700
      %703 = vst [vmem:[%s264 + $0x4] sm:$0xf] %v701
      %v704 = vlaneseq
      %v705 = vshrl.u32 %v704, 7
      %vm706 = vcmp.eq.s32.totalorder %v705, 0
      %v707 = vadd.f32 %v696, %v698
      %v708 = vrot.slane %v707, 4
      %v709 = vadd.f32 %v707, %v708
      %v710 = vrot.slane %v709, 2
      %v711 = vadd.f32 %v709, %v710
      %v712 = vrot.slane %v711, 1
      %v713 = vadd.f32 %v711, %v712
      %v714 = vsel %vm706, %v713, 0.0
      %715 = vst [vmem:[%s269] sm:$0xff] %v714
      %v716 = vmul.f32 %v696, %v696
      %v717 = vmul.f32 %v698, %v698
      %v718 = vadd.f32 %v716, %v717
      %v719 = vrot.slane %v718, 4
      %v720 = vadd.f32 %v718, %v719
      %v721 = vrot.slane %v720, 2
      %v722 = vadd.f32 %v720, %v721
      %v723 = vrot.slane %v722, 1
      %v724 = vadd.f32 %v722, %v723
      %v725 = vsel %vm706, %v724, 0.0
      %726 = vst [vmem:[%s273] sm:$0xff] %v725
      %s727 = smul.u32 2, %s17
      %p728 = scmp.lt.s32.totalorder %s727, 3
      %s729 = scalar_select %p728, %s727, 3
      %s730 = smul.addr %s729, 4
      %s731 = scalar_lea.vmem %s3, %s730
      %p732 = scmp.lt.s32.totalorder %s17, 1
      %s733 = scalar_select %p732, %s17, 1
      %s734 = smul.addr %s733, 8
      %s735 = scalar_lea.vmem %s4, %s734
      %p736 = scmp.lt.s32.totalorder %s17, 1
      %s737 = scalar_select %p736, %s17, 1
      %s738 = smul.addr %s737, 8
      %s739 = scalar_lea.vmem %s5, %s738
      // Predicated region
      $region33: #{preact_resnet_forward.30} parent=31 // pred_check
        %p740 = pneg %p108
      $region34: #{preact_resnet_forward.30} parent=31 // pred_check_branch
        %742 = sbr.rel (%p740) target = $region36
      $region35: #{preact_resnet_forward.30} parent=31 // pred_region
        %s743 = smul.u32 2, %s17
      $region36: #{preact_resnet_forward.30} parent=31 // pred_fallthru
        _
      // Predicated region
      $region37: #{preact_resnet_forward.30} parent=31 // pred_check
        %p744 = pneg %p134
      $region38: #{preact_resnet_forward.30} parent=31 // pred_check_branch
        %746 = sbr.rel (%p744) target = $region40
      $region39: #{preact_resnet_forward.30} parent=31 // pred_region
        _
      $region40: #{preact_resnet_forward.30} parent=31 // pred_fallthru
        _
      // Predicated region
      $region41: #{preact_resnet_forward.30} parent=31 // pred_check
        %p747 = pneg %p160
      $region42: #{preact_resnet_forward.30} parent=31 // pred_check_branch
        %749 = sbr.rel (%p747) target = $region44
      $region43: #{preact_resnet_forward.30} parent=31 // pred_region
        _
      $region44: #{preact_resnet_forward.30} parent=31 // pred_fallthru
        _
    $region32: #{preact_resnet_forward.30} parent=5 // pred_fallthru
      _
    %p750 = scmp.le.s32.totalorder 2, %s12
    // Predicated region
    $region45: #{preact_resnet_forward.30} parent=5 // pred_check
      %p751 = pneg %p750
    $region46: #{preact_resnet_forward.30} parent=5 // pred_check_branch
      %753 = sbr.rel (%p751) target = $region48
    $region47: #{preact_resnet_forward.30} parent=5 // pred_region
      %s754 = ssub.s32 %s12, 2
      // Predicated region
      $region49: #{preact_resnet_forward.30} parent=47 // pred_check
        %p755 = pneg %p114
      $region50: #{preact_resnet_forward.30} parent=47 // pred_check_branch
        %757 = sbr.rel (%p755) target = $region52
      $region51: #{preact_resnet_forward.30} parent=47 // pred_region
        %s758 = smul.u32 2, %s18
        %p759 = scmp.lt.s32.totalorder %s758, 3
        %s760 = scalar_select %p759, %s758, 3
        %s761 = smul.addr %s760, 4
        %s762 = scalar_lea.vmem %s3, %s761
      $region52: #{preact_resnet_forward.30} parent=47 // pred_fallthru
        _
      // Predicated region
      $region53: #{preact_resnet_forward.30} parent=47 // pred_check
        %p763 = pneg %p140
      $region54: #{preact_resnet_forward.30} parent=47 // pred_check_branch
        %765 = sbr.rel (%p763) target = $region56
      $region55: #{preact_resnet_forward.30} parent=47 // pred_region
        %p766 = scmp.lt.s32.totalorder %s18, 1
        %s767 = scalar_select %p766, %s18, 1
        %s768 = smul.addr %s767, 8
        %s769 = scalar_lea.vmem %s4, %s768
      $region56: #{preact_resnet_forward.30} parent=47 // pred_fallthru
        _
      // Predicated region
      $region57: #{preact_resnet_forward.30} parent=47 // pred_check
        %p770 = pneg %p166
      $region58: #{preact_resnet_forward.30} parent=47 // pred_check_branch
        %772 = sbr.rel (%p770) target = $region60
      $region59: #{preact_resnet_forward.30} parent=47 // pred_region
        %p773 = scmp.lt.s32.totalorder %s18, 1
        %s774 = scalar_select %p773, %s18, 1
        %s775 = smul.addr %s774, 8
        %s776 = scalar_lea.vmem %s5, %s775
      $region60: #{preact_resnet_forward.30} parent=47 // pred_fallthru
        _
    $region48: #{preact_resnet_forward.30} parent=5 // pred_fallthru
      _
  $region6: #{preact_resnet_forward.30} parent=0 // loop_footer
    %s16 = sadd.s32 1, %s12
  $region7: #{preact_resnet_forward.30} parent=0 // loop_footer_branch
    %11 = sbr.rel target = $region3
  $region8: #{preact_resnet_forward.30} parent=0 // loop_exit
    _

// kernel: preact_resnet_forward.31
$region0: #{preact_resnet_forward.31}
  #allocation0 [shape = 'u32[]', space=smem, size = 0x4, offset = 0x4, fixed_abs, tag = 'smem constant byte address 0x4 - core index']
  #allocation1 [shape = 'u32[72,128]{1,0:T(1,128)}', space=vmem, size = 0x9000, scoped, tag = 'internal scratch']
  %s0 = inlined_call_operand.vmem [shape: bf16[2,16,128], index: 0, kind: input, shape index: {}]
  %s1 = inlined_call_operand.vmem [shape: f32[16,128], index: 1, kind: input, shape index: {}]
  %s2 = inlined_call_operand.vmem [shape: f32[16,128], index: 2, kind: input, shape index: {}]
  %s3 = inlined_call_operand.vmem [shape: f32[1,128], index: 3, kind: input, shape index: {}]
  %s4 = inlined_call_operand.vmem [shape: f32[1,128], index: 4, kind: input, shape index: {}]
  %s5 = inlined_call_operand.vmem [shape: f32[128,128], index: 5, kind: input, shape index: {}]
  %s6 = inlined_call_operand.vmem [shape: f32[1,128], index: 6, kind: input, shape index: {}]
  %s7 = inlined_call_operand.hbm [shape: f32[2,128], index: 7, kind: output, shape index: {}]
  %s8 = sld [smem:[#allocation0]]
  $region38: #{preact_resnet_forward.31} parent=0
    _
  %s10 = ssub.s32 1, %s8
  %s11 = scalar_select 0, %s10, %s8
  $region1: #{preact_resnet_forward.31} parent=0
    #allocation2 [shape = 'u8[1024]{0}', space=vmem, size = 0x400, scoped, tag = 'output window, operand 0, single buffered']
    #allocation3 [shape = 's32[1]{0}', space=sflag, size = 0x4, scoped, tag = 'scoped memory for preact_resnet_forward.31']
    %12 = vsyncpa [#allocation3], 0
    // Predicated region
    $region2: #{preact_resnet_forward.31} parent=1 // pred_check
      _
    $region3: #{preact_resnet_forward.31} parent=1 // pred_check_branch
      %14 = sbr.rel (0) target = $region5
    $region4: #{preact_resnet_forward.31} parent=1 // pred_region
      _
    $region5: #{preact_resnet_forward.31} parent=1 // pred_fallthru
      _
    // Predicated region
    $region6: #{preact_resnet_forward.31} parent=1 // pred_check
      _
    $region7: #{preact_resnet_forward.31} parent=1 // pred_check_branch
      %16 = sbr.rel (0) target = $region9
    $region8: #{preact_resnet_forward.31} parent=1 // pred_region
      _
    $region9: #{preact_resnet_forward.31} parent=1 // pred_fallthru
      _
    // Predicated region
    $region10: #{preact_resnet_forward.31} parent=1 // pred_check
      _
    $region11: #{preact_resnet_forward.31} parent=1 // pred_check_branch
      %18 = sbr.rel (0) target = $region13
    $region12: #{preact_resnet_forward.31} parent=1 // pred_region
      _
    $region13: #{preact_resnet_forward.31} parent=1 // pred_fallthru
      _
    // Predicated region
    $region14: #{preact_resnet_forward.31} parent=1 // pred_check
      _
    $region15: #{preact_resnet_forward.31} parent=1 // pred_check_branch
      %20 = sbr.rel (0) target = $region17
    $region16: #{preact_resnet_forward.31} parent=1 // pred_region
      _
    $region17: #{preact_resnet_forward.31} parent=1 // pred_fallthru
      _
    // Predicated region
    $region18: #{preact_resnet_forward.31} parent=1 // pred_check
      _
    $region19: #{preact_resnet_forward.31} parent=1 // pred_check_branch
      %22 = sbr.rel (0) target = $region21
    $region20: #{preact_resnet_forward.31} parent=1 // pred_region
      _
    $region21: #{preact_resnet_forward.31} parent=1 // pred_fallthru
      _
    // Predicated region
    $region22: #{preact_resnet_forward.31} parent=1 // pred_check
      _
    $region23: #{preact_resnet_forward.31} parent=1 // pred_check_branch
      %24 = sbr.rel (0) target = $region25
    $region24: #{preact_resnet_forward.31} parent=1 // pred_region
      _
    $region25: #{preact_resnet_forward.31} parent=1 // pred_fallthru
      _
    // Predicated region
    $region26: #{preact_resnet_forward.31} parent=1 // pred_check
      _
    $region27: #{preact_resnet_forward.31} parent=1 // pred_check_branch
      %26 = sbr.rel (0) target = $region29
    $region28: #{preact_resnet_forward.31} parent=1 // pred_region
      _
    $region29: #{preact_resnet_forward.31} parent=1 // pred_fallthru
      _
    %v27 = vld [vmem:[%s1] sm:$0xff]
    %v28 = vld [vmem:[%s1 + $0x8] sm:$0xff]
    %v29 = vadd.f32 %v27, %v28
    %v30 = vrot.slane %v29, 4
    %v31 = vadd.f32 %v29, %v30
    %v32 = vrot.slane %v31, 2
    %v33 = vadd.f32 %v31, %v32
    %v34 = vrot.slane %v33, 1
    %v35 = vadd.f32 %v33, %v34
    %v36 = vld [vmem:[%s2] sm:$0xff]
    %v37 = vld [vmem:[%s2 + $0x8] sm:$0xff]
    %v38 = vadd.f32 %v36, %v37
    %v39 = vrot.slane %v38, 4
    %v40 = vadd.f32 %v38, %v39
    %v41 = vrot.slane %v40, 2
    %v42 = vadd.f32 %v40, %v41
    %v43 = vrot.slane %v42, 1
    %v44 = vadd.f32 %v42, %v43
    %v45 = vmul.f32 %v35, 0.03125
    %v46 = vmul.f32 %v44, 0.03125
    %v47 = vmul.f32 %v45, %v45
    %v48 = vsub.f32 %v46, %v47
    %v49 = vmax.f32 %v48, 0.0
    %v50 = vld [vmem:[%s3] sm:$0x1]
    %v51 = vadd.f32 %v49, 1e-05
    %v52 = vrsqrt.pop %v51
    %v53 = vmul.f32 %v52, %v51
    %v54 = vmul.f32 %v53, %v52
    %v55 = vmul.f32 0.5, %v54
    %v56 = vsub.f32 1.5, %v55
    %v57 = vmul.f32 %v52, %v56
    %vm58 = vweird.f32 %v51
    %vm59 = vweird.f32 %v52
    %vm60 = vmor %vm58, %vm59
    %v61 = vsel %vm60, %v52, %v57
    %v62 = vmul.f32 %v50, %v61
    %v63 = vld [vmem:[%s4] sm:$0x1]
    %v64 = vmul.f32 %v45, %v62
    %v65 = vsub.f32 %v63, %v64
    %v66 = vld [vmem:[%s0] sm:$0xf]
    %v67 = vld [vmem:[%s0 + $0x4] sm:$0xf]
    %v68 = vld [vmem:[%s0 + $0x8] sm:$0xf]
    %v69 = vld [vmem:[%s0 + $0xc] sm:$0xf]
    %v70 = vunpack.c.l.bf16 %v66
    %v71 = vunpack.c.l.bf16 %v67
    %v72 = vunpack.c.l.bf16 %v68
    %v73 = vunpack.c.l.bf16 %v69
    %v75 = vperm.slane %v62, 0
    %v77 = vmul.f32 %v70, %v75
    %v78 = vmul.f32 %v71, %v75
    %v79 = vmul.f32 %v72, %v75
    %v80 = vmul.f32 %v73, %v75
    %v82 = vperm.slane %v65, 0
    %v84 = vadd.f32 %v77, %v82
    %v85 = vadd.f32 %v78, %v82
    %v86 = vadd.f32 %v79, %v82
    %v87 = vadd.f32 %v80, %v82
    %v88 = vmax.f32 %v84, 0.0
    %v89 = vmax.f32 %v85, 0.0
    %v90 = vmax.f32 %v86, 0.0
    %v91 = vmax.f32 %v87, 0.0
    %v92 = vadd.f32 %v88, %v89
    %v93 = vrot.slane %v92, 4
    %v94 = vadd.f32 %v92, %v93
    %v95 = vrot.slane %v94, 2
    %v96 = vadd.f32 %v94, %v95
    %v97 = vrot.slane %v96, 1
    %v98 = vadd.f32 %v96, %v97
    %v99 = vadd.f32 %v90, %v91
    %v100 = vrot.slane %v99, 4
    %v101 = vadd.f32 %v99, %v100
    %v102 = vrot.slane %v101, 2
    %v103 = vadd.f32 %v101, %v102
    %v104 = vrot.slane %v103, 1
    %v105 = vadd.f32 %v103, %v104
    %v106 = vrcp.pop 16.0
    %v107 = vmul.f32 16.0, %v106
    %v108 = vsub.f32 1.0, %v107
    %v109 = vmul.f32 %v106, %v108
    %v110 = vadd.f32 %v106, %v109
    %vm111 = vweird.f32 %v106
    %v112 = vsel %vm111, %v106, %v110
    %v113 = vmul.f32 %v98, %v112
    %v114 = vmul.f32 %v105, %v112
    %v115 = vld [vmem:[%s5] sm:$0xff]
    %v116 = vld [vmem:[%s5 + $0x8] sm:$0xff]
    %v117 = vld [vmem:[%s5 + $0x10] sm:$0xff]
    %v118 = vld [vmem:[%s5 + $0x18] sm:$0xff]
    %v119 = vld [vmem:[%s5 + $0x20] sm:$0xff]
    %v120 = vld [vmem:[%s5 + $0x28] sm:$0xff]
    %v121 = vld [vmem:[%s5 + $0x30] sm:$0xff]
    %v122 = vld [vmem:[%s5 + $0x38] sm:$0xff]
    %v123 = vld [vmem:[%s5 + $0x40] sm:$0xff]
    %v124 = vld [vmem:[%s5 + $0x48] sm:$0xff]
    %v125 = vld [vmem:[%s5 + $0x50] sm:$0xff]
    %v126 = vld [vmem:[%s5 + $0x58] sm:$0xff]
    %v127 = vld [vmem:[%s5 + $0x60] sm:$0xff]
    %v128 = vld [vmem:[%s5 + $0x68] sm:$0xff]
    %v129 = vld [vmem:[%s5 + $0x70] sm:$0xff]
    %v130 = vld [vmem:[%s5 + $0x78] sm:$0xff]
    %v131 = vld [vmem:[%s6] sm:$0x1]
    %v133 = vperm.slane %v131, 0
    %vm137 = vcmask 1041409
    %v138 = vsel %vm137, %v114, %v113
    %140 = vmatpush.msra.mxu0 %v130
    %141 = vmatpush.msra.mxu0 %v129
    %142 = vmatpush.msra.mxu0 %v128
    %143 = vmatpush.msra.mxu0 %v127
    %144 = vmatpush.msra.mxu0 %v126
    %145 = vmatpush.msra.mxu0 %v125
    %146 = vmatpush.msra.mxu0 %v124
    %147 = vmatpush.msra.mxu0 %v123
    %148 = vmatpush.msra.mxu0 %v122
    %149 = vmatpush.msra.mxu0 %v121
    %150 = vmatpush.msra.mxu0 %v120
    %151 = vmatpush.msra.mxu0 %v119
    %152 = vmatpush.msra.mxu0 %v118
    %153 = vmatpush.msra.mxu0 %v117
    %154 = vmatpush.msra.mxu0 %v116
    %155 = vmatpush.msra.mxu0 %v115
    %156 = vmatmul.f32.gmra.mxu0 %v138
    %v157 = vpop.f32.mrf.mxu0
    %v158 = vadd.f32 %v133, %v157
    %159 = vdwg.mxu0
    %160 = vst [vmem:[#allocation2] sm:$0x3] %v158
    // Predicated region
    $region30: #{preact_resnet_forward.31} parent=1 // pred_check
      _
    $region31: #{preact_resnet_forward.31} parent=1 // pred_check_branch
      %162 = sbr.rel (0) target = $region33
    $region32: #{preact_resnet_forward.31} parent=1 // pred_region
      %164 = vsyncadd [#allocation3], 0
      %s166 = sshll.u32 [#allocation2], 4
      %s167 = int_to_ptr.vmem [resolvable:$true] %s166
      %s168 = sshll.u32 %s7, 4
      %s169 = int_to_ptr.hbm [resolvable:$true] %s168
      %171 = dma.vmem_to_hbm [thread:$0]  %s167, 32, %s169, [#allocation3]
    $region33: #{preact_resnet_forward.31} parent=1 // pred_fallthru
      _
    // Predicated region
    $region34: #{preact_resnet_forward.31} parent=1 // pred_check
      _
    $region35: #{preact_resnet_forward.31} parent=1 // pred_check_branch
      %173 = sbr.rel (0) target = $region37
    $region36: #{preact_resnet_forward.31} parent=1 // pred_region
      %175 = dma.done [#allocation3], 32
    $region37: #{preact_resnet_forward.31} parent=1 // pred_fallthru
      _
    %176 = vsyncpa [#allocation3], 1

</llo_original>
